<compile_context>
chip_gen: v6e
topology: v6e:2x2x1
jax: 0.10.0
libtpu: 0.0.40
codegen_flags: <defaults>
</compile_context>

<pallas_src>
from collections import OrderedDict

import numpy as np

import jax
import jax.numpy as jnp
from jax import lax
from jax.experimental import pallas as pl
from jax.experimental.pallas import tpu as pltpu


RETURN_LAYER_KEYS = ["stage0", "stage1", "stage2"]
FPN_IN_CHANNELS = [32, 64, 128]
FPN_OUT_CHANNELS = 64
CP = 128  # lane-dense padded FPN channel width (real out_channels = 64)


def _round_up(x, m):
    return (x + m - 1) // m * m


def _upsample_matrix(H, W):
    """0/1 matrix U with (U @ td_flat) == nearest-2x-upsample(td), flattened.

    Every row holds exactly one 1, so as a bf16 matmul it is an exact row
    gather of the (bf16) top-down feature."""
    Hc, Wc = H // 2, W // 2
    m = np.arange(H * W)
    src = (m // W // 2) * Wc + (m % W) // 2
    u = np.zeros((H * W, Hc * Wc), np.float32)
    u[m, src] = 1.0
    return u


# ---------------------------------------------------------------------------
# Fused 3-level FPN kernel (one pallas_call, grid over batch)
# ---------------------------------------------------------------------------
def make_fused_fpn_kernel(dims):
    """dims = [(H, W, Cin)] per FPN level, finest (0) -> coarsest (2)."""
    pads = []
    for (h, w, _c) in dims:
        top = _round_up(w + 1, 16)            # zero border above/below inner
        pads.append((top, top + h * w + top))

    def level_compute(lvl, x_ref, wi_ref, bi_ref, wl_ref, bl_ref,
                      u_ref, td_bf, out_ref, pad_ref, need_td):
        H, W, _cin = dims[lvl]
        top, n_pad = pads[lvl]
        HW = H * W

        # ---- lateral 1x1 conv (+bias): bf16 operands, f32 accumulate ------
        inner = jnp.dot(x_ref[...], wi_ref[...],
                        preferred_element_type=jnp.float32) + bi_ref[...]
        if td_bf is not None:
            # Fused nearest-2x upsample of the coarser top-down feature as a
            # bf16 0/1 row-gather matmul (exact; td stays VMEM-resident).
            inner = inner + jnp.dot(u_ref[...], td_bf,
                                    preferred_element_type=jnp.float32)

        # ---- zero-bordered flat copy of inner for the 3x3 taps ------------
        pad_ref[0:top, :] = jnp.zeros((top, CP), jnp.float32)
        pad_ref[top + HW:n_pad, :] = jnp.zeros((n_pad - top - HW, CP),
                                               jnp.float32)
        pad_ref[top:top + HW, :] = inner

        # ---- in-kernel left/right image-edge masks (no HBM mask inputs) ---
        assert W & (W - 1) == 0, "mask trick assumes power-of-two W"
        col = lax.broadcasted_iota(jnp.int32, (HW, 1), 0) & (W - 1)
        m_left = (col != 0).astype(jnp.bfloat16)        # 0 where w == 0
        m_right = (col != W - 1).astype(jnp.bfloat16)   # 0 where w == W - 1

        # ---- 3x3 "same" conv: 9 MXU matmuls accumulated in a local f32
        #      value, single store into the lane-dense output block ---------
        acc = jnp.zeros((HW, CP), jnp.float32) + bl_ref[...]
        for ky in range(3):
            for kx in range(3):
                dy, dx = ky - 1, kx - 1
                start = top + dy * W + dx
                slab = pad_ref[start:start + HW, :].astype(jnp.bfloat16)
                if dx == -1:
                    slab = slab * m_left
                elif dx == 1:
                    slab = slab * m_right
                acc = acc + jnp.dot(slab, wl_ref[ky * 3 + kx],
                                    preferred_element_type=jnp.float32)
        out_ref[...] = acc

        # Only the levels feeding a finer level need the bf16 top-down value.
        return inner.astype(jnp.bfloat16) if need_td else None

    def kernel(x0_ref, x1_ref, x2_ref,
               wi0_ref, bi0_ref, wl0_ref, bl0_ref,
               wi1_ref, bi1_ref, wl1_ref, bl1_ref,
               wi2_ref, bi2_ref, wl2_ref, bl2_ref,
               u0_ref, u1_ref,
               out0_ref, out1_ref, out2_ref,
               pad0_ref, pad1_ref, pad2_ref):
        td2 = level_compute(2, x2_ref, wi2_ref, bi2_ref, wl2_ref, bl2_ref,
                            None, None, out2_ref, pad2_ref, need_td=True)
        td1 = level_compute(1, x1_ref, wi1_ref, bi1_ref, wl1_ref, bl1_ref,
                            u1_ref, td2, out1_ref, pad1_ref, need_td=True)
        level_compute(0, x0_ref, wi0_ref, bi0_ref, wl0_ref, bl0_ref,
                      u0_ref, td1, out0_ref, pad0_ref, need_td=False)

    return kernel, pads


# ---------------------------------------------------------------------------
# Parameters (natural shapes mirroring the PyTorch module) + kernel prep
# ---------------------------------------------------------------------------
def init_params(key):
    params = {}
    scale = 0.05
    body_in = [4] + FPN_IN_CHANNELS[:-1]
    for i, (cin, cout) in enumerate(zip(body_in, FPN_IN_CHANNELS)):
        key, k1, k2 = jax.random.split(key, 3)
        params[f"body_w{i}"] = scale * jax.random.normal(k1, (cin, cout), jnp.float32)
        params[f"body_b{i}"] = scale * jax.random.normal(k2, (cout,), jnp.float32)
    for i, cin in enumerate(FPN_IN_CHANNELS):
        key, k1, k2, k3, k4 = jax.random.split(key, 5)
        params[f"inner_w{i}"] = scale * jax.random.normal(
            k1, (cin, FPN_OUT_CHANNELS), jnp.float32)
        params[f"inner_b{i}"] = scale * jax.random.normal(
            k2, (FPN_OUT_CHANNELS,), jnp.float32)
        params[f"layer_w{i}"] = scale * jax.random.normal(
            k3, (3, 3, FPN_OUT_CHANNELS, FPN_OUT_CHANNELS), jnp.float32)
        params[f"layer_b{i}"] = scale * jax.random.normal(
            k4, (FPN_OUT_CHANNELS,), jnp.float32)
    return params


def prepare_fpn_params(params):
    """Pad FPN channels 64 -> 128 (lane-dense stores) and cast matmul weights
    to bf16 (accumulation stays f32 inside the kernel).  Padded halves must
    stay exactly zero so nothing leaks into the top-down path."""
    out = dict(params)
    co = FPN_OUT_CHANNELS
    for i, cin in enumerate(FPN_IN_CHANNELS):
        wi = jnp.zeros((cin, CP), jnp.float32).at[:, :co].set(params[f"inner_w{i}"])
        bi = jnp.zeros((1, CP), jnp.float32).at[:, :co].set(params[f"inner_b{i}"])
        wl = jnp.zeros((9, CP, CP), jnp.float32).at[:, :co, :co].set(
            params[f"layer_w{i}"].reshape(9, co, co))
        bl = jnp.zeros((1, CP), jnp.float32).at[:, :co].set(params[f"layer_b{i}"])
        out[f"inner_w{i}"] = wi.astype(jnp.bfloat16)
        out[f"inner_b{i}"] = bi
        out[f"layer_w{i}"] = wl.astype(jnp.bfloat16)
        out[f"layer_b{i}"] = bl
    return out


# ---------------------------------------------------------------------------
# CustomSwinFPN (synthetic body + torchvision-style FPN, extra_blocks=None)
# ---------------------------------------------------------------------------
def synthetic_body(x_nchw, params):
    """Stand-in for the external Swin backbone: BHWC features at strides 1,2,4.
    Tiny-K 1x1 projections are intentionally left to XLA."""
    cur = jnp.transpose(x_nchw, (0, 2, 3, 1))     # NCHW -> NHWC
    feats = OrderedDict()
    for i, name in enumerate(RETURN_LAYER_KEYS):
        if i > 0:
            B, H, W, C = cur.shape
            cur = cur.reshape(B, H // 2, 2, W // 2, 2, C).mean(axis=(2, 4))
        cur = (jnp.einsum("bhwc,cd->bhwd", cur, params[f"body_w{i}"])
               + params[f"body_b{i}"])
        feats[name] = cur                          # BHWC, body contract
    return feats


def custom_swin_fpn_forward(x_nchw, params):
    # body -> dict of BHWC features; CustomSwinFPN permutes each to BCHW and
    # renames keys to '0','1',...  The Pallas FPN path stays channels-last
    # internally and emits NCHW only at the very end (semantically identical).
    features = synthetic_body(x_nchw, params)
    laterals = [features[k] for k in RETURN_LAYER_KEYS]   # finest -> coarsest
    B = laterals[0].shape[0]
    dims = [(t.shape[1], t.shape[2], t.shape[3]) for t in laterals]

    # bf16 cast + flatten hoisted out of the kernel (halves x DMA bytes).
    xf = [t.reshape(B, h * w, c).astype(jnp.bfloat16)
          for t, (h, w, c) in zip(laterals, dims)]

    # 0/1 nearest-2x expansion matrices (bf16: exact row gather on the MXU).
    u0 = jnp.asarray(_upsample_matrix(dims[0][0], dims[0][1]), jnp.bfloat16)
    u1 = jnp.asarray(_upsample_matrix(dims[1][0], dims[1][1]), jnp.bfloat16)

    kernel, pads = make_fused_fpn_kernel(dims)

    args = list(xf)
    in_specs = [pl.BlockSpec((None, h * w, c), lambda b: (b, 0, 0))
                for (h, w, c) in dims]
    for i in range(3):
        args += [params[f"inner_w{i}"], params[f"inner_b{i}"],
                 params[f"layer_w{i}"], params[f"layer_b{i}"]]
        in_specs += [
            pl.BlockSpec(params[f"inner_w{i}"].shape, lambda b: (0, 0)),
            pl.BlockSpec((1, CP), lambda b: (0, 0)),
            pl.BlockSpec((9, CP, CP), lambda b: (0, 0, 0)),
            pl.BlockSpec((1, CP), lambda b: (0, 0)),
        ]
    args += [u0, u1]
    in_specs += [pl.BlockSpec(u0.shape, lambda b: (0, 0)),
                 pl.BlockSpec(u1.shape, lambda b: (0, 0))]

    out_shape = tuple(jax.ShapeDtypeStruct((B, h * w, CP), jnp.float32)
                      for (h, w, _c) in dims)
    out_specs = tuple(pl.BlockSpec((None, h * w, CP), lambda b: (b, 0, 0))
                      for (h, w, _c) in dims)
    scratch_shapes = [pltpu.VMEM((n_pad, CP), jnp.float32)
                      for (_top, n_pad) in pads]

    outs = pl.pallas_call(
        kernel,
        out_shape=out_shape,
        grid=(B,),
        in_specs=in_specs,
        out_specs=out_specs,
        scratch_shapes=scratch_shapes,
        compiler_params=pltpu.CompilerParams(
            # batch across TensorCores (megacore).  At real Swin resolutions
            # add an HW-tiled "parallel" axis with a 1-row halo and re-derive
            # tile sizes against v7x's 64 MiB VMEM / raise vmem_limit_bytes
            # on v6e; all blocks here are far below the default scoped limit.
            dimension_semantics=("parallel",)),
    )(*args)

    # extra_blocks=None -> no extra levels.  Return OrderedDict of NCHW maps.
    out = OrderedDict()
    for i, (h, w, _c) in enumerate(dims):
        r = outs[i].reshape(B, h, w, CP)[..., :FPN_OUT_CHANNELS]
        out[str(i)] = jnp.transpose(r, (0, 3, 1, 2))   # NHWC -> NCHW
    return out


# ---------------------------------------------------------------------------
# Pure-XLA f32 reference (for a tolerance cross-check)
# ---------------------------------------------------------------------------
def reference_fpn(x_nchw, raw_params):
    feats = synthetic_body(x_nchw, raw_params)
    lats = [feats[k] for k in RETURN_LAYER_KEYS]
    n = len(lats)

    def conv1x1(t, w, b):
        return jnp.einsum("bhwc,cd->bhwd", t, w) + b

    def conv3x3(t, w, b):
        B, H, W, C = t.shape
        tp = jnp.pad(t, ((0, 0), (1, 1), (1, 1), (0, 0)))
        out = jnp.zeros((B, H, W, w.shape[-1]), jnp.float32)
        for ky in range(3):
            for kx in range(3):
                out = out + jnp.einsum("bhwc,cd->bhwd",
                                       tp[:, ky:ky + H, kx:kx + W, :], w[ky, kx])
        return out + b

    results = [None] * n
    last = conv1x1(lats[-1], raw_params[f"inner_w{n-1}"], raw_params[f"inner_b{n-1}"])
    results[-1] = conv3x3(last, raw_params[f"layer_w{n-1}"], raw_params[f"layer_b{n-1}"])
    for i in range(n - 2, -1, -1):
        up = jnp.repeat(jnp.repeat(last, 2, axis=1), 2, axis=2)
        last = conv1x1(lats[i], raw_params[f"inner_w{i}"], raw_params[f"inner_b{i}"]) + up
        results[i] = conv3x3(last, raw_params[f"layer_w{i}"], raw_params[f"layer_b{i}"])

    out = OrderedDict()
    for i in range(n):
        out[str(i)] = jnp.transpose(results[i], (0, 3, 1, 2))
    return out


if __name__ == "__main__":
    key = jax.random.PRNGKey(0)
    key, kx = jax.random.split(key)
    x = jax.random.normal(kx, (2, 4, 16, 16), jnp.float32)  # NCHW input

    raw_params = init_params(key)
    params = prepare_fpn_params(raw_params)

    fwd = jax.jit(custom_swin_fpn_forward)
    fpn_out = fwd(x, params)
    fpn_out = jax.tree_util.tree_map(jax.block_until_ready, fpn_out)

    # expected shapes ('0': stride-1, '1': /2, '2': /4), C=64, NCHW
    assert fpn_out["0"].shape == (2, 64, 16, 16)
    assert fpn_out["1"].shape == (2, 64, 8, 8)
    assert fpn_out["2"].shape == (2, 64, 4, 4)

    # numerical check vs. the pure-XLA f32 reference (bf16 matmul inputs in
    # the kernel -> loose, but intentional, precision contract)
    ref = reference_fpn(x, raw_params)
    for k in fpn_out:
        np.testing.assert_allclose(np.asarray(fpn_out[k]), np.asarray(ref[k]),
                                   rtol=5e-2, atol=2e-2)

    print("KERNEL_OK")
</pallas_src>

<mosaic_0001>
module attributes {stable_mosaic.version = 11 : i64} {
  func.func @kernel(%arg0: i32, %arg1: memref<1x256x32xbf16, #tpu.memory_space<vmem>>, %arg2: memref<1x64x64xbf16, #tpu.memory_space<vmem>>, %arg3: memref<1x16x128xbf16, #tpu.memory_space<vmem>>, %arg4: memref<32x128xbf16, #tpu.memory_space<vmem>>, %arg5: memref<1x128xf32, #tpu.memory_space<vmem>>, %arg6: memref<9x128x128xbf16, #tpu.memory_space<vmem>>, %arg7: memref<1x128xf32, #tpu.memory_space<vmem>>, %arg8: memref<64x128xbf16, #tpu.memory_space<vmem>>, %arg9: memref<1x128xf32, #tpu.memory_space<vmem>>, %arg10: memref<9x128x128xbf16, #tpu.memory_space<vmem>>, %arg11: memref<1x128xf32, #tpu.memory_space<vmem>>, %arg12: memref<128x128xbf16, #tpu.memory_space<vmem>>, %arg13: memref<1x128xf32, #tpu.memory_space<vmem>>, %arg14: memref<9x128x128xbf16, #tpu.memory_space<vmem>>, %arg15: memref<1x128xf32, #tpu.memory_space<vmem>>, %arg16: memref<256x64xbf16, #tpu.memory_space<vmem>>, %arg17: memref<64x16xbf16, #tpu.memory_space<vmem>>, %arg18: memref<1x256x128xf32, #tpu.memory_space<vmem>>, %arg19: memref<1x64x128xf32, #tpu.memory_space<vmem>>, %arg20: memref<1x16x128xf32, #tpu.memory_space<vmem>>, %arg21: memref<320x128xf32, #tpu.memory_space<vmem>>, %arg22: memref<96x128xf32, #tpu.memory_space<vmem>>, %arg23: memref<48x128xf32, #tpu.memory_space<vmem>>) attributes {dimension_semantics = [#tpu.dimension_semantics<parallel>], iteration_bounds = array<i64: 2>, scalar_prefetch = 0 : i64, scratch_operands = 3 : i64, tpu.core_type = #tpu.core_type<tc>, window_params = [{transform_indices = @transform_0, window_bounds = array<i64: 1, 256, 32>}, {transform_indices = @transform_1, window_bounds = array<i64: 1, 64, 64>}, {transform_indices = @transform_2, window_bounds = array<i64: 1, 16, 128>}, {pipeline_mode = #tpu.pipeline_mode<synchronous>, transform_indices = @transform_3, window_bounds = array<i64: 32, 128>}, {pipeline_mode = #tpu.pipeline_mode<synchronous>, transform_indices = @transform_4, window_bounds = array<i64: 1, 128>}, {pipeline_mode = #tpu.pipeline_mode<synchronous>, transform_indices = @transform_5, window_bounds = array<i64: 9, 128, 128>}, {pipeline_mode = #tpu.pipeline_mode<synchronous>, transform_indices = @transform_6, window_bounds = array<i64: 1, 128>}, {pipeline_mode = #tpu.pipeline_mode<synchronous>, transform_indices = @transform_7, window_bounds = array<i64: 64, 128>}, {pipeline_mode = #tpu.pipeline_mode<synchronous>, transform_indices = @transform_8, window_bounds = array<i64: 1, 128>}, {pipeline_mode = #tpu.pipeline_mode<synchronous>, transform_indices = @transform_9, window_bounds = array<i64: 9, 128, 128>}, {pipeline_mode = #tpu.pipeline_mode<synchronous>, transform_indices = @transform_10, window_bounds = array<i64: 1, 128>}, {pipeline_mode = #tpu.pipeline_mode<synchronous>, transform_indices = @transform_11, window_bounds = array<i64: 128, 128>}, {pipeline_mode = #tpu.pipeline_mode<synchronous>, transform_indices = @transform_12, window_bounds = array<i64: 1, 128>}, {pipeline_mode = #tpu.pipeline_mode<synchronous>, transform_indices = @transform_13, window_bounds = array<i64: 9, 128, 128>}, {pipeline_mode = #tpu.pipeline_mode<synchronous>, transform_indices = @transform_14, window_bounds = array<i64: 1, 128>}, {pipeline_mode = #tpu.pipeline_mode<synchronous>, transform_indices = @transform_15, window_bounds = array<i64: 256, 64>}, {pipeline_mode = #tpu.pipeline_mode<synchronous>, transform_indices = @transform_16, window_bounds = array<i64: 64, 16>}, {transform_indices = @transform_17, window_bounds = array<i64: 1, 256, 128>}, {transform_indices = @transform_18, window_bounds = array<i64: 1, 64, 128>}, {transform_indices = @transform_19, window_bounds = array<i64: 1, 16, 128>}]} {
    %c0 = arith.constant 0 : index
    %c0_0 = arith.constant 0 : index
    %c0_1 = arith.constant 0 : index
    %0 = vector.load %arg3[%c0, %c0_0, %c0_1] : memref<1x16x128xbf16, #tpu.memory_space<vmem>>, vector<1x16x128xbf16>
    %1 = vector.shape_cast %0 : vector<1x16x128xbf16> to vector<16x128xbf16>
    %c0_2 = arith.constant 0 : index
    %c0_3 = arith.constant 0 : index
    %2 = vector.load %arg12[%c0_2, %c0_3] : memref<128x128xbf16, #tpu.memory_space<vmem>>, vector<128x128xbf16>
    %cst = arith.constant dense<0.000000e+00> : vector<16x128xf32>
    %3 = tpu.matmul %1, %2, %cst {dimension_numbers = #tpu.dot_dimension_numbers<[1], [0], [0], [1], [0, 0, 1, 1], [], []>} : vector<16x128xbf16>, vector<128x128xbf16>, vector<16x128xf32> -> vector<16x128xf32>
    %c0_4 = arith.constant 0 : index
    %c0_5 = arith.constant 0 : index
    %4 = vector.load %arg13[%c0_4, %c0_5] : memref<1x128xf32, #tpu.memory_space<vmem>>, vector<1x128xf32>
    %5 = vector.broadcast %4 : vector<1x128xf32> to vector<16x128xf32>
    %6 = arith.addf %3, %5 : vector<16x128xf32>
    %cst_6 = arith.constant 0.000000e+00 : f32
    %7 = vector.broadcast %cst_6 : f32 to vector<16x128xf32>
    %c0_7 = arith.constant 0 : index
    %c0_8 = arith.constant 0 : index
    %8 = vector.load %arg23[%c0_7, %c0_8] : memref<48x128xf32, #tpu.memory_space<vmem>>, vector<16x128xf32>
    tpu.vector_store %arg23[%c0_7, %c0_8], %7 {strides = array<i32>} : memref<48x128xf32, #tpu.memory_space<vmem>>, vector<16x128xf32>,
    %cst_9 = arith.constant 0.000000e+00 : f32
    %9 = vector.broadcast %cst_9 : f32 to vector<16x128xf32>
    %c32 = arith.constant 32 : index
    %c0_10 = arith.constant 0 : index
    %10 = vector.load %arg23[%c32, %c0_10] : memref<48x128xf32, #tpu.memory_space<vmem>>, vector<16x128xf32>
    tpu.vector_store %arg23[%c32, %c0_10], %9 {strides = array<i32>} : memref<48x128xf32, #tpu.memory_space<vmem>>, vector<16x128xf32>,
    %c16 = arith.constant 16 : index
    %c0_11 = arith.constant 0 : index
    %11 = vector.load %arg23[%c16, %c0_11] : memref<48x128xf32, #tpu.memory_space<vmem>>, vector<16x128xf32>
    tpu.vector_store %arg23[%c16, %c0_11], %6 {strides = array<i32>} : memref<48x128xf32, #tpu.memory_space<vmem>>, vector<16x128xf32>,
    %12 = tpu.iota {dimensions = array<i32: 0>} : vector<16x1xi32>
    %c3_i32 = arith.constant 3 : i32
    %13 = vector.broadcast %c3_i32 : i32 to vector<16x1xi32>
    %14 = arith.andi %12, %13 : vector<16x1xi32>
    %c0_i32 = arith.constant 0 : i32
    %15 = vector.broadcast %c0_i32 : i32 to vector<16x1xi32>
    %16 = arith.cmpi ne, %14, %15 : vector<16x1xi32>
    %17 = arith.extui %16 : vector<16x1xi1> to vector<16x1xi32>
    %18 = arith.sitofp %17 : vector<16x1xi32> to vector<16x1xf32>
    %19 = arith.truncf %18 : vector<16x1xf32> to vector<16x1xbf16>
    %c3_i32_12 = arith.constant 3 : i32
    %20 = vector.broadcast %c3_i32_12 : i32 to vector<16x1xi32>
    %21 = arith.cmpi ne, %14, %20 : vector<16x1xi32>
    %22 = arith.extui %21 : vector<16x1xi1> to vector<16x1xi32>
    %23 = arith.sitofp %22 : vector<16x1xi32> to vector<16x1xf32>
    %24 = arith.truncf %23 : vector<16x1xf32> to vector<16x1xbf16>
    %cst_13 = arith.constant 0.000000e+00 : f32
    %25 = vector.broadcast %cst_13 : f32 to vector<16x128xf32>
    %c0_14 = arith.constant 0 : index
    %c0_15 = arith.constant 0 : index
    %26 = vector.load %arg15[%c0_14, %c0_15] : memref<1x128xf32, #tpu.memory_space<vmem>>, vector<1x128xf32>
    %27 = vector.broadcast %26 : vector<1x128xf32> to vector<16x128xf32>
    %28 = arith.addf %25, %27 : vector<16x128xf32>
    %c11 = arith.constant 11 : index
    %c0_16 = arith.constant 0 : index
    %29 = vector.load %arg23[%c11, %c0_16] : memref<48x128xf32, #tpu.memory_space<vmem>>, vector<16x128xf32>
    %30 = arith.truncf %29 : vector<16x128xf32> to vector<16x128xbf16>
    %31 = vector.broadcast %19 : vector<16x1xbf16> to vector<16x128xbf16>
    %32 = arith.mulf %30, %31 : vector<16x128xbf16>
    %c0_17 = arith.constant 0 : index
    %c0_18 = arith.constant 0 : index
    %c0_19 = arith.constant 0 : index
    %33 = vector.load %arg14[%c0_17, %c0_18, %c0_19] : memref<9x128x128xbf16, #tpu.memory_space<vmem>>, vector<1x128x128xbf16>
    %34 = vector.shape_cast %33 : vector<1x128x128xbf16> to vector<128x128xbf16>
    %cst_20 = arith.constant dense<0.000000e+00> : vector<16x128xf32>
    %35 = tpu.matmul %32, %34, %cst_20 {dimension_numbers = #tpu.dot_dimension_numbers<[1], [0], [0], [1], [0, 0, 1, 1], [], []>} : vector<16x128xbf16>, vector<128x128xbf16>, vector<16x128xf32> -> vector<16x128xf32>
    %36 = arith.addf %28, %35 : vector<16x128xf32>
    %c12 = arith.constant 12 : index
    %c0_21 = arith.constant 0 : index
    %37 = vector.load %arg23[%c12, %c0_21] : memref<48x128xf32, #tpu.memory_space<vmem>>, vector<16x128xf32>
    %38 = arith.truncf %37 : vector<16x128xf32> to vector<16x128xbf16>
    %c1 = arith.constant 1 : index
    %c0_22 = arith.constant 0 : index
    %c0_23 = arith.constant 0 : index
    %39 = vector.load %arg14[%c1, %c0_22, %c0_23] : memref<9x128x128xbf16, #tpu.memory_space<vmem>>, vector<1x128x128xbf16>
    %40 = vector.shape_cast %39 : vector<1x128x128xbf16> to vector<128x128xbf16>
    %cst_24 = arith.constant dense<0.000000e+00> : vector<16x128xf32>
    %41 = tpu.matmul %38, %40, %cst_24 {dimension_numbers = #tpu.dot_dimension_numbers<[1], [0], [0], [1], [0, 0, 1, 1], [], []>} : vector<16x128xbf16>, vector<128x128xbf16>, vector<16x128xf32> -> vector<16x128xf32>
    %42 = arith.addf %36, %41 : vector<16x128xf32>
    %c13 = arith.constant 13 : index
    %c0_25 = arith.constant 0 : index
    %43 = vector.load %arg23[%c13, %c0_25] : memref<48x128xf32, #tpu.memory_space<vmem>>, vector<16x128xf32>
    %44 = arith.truncf %43 : vector<16x128xf32> to vector<16x128xbf16>
    %45 = vector.broadcast %24 : vector<16x1xbf16> to vector<16x128xbf16>
    %46 = arith.mulf %44, %45 : vector<16x128xbf16>
    %c2 = arith.constant 2 : index
    %c0_26 = arith.constant 0 : index
    %c0_27 = arith.constant 0 : index
    %47 = vector.load %arg14[%c2, %c0_26, %c0_27] : memref<9x128x128xbf16, #tpu.memory_space<vmem>>, vector<1x128x128xbf16>
    %48 = vector.shape_cast %47 : vector<1x128x128xbf16> to vector<128x128xbf16>
    %cst_28 = arith.constant dense<0.000000e+00> : vector<16x128xf32>
    %49 = tpu.matmul %46, %48, %cst_28 {dimension_numbers = #tpu.dot_dimension_numbers<[1], [0], [0], [1], [0, 0, 1, 1], [], []>} : vector<16x128xbf16>, vector<128x128xbf16>, vector<16x128xf32> -> vector<16x128xf32>
    %50 = arith.addf %42, %49 : vector<16x128xf32>
    %c15 = arith.constant 15 : index
    %c0_29 = arith.constant 0 : index
    %51 = vector.load %arg23[%c15, %c0_29] : memref<48x128xf32, #tpu.memory_space<vmem>>, vector<16x128xf32>
    %52 = arith.truncf %51 : vector<16x128xf32> to vector<16x128xbf16>
    %53 = vector.broadcast %19 : vector<16x1xbf16> to vector<16x128xbf16>
    %54 = arith.mulf %52, %53 : vector<16x128xbf16>
    %c3 = arith.constant 3 : index
    %c0_30 = arith.constant 0 : index
    %c0_31 = arith.constant 0 : index
    %55 = vector.load %arg14[%c3, %c0_30, %c0_31] : memref<9x128x128xbf16, #tpu.memory_space<vmem>>, vector<1x128x128xbf16>
    %56 = vector.shape_cast %55 : vector<1x128x128xbf16> to vector<128x128xbf16>
    %cst_32 = arith.constant dense<0.000000e+00> : vector<16x128xf32>
    %57 = tpu.matmul %54, %56, %cst_32 {dimension_numbers = #tpu.dot_dimension_numbers<[1], [0], [0], [1], [0, 0, 1, 1], [], []>} : vector<16x128xbf16>, vector<128x128xbf16>, vector<16x128xf32> -> vector<16x128xf32>
    %58 = arith.addf %50, %57 : vector<16x128xf32>
    %c16_33 = arith.constant 16 : index
    %c0_34 = arith.constant 0 : index
    %59 = vector.load %arg23[%c16_33, %c0_34] : memref<48x128xf32, #tpu.memory_space<vmem>>, vector<16x128xf32>
    %60 = arith.truncf %59 : vector<16x128xf32> to vector<16x128xbf16>
    %c4 = arith.constant 4 : index
    %c0_35 = arith.constant 0 : index
    %c0_36 = arith.constant 0 : index
    %61 = vector.load %arg14[%c4, %c0_35, %c0_36] : memref<9x128x128xbf16, #tpu.memory_space<vmem>>, vector<1x128x128xbf16>
    %62 = vector.shape_cast %61 : vector<1x128x128xbf16> to vector<128x128xbf16>
    %cst_37 = arith.constant dense<0.000000e+00> : vector<16x128xf32>
    %63 = tpu.matmul %60, %62, %cst_37 {dimension_numbers = #tpu.dot_dimension_numbers<[1], [0], [0], [1], [0, 0, 1, 1], [], []>} : vector<16x128xbf16>, vector<128x128xbf16>, vector<16x128xf32> -> vector<16x128xf32>
    %64 = arith.addf %58, %63 : vector<16x128xf32>
    %c17 = arith.constant 17 : index
    %c0_38 = arith.constant 0 : index
    %65 = vector.load %arg23[%c17, %c0_38] : memref<48x128xf32, #tpu.memory_space<vmem>>, vector<16x128xf32>
    %66 = arith.truncf %65 : vector<16x128xf32> to vector<16x128xbf16>
    %67 = vector.broadcast %24 : vector<16x1xbf16> to vector<16x128xbf16>
    %68 = arith.mulf %66, %67 : vector<16x128xbf16>
    %c5 = arith.constant 5 : index
    %c0_39 = arith.constant 0 : index
    %c0_40 = arith.constant 0 : index
    %69 = vector.load %arg14[%c5, %c0_39, %c0_40] : memref<9x128x128xbf16, #tpu.memory_space<vmem>>, vector<1x128x128xbf16>
    %70 = vector.shape_cast %69 : vector<1x128x128xbf16> to vector<128x128xbf16>
    %cst_41 = arith.constant dense<0.000000e+00> : vector<16x128xf32>
    %71 = tpu.matmul %68, %70, %cst_41 {dimension_numbers = #tpu.dot_dimension_numbers<[1], [0], [0], [1], [0, 0, 1, 1], [], []>} : vector<16x128xbf16>, vector<128x128xbf16>, vector<16x128xf32> -> vector<16x128xf32>
    %72 = arith.addf %64, %71 : vector<16x128xf32>
    %c19 = arith.constant 19 : index
    %c0_42 = arith.constant 0 : index
    %73 = vector.load %arg23[%c19, %c0_42] : memref<48x128xf32, #tpu.memory_space<vmem>>, vector<16x128xf32>
    %74 = arith.truncf %73 : vector<16x128xf32> to vector<16x128xbf16>
    %75 = vector.broadcast %19 : vector<16x1xbf16> to vector<16x128xbf16>
    %76 = arith.mulf %74, %75 : vector<16x128xbf16>
    %c6 = arith.constant 6 : index
    %c0_43 = arith.constant 0 : index
    %c0_44 = arith.constant 0 : index
    %77 = vector.load %arg14[%c6, %c0_43, %c0_44] : memref<9x128x128xbf16, #tpu.memory_space<vmem>>, vector<1x128x128xbf16>
    %78 = vector.shape_cast %77 : vector<1x128x128xbf16> to vector<128x128xbf16>
    %cst_45 = arith.constant dense<0.000000e+00> : vector<16x128xf32>
    %79 = tpu.matmul %76, %78, %cst_45 {dimension_numbers = #tpu.dot_dimension_numbers<[1], [0], [0], [1], [0, 0, 1, 1], [], []>} : vector<16x128xbf16>, vector<128x128xbf16>, vector<16x128xf32> -> vector<16x128xf32>
    %80 = arith.addf %72, %79 : vector<16x128xf32>
    %c20 = arith.constant 20 : index
    %c0_46 = arith.constant 0 : index
    %81 = vector.load %arg23[%c20, %c0_46] : memref<48x128xf32, #tpu.memory_space<vmem>>, vector<16x128xf32>
    %82 = arith.truncf %81 : vector<16x128xf32> to vector<16x128xbf16>
    %c7 = arith.constant 7 : index
    %c0_47 = arith.constant 0 : index
    %c0_48 = arith.constant 0 : index
    %83 = vector.load %arg14[%c7, %c0_47, %c0_48] : memref<9x128x128xbf16, #tpu.memory_space<vmem>>, vector<1x128x128xbf16>
    %84 = vector.shape_cast %83 : vector<1x128x128xbf16> to vector<128x128xbf16>
    %cst_49 = arith.constant dense<0.000000e+00> : vector<16x128xf32>
    %85 = tpu.matmul %82, %84, %cst_49 {dimension_numbers = #tpu.dot_dimension_numbers<[1], [0], [0], [1], [0, 0, 1, 1], [], []>} : vector<16x128xbf16>, vector<128x128xbf16>, vector<16x128xf32> -> vector<16x128xf32>
    %86 = arith.addf %80, %85 : vector<16x128xf32>
    %c21 = arith.constant 21 : index
    %c0_50 = arith.constant 0 : index
    %87 = vector.load %arg23[%c21, %c0_50] : memref<48x128xf32, #tpu.memory_space<vmem>>, vector<16x128xf32>
    %88 = arith.truncf %87 : vector<16x128xf32> to vector<16x128xbf16>
    %89 = vector.broadcast %24 : vector<16x1xbf16> to vector<16x128xbf16>
    %90 = arith.mulf %88, %89 : vector<16x128xbf16>
    %c8 = arith.constant 8 : index
    %c0_51 = arith.constant 0 : index
    %c0_52 = arith.constant 0 : index
    %91 = vector.load %arg14[%c8, %c0_51, %c0_52] : memref<9x128x128xbf16, #tpu.memory_space<vmem>>, vector<1x128x128xbf16>
    %92 = vector.shape_cast %91 : vector<1x128x128xbf16> to vector<128x128xbf16>
    %cst_53 = arith.constant dense<0.000000e+00> : vector<16x128xf32>
    %93 = tpu.matmul %90, %92, %cst_53 {dimension_numbers = #tpu.dot_dimension_numbers<[1], [0], [0], [1], [0, 0, 1, 1], [], []>} : vector<16x128xbf16>, vector<128x128xbf16>, vector<16x128xf32> -> vector<16x128xf32>
    %94 = arith.addf %86, %93 : vector<16x128xf32>
    %c0_54 = arith.constant 0 : index
    %c0_55 = arith.constant 0 : index
    %c0_56 = arith.constant 0 : index
    %95 = vector.load %arg20[%c0_54, %c0_55, %c0_56] : memref<1x16x128xf32, #tpu.memory_space<vmem>>, vector<1x16x128xf32>
    %96 = vector.shape_cast %95 : vector<1x16x128xf32> to vector<16x128xf32>
    %97 = vector.shape_cast %94 : vector<16x128xf32> to vector<1x16x128xf32>
    tpu.vector_store %arg20[%c0_54, %c0_55, %c0_56], %97 {strides = array<i32>} : memref<1x16x128xf32, #tpu.memory_space<vmem>>, vector<1x16x128xf32>,
    %98 = arith.truncf %6 : vector<16x128xf32> to vector<16x128xbf16>
    %c0_57 = arith.constant 0 : index
    %c0_58 = arith.constant 0 : index
    %c0_59 = arith.constant 0 : index
    %99 = vector.load %arg2[%c0_57, %c0_58, %c0_59] : memref<1x64x64xbf16, #tpu.memory_space<vmem>>, vector<1x64x64xbf16>
    %100 = vector.shape_cast %99 : vector<1x64x64xbf16> to vector<64x64xbf16>
    %c0_60 = arith.constant 0 : index
    %c0_61 = arith.constant 0 : index
    %101 = vector.load %arg8[%c0_60, %c0_61] : memref<64x128xbf16, #tpu.memory_space<vmem>>, vector<64x128xbf16>
    %cst_62 = arith.constant dense<0.000000e+00> : vector<64x128xf32>
    %102 = tpu.matmul %100, %101, %cst_62 {dimension_numbers = #tpu.dot_dimension_numbers<[1], [0], [0], [1], [0, 0, 1, 1], [], []>} : vector<64x64xbf16>, vector<64x128xbf16>, vector<64x128xf32> -> vector<64x128xf32>
    %c0_63 = arith.constant 0 : index
    %c0_64 = arith.constant 0 : index
    %103 = vector.load %arg9[%c0_63, %c0_64] : memref<1x128xf32, #tpu.memory_space<vmem>>, vector<1x128xf32>
    %104 = vector.broadcast %103 : vector<1x128xf32> to vector<64x128xf32>
    %105 = arith.addf %102, %104 : vector<64x128xf32>
    %c0_65 = arith.constant 0 : index
    %c0_66 = arith.constant 0 : index
    %106 = vector.load %arg17[%c0_65, %c0_66] : memref<64x16xbf16, #tpu.memory_space<vmem>>, vector<64x16xbf16>
    %cst_67 = arith.constant dense<0.000000e+00> : vector<64x128xf32>
    %107 = tpu.matmul %106, %98, %cst_67 {dimension_numbers = #tpu.dot_dimension_numbers<[1], [0], [0], [1], [0, 0, 1, 1], [], []>} : vector<64x16xbf16>, vector<16x128xbf16>, vector<64x128xf32> -> vector<64x128xf32>
    %108 = arith.addf %105, %107 : vector<64x128xf32>
    %cst_68 = arith.constant 0.000000e+00 : f32
    %109 = vector.broadcast %cst_68 : f32 to vector<16x128xf32>
    %c0_69 = arith.constant 0 : index
    %c0_70 = arith.constant 0 : index
    %110 = vector.load %arg22[%c0_69, %c0_70] : memref<96x128xf32, #tpu.memory_space<vmem>>, vector<16x128xf32>
    tpu.vector_store %arg22[%c0_69, %c0_70], %109 {strides = array<i32>} : memref<96x128xf32, #tpu.memory_space<vmem>>, vector<16x128xf32>,
    %cst_71 = arith.constant 0.000000e+00 : f32
    %111 = vector.broadcast %cst_71 : f32 to vector<16x128xf32>
    %c80 = arith.constant 80 : index
    %c0_72 = arith.constant 0 : index
    %112 = vector.load %arg22[%c80, %c0_72] : memref<96x128xf32, #tpu.memory_space<vmem>>, vector<16x128xf32>
    tpu.vector_store %arg22[%c80, %c0_72], %111 {strides = array<i32>} : memref<96x128xf32, #tpu.memory_space<vmem>>, vector<16x128xf32>,
    %c16_73 = arith.constant 16 : index
    %c0_74 = arith.constant 0 : index
    %113 = vector.load %arg22[%c16_73, %c0_74] : memref<96x128xf32, #tpu.memory_space<vmem>>, vector<64x128xf32>
    tpu.vector_store %arg22[%c16_73, %c0_74], %108 {strides = array<i32>} : memref<96x128xf32, #tpu.memory_space<vmem>>, vector<64x128xf32>,
    %114 = tpu.iota {dimensions = array<i32: 0>} : vector<64x1xi32>
    %c7_i32 = arith.constant 7 : i32
    %115 = vector.broadcast %c7_i32 : i32 to vector<64x1xi32>
    %116 = arith.andi %114, %115 : vector<64x1xi32>
    %c0_i32_75 = arith.constant 0 : i32
    %117 = vector.broadcast %c0_i32_75 : i32 to vector<64x1xi32>
    %118 = arith.cmpi ne, %116, %117 : vector<64x1xi32>
    %119 = arith.extui %118 : vector<64x1xi1> to vector<64x1xi32>
    %120 = arith.sitofp %119 : vector<64x1xi32> to vector<64x1xf32>
    %121 = arith.truncf %120 : vector<64x1xf32> to vector<64x1xbf16>
    %c7_i32_76 = arith.constant 7 : i32
    %122 = vector.broadcast %c7_i32_76 : i32 to vector<64x1xi32>
    %123 = arith.cmpi ne, %116, %122 : vector<64x1xi32>
    %124 = arith.extui %123 : vector<64x1xi1> to vector<64x1xi32>
    %125 = arith.sitofp %124 : vector<64x1xi32> to vector<64x1xf32>
    %126 = arith.truncf %125 : vector<64x1xf32> to vector<64x1xbf16>
    %cst_77 = arith.constant 0.000000e+00 : f32
    %127 = vector.broadcast %cst_77 : f32 to vector<64x128xf32>
    %c0_78 = arith.constant 0 : index
    %c0_79 = arith.constant 0 : index
    %128 = vector.load %arg11[%c0_78, %c0_79] : memref<1x128xf32, #tpu.memory_space<vmem>>, vector<1x128xf32>
    %129 = vector.broadcast %128 : vector<1x128xf32> to vector<64x128xf32>
    %130 = arith.addf %127, %129 : vector<64x128xf32>
    %c7_80 = arith.constant 7 : index
    %c0_81 = arith.constant 0 : index
    %131 = vector.load %arg22[%c7_80, %c0_81] : memref<96x128xf32, #tpu.memory_space<vmem>>, vector<64x128xf32>
    %132 = arith.truncf %131 : vector<64x128xf32> to vector<64x128xbf16>
    %133 = vector.broadcast %121 : vector<64x1xbf16> to vector<64x128xbf16>
    %134 = arith.mulf %132, %133 : vector<64x128xbf16>
    %c0_82 = arith.constant 0 : index
    %c0_83 = arith.constant 0 : index
    %c0_84 = arith.constant 0 : index
    %135 = vector.load %arg10[%c0_82, %c0_83, %c0_84] : memref<9x128x128xbf16, #tpu.memory_space<vmem>>, vector<1x128x128xbf16>
    %136 = vector.shape_cast %135 : vector<1x128x128xbf16> to vector<128x128xbf16>
    %cst_85 = arith.constant dense<0.000000e+00> : vector<64x128xf32>
    %137 = tpu.matmul %134, %136, %cst_85 {dimension_numbers = #tpu.dot_dimension_numbers<[1], [0], [0], [1], [0, 0, 1, 1], [], []>} : vector<64x128xbf16>, vector<128x128xbf16>, vector<64x128xf32> -> vector<64x128xf32>
    %138 = arith.addf %130, %137 : vector<64x128xf32>
    %c8_86 = arith.constant 8 : index
    %c0_87 = arith.constant 0 : index
    %139 = vector.load %arg22[%c8_86, %c0_87] : memref<96x128xf32, #tpu.memory_space<vmem>>, vector<64x128xf32>
    %140 = arith.truncf %139 : vector<64x128xf32> to vector<64x128xbf16>
    %c1_88 = arith.constant 1 : index
    %c0_89 = arith.constant 0 : index
    %c0_90 = arith.constant 0 : index
    %141 = vector.load %arg10[%c1_88, %c0_89, %c0_90] : memref<9x128x128xbf16, #tpu.memory_space<vmem>>, vector<1x128x128xbf16>
    %142 = vector.shape_cast %141 : vector<1x128x128xbf16> to vector<128x128xbf16>
    %cst_91 = arith.constant dense<0.000000e+00> : vector<64x128xf32>
    %143 = tpu.matmul %140, %142, %cst_91 {dimension_numbers = #tpu.dot_dimension_numbers<[1], [0], [0], [1], [0, 0, 1, 1], [], []>} : vector<64x128xbf16>, vector<128x128xbf16>, vector<64x128xf32> -> vector<64x128xf32>
    %144 = arith.addf %138, %143 : vector<64x128xf32>
    %c9 = arith.constant 9 : index
    %c0_92 = arith.constant 0 : index
    %145 = vector.load %arg22[%c9, %c0_92] : memref<96x128xf32, #tpu.memory_space<vmem>>, vector<64x128xf32>
    %146 = arith.truncf %145 : vector<64x128xf32> to vector<64x128xbf16>
    %147 = vector.broadcast %126 : vector<64x1xbf16> to vector<64x128xbf16>
    %148 = arith.mulf %146, %147 : vector<64x128xbf16>
    %c2_93 = arith.constant 2 : index
    %c0_94 = arith.constant 0 : index
    %c0_95 = arith.constant 0 : index
    %149 = vector.load %arg10[%c2_93, %c0_94, %c0_95] : memref<9x128x128xbf16, #tpu.memory_space<vmem>>, vector<1x128x128xbf16>
    %150 = vector.shape_cast %149 : vector<1x128x128xbf16> to vector<128x128xbf16>
    %cst_96 = arith.constant dense<0.000000e+00> : vector<64x128xf32>
    %151 = tpu.matmul %148, %150, %cst_96 {dimension_numbers = #tpu.dot_dimension_numbers<[1], [0], [0], [1], [0, 0, 1, 1], [], []>} : vector<64x128xbf16>, vector<128x128xbf16>, vector<64x128xf32> -> vector<64x128xf32>
    %152 = arith.addf %144, %151 : vector<64x128xf32>
    %c15_97 = arith.constant 15 : index
    %c0_98 = arith.constant 0 : index
    %153 = vector.load %arg22[%c15_97, %c0_98] : memref<96x128xf32, #tpu.memory_space<vmem>>, vector<64x128xf32>
    %154 = arith.truncf %153 : vector<64x128xf32> to vector<64x128xbf16>
    %155 = vector.broadcast %121 : vector<64x1xbf16> to vector<64x128xbf16>
    %156 = arith.mulf %154, %155 : vector<64x128xbf16>
    %c3_99 = arith.constant 3 : index
    %c0_100 = arith.constant 0 : index
    %c0_101 = arith.constant 0 : index
    %157 = vector.load %arg10[%c3_99, %c0_100, %c0_101] : memref<9x128x128xbf16, #tpu.memory_space<vmem>>, vector<1x128x128xbf16>
    %158 = vector.shape_cast %157 : vector<1x128x128xbf16> to vector<128x128xbf16>
    %cst_102 = arith.constant dense<0.000000e+00> : vector<64x128xf32>
    %159 = tpu.matmul %156, %158, %cst_102 {dimension_numbers = #tpu.dot_dimension_numbers<[1], [0], [0], [1], [0, 0, 1, 1], [], []>} : vector<64x128xbf16>, vector<128x128xbf16>, vector<64x128xf32> -> vector<64x128xf32>
    %160 = arith.addf %152, %159 : vector<64x128xf32>
    %c16_103 = arith.constant 16 : index
    %c0_104 = arith.constant 0 : index
    %161 = vector.load %arg22[%c16_103, %c0_104] : memref<96x128xf32, #tpu.memory_space<vmem>>, vector<64x128xf32>
    %162 = arith.truncf %161 : vector<64x128xf32> to vector<64x128xbf16>
    %c4_105 = arith.constant 4 : index
    %c0_106 = arith.constant 0 : index
    %c0_107 = arith.constant 0 : index
    %163 = vector.load %arg10[%c4_105, %c0_106, %c0_107] : memref<9x128x128xbf16, #tpu.memory_space<vmem>>, vector<1x128x128xbf16>
    %164 = vector.shape_cast %163 : vector<1x128x128xbf16> to vector<128x128xbf16>
    %cst_108 = arith.constant dense<0.000000e+00> : vector<64x128xf32>
    %165 = tpu.matmul %162, %164, %cst_108 {dimension_numbers = #tpu.dot_dimension_numbers<[1], [0], [0], [1], [0, 0, 1, 1], [], []>} : vector<64x128xbf16>, vector<128x128xbf16>, vector<64x128xf32> -> vector<64x128xf32>
    %166 = arith.addf %160, %165 : vector<64x128xf32>
    %c17_109 = arith.constant 17 : index
    %c0_110 = arith.constant 0 : index
    %167 = vector.load %arg22[%c17_109, %c0_110] : memref<96x128xf32, #tpu.memory_space<vmem>>, vector<64x128xf32>
    %168 = arith.truncf %167 : vector<64x128xf32> to vector<64x128xbf16>
    %169 = vector.broadcast %126 : vector<64x1xbf16> to vector<64x128xbf16>
    %170 = arith.mulf %168, %169 : vector<64x128xbf16>
    %c5_111 = arith.constant 5 : index
    %c0_112 = arith.constant 0 : index
    %c0_113 = arith.constant 0 : index
    %171 = vector.load %arg10[%c5_111, %c0_112, %c0_113] : memref<9x128x128xbf16, #tpu.memory_space<vmem>>, vector<1x128x128xbf16>
    %172 = vector.shape_cast %171 : vector<1x128x128xbf16> to vector<128x128xbf16>
    %cst_114 = arith.constant dense<0.000000e+00> : vector<64x128xf32>
    %173 = tpu.matmul %170, %172, %cst_114 {dimension_numbers = #tpu.dot_dimension_numbers<[1], [0], [0], [1], [0, 0, 1, 1], [], []>} : vector<64x128xbf16>, vector<128x128xbf16>, vector<64x128xf32> -> vector<64x128xf32>
    %174 = arith.addf %166, %173 : vector<64x128xf32>
    %c23 = arith.constant 23 : index
    %c0_115 = arith.constant 0 : index
    %175 = vector.load %arg22[%c23, %c0_115] : memref<96x128xf32, #tpu.memory_space<vmem>>, vector<64x128xf32>
    %176 = arith.truncf %175 : vector<64x128xf32> to vector<64x128xbf16>
    %177 = vector.broadcast %121 : vector<64x1xbf16> to vector<64x128xbf16>
    %178 = arith.mulf %176, %177 : vector<64x128xbf16>
    %c6_116 = arith.constant 6 : index
    %c0_117 = arith.constant 0 : index
    %c0_118 = arith.constant 0 : index
    %179 = vector.load %arg10[%c6_116, %c0_117, %c0_118] : memref<9x128x128xbf16, #tpu.memory_space<vmem>>, vector<1x128x128xbf16>
    %180 = vector.shape_cast %179 : vector<1x128x128xbf16> to vector<128x128xbf16>
    %cst_119 = arith.constant dense<0.000000e+00> : vector<64x128xf32>
    %181 = tpu.matmul %178, %180, %cst_119 {dimension_numbers = #tpu.dot_dimension_numbers<[1], [0], [0], [1], [0, 0, 1, 1], [], []>} : vector<64x128xbf16>, vector<128x128xbf16>, vector<64x128xf32> -> vector<64x128xf32>
    %182 = arith.addf %174, %181 : vector<64x128xf32>
    %c24 = arith.constant 24 : index
    %c0_120 = arith.constant 0 : index
    %183 = vector.load %arg22[%c24, %c0_120] : memref<96x128xf32, #tpu.memory_space<vmem>>, vector<64x128xf32>
    %184 = arith.truncf %183 : vector<64x128xf32> to vector<64x128xbf16>
    %c7_121 = arith.constant 7 : index
    %c0_122 = arith.constant 0 : index
    %c0_123 = arith.constant 0 : index
    %185 = vector.load %arg10[%c7_121, %c0_122, %c0_123] : memref<9x128x128xbf16, #tpu.memory_space<vmem>>, vector<1x128x128xbf16>
    %186 = vector.shape_cast %185 : vector<1x128x128xbf16> to vector<128x128xbf16>
    %cst_124 = arith.constant dense<0.000000e+00> : vector<64x128xf32>
    %187 = tpu.matmul %184, %186, %cst_124 {dimension_numbers = #tpu.dot_dimension_numbers<[1], [0], [0], [1], [0, 0, 1, 1], [], []>} : vector<64x128xbf16>, vector<128x128xbf16>, vector<64x128xf32> -> vector<64x128xf32>
    %188 = arith.addf %182, %187 : vector<64x128xf32>
    %c25 = arith.constant 25 : index
    %c0_125 = arith.constant 0 : index
    %189 = vector.load %arg22[%c25, %c0_125] : memref<96x128xf32, #tpu.memory_space<vmem>>, vector<64x128xf32>
    %190 = arith.truncf %189 : vector<64x128xf32> to vector<64x128xbf16>
    %191 = vector.broadcast %126 : vector<64x1xbf16> to vector<64x128xbf16>
    %192 = arith.mulf %190, %191 : vector<64x128xbf16>
    %c8_126 = arith.constant 8 : index
    %c0_127 = arith.constant 0 : index
    %c0_128 = arith.constant 0 : index
    %193 = vector.load %arg10[%c8_126, %c0_127, %c0_128] : memref<9x128x128xbf16, #tpu.memory_space<vmem>>, vector<1x128x128xbf16>
    %194 = vector.shape_cast %193 : vector<1x128x128xbf16> to vector<128x128xbf16>
    %cst_129 = arith.constant dense<0.000000e+00> : vector<64x128xf32>
    %195 = tpu.matmul %192, %194, %cst_129 {dimension_numbers = #tpu.dot_dimension_numbers<[1], [0], [0], [1], [0, 0, 1, 1], [], []>} : vector<64x128xbf16>, vector<128x128xbf16>, vector<64x128xf32> -> vector<64x128xf32>
    %196 = arith.addf %188, %195 : vector<64x128xf32>
    %c0_130 = arith.constant 0 : index
    %c0_131 = arith.constant 0 : index
    %c0_132 = arith.constant 0 : index
    %197 = vector.load %arg19[%c0_130, %c0_131, %c0_132] : memref<1x64x128xf32, #tpu.memory_space<vmem>>, vector<1x64x128xf32>
    %198 = vector.shape_cast %197 : vector<1x64x128xf32> to vector<64x128xf32>
    %199 = vector.shape_cast %196 : vector<64x128xf32> to vector<1x64x128xf32>
    tpu.vector_store %arg19[%c0_130, %c0_131, %c0_132], %199 {strides = array<i32>} : memref<1x64x128xf32, #tpu.memory_space<vmem>>, vector<1x64x128xf32>,
    %200 = arith.truncf %108 : vector<64x128xf32> to vector<64x128xbf16>
    %c0_133 = arith.constant 0 : index
    %c0_134 = arith.constant 0 : index
    %c0_135 = arith.constant 0 : index
    %201 = vector.load %arg1[%c0_133, %c0_134, %c0_135] : memref<1x256x32xbf16, #tpu.memory_space<vmem>>, vector<1x256x32xbf16>
    %202 = vector.shape_cast %201 : vector<1x256x32xbf16> to vector<256x32xbf16>
    %c0_136 = arith.constant 0 : index
    %c0_137 = arith.constant 0 : index
    %203 = vector.load %arg4[%c0_136, %c0_137] : memref<32x128xbf16, #tpu.memory_space<vmem>>, vector<32x128xbf16>
    %cst_138 = arith.constant dense<0.000000e+00> : vector<256x128xf32>
    %204 = tpu.matmul %202, %203, %cst_138 {dimension_numbers = #tpu.dot_dimension_numbers<[1], [0], [0], [1], [0, 0, 1, 1], [], []>} : vector<256x32xbf16>, vector<32x128xbf16>, vector<256x128xf32> -> vector<256x128xf32>
    %c0_139 = arith.constant 0 : index
    %c0_140 = arith.constant 0 : index
    %205 = vector.load %arg5[%c0_139, %c0_140] : memref<1x128xf32, #tpu.memory_space<vmem>>, vector<1x128xf32>
    %206 = vector.broadcast %205 : vector<1x128xf32> to vector<256x128xf32>
    %207 = arith.addf %204, %206 : vector<256x128xf32>
    %c0_141 = arith.constant 0 : index
    %c0_142 = arith.constant 0 : index
    %208 = vector.load %arg16[%c0_141, %c0_142] : memref<256x64xbf16, #tpu.memory_space<vmem>>, vector<256x64xbf16>
    %cst_143 = arith.constant dense<0.000000e+00> : vector<256x128xf32>
    %209 = tpu.matmul %208, %200, %cst_143 {dimension_numbers = #tpu.dot_dimension_numbers<[1], [0], [0], [1], [0, 0, 1, 1], [], []>} : vector<256x64xbf16>, vector<64x128xbf16>, vector<256x128xf32> -> vector<256x128xf32>
    %210 = arith.addf %207, %209 : vector<256x128xf32>
    %cst_144 = arith.constant 0.000000e+00 : f32
    %211 = vector.broadcast %cst_144 : f32 to vector<32x128xf32>
    %c0_145 = arith.constant 0 : index
    %c0_146 = arith.constant 0 : index
    %212 = vector.load %arg21[%c0_145, %c0_146] : memref<320x128xf32, #tpu.memory_space<vmem>>, vector<32x128xf32>
    tpu.vector_store %arg21[%c0_145, %c0_146], %211 {strides = array<i32>} : memref<320x128xf32, #tpu.memory_space<vmem>>, vector<32x128xf32>,
    %cst_147 = arith.constant 0.000000e+00 : f32
    %213 = vector.broadcast %cst_147 : f32 to vector<32x128xf32>
    %c288 = arith.constant 288 : index
    %c0_148 = arith.constant 0 : index
    %214 = vector.load %arg21[%c288, %c0_148] : memref<320x128xf32, #tpu.memory_space<vmem>>, vector<32x128xf32>
    tpu.vector_store %arg21[%c288, %c0_148], %213 {strides = array<i32>} : memref<320x128xf32, #tpu.memory_space<vmem>>, vector<32x128xf32>,
    %c32_149 = arith.constant 32 : index
    %c0_150 = arith.constant 0 : index
    %215 = vector.load %arg21[%c32_149, %c0_150] : memref<320x128xf32, #tpu.memory_space<vmem>>, vector<256x128xf32>
    tpu.vector_store %arg21[%c32_149, %c0_150], %210 {strides = array<i32>} : memref<320x128xf32, #tpu.memory_space<vmem>>, vector<256x128xf32>,
    %216 = tpu.iota {dimensions = array<i32: 0>} : vector<256x1xi32>
    %c15_i32 = arith.constant 15 : i32
    %217 = vector.broadcast %c15_i32 : i32 to vector<256x1xi32>
    %218 = arith.andi %216, %217 : vector<256x1xi32>
    %c0_i32_151 = arith.constant 0 : i32
    %219 = vector.broadcast %c0_i32_151 : i32 to vector<256x1xi32>
    %220 = arith.cmpi ne, %218, %219 : vector<256x1xi32>
    %221 = arith.extui %220 : vector<256x1xi1> to vector<256x1xi32>
    %222 = arith.sitofp %221 : vector<256x1xi32> to vector<256x1xf32>
    %223 = arith.truncf %222 : vector<256x1xf32> to vector<256x1xbf16>
    %c15_i32_152 = arith.constant 15 : i32
    %224 = vector.broadcast %c15_i32_152 : i32 to vector<256x1xi32>
    %225 = arith.cmpi ne, %218, %224 : vector<256x1xi32>
    %226 = arith.extui %225 : vector<256x1xi1> to vector<256x1xi32>
    %227 = arith.sitofp %226 : vector<256x1xi32> to vector<256x1xf32>
    %228 = arith.truncf %227 : vector<256x1xf32> to vector<256x1xbf16>
    %cst_153 = arith.constant 0.000000e+00 : f32
    %229 = vector.broadcast %cst_153 : f32 to vector<256x128xf32>
    %c0_154 = arith.constant 0 : index
    %c0_155 = arith.constant 0 : index
    %230 = vector.load %arg7[%c0_154, %c0_155] : memref<1x128xf32, #tpu.memory_space<vmem>>, vector<1x128xf32>
    %231 = vector.broadcast %230 : vector<1x128xf32> to vector<256x128xf32>
    %232 = arith.addf %229, %231 : vector<256x128xf32>
    %c15_156 = arith.constant 15 : index
    %c0_157 = arith.constant 0 : index
    %233 = vector.load %arg21[%c15_156, %c0_157] : memref<320x128xf32, #tpu.memory_space<vmem>>, vector<256x128xf32>
    %234 = arith.truncf %233 : vector<256x128xf32> to vector<256x128xbf16>
    %235 = vector.broadcast %223 : vector<256x1xbf16> to vector<256x128xbf16>
    %236 = arith.mulf %234, %235 : vector<256x128xbf16>
    %c0_158 = arith.constant 0 : index
    %c0_159 = arith.constant 0 : index
    %c0_160 = arith.constant 0 : index
    %237 = vector.load %arg6[%c0_158, %c0_159, %c0_160] : memref<9x128x128xbf16, #tpu.memory_space<vmem>>, vector<1x128x128xbf16>
    %238 = vector.shape_cast %237 : vector<1x128x128xbf16> to vector<128x128xbf16>
    %cst_161 = arith.constant dense<0.000000e+00> : vector<256x128xf32>
    %239 = tpu.matmul %236, %238, %cst_161 {dimension_numbers = #tpu.dot_dimension_numbers<[1], [0], [0], [1], [0, 0, 1, 1], [], []>} : vector<256x128xbf16>, vector<128x128xbf16>, vector<256x128xf32> -> vector<256x128xf32>
    %240 = arith.addf %232, %239 : vector<256x128xf32>
    %c16_162 = arith.constant 16 : index
    %c0_163 = arith.constant 0 : index
    %241 = vector.load %arg21[%c16_162, %c0_163] : memref<320x128xf32, #tpu.memory_space<vmem>>, vector<256x128xf32>
    %242 = arith.truncf %241 : vector<256x128xf32> to vector<256x128xbf16>
    %c1_164 = arith.constant 1 : index
    %c0_165 = arith.constant 0 : index
    %c0_166 = arith.constant 0 : index
    %243 = vector.load %arg6[%c1_164, %c0_165, %c0_166] : memref<9x128x128xbf16, #tpu.memory_space<vmem>>, vector<1x128x128xbf16>
    %244 = vector.shape_cast %243 : vector<1x128x128xbf16> to vector<128x128xbf16>
    %cst_167 = arith.constant dense<0.000000e+00> : vector<256x128xf32>
    %245 = tpu.matmul %242, %244, %cst_167 {dimension_numbers = #tpu.dot_dimension_numbers<[1], [0], [0], [1], [0, 0, 1, 1], [], []>} : vector<256x128xbf16>, vector<128x128xbf16>, vector<256x128xf32> -> vector<256x128xf32>
    %246 = arith.addf %240, %245 : vector<256x128xf32>
    %c17_168 = arith.constant 17 : index
    %c0_169 = arith.constant 0 : index
    %247 = vector.load %arg21[%c17_168, %c0_169] : memref<320x128xf32, #tpu.memory_space<vmem>>, vector<256x128xf32>
    %248 = arith.truncf %247 : vector<256x128xf32> to vector<256x128xbf16>
    %249 = vector.broadcast %228 : vector<256x1xbf16> to vector<256x128xbf16>
    %250 = arith.mulf %248, %249 : vector<256x128xbf16>
    %c2_170 = arith.constant 2 : index
    %c0_171 = arith.constant 0 : index
    %c0_172 = arith.constant 0 : index
    %251 = vector.load %arg6[%c2_170, %c0_171, %c0_172] : memref<9x128x128xbf16, #tpu.memory_space<vmem>>, vector<1x128x128xbf16>
    %252 = vector.shape_cast %251 : vector<1x128x128xbf16> to vector<128x128xbf16>
    %cst_173 = arith.constant dense<0.000000e+00> : vector<256x128xf32>
    %253 = tpu.matmul %250, %252, %cst_173 {dimension_numbers = #tpu.dot_dimension_numbers<[1], [0], [0], [1], [0, 0, 1, 1], [], []>} : vector<256x128xbf16>, vector<128x128xbf16>, vector<256x128xf32> -> vector<256x128xf32>
    %254 = arith.addf %246, %253 : vector<256x128xf32>
    %c31 = arith.constant 31 : index
    %c0_174 = arith.constant 0 : index
    %255 = vector.load %arg21[%c31, %c0_174] : memref<320x128xf32, #tpu.memory_space<vmem>>, vector<256x128xf32>
    %256 = arith.truncf %255 : vector<256x128xf32> to vector<256x128xbf16>
    %257 = vector.broadcast %223 : vector<256x1xbf16> to vector<256x128xbf16>
    %258 = arith.mulf %256, %257 : vector<256x128xbf16>
    %c3_175 = arith.constant 3 : index
    %c0_176 = arith.constant 0 : index
    %c0_177 = arith.constant 0 : index
    %259 = vector.load %arg6[%c3_175, %c0_176, %c0_177] : memref<9x128x128xbf16, #tpu.memory_space<vmem>>, vector<1x128x128xbf16>
    %260 = vector.shape_cast %259 : vector<1x128x128xbf16> to vector<128x128xbf16>
    %cst_178 = arith.constant dense<0.000000e+00> : vector<256x128xf32>
    %261 = tpu.matmul %258, %260, %cst_178 {dimension_numbers = #tpu.dot_dimension_numbers<[1], [0], [0], [1], [0, 0, 1, 1], [], []>} : vector<256x128xbf16>, vector<128x128xbf16>, vector<256x128xf32> -> vector<256x128xf32>
    %262 = arith.addf %254, %261 : vector<256x128xf32>
    %c32_179 = arith.constant 32 : index
    %c0_180 = arith.constant 0 : index
    %263 = vector.load %arg21[%c32_179, %c0_180] : memref<320x128xf32, #tpu.memory_space<vmem>>, vector<256x128xf32>
    %264 = arith.truncf %263 : vector<256x128xf32> to vector<256x128xbf16>
    %c4_181 = arith.constant 4 : index
    %c0_182 = arith.constant 0 : index
    %c0_183 = arith.constant 0 : index
    %265 = vector.load %arg6[%c4_181, %c0_182, %c0_183] : memref<9x128x128xbf16, #tpu.memory_space<vmem>>, vector<1x128x128xbf16>
    %266 = vector.shape_cast %265 : vector<1x128x128xbf16> to vector<128x128xbf16>
    %cst_184 = arith.constant dense<0.000000e+00> : vector<256x128xf32>
    %267 = tpu.matmul %264, %266, %cst_184 {dimension_numbers = #tpu.dot_dimension_numbers<[1], [0], [0], [1], [0, 0, 1, 1], [], []>} : vector<256x128xbf16>, vector<128x128xbf16>, vector<256x128xf32> -> vector<256x128xf32>
    %268 = arith.addf %262, %267 : vector<256x128xf32>
    %c33 = arith.constant 33 : index
    %c0_185 = arith.constant 0 : index
    %269 = vector.load %arg21[%c33, %c0_185] : memref<320x128xf32, #tpu.memory_space<vmem>>, vector<256x128xf32>
    %270 = arith.truncf %269 : vector<256x128xf32> to vector<256x128xbf16>
    %271 = vector.broadcast %228 : vector<256x1xbf16> to vector<256x128xbf16>
    %272 = arith.mulf %270, %271 : vector<256x128xbf16>
    %c5_186 = arith.constant 5 : index
    %c0_187 = arith.constant 0 : index
    %c0_188 = arith.constant 0 : index
    %273 = vector.load %arg6[%c5_186, %c0_187, %c0_188] : memref<9x128x128xbf16, #tpu.memory_space<vmem>>, vector<1x128x128xbf16>
    %274 = vector.shape_cast %273 : vector<1x128x128xbf16> to vector<128x128xbf16>
    %cst_189 = arith.constant dense<0.000000e+00> : vector<256x128xf32>
    %275 = tpu.matmul %272, %274, %cst_189 {dimension_numbers = #tpu.dot_dimension_numbers<[1], [0], [0], [1], [0, 0, 1, 1], [], []>} : vector<256x128xbf16>, vector<128x128xbf16>, vector<256x128xf32> -> vector<256x128xf32>
    %276 = arith.addf %268, %275 : vector<256x128xf32>
    %c47 = arith.constant 47 : index
    %c0_190 = arith.constant 0 : index
    %277 = vector.load %arg21[%c47, %c0_190] : memref<320x128xf32, #tpu.memory_space<vmem>>, vector<256x128xf32>
    %278 = arith.truncf %277 : vector<256x128xf32> to vector<256x128xbf16>
    %279 = vector.broadcast %223 : vector<256x1xbf16> to vector<256x128xbf16>
    %280 = arith.mulf %278, %279 : vector<256x128xbf16>
    %c6_191 = arith.constant 6 : index
    %c0_192 = arith.constant 0 : index
    %c0_193 = arith.constant 0 : index
    %281 = vector.load %arg6[%c6_191, %c0_192, %c0_193] : memref<9x128x128xbf16, #tpu.memory_space<vmem>>, vector<1x128x128xbf16>
    %282 = vector.shape_cast %281 : vector<1x128x128xbf16> to vector<128x128xbf16>
    %cst_194 = arith.constant dense<0.000000e+00> : vector<256x128xf32>
    %283 = tpu.matmul %280, %282, %cst_194 {dimension_numbers = #tpu.dot_dimension_numbers<[1], [0], [0], [1], [0, 0, 1, 1], [], []>} : vector<256x128xbf16>, vector<128x128xbf16>, vector<256x128xf32> -> vector<256x128xf32>
    %284 = arith.addf %276, %283 : vector<256x128xf32>
    %c48 = arith.constant 48 : index
    %c0_195 = arith.constant 0 : index
    %285 = vector.load %arg21[%c48, %c0_195] : memref<320x128xf32, #tpu.memory_space<vmem>>, vector<256x128xf32>
    %286 = arith.truncf %285 : vector<256x128xf32> to vector<256x128xbf16>
    %c7_196 = arith.constant 7 : index
    %c0_197 = arith.constant 0 : index
    %c0_198 = arith.constant 0 : index
    %287 = vector.load %arg6[%c7_196, %c0_197, %c0_198] : memref<9x128x128xbf16, #tpu.memory_space<vmem>>, vector<1x128x128xbf16>
    %288 = vector.shape_cast %287 : vector<1x128x128xbf16> to vector<128x128xbf16>
    %cst_199 = arith.constant dense<0.000000e+00> : vector<256x128xf32>
    %289 = tpu.matmul %286, %288, %cst_199 {dimension_numbers = #tpu.dot_dimension_numbers<[1], [0], [0], [1], [0, 0, 1, 1], [], []>} : vector<256x128xbf16>, vector<128x128xbf16>, vector<256x128xf32> -> vector<256x128xf32>
    %290 = arith.addf %284, %289 : vector<256x128xf32>
    %c49 = arith.constant 49 : index
    %c0_200 = arith.constant 0 : index
    %291 = vector.load %arg21[%c49, %c0_200] : memref<320x128xf32, #tpu.memory_space<vmem>>, vector<256x128xf32>
    %292 = arith.truncf %291 : vector<256x128xf32> to vector<256x128xbf16>
    %293 = vector.broadcast %228 : vector<256x1xbf16> to vector<256x128xbf16>
    %294 = arith.mulf %292, %293 : vector<256x128xbf16>
    %c8_201 = arith.constant 8 : index
    %c0_202 = arith.constant 0 : index
    %c0_203 = arith.constant 0 : index
    %295 = vector.load %arg6[%c8_201, %c0_202, %c0_203] : memref<9x128x128xbf16, #tpu.memory_space<vmem>>, vector<1x128x128xbf16>
    %296 = vector.shape_cast %295 : vector<1x128x128xbf16> to vector<128x128xbf16>
    %cst_204 = arith.constant dense<0.000000e+00> : vector<256x128xf32>
    %297 = tpu.matmul %294, %296, %cst_204 {dimension_numbers = #tpu.dot_dimension_numbers<[1], [0], [0], [1], [0, 0, 1, 1], [], []>} : vector<256x128xbf16>, vector<128x128xbf16>, vector<256x128xf32> -> vector<256x128xf32>
    %298 = arith.addf %290, %297 : vector<256x128xf32>
    %c0_205 = arith.constant 0 : index
    %c0_206 = arith.constant 0 : index
    %c0_207 = arith.constant 0 : index
    %299 = vector.load %arg18[%c0_205, %c0_206, %c0_207] : memref<1x256x128xf32, #tpu.memory_space<vmem>>, vector<1x256x128xf32>
    %300 = vector.shape_cast %299 : vector<1x256x128xf32> to vector<256x128xf32>
    %301 = vector.shape_cast %298 : vector<256x128xf32> to vector<1x256x128xf32>
    tpu.vector_store %arg18[%c0_205, %c0_206, %c0_207], %301 {strides = array<i32>} : memref<1x256x128xf32, #tpu.memory_space<vmem>>, vector<1x256x128xf32>,
    return
  }
  func.func @transform_0(%arg0: i32) -> (i32, i32, i32) {
    %c0_i32 = arith.constant 0 : i32
    %c0_i32_0 = arith.constant 0 : i32
    %c0_i32_1 = arith.constant 0 : i32
    return %arg0, %c0_i32, %c0_i32_0 : i32, i32, i32
  }
  func.func @transform_1(%arg0: i32) -> (i32, i32, i32) {
    %c0_i32 = arith.constant 0 : i32
    %c0_i32_0 = arith.constant 0 : i32
    %c0_i32_1 = arith.constant 0 : i32
    return %arg0, %c0_i32, %c0_i32_0 : i32, i32, i32
  }
  func.func @transform_2(%arg0: i32) -> (i32, i32, i32) {
    %c0_i32 = arith.constant 0 : i32
    %c0_i32_0 = arith.constant 0 : i32
    %c0_i32_1 = arith.constant 0 : i32
    return %arg0, %c0_i32, %c0_i32_0 : i32, i32, i32
  }
  func.func @transform_3(%arg0: i32) -> (i32, i32) {
    %c0_i32 = arith.constant 0 : i32
    %c0_i32_0 = arith.constant 0 : i32
    %c0_i32_1 = arith.constant 0 : i32
    return %c0_i32, %c0_i32_0 : i32, i32
  }
  func.func @transform_4(%arg0: i32) -> (i32, i32) {
    %c0_i32 = arith.constant 0 : i32
    %c0_i32_0 = arith.constant 0 : i32
    %c0_i32_1 = arith.constant 0 : i32
    return %c0_i32, %c0_i32_0 : i32, i32
  }
  func.func @transform_5(%arg0: i32) -> (i32, i32, i32) {
    %c0_i32 = arith.constant 0 : i32
    %c0_i32_0 = arith.constant 0 : i32
    %c0_i32_1 = arith.constant 0 : i32
    %c0_i32_2 = arith.constant 0 : i32
    return %c0_i32, %c0_i32_0, %c0_i32_1 : i32, i32, i32
  }
  func.func @transform_6(%arg0: i32) -> (i32, i32) {
    %c0_i32 = arith.constant 0 : i32
    %c0_i32_0 = arith.constant 0 : i32
    %c0_i32_1 = arith.constant 0 : i32
    return %c0_i32, %c0_i32_0 : i32, i32
  }
  func.func @transform_7(%arg0: i32) -> (i32, i32) {
    %c0_i32 = arith.constant 0 : i32
    %c0_i32_0 = arith.constant 0 : i32
    %c0_i32_1 = arith.constant 0 : i32
    return %c0_i32, %c0_i32_0 : i32, i32
  }
  func.func @transform_8(%arg0: i32) -> (i32, i32) {
    %c0_i32 = arith.constant 0 : i32
    %c0_i32_0 = arith.constant 0 : i32
    %c0_i32_1 = arith.constant 0 : i32
    return %c0_i32, %c0_i32_0 : i32, i32
  }
  func.func @transform_9(%arg0: i32) -> (i32, i32, i32) {
    %c0_i32 = arith.constant 0 : i32
    %c0_i32_0 = arith.constant 0 : i32
    %c0_i32_1 = arith.constant 0 : i32
    %c0_i32_2 = arith.constant 0 : i32
    return %c0_i32, %c0_i32_0, %c0_i32_1 : i32, i32, i32
  }
  func.func @transform_10(%arg0: i32) -> (i32, i32) {
    %c0_i32 = arith.constant 0 : i32
    %c0_i32_0 = arith.constant 0 : i32
    %c0_i32_1 = arith.constant 0 : i32
    return %c0_i32, %c0_i32_0 : i32, i32
  }
  func.func @transform_11(%arg0: i32) -> (i32, i32) {
    %c0_i32 = arith.constant 0 : i32
    %c0_i32_0 = arith.constant 0 : i32
    %c0_i32_1 = arith.constant 0 : i32
    return %c0_i32, %c0_i32_0 : i32, i32
  }
  func.func @transform_12(%arg0: i32) -> (i32, i32) {
    %c0_i32 = arith.constant 0 : i32
    %c0_i32_0 = arith.constant 0 : i32
    %c0_i32_1 = arith.constant 0 : i32
    return %c0_i32, %c0_i32_0 : i32, i32
  }
  func.func @transform_13(%arg0: i32) -> (i32, i32, i32) {
    %c0_i32 = arith.constant 0 : i32
    %c0_i32_0 = arith.constant 0 : i32
    %c0_i32_1 = arith.constant 0 : i32
    %c0_i32_2 = arith.constant 0 : i32
    return %c0_i32, %c0_i32_0, %c0_i32_1 : i32, i32, i32
  }
  func.func @transform_14(%arg0: i32) -> (i32, i32) {
    %c0_i32 = arith.constant 0 : i32
    %c0_i32_0 = arith.constant 0 : i32
    %c0_i32_1 = arith.constant 0 : i32
    return %c0_i32, %c0_i32_0 : i32, i32
  }
  func.func @transform_15(%arg0: i32) -> (i32, i32) {
    %c0_i32 = arith.constant 0 : i32
    %c0_i32_0 = arith.constant 0 : i32
    %c0_i32_1 = arith.constant 0 : i32
    return %c0_i32, %c0_i32_0 : i32, i32
  }
  func.func @transform_16(%arg0: i32) -> (i32, i32) {
    %c0_i32 = arith.constant 0 : i32
    %c0_i32_0 = arith.constant 0 : i32
    %c0_i32_1 = arith.constant 0 : i32
    return %c0_i32, %c0_i32_0 : i32, i32
  }
  func.func @transform_17(%arg0: i32) -> (i32, i32, i32) {
    %c0_i32 = arith.constant 0 : i32
    %c0_i32_0 = arith.constant 0 : i32
    %c0_i32_1 = arith.constant 0 : i32
    return %arg0, %c0_i32, %c0_i32_0 : i32, i32, i32
  }
  func.func @transform_18(%arg0: i32) -> (i32, i32, i32) {
    %c0_i32 = arith.constant 0 : i32
    %c0_i32_0 = arith.constant 0 : i32
    %c0_i32_1 = arith.constant 0 : i32
    return %arg0, %c0_i32, %c0_i32_0 : i32, i32, i32
  }
  func.func @transform_19(%arg0: i32) -> (i32, i32, i32) {
    %c0_i32 = arith.constant 0 : i32
    %c0_i32_0 = arith.constant 0 : i32
    %c0_i32_1 = arith.constant 0 : i32
    return %arg0, %c0_i32, %c0_i32_0 : i32, i32, i32
  }
}

</mosaic_0001>

<llo_original>
// kernel: custom_swin_fpn_forward.1
$region0: #{custom_swin_fpn_forward.1}
  #allocation0 [shape = 'u32[]', space=smem, size = 0x4, offset = 0x4, fixed_abs, tag = 'smem constant byte address 0x4 - core index']
  #allocation1 [shape = 'u32[144,128]{1,0:T(1,128)}', space=vmem, size = 0x12000, scoped, tag = 'internal scratch']
  #allocation2 [shape = 'f32[320,128]{1,0:T(8,128)}', space=vmem, size = 0x28000, scoped, tag = 'scratch operand']
  #allocation3 [shape = 'f32[96,128]{1,0:T(8,128)}', space=vmem, size = 0xc000, scoped, tag = 'scratch operand']
  #allocation4 [shape = 'f32[48,128]{1,0:T(8,128)}', space=vmem, size = 0x6000, scoped, tag = 'scratch operand']
  %s0 = inlined_call_operand.vmem [shape: bf16[2,256,32], index: 0, kind: input, shape index: {}]
  %s1 = inlined_call_operand.vmem [shape: bf16[2,64,64], index: 1, kind: input, shape index: {}]
  %s2 = inlined_call_operand.vmem [shape: bf16[2,16,128], index: 2, kind: input, shape index: {}]
  %s3 = inlined_call_operand.vmem [shape: bf16[32,128], index: 3, kind: input, shape index: {}]
  %s4 = inlined_call_operand.vmem [shape: f32[1,128], index: 4, kind: input, shape index: {}]
  %s5 = inlined_call_operand.vmem [shape: bf16[9,128,128], index: 5, kind: input, shape index: {}]
  %s6 = inlined_call_operand.vmem [shape: f32[1,128], index: 6, kind: input, shape index: {}]
  %s7 = inlined_call_operand.vmem [shape: bf16[64,128], index: 7, kind: input, shape index: {}]
  %s8 = inlined_call_operand.vmem [shape: f32[1,128], index: 8, kind: input, shape index: {}]
  %s9 = inlined_call_operand.vmem [shape: bf16[9,128,128], index: 9, kind: input, shape index: {}]
  %s10 = inlined_call_operand.vmem [shape: f32[1,128], index: 10, kind: input, shape index: {}]
  %s11 = inlined_call_operand.vmem [shape: bf16[128,128], index: 11, kind: input, shape index: {}]
  %s12 = inlined_call_operand.vmem [shape: f32[1,128], index: 12, kind: input, shape index: {}]
  %s13 = inlined_call_operand.vmem [shape: bf16[9,128,128], index: 13, kind: input, shape index: {}]
  %s14 = inlined_call_operand.vmem [shape: f32[1,128], index: 14, kind: input, shape index: {}]
  %s15 = inlined_call_operand.vmem [shape: bf16[256,64], index: 15, kind: input, shape index: {}]
  %s16 = inlined_call_operand.vmem [shape: bf16[64,16], index: 16, kind: input, shape index: {}]
  %s17 = inlined_call_operand.vmem [shape: f32[2,256,128], index: 17, kind: output, shape index: {0}]
  %s18 = inlined_call_operand.vmem [shape: f32[2,64,128], index: 18, kind: output, shape index: {1}]
  %s19 = inlined_call_operand.vmem [shape: f32[2,16,128], index: 19, kind: output, shape index: {2}]
  %20 = xla_tuple %s17, %s18, %s19
  %s21 = sld [smem:[#allocation0]]
  $region117: #{custom_swin_fpn_forward.1} parent=0
    _
  %s23 = ssub.s32 1, %s21
  %s24 = scalar_select 0, %s23, %s21
  loop: start=0, step=1, limit=4
  $region2: #{custom_swin_fpn_forward.1} parent=0 // loop_pre_header
    _
  $region3: #{custom_swin_fpn_forward.1} parent=0 // loop_header
    %s26 = sphi 0, %s30
    %p27 = scmp.ge.s32.totalorder %s26, 4
    %s36 = sphi 0, %s38
    %s39 = sphi 0, %s36
    %s40 = sphi 0, %s39
    %s56 = sphi 0, %s40
    %s62 = sphi 0, %s64
    %s65 = sphi 0, %s62
    %s66 = sphi 0, %s65
    %s82 = sphi 0, %s66
    %s88 = sphi 0, %s90
    %s91 = sphi 0, %s88
    %s92 = sphi 0, %s91
    %s108 = sphi 0, %s92
    %s112 = sphi 0, %s112
    %s114 = sphi 0, %s112
    %s115 = sphi 0, %s114
    %s129 = sphi 0, %s115
    %s133 = sphi 0, %s133
    %s135 = sphi 0, %s133
    %s136 = sphi 0, %s135
    %s150 = sphi 0, %s136
    %s154 = sphi 0, %s154
    %s156 = sphi 0, %s154
    %s157 = sphi 0, %s156
    %s171 = sphi 0, %s157
    %s175 = sphi 0, %s175
    %s177 = sphi 0, %s175
    %s178 = sphi 0, %s177
    %s192 = sphi 0, %s178
    %s196 = sphi 0, %s196
    %s198 = sphi 0, %s196
    %s199 = sphi 0, %s198
    %s213 = sphi 0, %s199
    %s217 = sphi 0, %s217
    %s219 = sphi 0, %s217
    %s220 = sphi 0, %s219
    %s234 = sphi 0, %s220
    %s238 = sphi 0, %s238
    %s240 = sphi 0, %s238
    %s241 = sphi 0, %s240
    %s255 = sphi 0, %s241
    %s259 = sphi 0, %s259
    %s261 = sphi 0, %s259
    %s262 = sphi 0, %s261
    %s276 = sphi 0, %s262
    %s280 = sphi 0, %s280
    %s282 = sphi 0, %s280
    %s283 = sphi 0, %s282
    %s297 = sphi 0, %s283
    %s301 = sphi 0, %s301
    %s303 = sphi 0, %s301
    %s304 = sphi 0, %s303
    %s318 = sphi 0, %s304
    %s322 = sphi 0, %s322
    %s324 = sphi 0, %s322
    %s325 = sphi 0, %s324
    %s339 = sphi 0, %s325
    %s343 = sphi 0, %s343
    %s345 = sphi 0, %s343
    %s346 = sphi 0, %s345
    %s360 = sphi 0, %s346
    %s364 = sphi 0, %s364
    %s366 = sphi 0, %s364
    %s367 = sphi 0, %s366
    %s381 = sphi 0, %s367
    %s385 = sphi 0, %s385
    %s387 = sphi 0, %s385
    %s388 = sphi 0, %s387
    %s402 = sphi 0, %s388
    %s408 = sphi 0, %s410
    %s411 = sphi 0, %s408
    %s412 = sphi 0, %s411
    %s428 = sphi 0, %s412
    %s434 = sphi 0, %s436
    %s437 = sphi 0, %s434
    %s438 = sphi 0, %s437
    %s454 = sphi 0, %s438
    %s460 = sphi 0, %s462
    %s463 = sphi 0, %s460
    %s464 = sphi 0, %s463
    %s480 = sphi 0, %s464
  $region4: #{custom_swin_fpn_forward.1} parent=0 // loop_header_branch
    %29 = sbr.rel (%p27) target = $region8
  $region5: #{custom_swin_fpn_forward.1} parent=0 // loop_body
    %s31 = ssub.s32 %s26, 1
    %s32 = ssub.s32 %s26, 2
    %s33 = sadd.s32 %s26, 1
    %s34 = ssub.s32 %s26, %s33
    %p35 = scmp.eq.s32.totalorder %s34, 0
    %s37 = sadd.s32 %s36, 1
    %s38 = scalar_select %p35, %s36, %s37
    %p41 = pneg %p35
    %p42 = scmp.eq.s32.totalorder %s26, 1
    %p43 = por %p41, %p42
    %p44 = scmp.ne.s32.totalorder %s36, %s39
    %p45 = scmp.eq.s32.totalorder %s26, 0
    %p46 = por %p44, %p45
    %p47 = scmp.ne.s32.totalorder %s36, %s39
    %p48 = scmp.eq.s32.totalorder %s31, 1
    %p49 = por %p47, %p48
    %p50 = scmp.ne.s32.totalorder %s39, %s40
    %p51 = scmp.eq.s32.totalorder %s31, 0
    %p52 = por %p50, %p51
    %p53 = scmp.ne.s32.totalorder %s39, %s40
    %p54 = scmp.eq.s32.totalorder %s32, 1
    %p55 = por %p53, %p54
    %p57 = scmp.ne.s32.totalorder %s40, %s56
    %p58 = scmp.eq.s32.totalorder %s32, 0
    %p59 = por %p57, %p58
    %s60 = ssub.s32 %s26, %s33
    %p61 = scmp.eq.s32.totalorder %s60, 0
    %s63 = sadd.s32 %s62, 1
    %s64 = scalar_select %p61, %s62, %s63
    %p67 = pneg %p61
    %p68 = scmp.eq.s32.totalorder %s26, 1
    %p69 = por %p67, %p68
    %p70 = scmp.ne.s32.totalorder %s62, %s65
    %p71 = scmp.eq.s32.totalorder %s26, 0
    %p72 = por %p70, %p71
    %p73 = scmp.ne.s32.totalorder %s62, %s65
    %p74 = scmp.eq.s32.totalorder %s31, 1
    %p75 = por %p73, %p74
    %p76 = scmp.ne.s32.totalorder %s65, %s66
    %p77 = scmp.eq.s32.totalorder %s31, 0
    %p78 = por %p76, %p77
    %p79 = scmp.ne.s32.totalorder %s65, %s66
    %p80 = scmp.eq.s32.totalorder %s32, 1
    %p81 = por %p79, %p80
    %p83 = scmp.ne.s32.totalorder %s66, %s82
    %p84 = scmp.eq.s32.totalorder %s32, 0
    %p85 = por %p83, %p84
    %s86 = ssub.s32 %s26, %s33
    %p87 = scmp.eq.s32.totalorder %s86, 0
    %s89 = sadd.s32 %s88, 1
    %s90 = scalar_select %p87, %s88, %s89
    %p93 = pneg %p87
    %p94 = scmp.eq.s32.totalorder %s26, 1
    %p95 = por %p93, %p94
    %p96 = scmp.ne.s32.totalorder %s88, %s91
    %p97 = scmp.eq.s32.totalorder %s26, 0
    %p98 = por %p96, %p97
    %p99 = scmp.ne.s32.totalorder %s88, %s91
    %p100 = scmp.eq.s32.totalorder %s31, 1
    %p101 = por %p99, %p100
    %p102 = scmp.ne.s32.totalorder %s91, %s92
    %p103 = scmp.eq.s32.totalorder %s31, 0
    %p104 = por %p102, %p103
    %p105 = scmp.ne.s32.totalorder %s91, %s92
    %p106 = scmp.eq.s32.totalorder %s32, 1
    %p107 = por %p105, %p106
    %p109 = scmp.ne.s32.totalorder %s92, %s108
    %p110 = scmp.eq.s32.totalorder %s32, 0
    %p111 = por %p109, %p110
    %s113 = sadd.s32 %s112, 1
    %p116 = scmp.eq.s32.totalorder %s26, 1
    %p117 = scmp.ne.s32.totalorder %s112, %s114
    %p118 = scmp.eq.s32.totalorder %s26, 0
    %p119 = por %p117, %p118
    %p120 = scmp.ne.s32.totalorder %s112, %s114
    %p121 = scmp.eq.s32.totalorder %s31, 1
    %p122 = por %p120, %p121
    %p123 = scmp.ne.s32.totalorder %s114, %s115
    %p124 = scmp.eq.s32.totalorder %s31, 0
    %p125 = por %p123, %p124
    %p126 = scmp.ne.s32.totalorder %s114, %s115
    %p127 = scmp.eq.s32.totalorder %s32, 1
    %p128 = por %p126, %p127
    %p130 = scmp.ne.s32.totalorder %s115, %s129
    %p131 = scmp.eq.s32.totalorder %s32, 0
    %p132 = por %p130, %p131
    %s134 = sadd.s32 %s133, 1
    %p137 = scmp.eq.s32.totalorder %s26, 1
    %p138 = scmp.ne.s32.totalorder %s133, %s135
    %p139 = scmp.eq.s32.totalorder %s26, 0
    %p140 = por %p138, %p139
    %p141 = scmp.ne.s32.totalorder %s133, %s135
    %p142 = scmp.eq.s32.totalorder %s31, 1
    %p143 = por %p141, %p142
    %p144 = scmp.ne.s32.totalorder %s135, %s136
    %p145 = scmp.eq.s32.totalorder %s31, 0
    %p146 = por %p144, %p145
    %p147 = scmp.ne.s32.totalorder %s135, %s136
    %p148 = scmp.eq.s32.totalorder %s32, 1
    %p149 = por %p147, %p148
    %p151 = scmp.ne.s32.totalorder %s136, %s150
    %p152 = scmp.eq.s32.totalorder %s32, 0
    %p153 = por %p151, %p152
    %s155 = sadd.s32 %s154, 1
    %p158 = scmp.eq.s32.totalorder %s26, 1
    %p159 = scmp.ne.s32.totalorder %s154, %s156
    %p160 = scmp.eq.s32.totalorder %s26, 0
    %p161 = por %p159, %p160
    %p162 = scmp.ne.s32.totalorder %s154, %s156
    %p163 = scmp.eq.s32.totalorder %s31, 1
    %p164 = por %p162, %p163
    %p165 = scmp.ne.s32.totalorder %s156, %s157
    %p166 = scmp.eq.s32.totalorder %s31, 0
    %p167 = por %p165, %p166
    %p168 = scmp.ne.s32.totalorder %s156, %s157
    %p169 = scmp.eq.s32.totalorder %s32, 1
    %p170 = por %p168, %p169
    %p172 = scmp.ne.s32.totalorder %s157, %s171
    %p173 = scmp.eq.s32.totalorder %s32, 0
    %p174 = por %p172, %p173
    %s176 = sadd.s32 %s175, 1
    %p179 = scmp.eq.s32.totalorder %s26, 1
    %p180 = scmp.ne.s32.totalorder %s175, %s177
    %p181 = scmp.eq.s32.totalorder %s26, 0
    %p182 = por %p180, %p181
    %p183 = scmp.ne.s32.totalorder %s175, %s177
    %p184 = scmp.eq.s32.totalorder %s31, 1
    %p185 = por %p183, %p184
    %p186 = scmp.ne.s32.totalorder %s177, %s178
    %p187 = scmp.eq.s32.totalorder %s31, 0
    %p188 = por %p186, %p187
    %p189 = scmp.ne.s32.totalorder %s177, %s178
    %p190 = scmp.eq.s32.totalorder %s32, 1
    %p191 = por %p189, %p190
    %p193 = scmp.ne.s32.totalorder %s178, %s192
    %p194 = scmp.eq.s32.totalorder %s32, 0
    %p195 = por %p193, %p194
    %s197 = sadd.s32 %s196, 1
    %p200 = scmp.eq.s32.totalorder %s26, 1
    %p201 = scmp.ne.s32.totalorder %s196, %s198
    %p202 = scmp.eq.s32.totalorder %s26, 0
    %p203 = por %p201, %p202
    %p204 = scmp.ne.s32.totalorder %s196, %s198
    %p205 = scmp.eq.s32.totalorder %s31, 1
    %p206 = por %p204, %p205
    %p207 = scmp.ne.s32.totalorder %s198, %s199
    %p208 = scmp.eq.s32.totalorder %s31, 0
    %p209 = por %p207, %p208
    %p210 = scmp.ne.s32.totalorder %s198, %s199
    %p211 = scmp.eq.s32.totalorder %s32, 1
    %p212 = por %p210, %p211
    %p214 = scmp.ne.s32.totalorder %s199, %s213
    %p215 = scmp.eq.s32.totalorder %s32, 0
    %p216 = por %p214, %p215
    %s218 = sadd.s32 %s217, 1
    %p221 = scmp.eq.s32.totalorder %s26, 1
    %p222 = scmp.ne.s32.totalorder %s217, %s219
    %p223 = scmp.eq.s32.totalorder %s26, 0
    %p224 = por %p222, %p223
    %p225 = scmp.ne.s32.totalorder %s217, %s219
    %p226 = scmp.eq.s32.totalorder %s31, 1
    %p227 = por %p225, %p226
    %p228 = scmp.ne.s32.totalorder %s219, %s220
    %p229 = scmp.eq.s32.totalorder %s31, 0
    %p230 = por %p228, %p229
    %p231 = scmp.ne.s32.totalorder %s219, %s220
    %p232 = scmp.eq.s32.totalorder %s32, 1
    %p233 = por %p231, %p232
    %p235 = scmp.ne.s32.totalorder %s220, %s234
    %p236 = scmp.eq.s32.totalorder %s32, 0
    %p237 = por %p235, %p236
    %s239 = sadd.s32 %s238, 1
    %p242 = scmp.eq.s32.totalorder %s26, 1
    %p243 = scmp.ne.s32.totalorder %s238, %s240
    %p244 = scmp.eq.s32.totalorder %s26, 0
    %p245 = por %p243, %p244
    %p246 = scmp.ne.s32.totalorder %s238, %s240
    %p247 = scmp.eq.s32.totalorder %s31, 1
    %p248 = por %p246, %p247
    %p249 = scmp.ne.s32.totalorder %s240, %s241
    %p250 = scmp.eq.s32.totalorder %s31, 0
    %p251 = por %p249, %p250
    %p252 = scmp.ne.s32.totalorder %s240, %s241
    %p253 = scmp.eq.s32.totalorder %s32, 1
    %p254 = por %p252, %p253
    %p256 = scmp.ne.s32.totalorder %s241, %s255
    %p257 = scmp.eq.s32.totalorder %s32, 0
    %p258 = por %p256, %p257
    %s260 = sadd.s32 %s259, 1
    %p263 = scmp.eq.s32.totalorder %s26, 1
    %p264 = scmp.ne.s32.totalorder %s259, %s261
    %p265 = scmp.eq.s32.totalorder %s26, 0
    %p266 = por %p264, %p265
    %p267 = scmp.ne.s32.totalorder %s259, %s261
    %p268 = scmp.eq.s32.totalorder %s31, 1
    %p269 = por %p267, %p268
    %p270 = scmp.ne.s32.totalorder %s261, %s262
    %p271 = scmp.eq.s32.totalorder %s31, 0
    %p272 = por %p270, %p271
    %p273 = scmp.ne.s32.totalorder %s261, %s262
    %p274 = scmp.eq.s32.totalorder %s32, 1
    %p275 = por %p273, %p274
    %p277 = scmp.ne.s32.totalorder %s262, %s276
    %p278 = scmp.eq.s32.totalorder %s32, 0
    %p279 = por %p277, %p278
    %s281 = sadd.s32 %s280, 1
    %p284 = scmp.eq.s32.totalorder %s26, 1
    %p285 = scmp.ne.s32.totalorder %s280, %s282
    %p286 = scmp.eq.s32.totalorder %s26, 0
    %p287 = por %p285, %p286
    %p288 = scmp.ne.s32.totalorder %s280, %s282
    %p289 = scmp.eq.s32.totalorder %s31, 1
    %p290 = por %p288, %p289
    %p291 = scmp.ne.s32.totalorder %s282, %s283
    %p292 = scmp.eq.s32.totalorder %s31, 0
    %p293 = por %p291, %p292
    %p294 = scmp.ne.s32.totalorder %s282, %s283
    %p295 = scmp.eq.s32.totalorder %s32, 1
    %p296 = por %p294, %p295
    %p298 = scmp.ne.s32.totalorder %s283, %s297
    %p299 = scmp.eq.s32.totalorder %s32, 0
    %p300 = por %p298, %p299
    %s302 = sadd.s32 %s301, 1
    %p305 = scmp.eq.s32.totalorder %s26, 1
    %p306 = scmp.ne.s32.totalorder %s301, %s303
    %p307 = scmp.eq.s32.totalorder %s26, 0
    %p308 = por %p306, %p307
    %p309 = scmp.ne.s32.totalorder %s301, %s303
    %p310 = scmp.eq.s32.totalorder %s31, 1
    %p311 = por %p309, %p310
    %p312 = scmp.ne.s32.totalorder %s303, %s304
    %p313 = scmp.eq.s32.totalorder %s31, 0
    %p314 = por %p312, %p313
    %p315 = scmp.ne.s32.totalorder %s303, %s304
    %p316 = scmp.eq.s32.totalorder %s32, 1
    %p317 = por %p315, %p316
    %p319 = scmp.ne.s32.totalorder %s304, %s318
    %p320 = scmp.eq.s32.totalorder %s32, 0
    %p321 = por %p319, %p320
    %s323 = sadd.s32 %s322, 1
    %p326 = scmp.eq.s32.totalorder %s26, 1
    %p327 = scmp.ne.s32.totalorder %s322, %s324
    %p328 = scmp.eq.s32.totalorder %s26, 0
    %p329 = por %p327, %p328
    %p330 = scmp.ne.s32.totalorder %s322, %s324
    %p331 = scmp.eq.s32.totalorder %s31, 1
    %p332 = por %p330, %p331
    %p333 = scmp.ne.s32.totalorder %s324, %s325
    %p334 = scmp.eq.s32.totalorder %s31, 0
    %p335 = por %p333, %p334
    %p336 = scmp.ne.s32.totalorder %s324, %s325
    %p337 = scmp.eq.s32.totalorder %s32, 1
    %p338 = por %p336, %p337
    %p340 = scmp.ne.s32.totalorder %s325, %s339
    %p341 = scmp.eq.s32.totalorder %s32, 0
    %p342 = por %p340, %p341
    %s344 = sadd.s32 %s343, 1
    %p347 = scmp.eq.s32.totalorder %s26, 1
    %p348 = scmp.ne.s32.totalorder %s343, %s345
    %p349 = scmp.eq.s32.totalorder %s26, 0
    %p350 = por %p348, %p349
    %p351 = scmp.ne.s32.totalorder %s343, %s345
    %p352 = scmp.eq.s32.totalorder %s31, 1
    %p353 = por %p351, %p352
    %p354 = scmp.ne.s32.totalorder %s345, %s346
    %p355 = scmp.eq.s32.totalorder %s31, 0
    %p356 = por %p354, %p355
    %p357 = scmp.ne.s32.totalorder %s345, %s346
    %p358 = scmp.eq.s32.totalorder %s32, 1
    %p359 = por %p357, %p358
    %p361 = scmp.ne.s32.totalorder %s346, %s360
    %p362 = scmp.eq.s32.totalorder %s32, 0
    %p363 = por %p361, %p362
    %s365 = sadd.s32 %s364, 1
    %p368 = scmp.eq.s32.totalorder %s26, 1
    %p369 = scmp.ne.s32.totalorder %s364, %s366
    %p370 = scmp.eq.s32.totalorder %s26, 0
    %p371 = por %p369, %p370
    %p372 = scmp.ne.s32.totalorder %s364, %s366
    %p373 = scmp.eq.s32.totalorder %s31, 1
    %p374 = por %p372, %p373
    %p375 = scmp.ne.s32.totalorder %s366, %s367
    %p376 = scmp.eq.s32.totalorder %s31, 0
    %p377 = por %p375, %p376
    %p378 = scmp.ne.s32.totalorder %s366, %s367
    %p379 = scmp.eq.s32.totalorder %s32, 1
    %p380 = por %p378, %p379
    %p382 = scmp.ne.s32.totalorder %s367, %s381
    %p383 = scmp.eq.s32.totalorder %s32, 0
    %p384 = por %p382, %p383
    %s386 = sadd.s32 %s385, 1
    %p389 = scmp.eq.s32.totalorder %s26, 1
    %p390 = scmp.ne.s32.totalorder %s385, %s387
    %p391 = scmp.eq.s32.totalorder %s26, 0
    %p392 = por %p390, %p391
    %p393 = scmp.ne.s32.totalorder %s385, %s387
    %p394 = scmp.eq.s32.totalorder %s31, 1
    %p395 = por %p393, %p394
    %p396 = scmp.ne.s32.totalorder %s387, %s388
    %p397 = scmp.eq.s32.totalorder %s31, 0
    %p398 = por %p396, %p397
    %p399 = scmp.ne.s32.totalorder %s387, %s388
    %p400 = scmp.eq.s32.totalorder %s32, 1
    %p401 = por %p399, %p400
    %p403 = scmp.ne.s32.totalorder %s388, %s402
    %p404 = scmp.eq.s32.totalorder %s32, 0
    %p405 = por %p403, %p404
    %s406 = ssub.s32 %s26, %s33
    %p407 = scmp.eq.s32.totalorder %s406, 0
    %s409 = sadd.s32 %s408, 1
    %s410 = scalar_select %p407, %s408, %s409
    %p413 = pneg %p407
    %p414 = scmp.eq.s32.totalorder %s26, 1
    %p415 = por %p413, %p414
    %p416 = scmp.ne.s32.totalorder %s408, %s411
    %p417 = scmp.eq.s32.totalorder %s26, 0
    %p418 = por %p416, %p417
    %p419 = scmp.ne.s32.totalorder %s408, %s411
    %p420 = scmp.eq.s32.totalorder %s31, 1
    %p421 = por %p419, %p420
    %p422 = scmp.ne.s32.totalorder %s411, %s412
    %p423 = scmp.eq.s32.totalorder %s31, 0
    %p424 = por %p422, %p423
    %p425 = scmp.ne.s32.totalorder %s411, %s412
    %p426 = scmp.eq.s32.totalorder %s32, 1
    %p427 = por %p425, %p426
    %p429 = scmp.ne.s32.totalorder %s412, %s428
    %p430 = scmp.eq.s32.totalorder %s32, 0
    %p431 = por %p429, %p430
    %s432 = ssub.s32 %s26, %s33
    %p433 = scmp.eq.s32.totalorder %s432, 0
    %s435 = sadd.s32 %s434, 1
    %s436 = scalar_select %p433, %s434, %s435
    %p439 = pneg %p433
    %p440 = scmp.eq.s32.totalorder %s26, 1
    %p441 = por %p439, %p440
    %p442 = scmp.ne.s32.totalorder %s434, %s437
    %p443 = scmp.eq.s32.totalorder %s26, 0
    %p444 = por %p442, %p443
    %p445 = scmp.ne.s32.totalorder %s434, %s437
    %p446 = scmp.eq.s32.totalorder %s31, 1
    %p447 = por %p445, %p446
    %p448 = scmp.ne.s32.totalorder %s437, %s438
    %p449 = scmp.eq.s32.totalorder %s31, 0
    %p450 = por %p448, %p449
    %p451 = scmp.ne.s32.totalorder %s437, %s438
    %p452 = scmp.eq.s32.totalorder %s32, 1
    %p453 = por %p451, %p452
    %p455 = scmp.ne.s32.totalorder %s438, %s454
    %p456 = scmp.eq.s32.totalorder %s32, 0
    %p457 = por %p455, %p456
    %s458 = ssub.s32 %s26, %s33
    %p459 = scmp.eq.s32.totalorder %s458, 0
    %s461 = sadd.s32 %s460, 1
    %s462 = scalar_select %p459, %s460, %s461
    %p465 = pneg %p459
    %p466 = scmp.eq.s32.totalorder %s26, 1
    %p467 = por %p465, %p466
    %p468 = scmp.ne.s32.totalorder %s460, %s463
    %p469 = scmp.eq.s32.totalorder %s26, 0
    %p470 = por %p468, %p469
    %p471 = scmp.ne.s32.totalorder %s460, %s463
    %p472 = scmp.eq.s32.totalorder %s31, 1
    %p473 = por %p471, %p472
    %p474 = scmp.ne.s32.totalorder %s463, %s464
    %p475 = scmp.eq.s32.totalorder %s31, 0
    %p476 = por %p474, %p475
    %p477 = scmp.ne.s32.totalorder %s463, %s464
    %p478 = scmp.eq.s32.totalorder %s32, 1
    %p479 = por %p477, %p478
    %p481 = scmp.ne.s32.totalorder %s464, %s480
    %p482 = scmp.eq.s32.totalorder %s32, 0
    %p483 = por %p481, %p482
    %p484 = scmp.le.s32.totalorder 1, %s26
    %p485 = scmp.lt.s32.totalorder %s26, 3
    %p486 = pnand %p484, %p485
    %p487 = pneg %p486
    // Predicated region
    $region9: #{custom_swin_fpn_forward.1} parent=5 // pred_check
      _
    $region10: #{custom_swin_fpn_forward.1} parent=5 // pred_check_branch
      %489 = sbr.rel (%p486) target = $region12
    $region11: #{custom_swin_fpn_forward.1} parent=5 // pred_region
      %s490 = ssub.s32 %s26, 1
      // Predicated region
      $region13: #{custom_swin_fpn_forward.1} parent=11 // pred_check
        %p491 = pneg %p125
      $region14: #{custom_swin_fpn_forward.1} parent=11 // pred_check_branch
        %493 = sbr.rel (%p491) target = $region16
      $region15: #{custom_swin_fpn_forward.1} parent=11 // pred_region
        _
      $region16: #{custom_swin_fpn_forward.1} parent=11 // pred_fallthru
        _
      // Predicated region
      $region17: #{custom_swin_fpn_forward.1} parent=11 // pred_check
        %p494 = pneg %p146
      $region18: #{custom_swin_fpn_forward.1} parent=11 // pred_check_branch
        %496 = sbr.rel (%p494) target = $region20
      $region19: #{custom_swin_fpn_forward.1} parent=11 // pred_region
        _
      $region20: #{custom_swin_fpn_forward.1} parent=11 // pred_fallthru
        _
      // Predicated region
      $region21: #{custom_swin_fpn_forward.1} parent=11 // pred_check
        %p497 = pneg %p167
      $region22: #{custom_swin_fpn_forward.1} parent=11 // pred_check_branch
        %499 = sbr.rel (%p497) target = $region24
      $region23: #{custom_swin_fpn_forward.1} parent=11 // pred_region
        _
      $region24: #{custom_swin_fpn_forward.1} parent=11 // pred_fallthru
        _
      // Predicated region
      $region25: #{custom_swin_fpn_forward.1} parent=11 // pred_check
        %p500 = pneg %p188
      $region26: #{custom_swin_fpn_forward.1} parent=11 // pred_check_branch
        %502 = sbr.rel (%p500) target = $region28
      $region27: #{custom_swin_fpn_forward.1} parent=11 // pred_region
        _
      $region28: #{custom_swin_fpn_forward.1} parent=11 // pred_fallthru
        _
      // Predicated region
      $region29: #{custom_swin_fpn_forward.1} parent=11 // pred_check
        %p503 = pneg %p209
      $region30: #{custom_swin_fpn_forward.1} parent=11 // pred_check_branch
        %505 = sbr.rel (%p503) target = $region32
      $region31: #{custom_swin_fpn_forward.1} parent=11 // pred_region
        _
      $region32: #{custom_swin_fpn_forward.1} parent=11 // pred_fallthru
        _
      // Predicated region
      $region33: #{custom_swin_fpn_forward.1} parent=11 // pred_check
        %p506 = pneg %p230
      $region34: #{custom_swin_fpn_forward.1} parent=11 // pred_check_branch
        %508 = sbr.rel (%p506) target = $region36
      $region35: #{custom_swin_fpn_forward.1} parent=11 // pred_region
        _
      $region36: #{custom_swin_fpn_forward.1} parent=11 // pred_fallthru
        _
      // Predicated region
      $region37: #{custom_swin_fpn_forward.1} parent=11 // pred_check
        %p509 = pneg %p251
      $region38: #{custom_swin_fpn_forward.1} parent=11 // pred_check_branch
        %511 = sbr.rel (%p509) target = $region40
      $region39: #{custom_swin_fpn_forward.1} parent=11 // pred_region
        _
      $region40: #{custom_swin_fpn_forward.1} parent=11 // pred_fallthru
        _
      // Predicated region
      $region41: #{custom_swin_fpn_forward.1} parent=11 // pred_check
        %p512 = pneg %p272
      $region42: #{custom_swin_fpn_forward.1} parent=11 // pred_check_branch
        %514 = sbr.rel (%p512) target = $region44
      $region43: #{custom_swin_fpn_forward.1} parent=11 // pred_region
        _
      $region44: #{custom_swin_fpn_forward.1} parent=11 // pred_fallthru
        _
      // Predicated region
      $region45: #{custom_swin_fpn_forward.1} parent=11 // pred_check
        %p515 = pneg %p293
      $region46: #{custom_swin_fpn_forward.1} parent=11 // pred_check_branch
        %517 = sbr.rel (%p515) target = $region48
      $region47: #{custom_swin_fpn_forward.1} parent=11 // pred_region
        _
      $region48: #{custom_swin_fpn_forward.1} parent=11 // pred_fallthru
        _
      // Predicated region
      $region49: #{custom_swin_fpn_forward.1} parent=11 // pred_check
        %p518 = pneg %p314
      $region50: #{custom_swin_fpn_forward.1} parent=11 // pred_check_branch
        %520 = sbr.rel (%p518) target = $region52
      $region51: #{custom_swin_fpn_forward.1} parent=11 // pred_region
        _
      $region52: #{custom_swin_fpn_forward.1} parent=11 // pred_fallthru
        _
      // Predicated region
      $region53: #{custom_swin_fpn_forward.1} parent=11 // pred_check
        %p521 = pneg %p335
      $region54: #{custom_swin_fpn_forward.1} parent=11 // pred_check_branch
        %523 = sbr.rel (%p521) target = $region56
      $region55: #{custom_swin_fpn_forward.1} parent=11 // pred_region
        _
      $region56: #{custom_swin_fpn_forward.1} parent=11 // pred_fallthru
        _
      // Predicated region
      $region57: #{custom_swin_fpn_forward.1} parent=11 // pred_check
        %p524 = pneg %p356
      $region58: #{custom_swin_fpn_forward.1} parent=11 // pred_check_branch
        %526 = sbr.rel (%p524) target = $region60
      $region59: #{custom_swin_fpn_forward.1} parent=11 // pred_region
        _
      $region60: #{custom_swin_fpn_forward.1} parent=11 // pred_fallthru
        _
      // Predicated region
      $region61: #{custom_swin_fpn_forward.1} parent=11 // pred_check
        %p527 = pneg %p377
      $region62: #{custom_swin_fpn_forward.1} parent=11 // pred_check_branch
        %529 = sbr.rel (%p527) target = $region64
      $region63: #{custom_swin_fpn_forward.1} parent=11 // pred_region
        _
      $region64: #{custom_swin_fpn_forward.1} parent=11 // pred_fallthru
        _
      // Predicated region
      $region65: #{custom_swin_fpn_forward.1} parent=11 // pred_check
        %p530 = pneg %p398
      $region66: #{custom_swin_fpn_forward.1} parent=11 // pred_check_branch
        %532 = sbr.rel (%p530) target = $region68
      $region67: #{custom_swin_fpn_forward.1} parent=11 // pred_region
        _
      $region68: #{custom_swin_fpn_forward.1} parent=11 // pred_fallthru
        _
    $region12: #{custom_swin_fpn_forward.1} parent=5 // pred_fallthru
      _
    %p533 = scmp.lt.s32.totalorder %s26, 2
    // Predicated region
    $region69: #{custom_swin_fpn_forward.1} parent=5 // pred_check
      %p534 = pneg %p533
    $region70: #{custom_swin_fpn_forward.1} parent=5 // pred_check_branch
      %536 = sbr.rel (%p534) target = $region72
    $region71: #{custom_swin_fpn_forward.1} parent=5 // pred_region
      // Predicated region
      $region73: #{custom_swin_fpn_forward.1} parent=71 // pred_check
        %p537 = pneg %p46
      $region74: #{custom_swin_fpn_forward.1} parent=71 // pred_check_branch
        %539 = sbr.rel (%p537) target = $region76
      $region75: #{custom_swin_fpn_forward.1} parent=71 // pred_region
        %p540 = scmp.lt.s32.totalorder %s26, 1
        %s541 = scalar_select %p540, %s26, 1
        %s542 = smul.addr %s541, 32
        %s543 = smul.addr %s542, 4
        %s544 = scalar_lea.vmem %s0, %s543
      $region76: #{custom_swin_fpn_forward.1} parent=71 // pred_fallthru
        _
      // Predicated region
      $region77: #{custom_swin_fpn_forward.1} parent=71 // pred_check
        %p545 = pneg %p72
      $region78: #{custom_swin_fpn_forward.1} parent=71 // pred_check_branch
        %547 = sbr.rel (%p545) target = $region80
      $region79: #{custom_swin_fpn_forward.1} parent=71 // pred_region
        %p548 = scmp.lt.s32.totalorder %s26, 1
        %s549 = scalar_select %p548, %s26, 1
        %s550 = smul.addr %s549, 8
        %s551 = smul.addr %s550, 4
        %s552 = scalar_lea.vmem %s1, %s551
      $region80: #{custom_swin_fpn_forward.1} parent=71 // pred_fallthru
        _
      // Predicated region
      $region81: #{custom_swin_fpn_forward.1} parent=71 // pred_check
        %p553 = pneg %p98
      $region82: #{custom_swin_fpn_forward.1} parent=71 // pred_check_branch
        %555 = sbr.rel (%p553) target = $region84
      $region83: #{custom_swin_fpn_forward.1} parent=71 // pred_region
        %p556 = scmp.lt.s32.totalorder %s26, 1
        %s557 = scalar_select %p556, %s26, 1
        %s558 = smul.addr %s557, 2
        %s559 = smul.addr %s558, 4
        %s560 = scalar_lea.vmem %s2, %s559
      $region84: #{custom_swin_fpn_forward.1} parent=71 // pred_fallthru
        _
    $region72: #{custom_swin_fpn_forward.1} parent=5 // pred_fallthru
      _
    %p561 = scmp.le.s32.totalorder 1, %s26
    %p562 = scmp.lt.s32.totalorder %s26, 3
    %p563 = pnand %p561, %p562
    %p564 = pneg %p563
    // Predicated region
    $region85: #{custom_swin_fpn_forward.1} parent=5 // pred_check
      _
    $region86: #{custom_swin_fpn_forward.1} parent=5 // pred_check_branch
      %566 = sbr.rel (%p563) target = $region88
    $region87: #{custom_swin_fpn_forward.1} parent=5 // pred_region
      %s567 = ssub.s32 %s26, 1
      %p568 = scmp.lt.s32.totalorder %s31, 1
      %s569 = scalar_select %p568, %s31, 1
      %s570 = smul.addr %s569, 32
      %s571 = smul.addr %s570, 4
      %s572 = scalar_lea.vmem %s0, %s571
      %p573 = pneg %p52
      %p574 = pneg %p49
      %p575 = scmp.lt.s32.totalorder %s31, 1
      %s576 = scalar_select %p575, %s31, 1
      %s577 = smul.addr %s576, 8
      %s578 = smul.addr %s577, 4
      %s579 = scalar_lea.vmem %s1, %s578
      %p580 = pneg %p78
      %p581 = pneg %p75
      %p582 = scmp.lt.s32.totalorder %s31, 1
      %s583 = scalar_select %p582, %s31, 1
      %s584 = smul.addr %s583, 2
      %s585 = smul.addr %s584, 4
      %s586 = scalar_lea.vmem %s2, %s585
      %p587 = pneg %p104
      %p588 = pneg %p101
      %p589 = pneg %p125
      %p590 = pneg %p122
      %p591 = pneg %p146
      %p592 = pneg %p143
      %p593 = pneg %p167
      %p594 = pneg %p164
      %p595 = pneg %p188
      %p596 = pneg %p185
      %p597 = pneg %p209
      %p598 = pneg %p206
      %p599 = pneg %p230
      %p600 = pneg %p227
      %p601 = pneg %p251
      %p602 = pneg %p248
      %p603 = pneg %p272
      %p604 = pneg %p269
      %p605 = pneg %p293
      %p606 = pneg %p290
      %p607 = pneg %p314
      %p608 = pneg %p311
      %p609 = pneg %p335
      %p610 = pneg %p332
      %p611 = pneg %p356
      %p612 = pneg %p353
      %p613 = pneg %p377
      %p614 = pneg %p374
      %p615 = pneg %p398
      %p616 = pneg %p395
      %p617 = pneg %p424
      %p618 = pneg %p421
      %p619 = scmp.lt.s32.totalorder %s31, 1
      %s620 = scalar_select %p619, %s31, 1
      %s621 = smul.addr %s620, 32
      %s622 = smul.addr %s621, 8
      %s623 = scalar_lea.vmem %s17, %s622
      %p624 = pneg %p450
      %p625 = pneg %p447
      %p626 = scmp.lt.s32.totalorder %s31, 1
      %s627 = scalar_select %p626, %s31, 1
      %s628 = smul.addr %s627, 8
      %s629 = smul.addr %s628, 8
      %s630 = scalar_lea.vmem %s18, %s629
      %p631 = pneg %p476
      %p632 = pneg %p473
      %p633 = scmp.lt.s32.totalorder %s31, 1
      %s634 = scalar_select %p633, %s31, 1
      %s635 = smul.addr %s634, 2
      %s636 = smul.addr %s635, 8
      %s637 = scalar_lea.vmem %s19, %s636
      %p638 = scmp.lt.s32.totalorder %s31, 1
      %s639 = scalar_select %p638, %s31, 1
      %s640 = smul.addr %s639, 32
      %s641 = smul.addr %s640, 4
      %s642 = scalar_lea.vmem %s0, %s641
      %p643 = scmp.lt.s32.totalorder %s31, 1
      %s644 = scalar_select %p643, %s31, 1
      %s645 = smul.addr %s644, 8
      %s646 = smul.addr %s645, 4
      %s647 = scalar_lea.vmem %s1, %s646
      %p648 = scmp.lt.s32.totalorder %s31, 1
      %s649 = scalar_select %p648, %s31, 1
      %s650 = smul.addr %s649, 2
      %s651 = smul.addr %s650, 4
      %s652 = scalar_lea.vmem %s2, %s651
      %p653 = scmp.lt.s32.totalorder %s31, 1
      %s654 = scalar_select %p653, %s31, 1
      %s655 = smul.addr %s654, 32
      %s656 = smul.addr %s655, 8
      %s657 = scalar_lea.vmem %s17, %s656
      %p658 = scmp.lt.s32.totalorder %s31, 1
      %s659 = scalar_select %p658, %s31, 1
      %s660 = smul.addr %s659, 8
      %s661 = smul.addr %s660, 8
      %s662 = scalar_lea.vmem %s18, %s661
      %p663 = scmp.lt.s32.totalorder %s31, 1
      %s664 = scalar_select %p663, %s31, 1
      %s665 = smul.addr %s664, 2
      %s666 = smul.addr %s665, 8
      %s667 = scalar_lea.vmem %s19, %s666
      %v669 = vld [vmem:[%s652] sm:$0xf]
      %v670 = vld [vmem:[%s652 + $0x4] sm:$0xf]
      %v671 = vld [vmem:[%s11] sm:$0xf]
      %v672 = vld [vmem:[%s11 + $0x4] sm:$0xf]
      %v673 = vld [vmem:[%s11 + $0x8] sm:$0xf]
      %v674 = vld [vmem:[%s11 + $0xc] sm:$0xf]
      %v675 = vld [vmem:[%s11 + $0x10] sm:$0xf]
      %v676 = vld [vmem:[%s11 + $0x14] sm:$0xf]
      %v677 = vld [vmem:[%s11 + $0x18] sm:$0xf]
      %v678 = vld [vmem:[%s11 + $0x1c] sm:$0xf]
      %v679 = vld [vmem:[%s11 + $0x20] sm:$0xf]
      %v680 = vld [vmem:[%s11 + $0x24] sm:$0xf]
      %v681 = vld [vmem:[%s11 + $0x28] sm:$0xf]
      %v682 = vld [vmem:[%s11 + $0x2c] sm:$0xf]
      %v683 = vld [vmem:[%s11 + $0x30] sm:$0xf]
      %v684 = vld [vmem:[%s11 + $0x34] sm:$0xf]
      %v685 = vld [vmem:[%s11 + $0x38] sm:$0xf]
      %v686 = vld [vmem:[%s11 + $0x3c] sm:$0xf]
      %v687 = vld [vmem:[%s12] sm:$0x1]
      %v689 = vlaneseq
      %v690 = vshrl.u32 %v689, 7
      %v691 = vsub.s32 0, %v690
      %v692 = vrot.slane %v687, %v691
      %v696 = vunpack.c.l.b16 %v669
      %v697 = vunpack.c.l.b16 %v670
      %v698 = vpack.c.b16 %v697, %v696
      %v716 = vunpack.c.l.b16 %v671
      %v717 = vunpack.c.l.b16 %v672
      %v718 = vunpack.c.l.b16 %v673
      %v719 = vunpack.c.l.b16 %v674
      %v720 = vunpack.c.l.b16 %v675
      %v721 = vunpack.c.l.b16 %v676
      %v722 = vunpack.c.l.b16 %v677
      %v723 = vunpack.c.l.b16 %v678
      %v724 = vunpack.c.l.b16 %v679
      %v725 = vunpack.c.l.b16 %v680
      %v726 = vunpack.c.l.b16 %v681
      %v727 = vunpack.c.l.b16 %v682
      %v728 = vunpack.c.l.b16 %v683
      %v729 = vunpack.c.l.b16 %v684
      %v730 = vunpack.c.l.b16 %v685
      %v731 = vunpack.c.l.b16 %v686
      %v732 = vpack.c.b16 %v717, %v716
      %v733 = vpack.c.b16 %v719, %v718
      %v734 = vpack.c.b16 %v721, %v720
      %v735 = vpack.c.b16 %v723, %v722
      %v736 = vpack.c.b16 %v725, %v724
      %v737 = vpack.c.b16 %v727, %v726
      %v738 = vpack.c.b16 %v729, %v728
      %v739 = vpack.c.b16 %v731, %v730
      %748 = vmatprep.subr.bf16.mxu0 0
      %749 = vmatpush1.bf16.msra.mxu0 %v739
      %750 = vmatprep.subr.bf16.mxu0 0
      %751 = vmatpush1.bf16.msra.mxu0 %v738
      %752 = vmatprep.subr.bf16.mxu0 0
      %753 = vmatpush1.bf16.msra.mxu0 %v737
      %754 = vmatprep.subr.bf16.mxu0 0
      %755 = vmatpush1.bf16.msra.mxu0 %v736
      %756 = vmatprep.subr.bf16.mxu0 0
      %757 = vmatpush1.bf16.msra.mxu0 %v735
      %758 = vmatprep.subr.bf16.mxu0 0
      %759 = vmatpush1.bf16.msra.mxu0 %v734
      %760 = vmatprep.subr.bf16.mxu0 0
      %761 = vmatpush1.bf16.msra.mxu0 %v733
      %762 = vmatprep.subr.bf16.mxu0 0
      %763 = vmatpush1.bf16.msra.mxu0 %v732
      %764 = vmatprep.subr.bf16.mxu0 0
      %765 = vmatpush2.bf16.msra.mxu0 0
      %766 = vmatprep.subr.bf16.mxu0 0
      %767 = vmatpush2.bf16.msra.mxu0 0
      %768 = vmatprep.subr.bf16.mxu0 0
      %769 = vmatpush2.bf16.msra.mxu0 0
      %770 = vmatprep.subr.bf16.mxu0 0
      %771 = vmatpush2.bf16.msra.mxu0 0
      %772 = vmatprep.subr.bf16.mxu0 0
      %773 = vmatpush2.bf16.msra.mxu0 0
      %774 = vmatprep.subr.bf16.mxu0 0
      %775 = vmatpush2.bf16.msra.mxu0 0
      %776 = vmatprep.subr.bf16.mxu0 0
      %777 = vmatpush2.bf16.msra.mxu0 0
      %778 = vmatprep.subr.bf16.mxu0 0
      %779 = vmatpush2.bf16.msra.mxu0 0
      %780 = vmatprep.mubr.bf16.mxu0 0
      %781 = vmatmul.mubr.bf16.gmra.mxu0 %v698
      %v782 = vpop.f32.mrf.mxu0
      %v783 = vadd.f32 %v692, %v782
      %v784 = vpop.f32.mrf.mxu0
      %v785 = vpop.f32.mrf.mxu0
      %v786 = vadd.f32 %v692, %v785
      %v787 = vpop.f32.mrf.mxu0
      %788 = vdwg.mxu0
      %789 = vst [vmem:[#allocation4] sm:$0xff] 0.0
      %790 = vst [vmem:[#allocation4 + $0x8] sm:$0xff] 0.0
      %791 = vst [vmem:[#allocation4 + $0x20] sm:$0xff] 0.0
      %792 = vst [vmem:[#allocation4 + $0x28] sm:$0xff] 0.0
      %793 = vst [vmem:[#allocation4 + $0x10] sm:$0xff] %v783
      %794 = vst [vmem:[#allocation4 + $0x18] sm:$0xff] %v786
      %v795 = vlaneseq
      %v796 = vshrl.u32 %v795, 7
      %v797 = vadd.s32 %v796, 8
      %v798 = vand.u32 %v796, 3
      %v799 = vand.u32 %v797, 3
      %vm800 = vcmp.ne.s32.totalorder %v798, 0
      %vm801 = vcmp.ne.s32.totalorder %v799, 0
      %v802 = vsel %vm800, 1, 0
      %v803 = vsel %vm801, 1, 0
      %v804 = vcvt.s32.f32 %v802
      %v805 = vcvt.s32.f32 %v803
      %v806 = vpack.c.bf16 %v805, %v804
      %vm807 = vcmp.ne.s32.totalorder %v798, 3
      %vm808 = vcmp.ne.s32.totalorder %v799, 3
      %v809 = vsel %vm807, 1, 0
      %v810 = vsel %vm808, 1, 0
      %v811 = vcvt.s32.f32 %v809
      %v812 = vcvt.s32.f32 %v810
      %v813 = vpack.c.bf16 %v812, %v811
      %v814 = vld [vmem:[%s14] sm:$0x1]
      %v816 = vlaneseq
      %v817 = vshrl.u32 %v816, 7
      %v818 = vsub.s32 0, %v817
      %v819 = vrot.slane %v814, %v818
      %v821 = vadd.f32 %v819, 0.0
      %v822 = vld [vmem:[#allocation4 + $0xb] sm:$0xff]
      %v823 = vld [vmem:[#allocation4 + $0x13] sm:$0xff]
      %v824 = vpack.c.bf16 %v823, %v822
      %v825 = vmul.bf16 %v824, %v806
      %v826 = vld [vmem:[%s13] sm:$0xf]
      %v827 = vld [vmem:[%s13 + $0x4] sm:$0xf]
      %v828 = vld [vmem:[%s13 + $0x8] sm:$0xf]
      %v829 = vld [vmem:[%s13 + $0xc] sm:$0xf]
      %v830 = vld [vmem:[%s13 + $0x10] sm:$0xf]
      %v831 = vld [vmem:[%s13 + $0x14] sm:$0xf]
      %v832 = vld [vmem:[%s13 + $0x18] sm:$0xf]
      %v833 = vld [vmem:[%s13 + $0x1c] sm:$0xf]
      %v834 = vld [vmem:[%s13 + $0x20] sm:$0xf]
      %v835 = vld [vmem:[%s13 + $0x24] sm:$0xf]
      %v836 = vld [vmem:[%s13 + $0x28] sm:$0xf]
      %v837 = vld [vmem:[%s13 + $0x2c] sm:$0xf]
      %v838 = vld [vmem:[%s13 + $0x30] sm:$0xf]
      %v839 = vld [vmem:[%s13 + $0x34] sm:$0xf]
      %v840 = vld [vmem:[%s13 + $0x38] sm:$0xf]
      %v841 = vld [vmem:[%s13 + $0x3c] sm:$0xf]
      %v858 = vunpack.c.l.b16 %v826
      %v859 = vunpack.c.l.b16 %v827
      %v860 = vunpack.c.l.b16 %v828
      %v861 = vunpack.c.l.b16 %v829
      %v862 = vunpack.c.l.b16 %v830
      %v863 = vunpack.c.l.b16 %v831
      %v864 = vunpack.c.l.b16 %v832
      %v865 = vunpack.c.l.b16 %v833
      %v866 = vunpack.c.l.b16 %v834
      %v867 = vunpack.c.l.b16 %v835
      %v868 = vunpack.c.l.b16 %v836
      %v869 = vunpack.c.l.b16 %v837
      %v870 = vunpack.c.l.b16 %v838
      %v871 = vunpack.c.l.b16 %v839
      %v872 = vunpack.c.l.b16 %v840
      %v873 = vunpack.c.l.b16 %v841
      %v874 = vpack.c.b16 %v859, %v858
      %v875 = vpack.c.b16 %v861, %v860
      %v876 = vpack.c.b16 %v863, %v862
      %v877 = vpack.c.b16 %v865, %v864
      %v878 = vpack.c.b16 %v867, %v866
      %v879 = vpack.c.b16 %v869, %v868
      %v880 = vpack.c.b16 %v871, %v870
      %v881 = vpack.c.b16 %v873, %v872
      %890 = vmatprep.subr.bf16.mxu0 0
      %891 = vmatpush1.bf16.msra.mxu0 %v881
      %892 = vmatprep.subr.bf16.mxu0 0
      %893 = vmatpush1.bf16.msra.mxu0 %v880
      %894 = vmatprep.subr.bf16.mxu0 0
      %895 = vmatpush1.bf16.msra.mxu0 %v879
      %896 = vmatprep.subr.bf16.mxu0 0
      %897 = vmatpush1.bf16.msra.mxu0 %v878
      %898 = vmatprep.subr.bf16.mxu0 0
      %899 = vmatpush1.bf16.msra.mxu0 %v877
      %900 = vmatprep.subr.bf16.mxu0 0
      %901 = vmatpush1.bf16.msra.mxu0 %v876
      %902 = vmatprep.subr.bf16.mxu0 0
      %903 = vmatpush1.bf16.msra.mxu0 %v875
      %904 = vmatprep.subr.bf16.mxu0 0
      %905 = vmatpush1.bf16.msra.mxu0 %v874
      %906 = vmatprep.subr.bf16.mxu0 0
      %907 = vmatpush2.bf16.msra.mxu0 0
      %908 = vmatprep.subr.bf16.mxu0 0
      %909 = vmatpush2.bf16.msra.mxu0 0
      %910 = vmatprep.subr.bf16.mxu0 0
      %911 = vmatpush2.bf16.msra.mxu0 0
      %912 = vmatprep.subr.bf16.mxu0 0
      %913 = vmatpush2.bf16.msra.mxu0 0
      %914 = vmatprep.subr.bf16.mxu0 0
      %915 = vmatpush2.bf16.msra.mxu0 0
      %916 = vmatprep.subr.bf16.mxu0 0
      %917 = vmatpush2.bf16.msra.mxu0 0
      %918 = vmatprep.subr.bf16.mxu0 0
      %919 = vmatpush2.bf16.msra.mxu0 0
      %920 = vmatprep.subr.bf16.mxu0 0
      %921 = vmatpush2.bf16.msra.mxu0 0
      %922 = vmatprep.mubr.bf16.mxu0 0
      %923 = vmatmul.mubr.bf16.gmra.mxu0 %v825
      %v924 = vpop.f32.mrf.mxu0
      %v925 = vadd.f32 0.0, %v924
      %v926 = vpop.f32.mrf.mxu0
      %v927 = vpop.f32.mrf.mxu0
      %v928 = vadd.f32 0.0, %v927
      %v929 = vpop.f32.mrf.mxu0
      %930 = vdwg.mxu0
      %v931 = vadd.f32 %v821, %v925
      %v932 = vadd.f32 %v821, %v928
      %v933 = vld [vmem:[#allocation4 + $0xc] sm:$0xff]
      %v934 = vld [vmem:[#allocation4 + $0x14] sm:$0xff]
      %v935 = vpack.c.bf16 %v934, %v933
      %s936 = scalar_lea.vmem %s13, 64
      %v937 = vld [vmem:[%s936] sm:$0xf]
      %v938 = vld [vmem:[%s936 + $0x4] sm:$0xf]
      %v939 = vld [vmem:[%s936 + $0x8] sm:$0xf]
      %v940 = vld [vmem:[%s936 + $0xc] sm:$0xf]
      %v941 = vld [vmem:[%s936 + $0x10] sm:$0xf]
      %v942 = vld [vmem:[%s936 + $0x14] sm:$0xf]
      %v943 = vld [vmem:[%s936 + $0x18] sm:$0xf]
      %v944 = vld [vmem:[%s936 + $0x1c] sm:$0xf]
      %v945 = vld [vmem:[%s936 + $0x20] sm:$0xf]
      %v946 = vld [vmem:[%s936 + $0x24] sm:$0xf]
      %v947 = vld [vmem:[%s936 + $0x28] sm:$0xf]
      %v948 = vld [vmem:[%s936 + $0x2c] sm:$0xf]
      %v949 = vld [vmem:[%s936 + $0x30] sm:$0xf]
      %v950 = vld [vmem:[%s936 + $0x34] sm:$0xf]
      %v951 = vld [vmem:[%s936 + $0x38] sm:$0xf]
      %v952 = vld [vmem:[%s936 + $0x3c] sm:$0xf]
      %v969 = vunpack.c.l.b16 %v937
      %v970 = vunpack.c.l.b16 %v938
      %v971 = vunpack.c.l.b16 %v939
      %v972 = vunpack.c.l.b16 %v940
      %v973 = vunpack.c.l.b16 %v941
      %v974 = vunpack.c.l.b16 %v942
      %v975 = vunpack.c.l.b16 %v943
      %v976 = vunpack.c.l.b16 %v944
      %v977 = vunpack.c.l.b16 %v945
      %v978 = vunpack.c.l.b16 %v946
      %v979 = vunpack.c.l.b16 %v947
      %v980 = vunpack.c.l.b16 %v948
      %v981 = vunpack.c.l.b16 %v949
      %v982 = vunpack.c.l.b16 %v950
      %v983 = vunpack.c.l.b16 %v951
      %v984 = vunpack.c.l.b16 %v952
      %v985 = vpack.c.b16 %v970, %v969
      %v986 = vpack.c.b16 %v972, %v971
      %v987 = vpack.c.b16 %v974, %v973
      %v988 = vpack.c.b16 %v976, %v975
      %v989 = vpack.c.b16 %v978, %v977
      %v990 = vpack.c.b16 %v980, %v979
      %v991 = vpack.c.b16 %v982, %v981
      %v992 = vpack.c.b16 %v984, %v983
      %1001 = vmatprep.subr.bf16.mxu0 0
      %1002 = vmatpush1.bf16.msra.mxu0 %v992
      %1003 = vmatprep.subr.bf16.mxu0 0
      %1004 = vmatpush1.bf16.msra.mxu0 %v991
      %1005 = vmatprep.subr.bf16.mxu0 0
      %1006 = vmatpush1.bf16.msra.mxu0 %v990
      %1007 = vmatprep.subr.bf16.mxu0 0
      %1008 = vmatpush1.bf16.msra.mxu0 %v989
      %1009 = vmatprep.subr.bf16.mxu0 0
      %1010 = vmatpush1.bf16.msra.mxu0 %v988
      %1011 = vmatprep.subr.bf16.mxu0 0
      %1012 = vmatpush1.bf16.msra.mxu0 %v987
      %1013 = vmatprep.subr.bf16.mxu0 0
      %1014 = vmatpush1.bf16.msra.mxu0 %v986
      %1015 = vmatprep.subr.bf16.mxu0 0
      %1016 = vmatpush1.bf16.msra.mxu0 %v985
      %1017 = vmatprep.subr.bf16.mxu0 0
      %1018 = vmatpush2.bf16.msra.mxu0 0
      %1019 = vmatprep.subr.bf16.mxu0 0
      %1020 = vmatpush2.bf16.msra.mxu0 0
      %1021 = vmatprep.subr.bf16.mxu0 0
      %1022 = vmatpush2.bf16.msra.mxu0 0
      %1023 = vmatprep.subr.bf16.mxu0 0
      %1024 = vmatpush2.bf16.msra.mxu0 0
      %1025 = vmatprep.subr.bf16.mxu0 0
      %1026 = vmatpush2.bf16.msra.mxu0 0
      %1027 = vmatprep.subr.bf16.mxu0 0
      %1028 = vmatpush2.bf16.msra.mxu0 0
      %1029 = vmatprep.subr.bf16.mxu0 0
      %1030 = vmatpush2.bf16.msra.mxu0 0
      %1031 = vmatprep.subr.bf16.mxu0 0
      %1032 = vmatpush2.bf16.msra.mxu0 0
      %1033 = vmatprep.mubr.bf16.mxu0 0
      %1034 = vmatmul.mubr.bf16.gmra.mxu0 %v935
      %v1035 = vpop.f32.mrf.mxu0
      %v1036 = vadd.f32 0.0, %v1035
      %v1037 = vpop.f32.mrf.mxu0
      %v1038 = vpop.f32.mrf.mxu0
      %v1039 = vadd.f32 0.0, %v1038
      %v1040 = vpop.f32.mrf.mxu0
      %1041 = vdwg.mxu0
      %v1042 = vadd.f32 %v931, %v1036
      %v1043 = vadd.f32 %v932, %v1039
      %v1044 = vld [vmem:[#allocation4 + $0xd] sm:$0xff]
      %v1045 = vld [vmem:[#allocation4 + $0x15] sm:$0xff]
      %v1046 = vpack.c.bf16 %v1045, %v1044
      %v1047 = vmul.bf16 %v1046, %v813
      %s1048 = scalar_lea.vmem %s13, 128
      %v1049 = vld [vmem:[%s1048] sm:$0xf]
      %v1050 = vld [vmem:[%s1048 + $0x4] sm:$0xf]
      %v1051 = vld [vmem:[%s1048 + $0x8] sm:$0xf]
      %v1052 = vld [vmem:[%s1048 + $0xc] sm:$0xf]
      %v1053 = vld [vmem:[%s1048 + $0x10] sm:$0xf]
      %v1054 = vld [vmem:[%s1048 + $0x14] sm:$0xf]
      %v1055 = vld [vmem:[%s1048 + $0x18] sm:$0xf]
      %v1056 = vld [vmem:[%s1048 + $0x1c] sm:$0xf]
      %v1057 = vld [vmem:[%s1048 + $0x20] sm:$0xf]
      %v1058 = vld [vmem:[%s1048 + $0x24] sm:$0xf]
      %v1059 = vld [vmem:[%s1048 + $0x28] sm:$0xf]
      %v1060 = vld [vmem:[%s1048 + $0x2c] sm:$0xf]
      %v1061 = vld [vmem:[%s1048 + $0x30] sm:$0xf]
      %v1062 = vld [vmem:[%s1048 + $0x34] sm:$0xf]
      %v1063 = vld [vmem:[%s1048 + $0x38] sm:$0xf]
      %v1064 = vld [vmem:[%s1048 + $0x3c] sm:$0xf]
      %v1081 = vunpack.c.l.b16 %v1049
      %v1082 = vunpack.c.l.b16 %v1050
      %v1083 = vunpack.c.l.b16 %v1051
      %v1084 = vunpack.c.l.b16 %v1052
      %v1085 = vunpack.c.l.b16 %v1053
      %v1086 = vunpack.c.l.b16 %v1054
      %v1087 = vunpack.c.l.b16 %v1055
      %v1088 = vunpack.c.l.b16 %v1056
      %v1089 = vunpack.c.l.b16 %v1057
      %v1090 = vunpack.c.l.b16 %v1058
      %v1091 = vunpack.c.l.b16 %v1059
      %v1092 = vunpack.c.l.b16 %v1060
      %v1093 = vunpack.c.l.b16 %v1061
      %v1094 = vunpack.c.l.b16 %v1062
      %v1095 = vunpack.c.l.b16 %v1063
      %v1096 = vunpack.c.l.b16 %v1064
      %v1097 = vpack.c.b16 %v1082, %v1081
      %v1098 = vpack.c.b16 %v1084, %v1083
      %v1099 = vpack.c.b16 %v1086, %v1085
      %v1100 = vpack.c.b16 %v1088, %v1087
      %v1101 = vpack.c.b16 %v1090, %v1089
      %v1102 = vpack.c.b16 %v1092, %v1091
      %v1103 = vpack.c.b16 %v1094, %v1093
      %v1104 = vpack.c.b16 %v1096, %v1095
      %1113 = vmatprep.subr.bf16.mxu0 0
      %1114 = vmatpush1.bf16.msra.mxu0 %v1104
      %1115 = vmatprep.subr.bf16.mxu0 0
      %1116 = vmatpush1.bf16.msra.mxu0 %v1103
      %1117 = vmatprep.subr.bf16.mxu0 0
      %1118 = vmatpush1.bf16.msra.mxu0 %v1102
      %1119 = vmatprep.subr.bf16.mxu0 0
      %1120 = vmatpush1.bf16.msra.mxu0 %v1101
      %1121 = vmatprep.subr.bf16.mxu0 0
      %1122 = vmatpush1.bf16.msra.mxu0 %v1100
      %1123 = vmatprep.subr.bf16.mxu0 0
      %1124 = vmatpush1.bf16.msra.mxu0 %v1099
      %1125 = vmatprep.subr.bf16.mxu0 0
      %1126 = vmatpush1.bf16.msra.mxu0 %v1098
      %1127 = vmatprep.subr.bf16.mxu0 0
      %1128 = vmatpush1.bf16.msra.mxu0 %v1097
      %1129 = vmatprep.subr.bf16.mxu0 0
      %1130 = vmatpush2.bf16.msra.mxu0 0
      %1131 = vmatprep.subr.bf16.mxu0 0
      %1132 = vmatpush2.bf16.msra.mxu0 0
      %1133 = vmatprep.subr.bf16.mxu0 0
      %1134 = vmatpush2.bf16.msra.mxu0 0
      %1135 = vmatprep.subr.bf16.mxu0 0
      %1136 = vmatpush2.bf16.msra.mxu0 0
      %1137 = vmatprep.subr.bf16.mxu0 0
      %1138 = vmatpush2.bf16.msra.mxu0 0
      %1139 = vmatprep.subr.bf16.mxu0 0
      %1140 = vmatpush2.bf16.msra.mxu0 0
      %1141 = vmatprep.subr.bf16.mxu0 0
      %1142 = vmatpush2.bf16.msra.mxu0 0
      %1143 = vmatprep.subr.bf16.mxu0 0
      %1144 = vmatpush2.bf16.msra.mxu0 0
      %1145 = vmatprep.mubr.bf16.mxu0 0
      %1146 = vmatmul.mubr.bf16.gmra.mxu0 %v1047
      %v1147 = vpop.f32.mrf.mxu0
      %v1148 = vadd.f32 0.0, %v1147
      %v1149 = vpop.f32.mrf.mxu0
      %v1150 = vpop.f32.mrf.mxu0
      %v1151 = vadd.f32 0.0, %v1150
      %v1152 = vpop.f32.mrf.mxu0
      %1153 = vdwg.mxu0
      %v1154 = vadd.f32 %v1042, %v1148
      %v1155 = vadd.f32 %v1043, %v1151
      %v1156 = vld [vmem:[#allocation4 + $0xf] sm:$0xff]
      %v1157 = vld [vmem:[#allocation4 + $0x17] sm:$0xff]
      %v1158 = vpack.c.bf16 %v1157, %v1156
      %v1159 = vmul.bf16 %v1158, %v806
      %s1160 = scalar_lea.vmem %s13, 192
      %v1161 = vld [vmem:[%s1160] sm:$0xf]
      %v1162 = vld [vmem:[%s1160 + $0x4] sm:$0xf]
      %v1163 = vld [vmem:[%s1160 + $0x8] sm:$0xf]
      %v1164 = vld [vmem:[%s1160 + $0xc] sm:$0xf]
      %v1165 = vld [vmem:[%s1160 + $0x10] sm:$0xf]
      %v1166 = vld [vmem:[%s1160 + $0x14] sm:$0xf]
      %v1167 = vld [vmem:[%s1160 + $0x18] sm:$0xf]
      %v1168 = vld [vmem:[%s1160 + $0x1c] sm:$0xf]
      %v1169 = vld [vmem:[%s1160 + $0x20] sm:$0xf]
      %v1170 = vld [vmem:[%s1160 + $0x24] sm:$0xf]
      %v1171 = vld [vmem:[%s1160 + $0x28] sm:$0xf]
      %v1172 = vld [vmem:[%s1160 + $0x2c] sm:$0xf]
      %v1173 = vld [vmem:[%s1160 + $0x30] sm:$0xf]
      %v1174 = vld [vmem:[%s1160 + $0x34] sm:$0xf]
      %v1175 = vld [vmem:[%s1160 + $0x38] sm:$0xf]
      %v1176 = vld [vmem:[%s1160 + $0x3c] sm:$0xf]
      %v1193 = vunpack.c.l.b16 %v1161
      %v1194 = vunpack.c.l.b16 %v1162
      %v1195 = vunpack.c.l.b16 %v1163
      %v1196 = vunpack.c.l.b16 %v1164
      %v1197 = vunpack.c.l.b16 %v1165
      %v1198 = vunpack.c.l.b16 %v1166
      %v1199 = vunpack.c.l.b16 %v1167
      %v1200 = vunpack.c.l.b16 %v1168
      %v1201 = vunpack.c.l.b16 %v1169
      %v1202 = vunpack.c.l.b16 %v1170
      %v1203 = vunpack.c.l.b16 %v1171
      %v1204 = vunpack.c.l.b16 %v1172
      %v1205 = vunpack.c.l.b16 %v1173
      %v1206 = vunpack.c.l.b16 %v1174
      %v1207 = vunpack.c.l.b16 %v1175
      %v1208 = vunpack.c.l.b16 %v1176
      %v1209 = vpack.c.b16 %v1194, %v1193
      %v1210 = vpack.c.b16 %v1196, %v1195
      %v1211 = vpack.c.b16 %v1198, %v1197
      %v1212 = vpack.c.b16 %v1200, %v1199
      %v1213 = vpack.c.b16 %v1202, %v1201
      %v1214 = vpack.c.b16 %v1204, %v1203
      %v1215 = vpack.c.b16 %v1206, %v1205
      %v1216 = vpack.c.b16 %v1208, %v1207
      %1225 = vmatprep.subr.bf16.mxu0 0
      %1226 = vmatpush1.bf16.msra.mxu0 %v1216
      %1227 = vmatprep.subr.bf16.mxu0 0
      %1228 = vmatpush1.bf16.msra.mxu0 %v1215
      %1229 = vmatprep.subr.bf16.mxu0 0
      %1230 = vmatpush1.bf16.msra.mxu0 %v1214
      %1231 = vmatprep.subr.bf16.mxu0 0
      %1232 = vmatpush1.bf16.msra.mxu0 %v1213
      %1233 = vmatprep.subr.bf16.mxu0 0
      %1234 = vmatpush1.bf16.msra.mxu0 %v1212
      %1235 = vmatprep.subr.bf16.mxu0 0
      %1236 = vmatpush1.bf16.msra.mxu0 %v1211
      %1237 = vmatprep.subr.bf16.mxu0 0
      %1238 = vmatpush1.bf16.msra.mxu0 %v1210
      %1239 = vmatprep.subr.bf16.mxu0 0
      %1240 = vmatpush1.bf16.msra.mxu0 %v1209
      %1241 = vmatprep.subr.bf16.mxu0 0
      %1242 = vmatpush2.bf16.msra.mxu0 0
      %1243 = vmatprep.subr.bf16.mxu0 0
      %1244 = vmatpush2.bf16.msra.mxu0 0
      %1245 = vmatprep.subr.bf16.mxu0 0
      %1246 = vmatpush2.bf16.msra.mxu0 0
      %1247 = vmatprep.subr.bf16.mxu0 0
      %1248 = vmatpush2.bf16.msra.mxu0 0
      %1249 = vmatprep.subr.bf16.mxu0 0
      %1250 = vmatpush2.bf16.msra.mxu0 0
      %1251 = vmatprep.subr.bf16.mxu0 0
      %1252 = vmatpush2.bf16.msra.mxu0 0
      %1253 = vmatprep.subr.bf16.mxu0 0
      %1254 = vmatpush2.bf16.msra.mxu0 0
      %1255 = vmatprep.subr.bf16.mxu0 0
      %1256 = vmatpush2.bf16.msra.mxu0 0
      %1257 = vmatprep.mubr.bf16.mxu0 0
      %1258 = vmatmul.mubr.bf16.gmra.mxu0 %v1159
      %v1259 = vpop.f32.mrf.mxu0
      %v1260 = vadd.f32 0.0, %v1259
      %v1261 = vpop.f32.mrf.mxu0
      %v1262 = vpop.f32.mrf.mxu0
      %v1263 = vadd.f32 0.0, %v1262
      %v1264 = vpop.f32.mrf.mxu0
      %1265 = vdwg.mxu0
      %v1266 = vadd.f32 %v1154, %v1260
      %v1267 = vadd.f32 %v1155, %v1263
      %v1268 = vld [vmem:[#allocation4 + $0x10] sm:$0xff]
      %v1269 = vld [vmem:[#allocation4 + $0x18] sm:$0xff]
      %v1270 = vpack.c.bf16 %v1269, %v1268
      %s1271 = scalar_lea.vmem %s13, 256
      %v1272 = vld [vmem:[%s1271] sm:$0xf]
      %v1273 = vld [vmem:[%s1271 + $0x4] sm:$0xf]
      %v1274 = vld [vmem:[%s1271 + $0x8] sm:$0xf]
      %v1275 = vld [vmem:[%s1271 + $0xc] sm:$0xf]
      %v1276 = vld [vmem:[%s1271 + $0x10] sm:$0xf]
      %v1277 = vld [vmem:[%s1271 + $0x14] sm:$0xf]
      %v1278 = vld [vmem:[%s1271 + $0x18] sm:$0xf]
      %v1279 = vld [vmem:[%s1271 + $0x1c] sm:$0xf]
      %v1280 = vld [vmem:[%s1271 + $0x20] sm:$0xf]
      %v1281 = vld [vmem:[%s1271 + $0x24] sm:$0xf]
      %v1282 = vld [vmem:[%s1271 + $0x28] sm:$0xf]
      %v1283 = vld [vmem:[%s1271 + $0x2c] sm:$0xf]
      %v1284 = vld [vmem:[%s1271 + $0x30] sm:$0xf]
      %v1285 = vld [vmem:[%s1271 + $0x34] sm:$0xf]
      %v1286 = vld [vmem:[%s1271 + $0x38] sm:$0xf]
      %v1287 = vld [vmem:[%s1271 + $0x3c] sm:$0xf]
      %v1304 = vunpack.c.l.b16 %v1272
      %v1305 = vunpack.c.l.b16 %v1273
      %v1306 = vunpack.c.l.b16 %v1274
      %v1307 = vunpack.c.l.b16 %v1275
      %v1308 = vunpack.c.l.b16 %v1276
      %v1309 = vunpack.c.l.b16 %v1277
      %v1310 = vunpack.c.l.b16 %v1278
      %v1311 = vunpack.c.l.b16 %v1279
      %v1312 = vunpack.c.l.b16 %v1280
      %v1313 = vunpack.c.l.b16 %v1281
      %v1314 = vunpack.c.l.b16 %v1282
      %v1315 = vunpack.c.l.b16 %v1283
      %v1316 = vunpack.c.l.b16 %v1284
      %v1317 = vunpack.c.l.b16 %v1285
      %v1318 = vunpack.c.l.b16 %v1286
      %v1319 = vunpack.c.l.b16 %v1287
      %v1320 = vpack.c.b16 %v1305, %v1304
      %v1321 = vpack.c.b16 %v1307, %v1306
      %v1322 = vpack.c.b16 %v1309, %v1308
      %v1323 = vpack.c.b16 %v1311, %v1310
      %v1324 = vpack.c.b16 %v1313, %v1312
      %v1325 = vpack.c.b16 %v1315, %v1314
      %v1326 = vpack.c.b16 %v1317, %v1316
      %v1327 = vpack.c.b16 %v1319, %v1318
      %1336 = vmatprep.subr.bf16.mxu0 0
      %1337 = vmatpush1.bf16.msra.mxu0 %v1327
      %1338 = vmatprep.subr.bf16.mxu0 0
      %1339 = vmatpush1.bf16.msra.mxu0 %v1326
      %1340 = vmatprep.subr.bf16.mxu0 0
      %1341 = vmatpush1.bf16.msra.mxu0 %v1325
      %1342 = vmatprep.subr.bf16.mxu0 0
      %1343 = vmatpush1.bf16.msra.mxu0 %v1324
      %1344 = vmatprep.subr.bf16.mxu0 0
      %1345 = vmatpush1.bf16.msra.mxu0 %v1323
      %1346 = vmatprep.subr.bf16.mxu0 0
      %1347 = vmatpush1.bf16.msra.mxu0 %v1322
      %1348 = vmatprep.subr.bf16.mxu0 0
      %1349 = vmatpush1.bf16.msra.mxu0 %v1321
      %1350 = vmatprep.subr.bf16.mxu0 0
      %1351 = vmatpush1.bf16.msra.mxu0 %v1320
      %1352 = vmatprep.subr.bf16.mxu0 0
      %1353 = vmatpush2.bf16.msra.mxu0 0
      %1354 = vmatprep.subr.bf16.mxu0 0
      %1355 = vmatpush2.bf16.msra.mxu0 0
      %1356 = vmatprep.subr.bf16.mxu0 0
      %1357 = vmatpush2.bf16.msra.mxu0 0
      %1358 = vmatprep.subr.bf16.mxu0 0
      %1359 = vmatpush2.bf16.msra.mxu0 0
      %1360 = vmatprep.subr.bf16.mxu0 0
      %1361 = vmatpush2.bf16.msra.mxu0 0
      %1362 = vmatprep.subr.bf16.mxu0 0
      %1363 = vmatpush2.bf16.msra.mxu0 0
      %1364 = vmatprep.subr.bf16.mxu0 0
      %1365 = vmatpush2.bf16.msra.mxu0 0
      %1366 = vmatprep.subr.bf16.mxu0 0
      %1367 = vmatpush2.bf16.msra.mxu0 0
      %1368 = vmatprep.mubr.bf16.mxu0 0
      %1369 = vmatmul.mubr.bf16.gmra.mxu0 %v1270
      %v1370 = vpop.f32.mrf.mxu0
      %v1371 = vadd.f32 0.0, %v1370
      %v1372 = vpop.f32.mrf.mxu0
      %v1373 = vpop.f32.mrf.mxu0
      %v1374 = vadd.f32 0.0, %v1373
      %v1375 = vpop.f32.mrf.mxu0
      %1376 = vdwg.mxu0
      %v1377 = vadd.f32 %v1266, %v1371
      %v1378 = vadd.f32 %v1267, %v1374
      %v1379 = vld [vmem:[#allocation4 + $0x11] sm:$0xff]
      %v1380 = vld [vmem:[#allocation4 + $0x19] sm:$0xff]
      %v1381 = vpack.c.bf16 %v1380, %v1379
      %v1382 = vmul.bf16 %v1381, %v813
      %s1383 = scalar_lea.vmem %s13, 320
      %v1384 = vld [vmem:[%s1383] sm:$0xf]
      %v1385 = vld [vmem:[%s1383 + $0x4] sm:$0xf]
      %v1386 = vld [vmem:[%s1383 + $0x8] sm:$0xf]
      %v1387 = vld [vmem:[%s1383 + $0xc] sm:$0xf]
      %v1388 = vld [vmem:[%s1383 + $0x10] sm:$0xf]
      %v1389 = vld [vmem:[%s1383 + $0x14] sm:$0xf]
      %v1390 = vld [vmem:[%s1383 + $0x18] sm:$0xf]
      %v1391 = vld [vmem:[%s1383 + $0x1c] sm:$0xf]
      %v1392 = vld [vmem:[%s1383 + $0x20] sm:$0xf]
      %v1393 = vld [vmem:[%s1383 + $0x24] sm:$0xf]
      %v1394 = vld [vmem:[%s1383 + $0x28] sm:$0xf]
      %v1395 = vld [vmem:[%s1383 + $0x2c] sm:$0xf]
      %v1396 = vld [vmem:[%s1383 + $0x30] sm:$0xf]
      %v1397 = vld [vmem:[%s1383 + $0x34] sm:$0xf]
      %v1398 = vld [vmem:[%s1383 + $0x38] sm:$0xf]
      %v1399 = vld [vmem:[%s1383 + $0x3c] sm:$0xf]
      %v1416 = vunpack.c.l.b16 %v1384
      %v1417 = vunpack.c.l.b16 %v1385
      %v1418 = vunpack.c.l.b16 %v1386
      %v1419 = vunpack.c.l.b16 %v1387
      %v1420 = vunpack.c.l.b16 %v1388
      %v1421 = vunpack.c.l.b16 %v1389
      %v1422 = vunpack.c.l.b16 %v1390
      %v1423 = vunpack.c.l.b16 %v1391
      %v1424 = vunpack.c.l.b16 %v1392
      %v1425 = vunpack.c.l.b16 %v1393
      %v1426 = vunpack.c.l.b16 %v1394
      %v1427 = vunpack.c.l.b16 %v1395
      %v1428 = vunpack.c.l.b16 %v1396
      %v1429 = vunpack.c.l.b16 %v1397
      %v1430 = vunpack.c.l.b16 %v1398
      %v1431 = vunpack.c.l.b16 %v1399
      %v1432 = vpack.c.b16 %v1417, %v1416
      %v1433 = vpack.c.b16 %v1419, %v1418
      %v1434 = vpack.c.b16 %v1421, %v1420
      %v1435 = vpack.c.b16 %v1423, %v1422
      %v1436 = vpack.c.b16 %v1425, %v1424
      %v1437 = vpack.c.b16 %v1427, %v1426
      %v1438 = vpack.c.b16 %v1429, %v1428
      %v1439 = vpack.c.b16 %v1431, %v1430
      %1448 = vmatprep.subr.bf16.mxu0 0
      %1449 = vmatpush1.bf16.msra.mxu0 %v1439
      %1450 = vmatprep.subr.bf16.mxu0 0
      %1451 = vmatpush1.bf16.msra.mxu0 %v1438
      %1452 = vmatprep.subr.bf16.mxu0 0
      %1453 = vmatpush1.bf16.msra.mxu0 %v1437
      %1454 = vmatprep.subr.bf16.mxu0 0
      %1455 = vmatpush1.bf16.msra.mxu0 %v1436
      %1456 = vmatprep.subr.bf16.mxu0 0
      %1457 = vmatpush1.bf16.msra.mxu0 %v1435
      %1458 = vmatprep.subr.bf16.mxu0 0
      %1459 = vmatpush1.bf16.msra.mxu0 %v1434
      %1460 = vmatprep.subr.bf16.mxu0 0
      %1461 = vmatpush1.bf16.msra.mxu0 %v1433
      %1462 = vmatprep.subr.bf16.mxu0 0
      %1463 = vmatpush1.bf16.msra.mxu0 %v1432
      %1464 = vmatprep.subr.bf16.mxu0 0
      %1465 = vmatpush2.bf16.msra.mxu0 0
      %1466 = vmatprep.subr.bf16.mxu0 0
      %1467 = vmatpush2.bf16.msra.mxu0 0
      %1468 = vmatprep.subr.bf16.mxu0 0
      %1469 = vmatpush2.bf16.msra.mxu0 0
      %1470 = vmatprep.subr.bf16.mxu0 0
      %1471 = vmatpush2.bf16.msra.mxu0 0
      %1472 = vmatprep.subr.bf16.mxu0 0
      %1473 = vmatpush2.bf16.msra.mxu0 0
      %1474 = vmatprep.subr.bf16.mxu0 0
      %1475 = vmatpush2.bf16.msra.mxu0 0
      %1476 = vmatprep.subr.bf16.mxu0 0
      %1477 = vmatpush2.bf16.msra.mxu0 0
      %1478 = vmatprep.subr.bf16.mxu0 0
      %1479 = vmatpush2.bf16.msra.mxu0 0
      %1480 = vmatprep.mubr.bf16.mxu0 0
      %1481 = vmatmul.mubr.bf16.gmra.mxu0 %v1382
      %v1482 = vpop.f32.mrf.mxu0
      %v1483 = vadd.f32 0.0, %v1482
      %v1484 = vpop.f32.mrf.mxu0
      %v1485 = vpop.f32.mrf.mxu0
      %v1486 = vadd.f32 0.0, %v1485
      %v1487 = vpop.f32.mrf.mxu0
      %1488 = vdwg.mxu0
      %v1489 = vadd.f32 %v1377, %v1483
      %v1490 = vadd.f32 %v1378, %v1486
      %v1491 = vld [vmem:[#allocation4 + $0x13] sm:$0xff]
      %v1492 = vld [vmem:[#allocation4 + $0x1b] sm:$0xff]
      %v1493 = vpack.c.bf16 %v1492, %v1491
      %v1494 = vmul.bf16 %v1493, %v806
      %s1495 = scalar_lea.vmem %s13, 384
      %v1496 = vld [vmem:[%s1495] sm:$0xf]
      %v1497 = vld [vmem:[%s1495 + $0x4] sm:$0xf]
      %v1498 = vld [vmem:[%s1495 + $0x8] sm:$0xf]
      %v1499 = vld [vmem:[%s1495 + $0xc] sm:$0xf]
      %v1500 = vld [vmem:[%s1495 + $0x10] sm:$0xf]
      %v1501 = vld [vmem:[%s1495 + $0x14] sm:$0xf]
      %v1502 = vld [vmem:[%s1495 + $0x18] sm:$0xf]
      %v1503 = vld [vmem:[%s1495 + $0x1c] sm:$0xf]
      %v1504 = vld [vmem:[%s1495 + $0x20] sm:$0xf]
      %v1505 = vld [vmem:[%s1495 + $0x24] sm:$0xf]
      %v1506 = vld [vmem:[%s1495 + $0x28] sm:$0xf]
      %v1507 = vld [vmem:[%s1495 + $0x2c] sm:$0xf]
      %v1508 = vld [vmem:[%s1495 + $0x30] sm:$0xf]
      %v1509 = vld [vmem:[%s1495 + $0x34] sm:$0xf]
      %v1510 = vld [vmem:[%s1495 + $0x38] sm:$0xf]
      %v1511 = vld [vmem:[%s1495 + $0x3c] sm:$0xf]
      %v1528 = vunpack.c.l.b16 %v1496
      %v1529 = vunpack.c.l.b16 %v1497
      %v1530 = vunpack.c.l.b16 %v1498
      %v1531 = vunpack.c.l.b16 %v1499
      %v1532 = vunpack.c.l.b16 %v1500
      %v1533 = vunpack.c.l.b16 %v1501
      %v1534 = vunpack.c.l.b16 %v1502
      %v1535 = vunpack.c.l.b16 %v1503
      %v1536 = vunpack.c.l.b16 %v1504
      %v1537 = vunpack.c.l.b16 %v1505
      %v1538 = vunpack.c.l.b16 %v1506
      %v1539 = vunpack.c.l.b16 %v1507
      %v1540 = vunpack.c.l.b16 %v1508
      %v1541 = vunpack.c.l.b16 %v1509
      %v1542 = vunpack.c.l.b16 %v1510
      %v1543 = vunpack.c.l.b16 %v1511
      %v1544 = vpack.c.b16 %v1529, %v1528
      %v1545 = vpack.c.b16 %v1531, %v1530
      %v1546 = vpack.c.b16 %v1533, %v1532
      %v1547 = vpack.c.b16 %v1535, %v1534
      %v1548 = vpack.c.b16 %v1537, %v1536
      %v1549 = vpack.c.b16 %v1539, %v1538
      %v1550 = vpack.c.b16 %v1541, %v1540
      %v1551 = vpack.c.b16 %v1543, %v1542
      %1560 = vmatprep.subr.bf16.mxu0 0
      %1561 = vmatpush1.bf16.msra.mxu0 %v1551
      %1562 = vmatprep.subr.bf16.mxu0 0
      %1563 = vmatpush1.bf16.msra.mxu0 %v1550
      %1564 = vmatprep.subr.bf16.mxu0 0
      %1565 = vmatpush1.bf16.msra.mxu0 %v1549
      %1566 = vmatprep.subr.bf16.mxu0 0
      %1567 = vmatpush1.bf16.msra.mxu0 %v1548
      %1568 = vmatprep.subr.bf16.mxu0 0
      %1569 = vmatpush1.bf16.msra.mxu0 %v1547
      %1570 = vmatprep.subr.bf16.mxu0 0
      %1571 = vmatpush1.bf16.msra.mxu0 %v1546
      %1572 = vmatprep.subr.bf16.mxu0 0
      %1573 = vmatpush1.bf16.msra.mxu0 %v1545
      %1574 = vmatprep.subr.bf16.mxu0 0
      %1575 = vmatpush1.bf16.msra.mxu0 %v1544
      %1576 = vmatprep.subr.bf16.mxu0 0
      %1577 = vmatpush2.bf16.msra.mxu0 0
      %1578 = vmatprep.subr.bf16.mxu0 0
      %1579 = vmatpush2.bf16.msra.mxu0 0
      %1580 = vmatprep.subr.bf16.mxu0 0
      %1581 = vmatpush2.bf16.msra.mxu0 0
      %1582 = vmatprep.subr.bf16.mxu0 0
      %1583 = vmatpush2.bf16.msra.mxu0 0
      %1584 = vmatprep.subr.bf16.mxu0 0
      %1585 = vmatpush2.bf16.msra.mxu0 0
      %1586 = vmatprep.subr.bf16.mxu0 0
      %1587 = vmatpush2.bf16.msra.mxu0 0
      %1588 = vmatprep.subr.bf16.mxu0 0
      %1589 = vmatpush2.bf16.msra.mxu0 0
      %1590 = vmatprep.subr.bf16.mxu0 0
      %1591 = vmatpush2.bf16.msra.mxu0 0
      %1592 = vmatprep.mubr.bf16.mxu0 0
      %1593 = vmatmul.mubr.bf16.gmra.mxu0 %v1494
      %v1594 = vpop.f32.mrf.mxu0
      %v1595 = vadd.f32 0.0, %v1594
      %v1596 = vpop.f32.mrf.mxu0
      %v1597 = vpop.f32.mrf.mxu0
      %v1598 = vadd.f32 0.0, %v1597
      %v1599 = vpop.f32.mrf.mxu0
      %1600 = vdwg.mxu0
      %v1601 = vadd.f32 %v1489, %v1595
      %v1602 = vadd.f32 %v1490, %v1598
      %v1603 = vld [vmem:[#allocation4 + $0x14] sm:$0xff]
      %v1604 = vld [vmem:[#allocation4 + $0x1c] sm:$0xff]
      %v1605 = vpack.c.bf16 %v1604, %v1603
      %s1606 = scalar_lea.vmem %s13, 448
      %v1607 = vld [vmem:[%s1606] sm:$0xf]
      %v1608 = vld [vmem:[%s1606 + $0x4] sm:$0xf]
      %v1609 = vld [vmem:[%s1606 + $0x8] sm:$0xf]
      %v1610 = vld [vmem:[%s1606 + $0xc] sm:$0xf]
      %v1611 = vld [vmem:[%s1606 + $0x10] sm:$0xf]
      %v1612 = vld [vmem:[%s1606 + $0x14] sm:$0xf]
      %v1613 = vld [vmem:[%s1606 + $0x18] sm:$0xf]
      %v1614 = vld [vmem:[%s1606 + $0x1c] sm:$0xf]
      %v1615 = vld [vmem:[%s1606 + $0x20] sm:$0xf]
      %v1616 = vld [vmem:[%s1606 + $0x24] sm:$0xf]
      %v1617 = vld [vmem:[%s1606 + $0x28] sm:$0xf]
      %v1618 = vld [vmem:[%s1606 + $0x2c] sm:$0xf]
      %v1619 = vld [vmem:[%s1606 + $0x30] sm:$0xf]
      %v1620 = vld [vmem:[%s1606 + $0x34] sm:$0xf]
      %v1621 = vld [vmem:[%s1606 + $0x38] sm:$0xf]
      %v1622 = vld [vmem:[%s1606 + $0x3c] sm:$0xf]
      %v1639 = vunpack.c.l.b16 %v1607
      %v1640 = vunpack.c.l.b16 %v1608
      %v1641 = vunpack.c.l.b16 %v1609
      %v1642 = vunpack.c.l.b16 %v1610
      %v1643 = vunpack.c.l.b16 %v1611
      %v1644 = vunpack.c.l.b16 %v1612
      %v1645 = vunpack.c.l.b16 %v1613
      %v1646 = vunpack.c.l.b16 %v1614
      %v1647 = vunpack.c.l.b16 %v1615
      %v1648 = vunpack.c.l.b16 %v1616
      %v1649 = vunpack.c.l.b16 %v1617
      %v1650 = vunpack.c.l.b16 %v1618
      %v1651 = vunpack.c.l.b16 %v1619
      %v1652 = vunpack.c.l.b16 %v1620
      %v1653 = vunpack.c.l.b16 %v1621
      %v1654 = vunpack.c.l.b16 %v1622
      %v1655 = vpack.c.b16 %v1640, %v1639
      %v1656 = vpack.c.b16 %v1642, %v1641
      %v1657 = vpack.c.b16 %v1644, %v1643
      %v1658 = vpack.c.b16 %v1646, %v1645
      %v1659 = vpack.c.b16 %v1648, %v1647
      %v1660 = vpack.c.b16 %v1650, %v1649
      %v1661 = vpack.c.b16 %v1652, %v1651
      %v1662 = vpack.c.b16 %v1654, %v1653
      %1671 = vmatprep.subr.bf16.mxu0 0
      %1672 = vmatpush1.bf16.msra.mxu0 %v1662
      %1673 = vmatprep.subr.bf16.mxu0 0
      %1674 = vmatpush1.bf16.msra.mxu0 %v1661
      %1675 = vmatprep.subr.bf16.mxu0 0
      %1676 = vmatpush1.bf16.msra.mxu0 %v1660
      %1677 = vmatprep.subr.bf16.mxu0 0
      %1678 = vmatpush1.bf16.msra.mxu0 %v1659
      %1679 = vmatprep.subr.bf16.mxu0 0
      %1680 = vmatpush1.bf16.msra.mxu0 %v1658
      %1681 = vmatprep.subr.bf16.mxu0 0
      %1682 = vmatpush1.bf16.msra.mxu0 %v1657
      %1683 = vmatprep.subr.bf16.mxu0 0
      %1684 = vmatpush1.bf16.msra.mxu0 %v1656
      %1685 = vmatprep.subr.bf16.mxu0 0
      %1686 = vmatpush1.bf16.msra.mxu0 %v1655
      %1687 = vmatprep.subr.bf16.mxu0 0
      %1688 = vmatpush2.bf16.msra.mxu0 0
      %1689 = vmatprep.subr.bf16.mxu0 0
      %1690 = vmatpush2.bf16.msra.mxu0 0
      %1691 = vmatprep.subr.bf16.mxu0 0
      %1692 = vmatpush2.bf16.msra.mxu0 0
      %1693 = vmatprep.subr.bf16.mxu0 0
      %1694 = vmatpush2.bf16.msra.mxu0 0
      %1695 = vmatprep.subr.bf16.mxu0 0
      %1696 = vmatpush2.bf16.msra.mxu0 0
      %1697 = vmatprep.subr.bf16.mxu0 0
      %1698 = vmatpush2.bf16.msra.mxu0 0
      %1699 = vmatprep.subr.bf16.mxu0 0
      %1700 = vmatpush2.bf16.msra.mxu0 0
      %1701 = vmatprep.subr.bf16.mxu0 0
      %1702 = vmatpush2.bf16.msra.mxu0 0
      %1703 = vmatprep.mubr.bf16.mxu0 0
      %1704 = vmatmul.mubr.bf16.gmra.mxu0 %v1605
      %v1705 = vpop.f32.mrf.mxu0
      %v1706 = vadd.f32 0.0, %v1705
      %v1707 = vpop.f32.mrf.mxu0
      %v1708 = vpop.f32.mrf.mxu0
      %v1709 = vadd.f32 0.0, %v1708
      %v1710 = vpop.f32.mrf.mxu0
      %1711 = vdwg.mxu0
      %v1712 = vadd.f32 %v1601, %v1706
      %v1713 = vadd.f32 %v1602, %v1709
      %v1714 = vld [vmem:[#allocation4 + $0x15] sm:$0xff]
      %v1715 = vld [vmem:[#allocation4 + $0x1d] sm:$0xff]
      %v1716 = vpack.c.bf16 %v1715, %v1714
      %v1717 = vmul.bf16 %v1716, %v813
      %s1718 = scalar_lea.vmem %s13, 512
      %v1719 = vld [vmem:[%s1718] sm:$0xf]
      %v1720 = vld [vmem:[%s1718 + $0x4] sm:$0xf]
      %v1721 = vld [vmem:[%s1718 + $0x8] sm:$0xf]
      %v1722 = vld [vmem:[%s1718 + $0xc] sm:$0xf]
      %v1723 = vld [vmem:[%s1718 + $0x10] sm:$0xf]
      %v1724 = vld [vmem:[%s1718 + $0x14] sm:$0xf]
      %v1725 = vld [vmem:[%s1718 + $0x18] sm:$0xf]
      %v1726 = vld [vmem:[%s1718 + $0x1c] sm:$0xf]
      %v1727 = vld [vmem:[%s1718 + $0x20] sm:$0xf]
      %v1728 = vld [vmem:[%s1718 + $0x24] sm:$0xf]
      %v1729 = vld [vmem:[%s1718 + $0x28] sm:$0xf]
      %v1730 = vld [vmem:[%s1718 + $0x2c] sm:$0xf]
      %v1731 = vld [vmem:[%s1718 + $0x30] sm:$0xf]
      %v1732 = vld [vmem:[%s1718 + $0x34] sm:$0xf]
      %v1733 = vld [vmem:[%s1718 + $0x38] sm:$0xf]
      %v1734 = vld [vmem:[%s1718 + $0x3c] sm:$0xf]
      %v1751 = vunpack.c.l.b16 %v1719
      %v1752 = vunpack.c.l.b16 %v1720
      %v1753 = vunpack.c.l.b16 %v1721
      %v1754 = vunpack.c.l.b16 %v1722
      %v1755 = vunpack.c.l.b16 %v1723
      %v1756 = vunpack.c.l.b16 %v1724
      %v1757 = vunpack.c.l.b16 %v1725
      %v1758 = vunpack.c.l.b16 %v1726
      %v1759 = vunpack.c.l.b16 %v1727
      %v1760 = vunpack.c.l.b16 %v1728
      %v1761 = vunpack.c.l.b16 %v1729
      %v1762 = vunpack.c.l.b16 %v1730
      %v1763 = vunpack.c.l.b16 %v1731
      %v1764 = vunpack.c.l.b16 %v1732
      %v1765 = vunpack.c.l.b16 %v1733
      %v1766 = vunpack.c.l.b16 %v1734
      %v1767 = vpack.c.b16 %v1752, %v1751
      %v1768 = vpack.c.b16 %v1754, %v1753
      %v1769 = vpack.c.b16 %v1756, %v1755
      %v1770 = vpack.c.b16 %v1758, %v1757
      %v1771 = vpack.c.b16 %v1760, %v1759
      %v1772 = vpack.c.b16 %v1762, %v1761
      %v1773 = vpack.c.b16 %v1764, %v1763
      %v1774 = vpack.c.b16 %v1766, %v1765
      %1783 = vmatprep.subr.bf16.mxu0 0
      %1784 = vmatpush1.bf16.msra.mxu0 %v1774
      %1785 = vmatprep.subr.bf16.mxu0 0
      %1786 = vmatpush1.bf16.msra.mxu0 %v1773
      %1787 = vmatprep.subr.bf16.mxu0 0
      %1788 = vmatpush1.bf16.msra.mxu0 %v1772
      %1789 = vmatprep.subr.bf16.mxu0 0
      %1790 = vmatpush1.bf16.msra.mxu0 %v1771
      %1791 = vmatprep.subr.bf16.mxu0 0
      %1792 = vmatpush1.bf16.msra.mxu0 %v1770
      %1793 = vmatprep.subr.bf16.mxu0 0
      %1794 = vmatpush1.bf16.msra.mxu0 %v1769
      %1795 = vmatprep.subr.bf16.mxu0 0
      %1796 = vmatpush1.bf16.msra.mxu0 %v1768
      %1797 = vmatprep.subr.bf16.mxu0 0
      %1798 = vmatpush1.bf16.msra.mxu0 %v1767
      %1799 = vmatprep.subr.bf16.mxu0 0
      %1800 = vmatpush2.bf16.msra.mxu0 0
      %1801 = vmatprep.subr.bf16.mxu0 0
      %1802 = vmatpush2.bf16.msra.mxu0 0
      %1803 = vmatprep.subr.bf16.mxu0 0
      %1804 = vmatpush2.bf16.msra.mxu0 0
      %1805 = vmatprep.subr.bf16.mxu0 0
      %1806 = vmatpush2.bf16.msra.mxu0 0
      %1807 = vmatprep.subr.bf16.mxu0 0
      %1808 = vmatpush2.bf16.msra.mxu0 0
      %1809 = vmatprep.subr.bf16.mxu0 0
      %1810 = vmatpush2.bf16.msra.mxu0 0
      %1811 = vmatprep.subr.bf16.mxu0 0
      %1812 = vmatpush2.bf16.msra.mxu0 0
      %1813 = vmatprep.subr.bf16.mxu0 0
      %1814 = vmatpush2.bf16.msra.mxu0 0
      %1815 = vmatprep.mubr.bf16.mxu0 0
      %1816 = vmatmul.mubr.bf16.gmra.mxu0 %v1717
      %v1817 = vpop.f32.mrf.mxu0
      %v1818 = vadd.f32 0.0, %v1817
      %v1819 = vpop.f32.mrf.mxu0
      %v1820 = vpop.f32.mrf.mxu0
      %v1821 = vadd.f32 0.0, %v1820
      %v1822 = vpop.f32.mrf.mxu0
      %1823 = vdwg.mxu0
      %v1824 = vadd.f32 %v1712, %v1818
      %v1825 = vadd.f32 %v1713, %v1821
      %1826 = vst [vmem:[%s667] sm:$0xff] %v1824
      %1827 = vst [vmem:[%s667 + $0x8] sm:$0xff] %v1825
      %v1828 = vpack.c.bf16 %v786, %v783
      %v1829 = vld [vmem:[%s647] sm:$0xf]
      %v1830 = vld [vmem:[%s647 + $0x4] sm:$0xf]
      %v1831 = vld [vmem:[%s647 + $0x8] sm:$0xf]
      %v1832 = vld [vmem:[%s647 + $0xc] sm:$0xf]
      %v1833 = vld [vmem:[%s647 + $0x10] sm:$0xf]
      %v1834 = vld [vmem:[%s647 + $0x14] sm:$0xf]
      %v1835 = vld [vmem:[%s647 + $0x18] sm:$0xf]
      %v1836 = vld [vmem:[%s647 + $0x1c] sm:$0xf]
      %v1837 = vld [vmem:[%s7] sm:$0xf]
      %v1838 = vld [vmem:[%s7 + $0x4] sm:$0xf]
      %v1839 = vld [vmem:[%s7 + $0x8] sm:$0xf]
      %v1840 = vld [vmem:[%s7 + $0xc] sm:$0xf]
      %v1841 = vld [vmem:[%s7 + $0x10] sm:$0xf]
      %v1842 = vld [vmem:[%s7 + $0x14] sm:$0xf]
      %v1843 = vld [vmem:[%s7 + $0x18] sm:$0xf]
      %v1844 = vld [vmem:[%s7 + $0x1c] sm:$0xf]
      %v1845 = vld [vmem:[%s8] sm:$0x1]
      %v1847 = vlaneseq
      %v1848 = vshrl.u32 %v1847, 7
      %v1849 = vsub.s32 0, %v1848
      %v1850 = vrot.slane %v1845, %v1849
      %v1860 = vunpack.c.l.b16 %v1829
      %v1861 = vunpack.c.l.b16 %v1830
      %v1862 = vunpack.c.l.b16 %v1831
      %v1863 = vunpack.c.l.b16 %v1832
      %v1864 = vunpack.c.l.b16 %v1833
      %v1865 = vunpack.c.l.b16 %v1834
      %v1866 = vunpack.c.l.b16 %v1835
      %v1867 = vunpack.c.l.b16 %v1836
      %v1868 = vpack.c.b16 %v1861, %v1860
      %v1869 = vpack.c.b16 %v1863, %v1862
      %v1870 = vpack.c.b16 %v1865, %v1864
      %v1871 = vpack.c.b16 %v1867, %v1866
      %v1880 = vunpack.c.l.b16 %v1837
      %v1881 = vunpack.c.l.b16 %v1838
      %v1882 = vunpack.c.l.b16 %v1839
      %v1883 = vunpack.c.l.b16 %v1840
      %v1884 = vunpack.c.l.b16 %v1841
      %v1885 = vunpack.c.l.b16 %v1842
      %v1886 = vunpack.c.l.b16 %v1843
      %v1887 = vunpack.c.l.b16 %v1844
      %v1888 = vpack.c.b16 %v1881, %v1880
      %v1889 = vpack.c.b16 %v1883, %v1882
      %v1890 = vpack.c.b16 %v1885, %v1884
      %v1891 = vpack.c.b16 %v1887, %v1886
      %vm1896 = vcmask 523264
      %v1898 = vsel %vm1896, %v1868, 0
      %v1901 = vsel %vm1896, %v1869, 0
      %v1904 = vsel %vm1896, %v1870, 0
      %v1907 = vsel %vm1896, %v1871, 0
      %1909 = vmatprep.subr.bf16.mxu0 0
      %1910 = vmatpush1.bf16.msra.mxu0 0
      %1911 = vmatprep.subr.bf16.mxu0 0
      %1912 = vmatpush1.bf16.msra.mxu0 0
      %1913 = vmatprep.subr.bf16.mxu0 0
      %1914 = vmatpush1.bf16.msra.mxu0 0
      %1915 = vmatprep.subr.bf16.mxu0 0
      %1916 = vmatpush1.bf16.msra.mxu0 0
      %1917 = vmatprep.subr.bf16.mxu0 0
      %1918 = vmatpush1.bf16.msra.mxu0 %v1891
      %1919 = vmatprep.subr.bf16.mxu0 0
      %1920 = vmatpush1.bf16.msra.mxu0 %v1890
      %1921 = vmatprep.subr.bf16.mxu0 0
      %1922 = vmatpush1.bf16.msra.mxu0 %v1889
      %1923 = vmatprep.subr.bf16.mxu0 0
      %1924 = vmatpush1.bf16.msra.mxu0 %v1888
      %1925 = vmatprep.subr.bf16.mxu0 0
      %1926 = vmatpush2.bf16.msra.mxu0 0
      %1927 = vmatprep.subr.bf16.mxu0 0
      %1928 = vmatpush2.bf16.msra.mxu0 0
      %1929 = vmatprep.subr.bf16.mxu0 0
      %1930 = vmatpush2.bf16.msra.mxu0 0
      %1931 = vmatprep.subr.bf16.mxu0 0
      %1932 = vmatpush2.bf16.msra.mxu0 0
      %1933 = vmatprep.subr.bf16.mxu0 0
      %1934 = vmatpush2.bf16.msra.mxu0 0
      %1935 = vmatprep.subr.bf16.mxu0 0
      %1936 = vmatpush2.bf16.msra.mxu0 0
      %1937 = vmatprep.subr.bf16.mxu0 0
      %1938 = vmatpush2.bf16.msra.mxu0 0
      %1939 = vmatprep.subr.bf16.mxu0 0
      %1940 = vmatpush2.bf16.msra.mxu0 0
      %1941 = vmatprep.mubr.bf16.mxu0 0
      %1942 = vmatmul.mubr.bf16.gmra.mxu0 %v1898
      %v1943 = vpop.f32.mrf.mxu0
      %v1944 = vadd.f32 %v1850, %v1943
      %v1945 = vpop.f32.mrf.mxu0
      %v1946 = vpop.f32.mrf.mxu0
      %v1947 = vadd.f32 %v1850, %v1946
      %v1948 = vpop.f32.mrf.mxu0
      %1949 = vmatprep.mubr.bf16.mxu0 0
      %1950 = vmatmul.mubr.bf16.gmra.mxu0 %v1901
      %v1951 = vpop.f32.mrf.mxu0
      %v1952 = vadd.f32 %v1850, %v1951
      %v1953 = vpop.f32.mrf.mxu0
      %v1954 = vpop.f32.mrf.mxu0
      %v1955 = vadd.f32 %v1850, %v1954
      %v1956 = vpop.f32.mrf.mxu0
      %1957 = vmatprep.mubr.bf16.mxu0 0
      %1958 = vmatmul.mubr.bf16.gmra.mxu0 %v1904
      %v1959 = vpop.f32.mrf.mxu0
      %v1960 = vadd.f32 %v1850, %v1959
      %v1961 = vpop.f32.mrf.mxu0
      %v1962 = vpop.f32.mrf.mxu0
      %v1963 = vadd.f32 %v1850, %v1962
      %v1964 = vpop.f32.mrf.mxu0
      %1965 = vmatprep.mubr.bf16.mxu0 0
      %1966 = vmatmul.mubr.bf16.gmra.mxu0 %v1907
      %v1967 = vpop.f32.mrf.mxu0
      %v1968 = vadd.f32 %v1850, %v1967
      %v1969 = vpop.f32.mrf.mxu0
      %v1970 = vpop.f32.mrf.mxu0
      %v1971 = vadd.f32 %v1850, %v1970
      %v1972 = vpop.f32.mrf.mxu0
      %1973 = vdwg.mxu0
      %v1974 = vld [vmem:[%s16] sm:$0xf]
      %v1975 = vld [vmem:[%s16 + $0x4] sm:$0xf]
      %v1976 = vld [vmem:[%s16 + $0x8] sm:$0xf]
      %v1977 = vld [vmem:[%s16 + $0xc] sm:$0xf]
      %v1978 = vld [vmem:[%s16 + $0x10] sm:$0xf]
      %v1979 = vld [vmem:[%s16 + $0x14] sm:$0xf]
      %v1980 = vld [vmem:[%s16 + $0x18] sm:$0xf]
      %v1981 = vld [vmem:[%s16 + $0x1c] sm:$0xf]
      %v1990 = vunpack.c.l.b16 %v1974
      %v1991 = vunpack.c.l.b16 %v1975
      %v1992 = vunpack.c.l.b16 %v1976
      %v1993 = vunpack.c.l.b16 %v1977
      %v1994 = vunpack.c.l.b16 %v1978
      %v1995 = vunpack.c.l.b16 %v1979
      %v1996 = vunpack.c.l.b16 %v1980
      %v1997 = vunpack.c.l.b16 %v1981
      %v1998 = vpack.c.b16 %v1991, %v1990
      %v1999 = vpack.c.b16 %v1993, %v1992
      %v2000 = vpack.c.b16 %v1995, %v1994
      %v2001 = vpack.c.b16 %v1997, %v1996
      %vm2002 = vcmask 130048
      %v2004 = vsel %vm2002, %v1998, 0
      %v2007 = vsel %vm2002, %v1999, 0
      %v2010 = vsel %vm2002, %v2000, 0
      %v2013 = vsel %vm2002, %v2001, 0
      %2015 = vmatprep.subr.bf16.mxu0 0
      %2016 = vmatpush1.bf16.msra.mxu0 0
      %2017 = vmatprep.subr.bf16.mxu0 0
      %2018 = vmatpush1.bf16.msra.mxu0 0
      %2019 = vmatprep.subr.bf16.mxu0 0
      %2020 = vmatpush1.bf16.msra.mxu0 0
      %2021 = vmatprep.subr.bf16.mxu0 0
      %2022 = vmatpush1.bf16.msra.mxu0 0
      %2023 = vmatprep.subr.bf16.mxu0 0
      %2024 = vmatpush1.bf16.msra.mxu0 0
      %2025 = vmatprep.subr.bf16.mxu0 0
      %2026 = vmatpush1.bf16.msra.mxu0 0
      %2027 = vmatprep.subr.bf16.mxu0 0
      %2028 = vmatpush1.bf16.msra.mxu0 0
      %2029 = vmatprep.subr.bf16.mxu0 0
      %2030 = vmatpush1.bf16.msra.mxu0 %v1828
      %2031 = vmatprep.subr.bf16.mxu0 0
      %2032 = vmatpush2.bf16.msra.mxu0 0
      %2033 = vmatprep.subr.bf16.mxu0 0
      %2034 = vmatpush2.bf16.msra.mxu0 0
      %2035 = vmatprep.subr.bf16.mxu0 0
      %2036 = vmatpush2.bf16.msra.mxu0 0
      %2037 = vmatprep.subr.bf16.mxu0 0
      %2038 = vmatpush2.bf16.msra.mxu0 0
      %2039 = vmatprep.subr.bf16.mxu0 0
      %2040 = vmatpush2.bf16.msra.mxu0 0
      %2041 = vmatprep.subr.bf16.mxu0 0
      %2042 = vmatpush2.bf16.msra.mxu0 0
      %2043 = vmatprep.subr.bf16.mxu0 0
      %2044 = vmatpush2.bf16.msra.mxu0 0
      %2045 = vmatprep.subr.bf16.mxu0 0
      %2046 = vmatpush2.bf16.msra.mxu0 0
      %2047 = vmatprep.mubr.bf16.mxu0 0
      %2048 = vmatmul.mubr.bf16.gmra.mxu0 %v2004
      %v2049 = vpop.f32.mrf.mxu0
      %v2050 = vadd.f32 0.0, %v2049
      %v2051 = vpop.f32.mrf.mxu0
      %v2052 = vpop.f32.mrf.mxu0
      %v2053 = vadd.f32 0.0, %v2052
      %v2054 = vpop.f32.mrf.mxu0
      %2055 = vmatprep.mubr.bf16.mxu0 0
      %2056 = vmatmul.mubr.bf16.gmra.mxu0 %v2007
      %v2057 = vpop.f32.mrf.mxu0
      %v2058 = vadd.f32 0.0, %v2057
      %v2059 = vpop.f32.mrf.mxu0
      %v2060 = vpop.f32.mrf.mxu0
      %v2061 = vadd.f32 0.0, %v2060
      %v2062 = vpop.f32.mrf.mxu0
      %2063 = vmatprep.mubr.bf16.mxu0 0
      %2064 = vmatmul.mubr.bf16.gmra.mxu0 %v2010
      %v2065 = vpop.f32.mrf.mxu0
      %v2066 = vadd.f32 0.0, %v2065
      %v2067 = vpop.f32.mrf.mxu0
      %v2068 = vpop.f32.mrf.mxu0
      %v2069 = vadd.f32 0.0, %v2068
      %v2070 = vpop.f32.mrf.mxu0
      %2071 = vmatprep.mubr.bf16.mxu0 0
      %2072 = vmatmul.mubr.bf16.gmra.mxu0 %v2013
      %v2073 = vpop.f32.mrf.mxu0
      %v2074 = vadd.f32 0.0, %v2073
      %v2075 = vpop.f32.mrf.mxu0
      %v2076 = vpop.f32.mrf.mxu0
      %v2077 = vadd.f32 0.0, %v2076
      %v2078 = vpop.f32.mrf.mxu0
      %2079 = vdwg.mxu0
      %v2080 = vadd.f32 %v1944, %v2050
      %v2081 = vadd.f32 %v1947, %v2053
      %v2082 = vadd.f32 %v1952, %v2058
      %v2083 = vadd.f32 %v1955, %v2061
      %v2084 = vadd.f32 %v1960, %v2066
      %v2085 = vadd.f32 %v1963, %v2069
      %v2086 = vadd.f32 %v1968, %v2074
      %v2087 = vadd.f32 %v1971, %v2077
      %2088 = vst [vmem:[#allocation3] sm:$0xff] 0.0
      %2089 = vst [vmem:[#allocation3 + $0x8] sm:$0xff] 0.0
      %2090 = vst [vmem:[#allocation3 + $0x50] sm:$0xff] 0.0
      %2091 = vst [vmem:[#allocation3 + $0x58] sm:$0xff] 0.0
      %2092 = vst [vmem:[#allocation3 + $0x10] sm:$0xff] %v2080
      %2093 = vst [vmem:[#allocation3 + $0x18] sm:$0xff] %v2081
      %2094 = vst [vmem:[#allocation3 + $0x20] sm:$0xff] %v2082
      %2095 = vst [vmem:[#allocation3 + $0x28] sm:$0xff] %v2083
      %2096 = vst [vmem:[#allocation3 + $0x30] sm:$0xff] %v2084
      %2097 = vst [vmem:[#allocation3 + $0x38] sm:$0xff] %v2085
      %2098 = vst [vmem:[#allocation3 + $0x40] sm:$0xff] %v2086
      %2099 = vst [vmem:[#allocation3 + $0x48] sm:$0xff] %v2087
      %v2100 = vadd.s32 %v796, 16
      %v2101 = vadd.s32 %v796, 24
      %v2102 = vadd.s32 %v796, 32
      %v2103 = vadd.s32 %v796, 40
      %v2104 = vadd.s32 %v796, 48
      %v2105 = vadd.s32 %v796, 56
      %v2106 = vand.u32 %v796, 7
      %v2107 = vand.u32 %v797, 7
      %v2108 = vand.u32 %v2100, 7
      %v2109 = vand.u32 %v2101, 7
      %v2110 = vand.u32 %v2102, 7
      %v2111 = vand.u32 %v2103, 7
      %v2112 = vand.u32 %v2104, 7
      %v2113 = vand.u32 %v2105, 7
      %vm2114 = vcmp.ne.s32.totalorder %v2106, 0
      %vm2115 = vcmp.ne.s32.totalorder %v2107, 0
      %vm2116 = vcmp.ne.s32.totalorder %v2108, 0
      %vm2117 = vcmp.ne.s32.totalorder %v2109, 0
      %vm2118 = vcmp.ne.s32.totalorder %v2110, 0
      %vm2119 = vcmp.ne.s32.totalorder %v2111, 0
      %vm2120 = vcmp.ne.s32.totalorder %v2112, 0
      %vm2121 = vcmp.ne.s32.totalorder %v2113, 0
      %v2122 = vsel %vm2114, 1, 0
      %v2123 = vsel %vm2115, 1, 0
      %v2124 = vsel %vm2116, 1, 0
      %v2125 = vsel %vm2117, 1, 0
      %v2126 = vsel %vm2118, 1, 0
      %v2127 = vsel %vm2119, 1, 0
      %v2128 = vsel %vm2120, 1, 0
      %v2129 = vsel %vm2121, 1, 0
      %v2130 = vcvt.s32.f32 %v2122
      %v2131 = vcvt.s32.f32 %v2123
      %v2132 = vcvt.s32.f32 %v2124
      %v2133 = vcvt.s32.f32 %v2125
      %v2134 = vcvt.s32.f32 %v2126
      %v2135 = vcvt.s32.f32 %v2127
      %v2136 = vcvt.s32.f32 %v2128
      %v2137 = vcvt.s32.f32 %v2129
      %v2138 = vpack.c.bf16 %v2131, %v2130
      %v2139 = vpack.c.bf16 %v2133, %v2132
      %v2140 = vpack.c.bf16 %v2135, %v2134
      %v2141 = vpack.c.bf16 %v2137, %v2136
      %vm2142 = vcmp.ne.s32.totalorder %v2106, 7
      %vm2143 = vcmp.ne.s32.totalorder %v2107, 7
      %vm2144 = vcmp.ne.s32.totalorder %v2108, 7
      %vm2145 = vcmp.ne.s32.totalorder %v2109, 7
      %vm2146 = vcmp.ne.s32.totalorder %v2110, 7
      %vm2147 = vcmp.ne.s32.totalorder %v2111, 7
      %vm2148 = vcmp.ne.s32.totalorder %v2112, 7
      %vm2149 = vcmp.ne.s32.totalorder %v2113, 7
      %v2150 = vsel %vm2142, 1, 0
      %v2151 = vsel %vm2143, 1, 0
      %v2152 = vsel %vm2144, 1, 0
      %v2153 = vsel %vm2145, 1, 0
      %v2154 = vsel %vm2146, 1, 0
      %v2155 = vsel %vm2147, 1, 0
      %v2156 = vsel %vm2148, 1, 0
      %v2157 = vsel %vm2149, 1, 0
      %v2158 = vcvt.s32.f32 %v2150
      %v2159 = vcvt.s32.f32 %v2151
      %v2160 = vcvt.s32.f32 %v2152
      %v2161 = vcvt.s32.f32 %v2153
      %v2162 = vcvt.s32.f32 %v2154
      %v2163 = vcvt.s32.f32 %v2155
      %v2164 = vcvt.s32.f32 %v2156
      %v2165 = vcvt.s32.f32 %v2157
      %v2166 = vpack.c.bf16 %v2159, %v2158
      %v2167 = vpack.c.bf16 %v2161, %v2160
      %v2168 = vpack.c.bf16 %v2163, %v2162
      %v2169 = vpack.c.bf16 %v2165, %v2164
      %v2170 = vld [vmem:[%s10] sm:$0x1]
      %v2172 = vlaneseq
      %v2173 = vshrl.u32 %v2172, 7
      %v2174 = vsub.s32 0, %v2173
      %v2175 = vrot.slane %v2170, %v2174
      %v2177 = vadd.f32 %v2175, 0.0
      %v2178 = vld [vmem:[#allocation3 + $0x7] sm:$0xff]
      %v2179 = vld [vmem:[#allocation3 + $0xf] sm:$0xff]
      %v2180 = vld [vmem:[#allocation3 + $0x17] sm:$0xff]
      %v2181 = vld [vmem:[#allocation3 + $0x1f] sm:$0xff]
      %v2182 = vld [vmem:[#allocation3 + $0x27] sm:$0xff]
      %v2183 = vld [vmem:[#allocation3 + $0x2f] sm:$0xff]
      %v2184 = vld [vmem:[#allocation3 + $0x37] sm:$0xff]
      %v2185 = vld [vmem:[#allocation3 + $0x3f] sm:$0xff]
      %v2186 = vpack.c.bf16 %v2179, %v2178
      %v2187 = vpack.c.bf16 %v2181, %v2180
      %v2188 = vpack.c.bf16 %v2183, %v2182
      %v2189 = vpack.c.bf16 %v2185, %v2184
      %v2190 = vmul.bf16 %v2186, %v2138
      %v2191 = vmul.bf16 %v2187, %v2139
      %v2192 = vmul.bf16 %v2188, %v2140
      %v2193 = vmul.bf16 %v2189, %v2141
      %v2194 = vld [vmem:[%s9] sm:$0xf]
      %v2195 = vld [vmem:[%s9 + $0x4] sm:$0xf]
      %v2196 = vld [vmem:[%s9 + $0x8] sm:$0xf]
      %v2197 = vld [vmem:[%s9 + $0xc] sm:$0xf]
      %v2198 = vld [vmem:[%s9 + $0x10] sm:$0xf]
      %v2199 = vld [vmem:[%s9 + $0x14] sm:$0xf]
      %v2200 = vld [vmem:[%s9 + $0x18] sm:$0xf]
      %v2201 = vld [vmem:[%s9 + $0x1c] sm:$0xf]
      %v2202 = vld [vmem:[%s9 + $0x20] sm:$0xf]
      %v2203 = vld [vmem:[%s9 + $0x24] sm:$0xf]
      %v2204 = vld [vmem:[%s9 + $0x28] sm:$0xf]
      %v2205 = vld [vmem:[%s9 + $0x2c] sm:$0xf]
      %v2206 = vld [vmem:[%s9 + $0x30] sm:$0xf]
      %v2207 = vld [vmem:[%s9 + $0x34] sm:$0xf]
      %v2208 = vld [vmem:[%s9 + $0x38] sm:$0xf]
      %v2209 = vld [vmem:[%s9 + $0x3c] sm:$0xf]
      %v2226 = vunpack.c.l.b16 %v2194
      %v2227 = vunpack.c.l.b16 %v2195
      %v2228 = vunpack.c.l.b16 %v2196
      %v2229 = vunpack.c.l.b16 %v2197
      %v2230 = vunpack.c.l.b16 %v2198
      %v2231 = vunpack.c.l.b16 %v2199
      %v2232 = vunpack.c.l.b16 %v2200
      %v2233 = vunpack.c.l.b16 %v2201
      %v2234 = vunpack.c.l.b16 %v2202
      %v2235 = vunpack.c.l.b16 %v2203
      %v2236 = vunpack.c.l.b16 %v2204
      %v2237 = vunpack.c.l.b16 %v2205
      %v2238 = vunpack.c.l.b16 %v2206
      %v2239 = vunpack.c.l.b16 %v2207
      %v2240 = vunpack.c.l.b16 %v2208
      %v2241 = vunpack.c.l.b16 %v2209
      %v2242 = vpack.c.b16 %v2227, %v2226
      %v2243 = vpack.c.b16 %v2229, %v2228
      %v2244 = vpack.c.b16 %v2231, %v2230
      %v2245 = vpack.c.b16 %v2233, %v2232
      %v2246 = vpack.c.b16 %v2235, %v2234
      %v2247 = vpack.c.b16 %v2237, %v2236
      %v2248 = vpack.c.b16 %v2239, %v2238
      %v2249 = vpack.c.b16 %v2241, %v2240
      %2258 = vmatprep.subr.bf16.mxu0 0
      %2259 = vmatpush1.bf16.msra.mxu0 %v2249
      %2260 = vmatprep.subr.bf16.mxu0 0
      %2261 = vmatpush1.bf16.msra.mxu0 %v2248
      %2262 = vmatprep.subr.bf16.mxu0 0
      %2263 = vmatpush1.bf16.msra.mxu0 %v2247
      %2264 = vmatprep.subr.bf16.mxu0 0
      %2265 = vmatpush1.bf16.msra.mxu0 %v2246
      %2266 = vmatprep.subr.bf16.mxu0 0
      %2267 = vmatpush1.bf16.msra.mxu0 %v2245
      %2268 = vmatprep.subr.bf16.mxu0 0
      %2269 = vmatpush1.bf16.msra.mxu0 %v2244
      %2270 = vmatprep.subr.bf16.mxu0 0
      %2271 = vmatpush1.bf16.msra.mxu0 %v2243
      %2272 = vmatprep.subr.bf16.mxu0 0
      %2273 = vmatpush1.bf16.msra.mxu0 %v2242
      %2274 = vmatprep.subr.bf16.mxu0 0
      %2275 = vmatpush2.bf16.msra.mxu0 0
      %2276 = vmatprep.subr.bf16.mxu0 0
      %2277 = vmatpush2.bf16.msra.mxu0 0
      %2278 = vmatprep.subr.bf16.mxu0 0
      %2279 = vmatpush2.bf16.msra.mxu0 0
      %2280 = vmatprep.subr.bf16.mxu0 0
      %2281 = vmatpush2.bf16.msra.mxu0 0
      %2282 = vmatprep.subr.bf16.mxu0 0
      %2283 = vmatpush2.bf16.msra.mxu0 0
      %2284 = vmatprep.subr.bf16.mxu0 0
      %2285 = vmatpush2.bf16.msra.mxu0 0
      %2286 = vmatprep.subr.bf16.mxu0 0
      %2287 = vmatpush2.bf16.msra.mxu0 0
      %2288 = vmatprep.subr.bf16.mxu0 0
      %2289 = vmatpush2.bf16.msra.mxu0 0
      %2290 = vmatprep.mubr.bf16.mxu0 0
      %2291 = vmatmul.mubr.bf16.gmra.mxu0 %v2190
      %v2292 = vpop.f32.mrf.mxu0
      %v2293 = vadd.f32 0.0, %v2292
      %v2294 = vpop.f32.mrf.mxu0
      %v2295 = vpop.f32.mrf.mxu0
      %v2296 = vadd.f32 0.0, %v2295
      %v2297 = vpop.f32.mrf.mxu0
      %2298 = vmatprep.mubr.bf16.mxu0 0
      %2299 = vmatmul.mubr.bf16.gmra.mxu0 %v2191
      %v2300 = vpop.f32.mrf.mxu0
      %v2301 = vadd.f32 0.0, %v2300
      %v2302 = vpop.f32.mrf.mxu0
      %v2303 = vpop.f32.mrf.mxu0
      %v2304 = vadd.f32 0.0, %v2303
      %v2305 = vpop.f32.mrf.mxu0
      %2306 = vmatprep.mubr.bf16.mxu0 0
      %2307 = vmatmul.mubr.bf16.gmra.mxu0 %v2192
      %v2308 = vpop.f32.mrf.mxu0
      %v2309 = vadd.f32 0.0, %v2308
      %v2310 = vpop.f32.mrf.mxu0
      %v2311 = vpop.f32.mrf.mxu0
      %v2312 = vadd.f32 0.0, %v2311
      %v2313 = vpop.f32.mrf.mxu0
      %2314 = vmatprep.mubr.bf16.mxu0 0
      %2315 = vmatmul.mubr.bf16.gmra.mxu0 %v2193
      %v2316 = vpop.f32.mrf.mxu0
      %v2317 = vadd.f32 0.0, %v2316
      %v2318 = vpop.f32.mrf.mxu0
      %v2319 = vpop.f32.mrf.mxu0
      %v2320 = vadd.f32 0.0, %v2319
      %v2321 = vpop.f32.mrf.mxu0
      %2322 = vdwg.mxu0
      %v2323 = vadd.f32 %v2177, %v2293
      %v2324 = vadd.f32 %v2177, %v2296
      %v2325 = vadd.f32 %v2177, %v2301
      %v2326 = vadd.f32 %v2177, %v2304
      %v2327 = vadd.f32 %v2177, %v2309
      %v2328 = vadd.f32 %v2177, %v2312
      %v2329 = vadd.f32 %v2177, %v2317
      %v2330 = vadd.f32 %v2177, %v2320
      %v2331 = vld [vmem:[#allocation3 + $0x8] sm:$0xff]
      %v2332 = vld [vmem:[#allocation3 + $0x10] sm:$0xff]
      %v2333 = vld [vmem:[#allocation3 + $0x18] sm:$0xff]
      %v2334 = vld [vmem:[#allocation3 + $0x20] sm:$0xff]
      %v2335 = vld [vmem:[#allocation3 + $0x28] sm:$0xff]
      %v2336 = vld [vmem:[#allocation3 + $0x30] sm:$0xff]
      %v2337 = vld [vmem:[#allocation3 + $0x38] sm:$0xff]
      %v2338 = vld [vmem:[#allocation3 + $0x40] sm:$0xff]
      %v2339 = vpack.c.bf16 %v2332, %v2331
      %v2340 = vpack.c.bf16 %v2334, %v2333
      %v2341 = vpack.c.bf16 %v2336, %v2335
      %v2342 = vpack.c.bf16 %v2338, %v2337
      %s2343 = scalar_lea.vmem %s9, 64
      %v2344 = vld [vmem:[%s2343] sm:$0xf]
      %v2345 = vld [vmem:[%s2343 + $0x4] sm:$0xf]
      %v2346 = vld [vmem:[%s2343 + $0x8] sm:$0xf]
      %v2347 = vld [vmem:[%s2343 + $0xc] sm:$0xf]
      %v2348 = vld [vmem:[%s2343 + $0x10] sm:$0xf]
      %v2349 = vld [vmem:[%s2343 + $0x14] sm:$0xf]
      %v2350 = vld [vmem:[%s2343 + $0x18] sm:$0xf]
      %v2351 = vld [vmem:[%s2343 + $0x1c] sm:$0xf]
      %v2352 = vld [vmem:[%s2343 + $0x20] sm:$0xf]
      %v2353 = vld [vmem:[%s2343 + $0x24] sm:$0xf]
      %v2354 = vld [vmem:[%s2343 + $0x28] sm:$0xf]
      %v2355 = vld [vmem:[%s2343 + $0x2c] sm:$0xf]
      %v2356 = vld [vmem:[%s2343 + $0x30] sm:$0xf]
      %v2357 = vld [vmem:[%s2343 + $0x34] sm:$0xf]
      %v2358 = vld [vmem:[%s2343 + $0x38] sm:$0xf]
      %v2359 = vld [vmem:[%s2343 + $0x3c] sm:$0xf]
      %v2376 = vunpack.c.l.b16 %v2344
      %v2377 = vunpack.c.l.b16 %v2345
      %v2378 = vunpack.c.l.b16 %v2346
      %v2379 = vunpack.c.l.b16 %v2347
      %v2380 = vunpack.c.l.b16 %v2348
      %v2381 = vunpack.c.l.b16 %v2349
      %v2382 = vunpack.c.l.b16 %v2350
      %v2383 = vunpack.c.l.b16 %v2351
      %v2384 = vunpack.c.l.b16 %v2352
      %v2385 = vunpack.c.l.b16 %v2353
      %v2386 = vunpack.c.l.b16 %v2354
      %v2387 = vunpack.c.l.b16 %v2355
      %v2388 = vunpack.c.l.b16 %v2356
      %v2389 = vunpack.c.l.b16 %v2357
      %v2390 = vunpack.c.l.b16 %v2358
      %v2391 = vunpack.c.l.b16 %v2359
      %v2392 = vpack.c.b16 %v2377, %v2376
      %v2393 = vpack.c.b16 %v2379, %v2378
      %v2394 = vpack.c.b16 %v2381, %v2380
      %v2395 = vpack.c.b16 %v2383, %v2382
      %v2396 = vpack.c.b16 %v2385, %v2384
      %v2397 = vpack.c.b16 %v2387, %v2386
      %v2398 = vpack.c.b16 %v2389, %v2388
      %v2399 = vpack.c.b16 %v2391, %v2390
      %2408 = vmatprep.subr.bf16.mxu0 0
      %2409 = vmatpush1.bf16.msra.mxu0 %v2399
      %2410 = vmatprep.subr.bf16.mxu0 0
      %2411 = vmatpush1.bf16.msra.mxu0 %v2398
      %2412 = vmatprep.subr.bf16.mxu0 0
      %2413 = vmatpush1.bf16.msra.mxu0 %v2397
      %2414 = vmatprep.subr.bf16.mxu0 0
      %2415 = vmatpush1.bf16.msra.mxu0 %v2396
      %2416 = vmatprep.subr.bf16.mxu0 0
      %2417 = vmatpush1.bf16.msra.mxu0 %v2395
      %2418 = vmatprep.subr.bf16.mxu0 0
      %2419 = vmatpush1.bf16.msra.mxu0 %v2394
      %2420 = vmatprep.subr.bf16.mxu0 0
      %2421 = vmatpush1.bf16.msra.mxu0 %v2393
      %2422 = vmatprep.subr.bf16.mxu0 0
      %2423 = vmatpush1.bf16.msra.mxu0 %v2392
      %2424 = vmatprep.subr.bf16.mxu0 0
      %2425 = vmatpush2.bf16.msra.mxu0 0
      %2426 = vmatprep.subr.bf16.mxu0 0
      %2427 = vmatpush2.bf16.msra.mxu0 0
      %2428 = vmatprep.subr.bf16.mxu0 0
      %2429 = vmatpush2.bf16.msra.mxu0 0
      %2430 = vmatprep.subr.bf16.mxu0 0
      %2431 = vmatpush2.bf16.msra.mxu0 0
      %2432 = vmatprep.subr.bf16.mxu0 0
      %2433 = vmatpush2.bf16.msra.mxu0 0
      %2434 = vmatprep.subr.bf16.mxu0 0
      %2435 = vmatpush2.bf16.msra.mxu0 0
      %2436 = vmatprep.subr.bf16.mxu0 0
      %2437 = vmatpush2.bf16.msra.mxu0 0
      %2438 = vmatprep.subr.bf16.mxu0 0
      %2439 = vmatpush2.bf16.msra.mxu0 0
      %2440 = vmatprep.mubr.bf16.mxu0 0
      %2441 = vmatmul.mubr.bf16.gmra.mxu0 %v2339
      %v2442 = vpop.f32.mrf.mxu0
      %v2443 = vadd.f32 0.0, %v2442
      %v2444 = vpop.f32.mrf.mxu0
      %v2445 = vpop.f32.mrf.mxu0
      %v2446 = vadd.f32 0.0, %v2445
      %v2447 = vpop.f32.mrf.mxu0
      %2448 = vmatprep.mubr.bf16.mxu0 0
      %2449 = vmatmul.mubr.bf16.gmra.mxu0 %v2340
      %v2450 = vpop.f32.mrf.mxu0
      %v2451 = vadd.f32 0.0, %v2450
      %v2452 = vpop.f32.mrf.mxu0
      %v2453 = vpop.f32.mrf.mxu0
      %v2454 = vadd.f32 0.0, %v2453
      %v2455 = vpop.f32.mrf.mxu0
      %2456 = vmatprep.mubr.bf16.mxu0 0
      %2457 = vmatmul.mubr.bf16.gmra.mxu0 %v2341
      %v2458 = vpop.f32.mrf.mxu0
      %v2459 = vadd.f32 0.0, %v2458
      %v2460 = vpop.f32.mrf.mxu0
      %v2461 = vpop.f32.mrf.mxu0
      %v2462 = vadd.f32 0.0, %v2461
      %v2463 = vpop.f32.mrf.mxu0
      %2464 = vmatprep.mubr.bf16.mxu0 0
      %2465 = vmatmul.mubr.bf16.gmra.mxu0 %v2342
      %v2466 = vpop.f32.mrf.mxu0
      %v2467 = vadd.f32 0.0, %v2466
      %v2468 = vpop.f32.mrf.mxu0
      %v2469 = vpop.f32.mrf.mxu0
      %v2470 = vadd.f32 0.0, %v2469
      %v2471 = vpop.f32.mrf.mxu0
      %2472 = vdwg.mxu0
      %v2473 = vadd.f32 %v2323, %v2443
      %v2474 = vadd.f32 %v2324, %v2446
      %v2475 = vadd.f32 %v2325, %v2451
      %v2476 = vadd.f32 %v2326, %v2454
      %v2477 = vadd.f32 %v2327, %v2459
      %v2478 = vadd.f32 %v2328, %v2462
      %v2479 = vadd.f32 %v2329, %v2467
      %v2480 = vadd.f32 %v2330, %v2470
      %v2481 = vld [vmem:[#allocation3 + $0x9] sm:$0xff]
      %v2482 = vld [vmem:[#allocation3 + $0x11] sm:$0xff]
      %v2483 = vld [vmem:[#allocation3 + $0x19] sm:$0xff]
      %v2484 = vld [vmem:[#allocation3 + $0x21] sm:$0xff]
      %v2485 = vld [vmem:[#allocation3 + $0x29] sm:$0xff]
      %v2486 = vld [vmem:[#allocation3 + $0x31] sm:$0xff]
      %v2487 = vld [vmem:[#allocation3 + $0x39] sm:$0xff]
      %v2488 = vld [vmem:[#allocation3 + $0x41] sm:$0xff]
      %v2489 = vpack.c.bf16 %v2482, %v2481
      %v2490 = vpack.c.bf16 %v2484, %v2483
      %v2491 = vpack.c.bf16 %v2486, %v2485
      %v2492 = vpack.c.bf16 %v2488, %v2487
      %v2493 = vmul.bf16 %v2489, %v2166
      %v2494 = vmul.bf16 %v2490, %v2167
      %v2495 = vmul.bf16 %v2491, %v2168
      %v2496 = vmul.bf16 %v2492, %v2169
      %s2497 = scalar_lea.vmem %s9, 128
      %v2498 = vld [vmem:[%s2497] sm:$0xf]
      %v2499 = vld [vmem:[%s2497 + $0x4] sm:$0xf]
      %v2500 = vld [vmem:[%s2497 + $0x8] sm:$0xf]
      %v2501 = vld [vmem:[%s2497 + $0xc] sm:$0xf]
      %v2502 = vld [vmem:[%s2497 + $0x10] sm:$0xf]
      %v2503 = vld [vmem:[%s2497 + $0x14] sm:$0xf]
      %v2504 = vld [vmem:[%s2497 + $0x18] sm:$0xf]
      %v2505 = vld [vmem:[%s2497 + $0x1c] sm:$0xf]
      %v2506 = vld [vmem:[%s2497 + $0x20] sm:$0xf]
      %v2507 = vld [vmem:[%s2497 + $0x24] sm:$0xf]
      %v2508 = vld [vmem:[%s2497 + $0x28] sm:$0xf]
      %v2509 = vld [vmem:[%s2497 + $0x2c] sm:$0xf]
      %v2510 = vld [vmem:[%s2497 + $0x30] sm:$0xf]
      %v2511 = vld [vmem:[%s2497 + $0x34] sm:$0xf]
      %v2512 = vld [vmem:[%s2497 + $0x38] sm:$0xf]
      %v2513 = vld [vmem:[%s2497 + $0x3c] sm:$0xf]
      %v2530 = vunpack.c.l.b16 %v2498
      %v2531 = vunpack.c.l.b16 %v2499
      %v2532 = vunpack.c.l.b16 %v2500
      %v2533 = vunpack.c.l.b16 %v2501
      %v2534 = vunpack.c.l.b16 %v2502
      %v2535 = vunpack.c.l.b16 %v2503
      %v2536 = vunpack.c.l.b16 %v2504
      %v2537 = vunpack.c.l.b16 %v2505
      %v2538 = vunpack.c.l.b16 %v2506
      %v2539 = vunpack.c.l.b16 %v2507
      %v2540 = vunpack.c.l.b16 %v2508
      %v2541 = vunpack.c.l.b16 %v2509
      %v2542 = vunpack.c.l.b16 %v2510
      %v2543 = vunpack.c.l.b16 %v2511
      %v2544 = vunpack.c.l.b16 %v2512
      %v2545 = vunpack.c.l.b16 %v2513
      %v2546 = vpack.c.b16 %v2531, %v2530
      %v2547 = vpack.c.b16 %v2533, %v2532
      %v2548 = vpack.c.b16 %v2535, %v2534
      %v2549 = vpack.c.b16 %v2537, %v2536
      %v2550 = vpack.c.b16 %v2539, %v2538
      %v2551 = vpack.c.b16 %v2541, %v2540
      %v2552 = vpack.c.b16 %v2543, %v2542
      %v2553 = vpack.c.b16 %v2545, %v2544
      %2562 = vmatprep.subr.bf16.mxu0 0
      %2563 = vmatpush1.bf16.msra.mxu0 %v2553
      %2564 = vmatprep.subr.bf16.mxu0 0
      %2565 = vmatpush1.bf16.msra.mxu0 %v2552
      %2566 = vmatprep.subr.bf16.mxu0 0
      %2567 = vmatpush1.bf16.msra.mxu0 %v2551
      %2568 = vmatprep.subr.bf16.mxu0 0
      %2569 = vmatpush1.bf16.msra.mxu0 %v2550
      %2570 = vmatprep.subr.bf16.mxu0 0
      %2571 = vmatpush1.bf16.msra.mxu0 %v2549
      %2572 = vmatprep.subr.bf16.mxu0 0
      %2573 = vmatpush1.bf16.msra.mxu0 %v2548
      %2574 = vmatprep.subr.bf16.mxu0 0
      %2575 = vmatpush1.bf16.msra.mxu0 %v2547
      %2576 = vmatprep.subr.bf16.mxu0 0
      %2577 = vmatpush1.bf16.msra.mxu0 %v2546
      %2578 = vmatprep.subr.bf16.mxu0 0
      %2579 = vmatpush2.bf16.msra.mxu0 0
      %2580 = vmatprep.subr.bf16.mxu0 0
      %2581 = vmatpush2.bf16.msra.mxu0 0
      %2582 = vmatprep.subr.bf16.mxu0 0
      %2583 = vmatpush2.bf16.msra.mxu0 0
      %2584 = vmatprep.subr.bf16.mxu0 0
      %2585 = vmatpush2.bf16.msra.mxu0 0
      %2586 = vmatprep.subr.bf16.mxu0 0
      %2587 = vmatpush2.bf16.msra.mxu0 0
      %2588 = vmatprep.subr.bf16.mxu0 0
      %2589 = vmatpush2.bf16.msra.mxu0 0
      %2590 = vmatprep.subr.bf16.mxu0 0
      %2591 = vmatpush2.bf16.msra.mxu0 0
      %2592 = vmatprep.subr.bf16.mxu0 0
      %2593 = vmatpush2.bf16.msra.mxu0 0
      %2594 = vmatprep.mubr.bf16.mxu0 0
      %2595 = vmatmul.mubr.bf16.gmra.mxu0 %v2493
      %v2596 = vpop.f32.mrf.mxu0
      %v2597 = vadd.f32 0.0, %v2596
      %v2598 = vpop.f32.mrf.mxu0
      %v2599 = vpop.f32.mrf.mxu0
      %v2600 = vadd.f32 0.0, %v2599
      %v2601 = vpop.f32.mrf.mxu0
      %2602 = vmatprep.mubr.bf16.mxu0 0
      %2603 = vmatmul.mubr.bf16.gmra.mxu0 %v2494
      %v2604 = vpop.f32.mrf.mxu0
      %v2605 = vadd.f32 0.0, %v2604
      %v2606 = vpop.f32.mrf.mxu0
      %v2607 = vpop.f32.mrf.mxu0
      %v2608 = vadd.f32 0.0, %v2607
      %v2609 = vpop.f32.mrf.mxu0
      %2610 = vmatprep.mubr.bf16.mxu0 0
      %2611 = vmatmul.mubr.bf16.gmra.mxu0 %v2495
      %v2612 = vpop.f32.mrf.mxu0
      %v2613 = vadd.f32 0.0, %v2612
      %v2614 = vpop.f32.mrf.mxu0
      %v2615 = vpop.f32.mrf.mxu0
      %v2616 = vadd.f32 0.0, %v2615
      %v2617 = vpop.f32.mrf.mxu0
      %2618 = vmatprep.mubr.bf16.mxu0 0
      %2619 = vmatmul.mubr.bf16.gmra.mxu0 %v2496
      %v2620 = vpop.f32.mrf.mxu0
      %v2621 = vadd.f32 0.0, %v2620
      %v2622 = vpop.f32.mrf.mxu0
      %v2623 = vpop.f32.mrf.mxu0
      %v2624 = vadd.f32 0.0, %v2623
      %v2625 = vpop.f32.mrf.mxu0
      %2626 = vdwg.mxu0
      %v2627 = vadd.f32 %v2473, %v2597
      %v2628 = vadd.f32 %v2474, %v2600
      %v2629 = vadd.f32 %v2475, %v2605
      %v2630 = vadd.f32 %v2476, %v2608
      %v2631 = vadd.f32 %v2477, %v2613
      %v2632 = vadd.f32 %v2478, %v2616
      %v2633 = vadd.f32 %v2479, %v2621
      %v2634 = vadd.f32 %v2480, %v2624
      %v2635 = vld [vmem:[#allocation3 + $0xf] sm:$0xff]
      %v2636 = vld [vmem:[#allocation3 + $0x17] sm:$0xff]
      %v2637 = vld [vmem:[#allocation3 + $0x1f] sm:$0xff]
      %v2638 = vld [vmem:[#allocation3 + $0x27] sm:$0xff]
      %v2639 = vld [vmem:[#allocation3 + $0x2f] sm:$0xff]
      %v2640 = vld [vmem:[#allocation3 + $0x37] sm:$0xff]
      %v2641 = vld [vmem:[#allocation3 + $0x3f] sm:$0xff]
      %v2642 = vld [vmem:[#allocation3 + $0x47] sm:$0xff]
      %v2643 = vpack.c.bf16 %v2636, %v2635
      %v2644 = vpack.c.bf16 %v2638, %v2637
      %v2645 = vpack.c.bf16 %v2640, %v2639
      %v2646 = vpack.c.bf16 %v2642, %v2641
      %v2647 = vmul.bf16 %v2643, %v2138
      %v2648 = vmul.bf16 %v2644, %v2139
      %v2649 = vmul.bf16 %v2645, %v2140
      %v2650 = vmul.bf16 %v2646, %v2141
      %s2651 = scalar_lea.vmem %s9, 192
      %v2652 = vld [vmem:[%s2651] sm:$0xf]
      %v2653 = vld [vmem:[%s2651 + $0x4] sm:$0xf]
      %v2654 = vld [vmem:[%s2651 + $0x8] sm:$0xf]
      %v2655 = vld [vmem:[%s2651 + $0xc] sm:$0xf]
      %v2656 = vld [vmem:[%s2651 + $0x10] sm:$0xf]
      %v2657 = vld [vmem:[%s2651 + $0x14] sm:$0xf]
      %v2658 = vld [vmem:[%s2651 + $0x18] sm:$0xf]
      %v2659 = vld [vmem:[%s2651 + $0x1c] sm:$0xf]
      %v2660 = vld [vmem:[%s2651 + $0x20] sm:$0xf]
      %v2661 = vld [vmem:[%s2651 + $0x24] sm:$0xf]
      %v2662 = vld [vmem:[%s2651 + $0x28] sm:$0xf]
      %v2663 = vld [vmem:[%s2651 + $0x2c] sm:$0xf]
      %v2664 = vld [vmem:[%s2651 + $0x30] sm:$0xf]
      %v2665 = vld [vmem:[%s2651 + $0x34] sm:$0xf]
      %v2666 = vld [vmem:[%s2651 + $0x38] sm:$0xf]
      %v2667 = vld [vmem:[%s2651 + $0x3c] sm:$0xf]
      %v2684 = vunpack.c.l.b16 %v2652
      %v2685 = vunpack.c.l.b16 %v2653
      %v2686 = vunpack.c.l.b16 %v2654
      %v2687 = vunpack.c.l.b16 %v2655
      %v2688 = vunpack.c.l.b16 %v2656
      %v2689 = vunpack.c.l.b16 %v2657
      %v2690 = vunpack.c.l.b16 %v2658
      %v2691 = vunpack.c.l.b16 %v2659
      %v2692 = vunpack.c.l.b16 %v2660
      %v2693 = vunpack.c.l.b16 %v2661
      %v2694 = vunpack.c.l.b16 %v2662
      %v2695 = vunpack.c.l.b16 %v2663
      %v2696 = vunpack.c.l.b16 %v2664
      %v2697 = vunpack.c.l.b16 %v2665
      %v2698 = vunpack.c.l.b16 %v2666
      %v2699 = vunpack.c.l.b16 %v2667
      %v2700 = vpack.c.b16 %v2685, %v2684
      %v2701 = vpack.c.b16 %v2687, %v2686
      %v2702 = vpack.c.b16 %v2689, %v2688
      %v2703 = vpack.c.b16 %v2691, %v2690
      %v2704 = vpack.c.b16 %v2693, %v2692
      %v2705 = vpack.c.b16 %v2695, %v2694
      %v2706 = vpack.c.b16 %v2697, %v2696
      %v2707 = vpack.c.b16 %v2699, %v2698
      %2716 = vmatprep.subr.bf16.mxu0 0
      %2717 = vmatpush1.bf16.msra.mxu0 %v2707
      %2718 = vmatprep.subr.bf16.mxu0 0
      %2719 = vmatpush1.bf16.msra.mxu0 %v2706
      %2720 = vmatprep.subr.bf16.mxu0 0
      %2721 = vmatpush1.bf16.msra.mxu0 %v2705
      %2722 = vmatprep.subr.bf16.mxu0 0
      %2723 = vmatpush1.bf16.msra.mxu0 %v2704
      %2724 = vmatprep.subr.bf16.mxu0 0
      %2725 = vmatpush1.bf16.msra.mxu0 %v2703
      %2726 = vmatprep.subr.bf16.mxu0 0
      %2727 = vmatpush1.bf16.msra.mxu0 %v2702
      %2728 = vmatprep.subr.bf16.mxu0 0
      %2729 = vmatpush1.bf16.msra.mxu0 %v2701
      %2730 = vmatprep.subr.bf16.mxu0 0
      %2731 = vmatpush1.bf16.msra.mxu0 %v2700
      %2732 = vmatprep.subr.bf16.mxu0 0
      %2733 = vmatpush2.bf16.msra.mxu0 0
      %2734 = vmatprep.subr.bf16.mxu0 0
      %2735 = vmatpush2.bf16.msra.mxu0 0
      %2736 = vmatprep.subr.bf16.mxu0 0
      %2737 = vmatpush2.bf16.msra.mxu0 0
      %2738 = vmatprep.subr.bf16.mxu0 0
      %2739 = vmatpush2.bf16.msra.mxu0 0
      %2740 = vmatprep.subr.bf16.mxu0 0
      %2741 = vmatpush2.bf16.msra.mxu0 0
      %2742 = vmatprep.subr.bf16.mxu0 0
      %2743 = vmatpush2.bf16.msra.mxu0 0
      %2744 = vmatprep.subr.bf16.mxu0 0
      %2745 = vmatpush2.bf16.msra.mxu0 0
      %2746 = vmatprep.subr.bf16.mxu0 0
      %2747 = vmatpush2.bf16.msra.mxu0 0
      %2748 = vmatprep.mubr.bf16.mxu0 0
      %2749 = vmatmul.mubr.bf16.gmra.mxu0 %v2647
      %v2750 = vpop.f32.mrf.mxu0
      %v2751 = vadd.f32 0.0, %v2750
      %v2752 = vpop.f32.mrf.mxu0
      %v2753 = vpop.f32.mrf.mxu0
      %v2754 = vadd.f32 0.0, %v2753
      %v2755 = vpop.f32.mrf.mxu0
      %2756 = vmatprep.mubr.bf16.mxu0 0
      %2757 = vmatmul.mubr.bf16.gmra.mxu0 %v2648
      %v2758 = vpop.f32.mrf.mxu0
      %v2759 = vadd.f32 0.0, %v2758
      %v2760 = vpop.f32.mrf.mxu0
      %v2761 = vpop.f32.mrf.mxu0
      %v2762 = vadd.f32 0.0, %v2761
      %v2763 = vpop.f32.mrf.mxu0
      %2764 = vmatprep.mubr.bf16.mxu0 0
      %2765 = vmatmul.mubr.bf16.gmra.mxu0 %v2649
      %v2766 = vpop.f32.mrf.mxu0
      %v2767 = vadd.f32 0.0, %v2766
      %v2768 = vpop.f32.mrf.mxu0
      %v2769 = vpop.f32.mrf.mxu0
      %v2770 = vadd.f32 0.0, %v2769
      %v2771 = vpop.f32.mrf.mxu0
      %2772 = vmatprep.mubr.bf16.mxu0 0
      %2773 = vmatmul.mubr.bf16.gmra.mxu0 %v2650
      %v2774 = vpop.f32.mrf.mxu0
      %v2775 = vadd.f32 0.0, %v2774
      %v2776 = vpop.f32.mrf.mxu0
      %v2777 = vpop.f32.mrf.mxu0
      %v2778 = vadd.f32 0.0, %v2777
      %v2779 = vpop.f32.mrf.mxu0
      %2780 = vdwg.mxu0
      %v2781 = vadd.f32 %v2627, %v2751
      %v2782 = vadd.f32 %v2628, %v2754
      %v2783 = vadd.f32 %v2629, %v2759
      %v2784 = vadd.f32 %v2630, %v2762
      %v2785 = vadd.f32 %v2631, %v2767
      %v2786 = vadd.f32 %v2632, %v2770
      %v2787 = vadd.f32 %v2633, %v2775
      %v2788 = vadd.f32 %v2634, %v2778
      %v2789 = vld [vmem:[#allocation3 + $0x10] sm:$0xff]
      %v2790 = vld [vmem:[#allocation3 + $0x18] sm:$0xff]
      %v2791 = vld [vmem:[#allocation3 + $0x20] sm:$0xff]
      %v2792 = vld [vmem:[#allocation3 + $0x28] sm:$0xff]
      %v2793 = vld [vmem:[#allocation3 + $0x30] sm:$0xff]
      %v2794 = vld [vmem:[#allocation3 + $0x38] sm:$0xff]
      %v2795 = vld [vmem:[#allocation3 + $0x40] sm:$0xff]
      %v2796 = vld [vmem:[#allocation3 + $0x48] sm:$0xff]
      %v2797 = vpack.c.bf16 %v2790, %v2789
      %v2798 = vpack.c.bf16 %v2792, %v2791
      %v2799 = vpack.c.bf16 %v2794, %v2793
      %v2800 = vpack.c.bf16 %v2796, %v2795
      %s2801 = scalar_lea.vmem %s9, 256
      %v2802 = vld [vmem:[%s2801] sm:$0xf]
      %v2803 = vld [vmem:[%s2801 + $0x4] sm:$0xf]
      %v2804 = vld [vmem:[%s2801 + $0x8] sm:$0xf]
      %v2805 = vld [vmem:[%s2801 + $0xc] sm:$0xf]
      %v2806 = vld [vmem:[%s2801 + $0x10] sm:$0xf]
      %v2807 = vld [vmem:[%s2801 + $0x14] sm:$0xf]
      %v2808 = vld [vmem:[%s2801 + $0x18] sm:$0xf]
      %v2809 = vld [vmem:[%s2801 + $0x1c] sm:$0xf]
      %v2810 = vld [vmem:[%s2801 + $0x20] sm:$0xf]
      %v2811 = vld [vmem:[%s2801 + $0x24] sm:$0xf]
      %v2812 = vld [vmem:[%s2801 + $0x28] sm:$0xf]
      %v2813 = vld [vmem:[%s2801 + $0x2c] sm:$0xf]
      %v2814 = vld [vmem:[%s2801 + $0x30] sm:$0xf]
      %v2815 = vld [vmem:[%s2801 + $0x34] sm:$0xf]
      %v2816 = vld [vmem:[%s2801 + $0x38] sm:$0xf]
      %v2817 = vld [vmem:[%s2801 + $0x3c] sm:$0xf]
      %v2834 = vunpack.c.l.b16 %v2802
      %v2835 = vunpack.c.l.b16 %v2803
      %v2836 = vunpack.c.l.b16 %v2804
      %v2837 = vunpack.c.l.b16 %v2805
      %v2838 = vunpack.c.l.b16 %v2806
      %v2839 = vunpack.c.l.b16 %v2807
      %v2840 = vunpack.c.l.b16 %v2808
      %v2841 = vunpack.c.l.b16 %v2809
      %v2842 = vunpack.c.l.b16 %v2810
      %v2843 = vunpack.c.l.b16 %v2811
      %v2844 = vunpack.c.l.b16 %v2812
      %v2845 = vunpack.c.l.b16 %v2813
      %v2846 = vunpack.c.l.b16 %v2814
      %v2847 = vunpack.c.l.b16 %v2815
      %v2848 = vunpack.c.l.b16 %v2816
      %v2849 = vunpack.c.l.b16 %v2817
      %v2850 = vpack.c.b16 %v2835, %v2834
      %v2851 = vpack.c.b16 %v2837, %v2836
      %v2852 = vpack.c.b16 %v2839, %v2838
      %v2853 = vpack.c.b16 %v2841, %v2840
      %v2854 = vpack.c.b16 %v2843, %v2842
      %v2855 = vpack.c.b16 %v2845, %v2844
      %v2856 = vpack.c.b16 %v2847, %v2846
      %v2857 = vpack.c.b16 %v2849, %v2848
      %2866 = vmatprep.subr.bf16.mxu0 0
      %2867 = vmatpush1.bf16.msra.mxu0 %v2857
      %2868 = vmatprep.subr.bf16.mxu0 0
      %2869 = vmatpush1.bf16.msra.mxu0 %v2856
      %2870 = vmatprep.subr.bf16.mxu0 0
      %2871 = vmatpush1.bf16.msra.mxu0 %v2855
      %2872 = vmatprep.subr.bf16.mxu0 0
      %2873 = vmatpush1.bf16.msra.mxu0 %v2854
      %2874 = vmatprep.subr.bf16.mxu0 0
      %2875 = vmatpush1.bf16.msra.mxu0 %v2853
      %2876 = vmatprep.subr.bf16.mxu0 0
      %2877 = vmatpush1.bf16.msra.mxu0 %v2852
      %2878 = vmatprep.subr.bf16.mxu0 0
      %2879 = vmatpush1.bf16.msra.mxu0 %v2851
      %2880 = vmatprep.subr.bf16.mxu0 0
      %2881 = vmatpush1.bf16.msra.mxu0 %v2850
      %2882 = vmatprep.subr.bf16.mxu0 0
      %2883 = vmatpush2.bf16.msra.mxu0 0
      %2884 = vmatprep.subr.bf16.mxu0 0
      %2885 = vmatpush2.bf16.msra.mxu0 0
      %2886 = vmatprep.subr.bf16.mxu0 0
      %2887 = vmatpush2.bf16.msra.mxu0 0
      %2888 = vmatprep.subr.bf16.mxu0 0
      %2889 = vmatpush2.bf16.msra.mxu0 0
      %2890 = vmatprep.subr.bf16.mxu0 0
      %2891 = vmatpush2.bf16.msra.mxu0 0
      %2892 = vmatprep.subr.bf16.mxu0 0
      %2893 = vmatpush2.bf16.msra.mxu0 0
      %2894 = vmatprep.subr.bf16.mxu0 0
      %2895 = vmatpush2.bf16.msra.mxu0 0
      %2896 = vmatprep.subr.bf16.mxu0 0
      %2897 = vmatpush2.bf16.msra.mxu0 0
      %2898 = vmatprep.mubr.bf16.mxu0 0
      %2899 = vmatmul.mubr.bf16.gmra.mxu0 %v2797
      %v2900 = vpop.f32.mrf.mxu0
      %v2901 = vadd.f32 0.0, %v2900
      %v2902 = vpop.f32.mrf.mxu0
      %v2903 = vpop.f32.mrf.mxu0
      %v2904 = vadd.f32 0.0, %v2903
      %v2905 = vpop.f32.mrf.mxu0
      %2906 = vmatprep.mubr.bf16.mxu0 0
      %2907 = vmatmul.mubr.bf16.gmra.mxu0 %v2798
      %v2908 = vpop.f32.mrf.mxu0
      %v2909 = vadd.f32 0.0, %v2908
      %v2910 = vpop.f32.mrf.mxu0
      %v2911 = vpop.f32.mrf.mxu0
      %v2912 = vadd.f32 0.0, %v2911
      %v2913 = vpop.f32.mrf.mxu0
      %2914 = vmatprep.mubr.bf16.mxu0 0
      %2915 = vmatmul.mubr.bf16.gmra.mxu0 %v2799
      %v2916 = vpop.f32.mrf.mxu0
      %v2917 = vadd.f32 0.0, %v2916
      %v2918 = vpop.f32.mrf.mxu0
      %v2919 = vpop.f32.mrf.mxu0
      %v2920 = vadd.f32 0.0, %v2919
      %v2921 = vpop.f32.mrf.mxu0
      %2922 = vmatprep.mubr.bf16.mxu0 0
      %2923 = vmatmul.mubr.bf16.gmra.mxu0 %v2800
      %v2924 = vpop.f32.mrf.mxu0
      %v2925 = vadd.f32 0.0, %v2924
      %v2926 = vpop.f32.mrf.mxu0
      %v2927 = vpop.f32.mrf.mxu0
      %v2928 = vadd.f32 0.0, %v2927
      %v2929 = vpop.f32.mrf.mxu0
      %2930 = vdwg.mxu0
      %v2931 = vadd.f32 %v2781, %v2901
      %v2932 = vadd.f32 %v2782, %v2904
      %v2933 = vadd.f32 %v2783, %v2909
      %v2934 = vadd.f32 %v2784, %v2912
      %v2935 = vadd.f32 %v2785, %v2917
      %v2936 = vadd.f32 %v2786, %v2920
      %v2937 = vadd.f32 %v2787, %v2925
      %v2938 = vadd.f32 %v2788, %v2928
      %v2939 = vld [vmem:[#allocation3 + $0x11] sm:$0xff]
      %v2940 = vld [vmem:[#allocation3 + $0x19] sm:$0xff]
      %v2941 = vld [vmem:[#allocation3 + $0x21] sm:$0xff]
      %v2942 = vld [vmem:[#allocation3 + $0x29] sm:$0xff]
      %v2943 = vld [vmem:[#allocation3 + $0x31] sm:$0xff]
      %v2944 = vld [vmem:[#allocation3 + $0x39] sm:$0xff]
      %v2945 = vld [vmem:[#allocation3 + $0x41] sm:$0xff]
      %v2946 = vld [vmem:[#allocation3 + $0x49] sm:$0xff]
      %v2947 = vpack.c.bf16 %v2940, %v2939
      %v2948 = vpack.c.bf16 %v2942, %v2941
      %v2949 = vpack.c.bf16 %v2944, %v2943
      %v2950 = vpack.c.bf16 %v2946, %v2945
      %v2951 = vmul.bf16 %v2947, %v2166
      %v2952 = vmul.bf16 %v2948, %v2167
      %v2953 = vmul.bf16 %v2949, %v2168
      %v2954 = vmul.bf16 %v2950, %v2169
      %s2955 = scalar_lea.vmem %s9, 320
      %v2956 = vld [vmem:[%s2955] sm:$0xf]
      %v2957 = vld [vmem:[%s2955 + $0x4] sm:$0xf]
      %v2958 = vld [vmem:[%s2955 + $0x8] sm:$0xf]
      %v2959 = vld [vmem:[%s2955 + $0xc] sm:$0xf]
      %v2960 = vld [vmem:[%s2955 + $0x10] sm:$0xf]
      %v2961 = vld [vmem:[%s2955 + $0x14] sm:$0xf]
      %v2962 = vld [vmem:[%s2955 + $0x18] sm:$0xf]
      %v2963 = vld [vmem:[%s2955 + $0x1c] sm:$0xf]
      %v2964 = vld [vmem:[%s2955 + $0x20] sm:$0xf]
      %v2965 = vld [vmem:[%s2955 + $0x24] sm:$0xf]
      %v2966 = vld [vmem:[%s2955 + $0x28] sm:$0xf]
      %v2967 = vld [vmem:[%s2955 + $0x2c] sm:$0xf]
      %v2968 = vld [vmem:[%s2955 + $0x30] sm:$0xf]
      %v2969 = vld [vmem:[%s2955 + $0x34] sm:$0xf]
      %v2970 = vld [vmem:[%s2955 + $0x38] sm:$0xf]
      %v2971 = vld [vmem:[%s2955 + $0x3c] sm:$0xf]
      %v2988 = vunpack.c.l.b16 %v2956
      %v2989 = vunpack.c.l.b16 %v2957
      %v2990 = vunpack.c.l.b16 %v2958
      %v2991 = vunpack.c.l.b16 %v2959
      %v2992 = vunpack.c.l.b16 %v2960
      %v2993 = vunpack.c.l.b16 %v2961
      %v2994 = vunpack.c.l.b16 %v2962
      %v2995 = vunpack.c.l.b16 %v2963
      %v2996 = vunpack.c.l.b16 %v2964
      %v2997 = vunpack.c.l.b16 %v2965
      %v2998 = vunpack.c.l.b16 %v2966
      %v2999 = vunpack.c.l.b16 %v2967
      %v3000 = vunpack.c.l.b16 %v2968
      %v3001 = vunpack.c.l.b16 %v2969
      %v3002 = vunpack.c.l.b16 %v2970
      %v3003 = vunpack.c.l.b16 %v2971
      %v3004 = vpack.c.b16 %v2989, %v2988
      %v3005 = vpack.c.b16 %v2991, %v2990
      %v3006 = vpack.c.b16 %v2993, %v2992
      %v3007 = vpack.c.b16 %v2995, %v2994
      %v3008 = vpack.c.b16 %v2997, %v2996
      %v3009 = vpack.c.b16 %v2999, %v2998
      %v3010 = vpack.c.b16 %v3001, %v3000
      %v3011 = vpack.c.b16 %v3003, %v3002
      %3020 = vmatprep.subr.bf16.mxu0 0
      %3021 = vmatpush1.bf16.msra.mxu0 %v3011
      %3022 = vmatprep.subr.bf16.mxu0 0
      %3023 = vmatpush1.bf16.msra.mxu0 %v3010
      %3024 = vmatprep.subr.bf16.mxu0 0
      %3025 = vmatpush1.bf16.msra.mxu0 %v3009
      %3026 = vmatprep.subr.bf16.mxu0 0
      %3027 = vmatpush1.bf16.msra.mxu0 %v3008
      %3028 = vmatprep.subr.bf16.mxu0 0
      %3029 = vmatpush1.bf16.msra.mxu0 %v3007
      %3030 = vmatprep.subr.bf16.mxu0 0
      %3031 = vmatpush1.bf16.msra.mxu0 %v3006
      %3032 = vmatprep.subr.bf16.mxu0 0
      %3033 = vmatpush1.bf16.msra.mxu0 %v3005
      %3034 = vmatprep.subr.bf16.mxu0 0
      %3035 = vmatpush1.bf16.msra.mxu0 %v3004
      %3036 = vmatprep.subr.bf16.mxu0 0
      %3037 = vmatpush2.bf16.msra.mxu0 0
      %3038 = vmatprep.subr.bf16.mxu0 0
      %3039 = vmatpush2.bf16.msra.mxu0 0
      %3040 = vmatprep.subr.bf16.mxu0 0
      %3041 = vmatpush2.bf16.msra.mxu0 0
      %3042 = vmatprep.subr.bf16.mxu0 0
      %3043 = vmatpush2.bf16.msra.mxu0 0
      %3044 = vmatprep.subr.bf16.mxu0 0
      %3045 = vmatpush2.bf16.msra.mxu0 0
      %3046 = vmatprep.subr.bf16.mxu0 0
      %3047 = vmatpush2.bf16.msra.mxu0 0
      %3048 = vmatprep.subr.bf16.mxu0 0
      %3049 = vmatpush2.bf16.msra.mxu0 0
      %3050 = vmatprep.subr.bf16.mxu0 0
      %3051 = vmatpush2.bf16.msra.mxu0 0
      %3052 = vmatprep.mubr.bf16.mxu0 0
      %3053 = vmatmul.mubr.bf16.gmra.mxu0 %v2951
      %v3054 = vpop.f32.mrf.mxu0
      %v3055 = vadd.f32 0.0, %v3054
      %v3056 = vpop.f32.mrf.mxu0
      %v3057 = vpop.f32.mrf.mxu0
      %v3058 = vadd.f32 0.0, %v3057
      %v3059 = vpop.f32.mrf.mxu0
      %3060 = vmatprep.mubr.bf16.mxu0 0
      %3061 = vmatmul.mubr.bf16.gmra.mxu0 %v2952
      %v3062 = vpop.f32.mrf.mxu0
      %v3063 = vadd.f32 0.0, %v3062
      %v3064 = vpop.f32.mrf.mxu0
      %v3065 = vpop.f32.mrf.mxu0
      %v3066 = vadd.f32 0.0, %v3065
      %v3067 = vpop.f32.mrf.mxu0
      %3068 = vmatprep.mubr.bf16.mxu0 0
      %3069 = vmatmul.mubr.bf16.gmra.mxu0 %v2953
      %v3070 = vpop.f32.mrf.mxu0
      %v3071 = vadd.f32 0.0, %v3070
      %v3072 = vpop.f32.mrf.mxu0
      %v3073 = vpop.f32.mrf.mxu0
      %v3074 = vadd.f32 0.0, %v3073
      %v3075 = vpop.f32.mrf.mxu0
      %3076 = vmatprep.mubr.bf16.mxu0 0
      %3077 = vmatmul.mubr.bf16.gmra.mxu0 %v2954
      %v3078 = vpop.f32.mrf.mxu0
      %v3079 = vadd.f32 0.0, %v3078
      %v3080 = vpop.f32.mrf.mxu0
      %v3081 = vpop.f32.mrf.mxu0
      %v3082 = vadd.f32 0.0, %v3081
      %v3083 = vpop.f32.mrf.mxu0
      %3084 = vdwg.mxu0
      %v3085 = vadd.f32 %v2931, %v3055
      %v3086 = vadd.f32 %v2932, %v3058
      %v3087 = vadd.f32 %v2933, %v3063
      %v3088 = vadd.f32 %v2934, %v3066
      %v3089 = vadd.f32 %v2935, %v3071
      %v3090 = vadd.f32 %v2936, %v3074
      %v3091 = vadd.f32 %v2937, %v3079
      %v3092 = vadd.f32 %v2938, %v3082
      %v3093 = vld [vmem:[#allocation3 + $0x17] sm:$0xff]
      %v3094 = vld [vmem:[#allocation3 + $0x1f] sm:$0xff]
      %v3095 = vld [vmem:[#allocation3 + $0x27] sm:$0xff]
      %v3096 = vld [vmem:[#allocation3 + $0x2f] sm:$0xff]
      %v3097 = vld [vmem:[#allocation3 + $0x37] sm:$0xff]
      %v3098 = vld [vmem:[#allocation3 + $0x3f] sm:$0xff]
      %v3099 = vld [vmem:[#allocation3 + $0x47] sm:$0xff]
      %v3100 = vld [vmem:[#allocation3 + $0x4f] sm:$0xff]
      %v3101 = vpack.c.bf16 %v3094, %v3093
      %v3102 = vpack.c.bf16 %v3096, %v3095
      %v3103 = vpack.c.bf16 %v3098, %v3097
      %v3104 = vpack.c.bf16 %v3100, %v3099
      %v3105 = vmul.bf16 %v3101, %v2138
      %v3106 = vmul.bf16 %v3102, %v2139
      %v3107 = vmul.bf16 %v3103, %v2140
      %v3108 = vmul.bf16 %v3104, %v2141
      %s3109 = scalar_lea.vmem %s9, 384
      %v3110 = vld [vmem:[%s3109] sm:$0xf]
      %v3111 = vld [vmem:[%s3109 + $0x4] sm:$0xf]
      %v3112 = vld [vmem:[%s3109 + $0x8] sm:$0xf]
      %v3113 = vld [vmem:[%s3109 + $0xc] sm:$0xf]
      %v3114 = vld [vmem:[%s3109 + $0x10] sm:$0xf]
      %v3115 = vld [vmem:[%s3109 + $0x14] sm:$0xf]
      %v3116 = vld [vmem:[%s3109 + $0x18] sm:$0xf]
      %v3117 = vld [vmem:[%s3109 + $0x1c] sm:$0xf]
      %v3118 = vld [vmem:[%s3109 + $0x20] sm:$0xf]
      %v3119 = vld [vmem:[%s3109 + $0x24] sm:$0xf]
      %v3120 = vld [vmem:[%s3109 + $0x28] sm:$0xf]
      %v3121 = vld [vmem:[%s3109 + $0x2c] sm:$0xf]
      %v3122 = vld [vmem:[%s3109 + $0x30] sm:$0xf]
      %v3123 = vld [vmem:[%s3109 + $0x34] sm:$0xf]
      %v3124 = vld [vmem:[%s3109 + $0x38] sm:$0xf]
      %v3125 = vld [vmem:[%s3109 + $0x3c] sm:$0xf]
      %v3142 = vunpack.c.l.b16 %v3110
      %v3143 = vunpack.c.l.b16 %v3111
      %v3144 = vunpack.c.l.b16 %v3112
      %v3145 = vunpack.c.l.b16 %v3113
      %v3146 = vunpack.c.l.b16 %v3114
      %v3147 = vunpack.c.l.b16 %v3115
      %v3148 = vunpack.c.l.b16 %v3116
      %v3149 = vunpack.c.l.b16 %v3117
      %v3150 = vunpack.c.l.b16 %v3118
      %v3151 = vunpack.c.l.b16 %v3119
      %v3152 = vunpack.c.l.b16 %v3120
      %v3153 = vunpack.c.l.b16 %v3121
      %v3154 = vunpack.c.l.b16 %v3122
      %v3155 = vunpack.c.l.b16 %v3123
      %v3156 = vunpack.c.l.b16 %v3124
      %v3157 = vunpack.c.l.b16 %v3125
      %v3158 = vpack.c.b16 %v3143, %v3142
      %v3159 = vpack.c.b16 %v3145, %v3144
      %v3160 = vpack.c.b16 %v3147, %v3146
      %v3161 = vpack.c.b16 %v3149, %v3148
      %v3162 = vpack.c.b16 %v3151, %v3150
      %v3163 = vpack.c.b16 %v3153, %v3152
      %v3164 = vpack.c.b16 %v3155, %v3154
      %v3165 = vpack.c.b16 %v3157, %v3156
      %3174 = vmatprep.subr.bf16.mxu0 0
      %3175 = vmatpush1.bf16.msra.mxu0 %v3165
      %3176 = vmatprep.subr.bf16.mxu0 0
      %3177 = vmatpush1.bf16.msra.mxu0 %v3164
      %3178 = vmatprep.subr.bf16.mxu0 0
      %3179 = vmatpush1.bf16.msra.mxu0 %v3163
      %3180 = vmatprep.subr.bf16.mxu0 0
      %3181 = vmatpush1.bf16.msra.mxu0 %v3162
      %3182 = vmatprep.subr.bf16.mxu0 0
      %3183 = vmatpush1.bf16.msra.mxu0 %v3161
      %3184 = vmatprep.subr.bf16.mxu0 0
      %3185 = vmatpush1.bf16.msra.mxu0 %v3160
      %3186 = vmatprep.subr.bf16.mxu0 0
      %3187 = vmatpush1.bf16.msra.mxu0 %v3159
      %3188 = vmatprep.subr.bf16.mxu0 0
      %3189 = vmatpush1.bf16.msra.mxu0 %v3158
      %3190 = vmatprep.subr.bf16.mxu0 0
      %3191 = vmatpush2.bf16.msra.mxu0 0
      %3192 = vmatprep.subr.bf16.mxu0 0
      %3193 = vmatpush2.bf16.msra.mxu0 0
      %3194 = vmatprep.subr.bf16.mxu0 0
      %3195 = vmatpush2.bf16.msra.mxu0 0
      %3196 = vmatprep.subr.bf16.mxu0 0
      %3197 = vmatpush2.bf16.msra.mxu0 0
      %3198 = vmatprep.subr.bf16.mxu0 0
      %3199 = vmatpush2.bf16.msra.mxu0 0
      %3200 = vmatprep.subr.bf16.mxu0 0
      %3201 = vmatpush2.bf16.msra.mxu0 0
      %3202 = vmatprep.subr.bf16.mxu0 0
      %3203 = vmatpush2.bf16.msra.mxu0 0
      %3204 = vmatprep.subr.bf16.mxu0 0
      %3205 = vmatpush2.bf16.msra.mxu0 0
      %3206 = vmatprep.mubr.bf16.mxu0 0
      %3207 = vmatmul.mubr.bf16.gmra.mxu0 %v3105
      %v3208 = vpop.f32.mrf.mxu0
      %v3209 = vadd.f32 0.0, %v3208
      %v3210 = vpop.f32.mrf.mxu0
      %v3211 = vpop.f32.mrf.mxu0
      %v3212 = vadd.f32 0.0, %v3211
      %v3213 = vpop.f32.mrf.mxu0
      %3214 = vmatprep.mubr.bf16.mxu0 0
      %3215 = vmatmul.mubr.bf16.gmra.mxu0 %v3106
      %v3216 = vpop.f32.mrf.mxu0
      %v3217 = vadd.f32 0.0, %v3216
      %v3218 = vpop.f32.mrf.mxu0
      %v3219 = vpop.f32.mrf.mxu0
      %v3220 = vadd.f32 0.0, %v3219
      %v3221 = vpop.f32.mrf.mxu0
      %3222 = vmatprep.mubr.bf16.mxu0 0
      %3223 = vmatmul.mubr.bf16.gmra.mxu0 %v3107
      %v3224 = vpop.f32.mrf.mxu0
      %v3225 = vadd.f32 0.0, %v3224
      %v3226 = vpop.f32.mrf.mxu0
      %v3227 = vpop.f32.mrf.mxu0
      %v3228 = vadd.f32 0.0, %v3227
      %v3229 = vpop.f32.mrf.mxu0
      %3230 = vmatprep.mubr.bf16.mxu0 0
      %3231 = vmatmul.mubr.bf16.gmra.mxu0 %v3108
      %v3232 = vpop.f32.mrf.mxu0
      %v3233 = vadd.f32 0.0, %v3232
      %v3234 = vpop.f32.mrf.mxu0
      %v3235 = vpop.f32.mrf.mxu0
      %v3236 = vadd.f32 0.0, %v3235
      %v3237 = vpop.f32.mrf.mxu0
      %3238 = vdwg.mxu0
      %v3239 = vadd.f32 %v3085, %v3209
      %v3240 = vadd.f32 %v3086, %v3212
      %v3241 = vadd.f32 %v3087, %v3217
      %v3242 = vadd.f32 %v3088, %v3220
      %v3243 = vadd.f32 %v3089, %v3225
      %v3244 = vadd.f32 %v3090, %v3228
      %v3245 = vadd.f32 %v3091, %v3233
      %v3246 = vadd.f32 %v3092, %v3236
      %v3247 = vld [vmem:[#allocation3 + $0x18] sm:$0xff]
      %v3248 = vld [vmem:[#allocation3 + $0x20] sm:$0xff]
      %v3249 = vld [vmem:[#allocation3 + $0x28] sm:$0xff]
      %v3250 = vld [vmem:[#allocation3 + $0x30] sm:$0xff]
      %v3251 = vld [vmem:[#allocation3 + $0x38] sm:$0xff]
      %v3252 = vld [vmem:[#allocation3 + $0x40] sm:$0xff]
      %v3253 = vld [vmem:[#allocation3 + $0x48] sm:$0xff]
      %v3254 = vld [vmem:[#allocation3 + $0x50] sm:$0xff]
      %v3255 = vpack.c.bf16 %v3248, %v3247
      %v3256 = vpack.c.bf16 %v3250, %v3249
      %v3257 = vpack.c.bf16 %v3252, %v3251
      %v3258 = vpack.c.bf16 %v3254, %v3253
      %s3259 = scalar_lea.vmem %s9, 448
      %v3260 = vld [vmem:[%s3259] sm:$0xf]
      %v3261 = vld [vmem:[%s3259 + $0x4] sm:$0xf]
      %v3262 = vld [vmem:[%s3259 + $0x8] sm:$0xf]
      %v3263 = vld [vmem:[%s3259 + $0xc] sm:$0xf]
      %v3264 = vld [vmem:[%s3259 + $0x10] sm:$0xf]
      %v3265 = vld [vmem:[%s3259 + $0x14] sm:$0xf]
      %v3266 = vld [vmem:[%s3259 + $0x18] sm:$0xf]
      %v3267 = vld [vmem:[%s3259 + $0x1c] sm:$0xf]
      %v3268 = vld [vmem:[%s3259 + $0x20] sm:$0xf]
      %v3269 = vld [vmem:[%s3259 + $0x24] sm:$0xf]
      %v3270 = vld [vmem:[%s3259 + $0x28] sm:$0xf]
      %v3271 = vld [vmem:[%s3259 + $0x2c] sm:$0xf]
      %v3272 = vld [vmem:[%s3259 + $0x30] sm:$0xf]
      %v3273 = vld [vmem:[%s3259 + $0x34] sm:$0xf]
      %v3274 = vld [vmem:[%s3259 + $0x38] sm:$0xf]
      %v3275 = vld [vmem:[%s3259 + $0x3c] sm:$0xf]
      %v3292 = vunpack.c.l.b16 %v3260
      %v3293 = vunpack.c.l.b16 %v3261
      %v3294 = vunpack.c.l.b16 %v3262
      %v3295 = vunpack.c.l.b16 %v3263
      %v3296 = vunpack.c.l.b16 %v3264
      %v3297 = vunpack.c.l.b16 %v3265
      %v3298 = vunpack.c.l.b16 %v3266
      %v3299 = vunpack.c.l.b16 %v3267
      %v3300 = vunpack.c.l.b16 %v3268
      %v3301 = vunpack.c.l.b16 %v3269
      %v3302 = vunpack.c.l.b16 %v3270
      %v3303 = vunpack.c.l.b16 %v3271
      %v3304 = vunpack.c.l.b16 %v3272
      %v3305 = vunpack.c.l.b16 %v3273
      %v3306 = vunpack.c.l.b16 %v3274
      %v3307 = vunpack.c.l.b16 %v3275
      %v3308 = vpack.c.b16 %v3293, %v3292
      %v3309 = vpack.c.b16 %v3295, %v3294
      %v3310 = vpack.c.b16 %v3297, %v3296
      %v3311 = vpack.c.b16 %v3299, %v3298
      %v3312 = vpack.c.b16 %v3301, %v3300
      %v3313 = vpack.c.b16 %v3303, %v3302
      %v3314 = vpack.c.b16 %v3305, %v3304
      %v3315 = vpack.c.b16 %v3307, %v3306
      %3324 = vmatprep.subr.bf16.mxu0 0
      %3325 = vmatpush1.bf16.msra.mxu0 %v3315
      %3326 = vmatprep.subr.bf16.mxu0 0
      %3327 = vmatpush1.bf16.msra.mxu0 %v3314
      %3328 = vmatprep.subr.bf16.mxu0 0
      %3329 = vmatpush1.bf16.msra.mxu0 %v3313
      %3330 = vmatprep.subr.bf16.mxu0 0
      %3331 = vmatpush1.bf16.msra.mxu0 %v3312
      %3332 = vmatprep.subr.bf16.mxu0 0
      %3333 = vmatpush1.bf16.msra.mxu0 %v3311
      %3334 = vmatprep.subr.bf16.mxu0 0
      %3335 = vmatpush1.bf16.msra.mxu0 %v3310
      %3336 = vmatprep.subr.bf16.mxu0 0
      %3337 = vmatpush1.bf16.msra.mxu0 %v3309
      %3338 = vmatprep.subr.bf16.mxu0 0
      %3339 = vmatpush1.bf16.msra.mxu0 %v3308
      %3340 = vmatprep.subr.bf16.mxu0 0
      %3341 = vmatpush2.bf16.msra.mxu0 0
      %3342 = vmatprep.subr.bf16.mxu0 0
      %3343 = vmatpush2.bf16.msra.mxu0 0
      %3344 = vmatprep.subr.bf16.mxu0 0
      %3345 = vmatpush2.bf16.msra.mxu0 0
      %3346 = vmatprep.subr.bf16.mxu0 0
      %3347 = vmatpush2.bf16.msra.mxu0 0
      %3348 = vmatprep.subr.bf16.mxu0 0
      %3349 = vmatpush2.bf16.msra.mxu0 0
      %3350 = vmatprep.subr.bf16.mxu0 0
      %3351 = vmatpush2.bf16.msra.mxu0 0
      %3352 = vmatprep.subr.bf16.mxu0 0
      %3353 = vmatpush2.bf16.msra.mxu0 0
      %3354 = vmatprep.subr.bf16.mxu0 0
      %3355 = vmatpush2.bf16.msra.mxu0 0
      %3356 = vmatprep.mubr.bf16.mxu0 0
      %3357 = vmatmul.mubr.bf16.gmra.mxu0 %v3255
      %v3358 = vpop.f32.mrf.mxu0
      %v3359 = vadd.f32 0.0, %v3358
      %v3360 = vpop.f32.mrf.mxu0
      %v3361 = vpop.f32.mrf.mxu0
      %v3362 = vadd.f32 0.0, %v3361
      %v3363 = vpop.f32.mrf.mxu0
      %3364 = vmatprep.mubr.bf16.mxu0 0
      %3365 = vmatmul.mubr.bf16.gmra.mxu0 %v3256
      %v3366 = vpop.f32.mrf.mxu0
      %v3367 = vadd.f32 0.0, %v3366
      %v3368 = vpop.f32.mrf.mxu0
      %v3369 = vpop.f32.mrf.mxu0
      %v3370 = vadd.f32 0.0, %v3369
      %v3371 = vpop.f32.mrf.mxu0
      %3372 = vmatprep.mubr.bf16.mxu0 0
      %3373 = vmatmul.mubr.bf16.gmra.mxu0 %v3257
      %v3374 = vpop.f32.mrf.mxu0
      %v3375 = vadd.f32 0.0, %v3374
      %v3376 = vpop.f32.mrf.mxu0
      %v3377 = vpop.f32.mrf.mxu0
      %v3378 = vadd.f32 0.0, %v3377
      %v3379 = vpop.f32.mrf.mxu0
      %3380 = vmatprep.mubr.bf16.mxu0 0
      %3381 = vmatmul.mubr.bf16.gmra.mxu0 %v3258
      %v3382 = vpop.f32.mrf.mxu0
      %v3383 = vadd.f32 0.0, %v3382
      %v3384 = vpop.f32.mrf.mxu0
      %v3385 = vpop.f32.mrf.mxu0
      %v3386 = vadd.f32 0.0, %v3385
      %v3387 = vpop.f32.mrf.mxu0
      %3388 = vdwg.mxu0
      %v3389 = vadd.f32 %v3239, %v3359
      %v3390 = vadd.f32 %v3240, %v3362
      %v3391 = vadd.f32 %v3241, %v3367
      %v3392 = vadd.f32 %v3242, %v3370
      %v3393 = vadd.f32 %v3243, %v3375
      %v3394 = vadd.f32 %v3244, %v3378
      %v3395 = vadd.f32 %v3245, %v3383
      %v3396 = vadd.f32 %v3246, %v3386
      %v3397 = vld [vmem:[#allocation3 + $0x19] sm:$0xff]
      %v3398 = vld [vmem:[#allocation3 + $0x21] sm:$0xff]
      %v3399 = vld [vmem:[#allocation3 + $0x29] sm:$0xff]
      %v3400 = vld [vmem:[#allocation3 + $0x31] sm:$0xff]
      %v3401 = vld [vmem:[#allocation3 + $0x39] sm:$0xff]
      %v3402 = vld [vmem:[#allocation3 + $0x41] sm:$0xff]
      %v3403 = vld [vmem:[#allocation3 + $0x49] sm:$0xff]
      %v3404 = vld [vmem:[#allocation3 + $0x51] sm:$0xff]
      %v3405 = vpack.c.bf16 %v3398, %v3397
      %v3406 = vpack.c.bf16 %v3400, %v3399
      %v3407 = vpack.c.bf16 %v3402, %v3401
      %v3408 = vpack.c.bf16 %v3404, %v3403
      %v3409 = vmul.bf16 %v3405, %v2166
      %v3410 = vmul.bf16 %v3406, %v2167
      %v3411 = vmul.bf16 %v3407, %v2168
      %v3412 = vmul.bf16 %v3408, %v2169
      %s3413 = scalar_lea.vmem %s9, 512
      %v3414 = vld [vmem:[%s3413] sm:$0xf]
      %v3415 = vld [vmem:[%s3413 + $0x4] sm:$0xf]
      %v3416 = vld [vmem:[%s3413 + $0x8] sm:$0xf]
      %v3417 = vld [vmem:[%s3413 + $0xc] sm:$0xf]
      %v3418 = vld [vmem:[%s3413 + $0x10] sm:$0xf]
      %v3419 = vld [vmem:[%s3413 + $0x14] sm:$0xf]
      %v3420 = vld [vmem:[%s3413 + $0x18] sm:$0xf]
      %v3421 = vld [vmem:[%s3413 + $0x1c] sm:$0xf]
      %v3422 = vld [vmem:[%s3413 + $0x20] sm:$0xf]
      %v3423 = vld [vmem:[%s3413 + $0x24] sm:$0xf]
      %v3424 = vld [vmem:[%s3413 + $0x28] sm:$0xf]
      %v3425 = vld [vmem:[%s3413 + $0x2c] sm:$0xf]
      %v3426 = vld [vmem:[%s3413 + $0x30] sm:$0xf]
      %v3427 = vld [vmem:[%s3413 + $0x34] sm:$0xf]
      %v3428 = vld [vmem:[%s3413 + $0x38] sm:$0xf]
      %v3429 = vld [vmem:[%s3413 + $0x3c] sm:$0xf]
      %v3446 = vunpack.c.l.b16 %v3414
      %v3447 = vunpack.c.l.b16 %v3415
      %v3448 = vunpack.c.l.b16 %v3416
      %v3449 = vunpack.c.l.b16 %v3417
      %v3450 = vunpack.c.l.b16 %v3418
      %v3451 = vunpack.c.l.b16 %v3419
      %v3452 = vunpack.c.l.b16 %v3420
      %v3453 = vunpack.c.l.b16 %v3421
      %v3454 = vunpack.c.l.b16 %v3422
      %v3455 = vunpack.c.l.b16 %v3423
      %v3456 = vunpack.c.l.b16 %v3424
      %v3457 = vunpack.c.l.b16 %v3425
      %v3458 = vunpack.c.l.b16 %v3426
      %v3459 = vunpack.c.l.b16 %v3427
      %v3460 = vunpack.c.l.b16 %v3428
      %v3461 = vunpack.c.l.b16 %v3429
      %v3462 = vpack.c.b16 %v3447, %v3446
      %v3463 = vpack.c.b16 %v3449, %v3448
      %v3464 = vpack.c.b16 %v3451, %v3450
      %v3465 = vpack.c.b16 %v3453, %v3452
      %v3466 = vpack.c.b16 %v3455, %v3454
      %v3467 = vpack.c.b16 %v3457, %v3456
      %v3468 = vpack.c.b16 %v3459, %v3458
      %v3469 = vpack.c.b16 %v3461, %v3460
      %3478 = vmatprep.subr.bf16.mxu0 0
      %3479 = vmatpush1.bf16.msra.mxu0 %v3469
      %3480 = vmatprep.subr.bf16.mxu0 0
      %3481 = vmatpush1.bf16.msra.mxu0 %v3468
      %3482 = vmatprep.subr.bf16.mxu0 0
      %3483 = vmatpush1.bf16.msra.mxu0 %v3467
      %3484 = vmatprep.subr.bf16.mxu0 0
      %3485 = vmatpush1.bf16.msra.mxu0 %v3466
      %3486 = vmatprep.subr.bf16.mxu0 0
      %3487 = vmatpush1.bf16.msra.mxu0 %v3465
      %3488 = vmatprep.subr.bf16.mxu0 0
      %3489 = vmatpush1.bf16.msra.mxu0 %v3464
      %3490 = vmatprep.subr.bf16.mxu0 0
      %3491 = vmatpush1.bf16.msra.mxu0 %v3463
      %3492 = vmatprep.subr.bf16.mxu0 0
      %3493 = vmatpush1.bf16.msra.mxu0 %v3462
      %3494 = vmatprep.subr.bf16.mxu0 0
      %3495 = vmatpush2.bf16.msra.mxu0 0
      %3496 = vmatprep.subr.bf16.mxu0 0
      %3497 = vmatpush2.bf16.msra.mxu0 0
      %3498 = vmatprep.subr.bf16.mxu0 0
      %3499 = vmatpush2.bf16.msra.mxu0 0
      %3500 = vmatprep.subr.bf16.mxu0 0
      %3501 = vmatpush2.bf16.msra.mxu0 0
      %3502 = vmatprep.subr.bf16.mxu0 0
      %3503 = vmatpush2.bf16.msra.mxu0 0
      %3504 = vmatprep.subr.bf16.mxu0 0
      %3505 = vmatpush2.bf16.msra.mxu0 0
      %3506 = vmatprep.subr.bf16.mxu0 0
      %3507 = vmatpush2.bf16.msra.mxu0 0
      %3508 = vmatprep.subr.bf16.mxu0 0
      %3509 = vmatpush2.bf16.msra.mxu0 0
      %3510 = vmatprep.mubr.bf16.mxu0 0
      %3511 = vmatmul.mubr.bf16.gmra.mxu0 %v3409
      %v3512 = vpop.f32.mrf.mxu0
      %v3513 = vadd.f32 0.0, %v3512
      %v3514 = vpop.f32.mrf.mxu0
      %v3515 = vpop.f32.mrf.mxu0
      %v3516 = vadd.f32 0.0, %v3515
      %v3517 = vpop.f32.mrf.mxu0
      %3518 = vmatprep.mubr.bf16.mxu0 0
      %3519 = vmatmul.mubr.bf16.gmra.mxu0 %v3410
      %v3520 = vpop.f32.mrf.mxu0
      %v3521 = vadd.f32 0.0, %v3520
      %v3522 = vpop.f32.mrf.mxu0
      %v3523 = vpop.f32.mrf.mxu0
      %v3524 = vadd.f32 0.0, %v3523
      %v3525 = vpop.f32.mrf.mxu0
      %3526 = vmatprep.mubr.bf16.mxu0 0
      %3527 = vmatmul.mubr.bf16.gmra.mxu0 %v3411
      %v3528 = vpop.f32.mrf.mxu0
      %v3529 = vadd.f32 0.0, %v3528
      %v3530 = vpop.f32.mrf.mxu0
      %v3531 = vpop.f32.mrf.mxu0
      %v3532 = vadd.f32 0.0, %v3531
      %v3533 = vpop.f32.mrf.mxu0
      %3534 = vmatprep.mubr.bf16.mxu0 0
      %3535 = vmatmul.mubr.bf16.gmra.mxu0 %v3412
      %v3536 = vpop.f32.mrf.mxu0
      %v3537 = vadd.f32 0.0, %v3536
      %v3538 = vpop.f32.mrf.mxu0
      %v3539 = vpop.f32.mrf.mxu0
      %v3540 = vadd.f32 0.0, %v3539
      %v3541 = vpop.f32.mrf.mxu0
      %3542 = vdwg.mxu0
      %v3543 = vadd.f32 %v3389, %v3513
      %v3544 = vadd.f32 %v3390, %v3516
      %v3545 = vadd.f32 %v3391, %v3521
      %v3546 = vadd.f32 %v3392, %v3524
      %v3547 = vadd.f32 %v3393, %v3529
      %v3548 = vadd.f32 %v3394, %v3532
      %v3549 = vadd.f32 %v3395, %v3537
      %v3550 = vadd.f32 %v3396, %v3540
      %3551 = vst [vmem:[%s662] sm:$0xff] %v3543
      %3552 = vst [vmem:[%s662 + $0x8] sm:$0xff] %v3544
      %3553 = vst [vmem:[%s662 + $0x10] sm:$0xff] %v3545
      %3554 = vst [vmem:[%s662 + $0x18] sm:$0xff] %v3546
      %3555 = vst [vmem:[%s662 + $0x20] sm:$0xff] %v3547
      %3556 = vst [vmem:[%s662 + $0x28] sm:$0xff] %v3548
      %3557 = vst [vmem:[%s662 + $0x30] sm:$0xff] %v3549
      %3558 = vst [vmem:[%s662 + $0x38] sm:$0xff] %v3550
      %v3559 = vpack.c.bf16 %v2081, %v2080
      %v3560 = vpack.c.bf16 %v2083, %v2082
      %v3561 = vpack.c.bf16 %v2085, %v2084
      %v3562 = vpack.c.bf16 %v2087, %v2086
      %v3563 = vld [vmem:[%s642] sm:$0xf]
      %v3564 = vld [vmem:[%s642 + $0x4] sm:$0xf]
      %v3565 = vld [vmem:[%s642 + $0x8] sm:$0xf]
      %v3566 = vld [vmem:[%s642 + $0xc] sm:$0xf]
      %v3567 = vld [vmem:[%s642 + $0x10] sm:$0xf]
      %v3568 = vld [vmem:[%s642 + $0x14] sm:$0xf]
      %v3569 = vld [vmem:[%s642 + $0x18] sm:$0xf]
      %v3570 = vld [vmem:[%s642 + $0x1c] sm:$0xf]
      %v3571 = vld [vmem:[%s642 + $0x20] sm:$0xf]
      %v3572 = vld [vmem:[%s642 + $0x24] sm:$0xf]
      %v3573 = vld [vmem:[%s642 + $0x28] sm:$0xf]
      %v3574 = vld [vmem:[%s642 + $0x2c] sm:$0xf]
      %v3575 = vld [vmem:[%s642 + $0x30] sm:$0xf]
      %v3576 = vld [vmem:[%s642 + $0x34] sm:$0xf]
      %v3577 = vld [vmem:[%s642 + $0x38] sm:$0xf]
      %v3578 = vld [vmem:[%s642 + $0x3c] sm:$0xf]
      %v3579 = vld [vmem:[%s642 + $0x40] sm:$0xf]
      %v3580 = vld [vmem:[%s642 + $0x44] sm:$0xf]
      %v3581 = vld [vmem:[%s642 + $0x48] sm:$0xf]
      %v3582 = vld [vmem:[%s642 + $0x4c] sm:$0xf]
      %v3583 = vld [vmem:[%s642 + $0x50] sm:$0xf]
      %v3584 = vld [vmem:[%s642 + $0x54] sm:$0xf]
      %v3585 = vld [vmem:[%s642 + $0x58] sm:$0xf]
      %v3586 = vld [vmem:[%s642 + $0x5c] sm:$0xf]
      %v3587 = vld [vmem:[%s642 + $0x60] sm:$0xf]
      %v3588 = vld [vmem:[%s642 + $0x64] sm:$0xf]
      %v3589 = vld [vmem:[%s642 + $0x68] sm:$0xf]
      %v3590 = vld [vmem:[%s642 + $0x6c] sm:$0xf]
      %v3591 = vld [vmem:[%s642 + $0x70] sm:$0xf]
      %v3592 = vld [vmem:[%s642 + $0x74] sm:$0xf]
      %v3593 = vld [vmem:[%s642 + $0x78] sm:$0xf]
      %v3594 = vld [vmem:[%s642 + $0x7c] sm:$0xf]
      %v3595 = vld [vmem:[%s3] sm:$0xf]
      %v3596 = vld [vmem:[%s3 + $0x4] sm:$0xf]
      %v3597 = vld [vmem:[%s3 + $0x8] sm:$0xf]
      %v3598 = vld [vmem:[%s3 + $0xc] sm:$0xf]
      %v3599 = vld [vmem:[%s4] sm:$0x1]
      %v3601 = vlaneseq
      %v3602 = vshrl.u32 %v3601, 7
      %v3603 = vsub.s32 0, %v3602
      %v3604 = vrot.slane %v3599, %v3603
      %v3638 = vunpack.c.l.b16 %v3563
      %v3639 = vunpack.c.l.b16 %v3564
      %v3640 = vunpack.c.l.b16 %v3565
      %v3641 = vunpack.c.l.b16 %v3566
      %v3642 = vunpack.c.l.b16 %v3567
      %v3643 = vunpack.c.l.b16 %v3568
      %v3644 = vunpack.c.l.b16 %v3569
      %v3645 = vunpack.c.l.b16 %v3570
      %v3646 = vunpack.c.l.b16 %v3571
      %v3647 = vunpack.c.l.b16 %v3572
      %v3648 = vunpack.c.l.b16 %v3573
      %v3649 = vunpack.c.l.b16 %v3574
      %v3650 = vunpack.c.l.b16 %v3575
      %v3651 = vunpack.c.l.b16 %v3576
      %v3652 = vunpack.c.l.b16 %v3577
      %v3653 = vunpack.c.l.b16 %v3578
      %v3654 = vunpack.c.l.b16 %v3579
      %v3655 = vunpack.c.l.b16 %v3580
      %v3656 = vunpack.c.l.b16 %v3581
      %v3657 = vunpack.c.l.b16 %v3582
      %v3658 = vunpack.c.l.b16 %v3583
      %v3659 = vunpack.c.l.b16 %v3584
      %v3660 = vunpack.c.l.b16 %v3585
      %v3661 = vunpack.c.l.b16 %v3586
      %v3662 = vunpack.c.l.b16 %v3587
      %v3663 = vunpack.c.l.b16 %v3588
      %v3664 = vunpack.c.l.b16 %v3589
      %v3665 = vunpack.c.l.b16 %v3590
      %v3666 = vunpack.c.l.b16 %v3591
      %v3667 = vunpack.c.l.b16 %v3592
      %v3668 = vunpack.c.l.b16 %v3593
      %v3669 = vunpack.c.l.b16 %v3594
      %v3670 = vpack.c.b16 %v3639, %v3638
      %v3671 = vpack.c.b16 %v3641, %v3640
      %v3672 = vpack.c.b16 %v3643, %v3642
      %v3673 = vpack.c.b16 %v3645, %v3644
      %v3674 = vpack.c.b16 %v3647, %v3646
      %v3675 = vpack.c.b16 %v3649, %v3648
      %v3676 = vpack.c.b16 %v3651, %v3650
      %v3677 = vpack.c.b16 %v3653, %v3652
      %v3678 = vpack.c.b16 %v3655, %v3654
      %v3679 = vpack.c.b16 %v3657, %v3656
      %v3680 = vpack.c.b16 %v3659, %v3658
      %v3681 = vpack.c.b16 %v3661, %v3660
      %v3682 = vpack.c.b16 %v3663, %v3662
      %v3683 = vpack.c.b16 %v3665, %v3664
      %v3684 = vpack.c.b16 %v3667, %v3666
      %v3685 = vpack.c.b16 %v3669, %v3668
      %v3690 = vunpack.c.l.b16 %v3595
      %v3691 = vunpack.c.l.b16 %v3596
      %v3692 = vunpack.c.l.b16 %v3597
      %v3693 = vunpack.c.l.b16 %v3598
      %v3694 = vpack.c.b16 %v3691, %v3690
      %v3695 = vpack.c.b16 %v3693, %v3692
      %vm3698 = vcmask 261120
      %v3700 = vsel %vm3698, %v3670, 0
      %v3703 = vsel %vm3698, %v3671, 0
      %v3706 = vsel %vm3698, %v3672, 0
      %v3709 = vsel %vm3698, %v3673, 0
      %v3712 = vsel %vm3698, %v3674, 0
      %v3715 = vsel %vm3698, %v3675, 0
      %v3718 = vsel %vm3698, %v3676, 0
      %v3721 = vsel %vm3698, %v3677, 0
      %v3724 = vsel %vm3698, %v3678, 0
      %v3727 = vsel %vm3698, %v3679, 0
      %v3730 = vsel %vm3698, %v3680, 0
      %v3733 = vsel %vm3698, %v3681, 0
      %v3736 = vsel %vm3698, %v3682, 0
      %v3739 = vsel %vm3698, %v3683, 0
      %v3742 = vsel %vm3698, %v3684, 0
      %v3745 = vsel %vm3698, %v3685, 0
      %3747 = vmatprep.subr.bf16.mxu0 0
      %3748 = vmatpush1.bf16.msra.mxu0 0
      %3749 = vmatprep.subr.bf16.mxu0 0
      %3750 = vmatpush1.bf16.msra.mxu0 0
      %3751 = vmatprep.subr.bf16.mxu0 0
      %3752 = vmatpush1.bf16.msra.mxu0 0
      %3753 = vmatprep.subr.bf16.mxu0 0
      %3754 = vmatpush1.bf16.msra.mxu0 0
      %3755 = vmatprep.subr.bf16.mxu0 0
      %3756 = vmatpush1.bf16.msra.mxu0 0
      %3757 = vmatprep.subr.bf16.mxu0 0
      %3758 = vmatpush1.bf16.msra.mxu0 0
      %3759 = vmatprep.subr.bf16.mxu0 0
      %3760 = vmatpush1.bf16.msra.mxu0 %v3695
      %3761 = vmatprep.subr.bf16.mxu0 0
      %3762 = vmatpush1.bf16.msra.mxu0 %v3694
      %3763 = vmatprep.subr.bf16.mxu0 0
      %3764 = vmatpush2.bf16.msra.mxu0 0
      %3765 = vmatprep.subr.bf16.mxu0 0
      %3766 = vmatpush2.bf16.msra.mxu0 0
      %3767 = vmatprep.subr.bf16.mxu0 0
      %3768 = vmatpush2.bf16.msra.mxu0 0
      %3769 = vmatprep.subr.bf16.mxu0 0
      %3770 = vmatpush2.bf16.msra.mxu0 0
      %3771 = vmatprep.subr.bf16.mxu0 0
      %3772 = vmatpush2.bf16.msra.mxu0 0
      %3773 = vmatprep.subr.bf16.mxu0 0
      %3774 = vmatpush2.bf16.msra.mxu0 0
      %3775 = vmatprep.subr.bf16.mxu0 0
      %3776 = vmatpush2.bf16.msra.mxu0 0
      %3777 = vmatprep.subr.bf16.mxu0 0
      %3778 = vmatpush2.bf16.msra.mxu0 0
      %3779 = vmatprep.mubr.bf16.mxu0 0
      %3780 = vmatmul.mubr.bf16.gmra.mxu0 %v3700
      %v3781 = vpop.f32.mrf.mxu0
      %v3782 = vadd.f32 %v3604, %v3781
      %v3783 = vpop.f32.mrf.mxu0
      %v3784 = vpop.f32.mrf.mxu0
      %v3785 = vadd.f32 %v3604, %v3784
      %v3786 = vpop.f32.mrf.mxu0
      %3787 = vmatprep.mubr.bf16.mxu0 0
      %3788 = vmatmul.mubr.bf16.gmra.mxu0 %v3703
      %v3789 = vpop.f32.mrf.mxu0
      %v3790 = vadd.f32 %v3604, %v3789
      %v3791 = vpop.f32.mrf.mxu0
      %v3792 = vpop.f32.mrf.mxu0
      %v3793 = vadd.f32 %v3604, %v3792
      %v3794 = vpop.f32.mrf.mxu0
      %3795 = vmatprep.mubr.bf16.mxu0 0
      %3796 = vmatmul.mubr.bf16.gmra.mxu0 %v3706
      %v3797 = vpop.f32.mrf.mxu0
      %v3798 = vadd.f32 %v3604, %v3797
      %v3799 = vpop.f32.mrf.mxu0
      %v3800 = vpop.f32.mrf.mxu0
      %v3801 = vadd.f32 %v3604, %v3800
      %v3802 = vpop.f32.mrf.mxu0
      %3803 = vmatprep.mubr.bf16.mxu0 0
      %3804 = vmatmul.mubr.bf16.gmra.mxu0 %v3709
      %v3805 = vpop.f32.mrf.mxu0
      %v3806 = vadd.f32 %v3604, %v3805
      %v3807 = vpop.f32.mrf.mxu0
      %v3808 = vpop.f32.mrf.mxu0
      %v3809 = vadd.f32 %v3604, %v3808
      %v3810 = vpop.f32.mrf.mxu0
      %3811 = vmatprep.mubr.bf16.mxu0 0
      %3812 = vmatmul.mubr.bf16.gmra.mxu0 %v3712
      %v3813 = vpop.f32.mrf.mxu0
      %v3814 = vadd.f32 %v3604, %v3813
      %v3815 = vpop.f32.mrf.mxu0
      %v3816 = vpop.f32.mrf.mxu0
      %v3817 = vadd.f32 %v3604, %v3816
      %v3818 = vpop.f32.mrf.mxu0
      %3819 = vmatprep.mubr.bf16.mxu0 0
      %3820 = vmatmul.mubr.bf16.gmra.mxu0 %v3715
      %v3821 = vpop.f32.mrf.mxu0
      %v3822 = vadd.f32 %v3604, %v3821
      %v3823 = vpop.f32.mrf.mxu0
      %v3824 = vpop.f32.mrf.mxu0
      %v3825 = vadd.f32 %v3604, %v3824
      %v3826 = vpop.f32.mrf.mxu0
      %3827 = vmatprep.mubr.bf16.mxu0 0
      %3828 = vmatmul.mubr.bf16.gmra.mxu0 %v3718
      %v3829 = vpop.f32.mrf.mxu0
      %v3830 = vadd.f32 %v3604, %v3829
      %v3831 = vpop.f32.mrf.mxu0
      %v3832 = vpop.f32.mrf.mxu0
      %v3833 = vadd.f32 %v3604, %v3832
      %v3834 = vpop.f32.mrf.mxu0
      %3835 = vmatprep.mubr.bf16.mxu0 0
      %3836 = vmatmul.mubr.bf16.gmra.mxu0 %v3721
      %v3837 = vpop.f32.mrf.mxu0
      %v3838 = vadd.f32 %v3604, %v3837
      %v3839 = vpop.f32.mrf.mxu0
      %v3840 = vpop.f32.mrf.mxu0
      %v3841 = vadd.f32 %v3604, %v3840
      %v3842 = vpop.f32.mrf.mxu0
      %3843 = vmatprep.mubr.bf16.mxu0 0
      %3844 = vmatmul.mubr.bf16.gmra.mxu0 %v3724
      %v3845 = vpop.f32.mrf.mxu0
      %v3846 = vadd.f32 %v3604, %v3845
      %v3847 = vpop.f32.mrf.mxu0
      %v3848 = vpop.f32.mrf.mxu0
      %v3849 = vadd.f32 %v3604, %v3848
      %v3850 = vpop.f32.mrf.mxu0
      %3851 = vmatprep.mubr.bf16.mxu0 0
      %3852 = vmatmul.mubr.bf16.gmra.mxu0 %v3727
      %v3853 = vpop.f32.mrf.mxu0
      %v3854 = vadd.f32 %v3604, %v3853
      %v3855 = vpop.f32.mrf.mxu0
      %v3856 = vpop.f32.mrf.mxu0
      %v3857 = vadd.f32 %v3604, %v3856
      %v3858 = vpop.f32.mrf.mxu0
      %3859 = vmatprep.mubr.bf16.mxu0 0
      %3860 = vmatmul.mubr.bf16.gmra.mxu0 %v3730
      %v3861 = vpop.f32.mrf.mxu0
      %v3862 = vadd.f32 %v3604, %v3861
      %v3863 = vpop.f32.mrf.mxu0
      %v3864 = vpop.f32.mrf.mxu0
      %v3865 = vadd.f32 %v3604, %v3864
      %v3866 = vpop.f32.mrf.mxu0
      %3867 = vmatprep.mubr.bf16.mxu0 0
      %3868 = vmatmul.mubr.bf16.gmra.mxu0 %v3733
      %v3869 = vpop.f32.mrf.mxu0
      %v3870 = vadd.f32 %v3604, %v3869
      %v3871 = vpop.f32.mrf.mxu0
      %v3872 = vpop.f32.mrf.mxu0
      %v3873 = vadd.f32 %v3604, %v3872
      %v3874 = vpop.f32.mrf.mxu0
      %3875 = vmatprep.mubr.bf16.mxu0 0
      %3876 = vmatmul.mubr.bf16.gmra.mxu0 %v3736
      %v3877 = vpop.f32.mrf.mxu0
      %v3878 = vadd.f32 %v3604, %v3877
      %v3879 = vpop.f32.mrf.mxu0
      %v3880 = vpop.f32.mrf.mxu0
      %v3881 = vadd.f32 %v3604, %v3880
      %v3882 = vpop.f32.mrf.mxu0
      %3883 = vmatprep.mubr.bf16.mxu0 0
      %3884 = vmatmul.mubr.bf16.gmra.mxu0 %v3739
      %v3885 = vpop.f32.mrf.mxu0
      %v3886 = vadd.f32 %v3604, %v3885
      %v3887 = vpop.f32.mrf.mxu0
      %v3888 = vpop.f32.mrf.mxu0
      %v3889 = vadd.f32 %v3604, %v3888
      %v3890 = vpop.f32.mrf.mxu0
      %3891 = vmatprep.mubr.bf16.mxu0 0
      %3892 = vmatmul.mubr.bf16.gmra.mxu0 %v3742
      %v3893 = vpop.f32.mrf.mxu0
      %v3894 = vadd.f32 %v3604, %v3893
      %v3895 = vpop.f32.mrf.mxu0
      %v3896 = vpop.f32.mrf.mxu0
      %v3897 = vadd.f32 %v3604, %v3896
      %v3898 = vpop.f32.mrf.mxu0
      %3899 = vmatprep.mubr.bf16.mxu0 0
      %3900 = vmatmul.mubr.bf16.gmra.mxu0 %v3745
      %v3901 = vpop.f32.mrf.mxu0
      %v3902 = vadd.f32 %v3604, %v3901
      %v3903 = vpop.f32.mrf.mxu0
      %v3904 = vpop.f32.mrf.mxu0
      %v3905 = vadd.f32 %v3604, %v3904
      %v3906 = vpop.f32.mrf.mxu0
      %3907 = vdwg.mxu0
      %v3908 = vld [vmem:[%s15] sm:$0xf]
      %v3909 = vld [vmem:[%s15 + $0x4] sm:$0xf]
      %v3910 = vld [vmem:[%s15 + $0x8] sm:$0xf]
      %v3911 = vld [vmem:[%s15 + $0xc] sm:$0xf]
      %v3912 = vld [vmem:[%s15 + $0x10] sm:$0xf]
      %v3913 = vld [vmem:[%s15 + $0x14] sm:$0xf]
      %v3914 = vld [vmem:[%s15 + $0x18] sm:$0xf]
      %v3915 = vld [vmem:[%s15 + $0x1c] sm:$0xf]
      %v3916 = vld [vmem:[%s15 + $0x20] sm:$0xf]
      %v3917 = vld [vmem:[%s15 + $0x24] sm:$0xf]
      %v3918 = vld [vmem:[%s15 + $0x28] sm:$0xf]
      %v3919 = vld [vmem:[%s15 + $0x2c] sm:$0xf]
      %v3920 = vld [vmem:[%s15 + $0x30] sm:$0xf]
      %v3921 = vld [vmem:[%s15 + $0x34] sm:$0xf]
      %v3922 = vld [vmem:[%s15 + $0x38] sm:$0xf]
      %v3923 = vld [vmem:[%s15 + $0x3c] sm:$0xf]
      %v3924 = vld [vmem:[%s15 + $0x40] sm:$0xf]
      %v3925 = vld [vmem:[%s15 + $0x44] sm:$0xf]
      %v3926 = vld [vmem:[%s15 + $0x48] sm:$0xf]
      %v3927 = vld [vmem:[%s15 + $0x4c] sm:$0xf]
      %v3928 = vld [vmem:[%s15 + $0x50] sm:$0xf]
      %v3929 = vld [vmem:[%s15 + $0x54] sm:$0xf]
      %v3930 = vld [vmem:[%s15 + $0x58] sm:$0xf]
      %v3931 = vld [vmem:[%s15 + $0x5c] sm:$0xf]
      %v3932 = vld [vmem:[%s15 + $0x60] sm:$0xf]
      %v3933 = vld [vmem:[%s15 + $0x64] sm:$0xf]
      %v3934 = vld [vmem:[%s15 + $0x68] sm:$0xf]
      %v3935 = vld [vmem:[%s15 + $0x6c] sm:$0xf]
      %v3936 = vld [vmem:[%s15 + $0x70] sm:$0xf]
      %v3937 = vld [vmem:[%s15 + $0x74] sm:$0xf]
      %v3938 = vld [vmem:[%s15 + $0x78] sm:$0xf]
      %v3939 = vld [vmem:[%s15 + $0x7c] sm:$0xf]
      %v3972 = vunpack.c.l.b16 %v3908
      %v3973 = vunpack.c.l.b16 %v3909
      %v3974 = vunpack.c.l.b16 %v3910
      %v3975 = vunpack.c.l.b16 %v3911
      %v3976 = vunpack.c.l.b16 %v3912
      %v3977 = vunpack.c.l.b16 %v3913
      %v3978 = vunpack.c.l.b16 %v3914
      %v3979 = vunpack.c.l.b16 %v3915
      %v3980 = vunpack.c.l.b16 %v3916
      %v3981 = vunpack.c.l.b16 %v3917
      %v3982 = vunpack.c.l.b16 %v3918
      %v3983 = vunpack.c.l.b16 %v3919
      %v3984 = vunpack.c.l.b16 %v3920
      %v3985 = vunpack.c.l.b16 %v3921
      %v3986 = vunpack.c.l.b16 %v3922
      %v3987 = vunpack.c.l.b16 %v3923
      %v3988 = vunpack.c.l.b16 %v3924
      %v3989 = vunpack.c.l.b16 %v3925
      %v3990 = vunpack.c.l.b16 %v3926
      %v3991 = vunpack.c.l.b16 %v3927
      %v3992 = vunpack.c.l.b16 %v3928
      %v3993 = vunpack.c.l.b16 %v3929
      %v3994 = vunpack.c.l.b16 %v3930
      %v3995 = vunpack.c.l.b16 %v3931
      %v3996 = vunpack.c.l.b16 %v3932
      %v3997 = vunpack.c.l.b16 %v3933
      %v3998 = vunpack.c.l.b16 %v3934
      %v3999 = vunpack.c.l.b16 %v3935
      %v4000 = vunpack.c.l.b16 %v3936
      %v4001 = vunpack.c.l.b16 %v3937
      %v4002 = vunpack.c.l.b16 %v3938
      %v4003 = vunpack.c.l.b16 %v3939
      %v4004 = vpack.c.b16 %v3973, %v3972
      %v4005 = vpack.c.b16 %v3975, %v3974
      %v4006 = vpack.c.b16 %v3977, %v3976
      %v4007 = vpack.c.b16 %v3979, %v3978
      %v4008 = vpack.c.b16 %v3981, %v3980
      %v4009 = vpack.c.b16 %v3983, %v3982
      %v4010 = vpack.c.b16 %v3985, %v3984
      %v4011 = vpack.c.b16 %v3987, %v3986
      %v4012 = vpack.c.b16 %v3989, %v3988
      %v4013 = vpack.c.b16 %v3991, %v3990
      %v4014 = vpack.c.b16 %v3993, %v3992
      %v4015 = vpack.c.b16 %v3995, %v3994
      %v4016 = vpack.c.b16 %v3997, %v3996
      %v4017 = vpack.c.b16 %v3999, %v3998
      %v4018 = vpack.c.b16 %v4001, %v4000
      %v4019 = vpack.c.b16 %v4003, %v4002
      %v4021 = vsel %vm1896, %v4004, 0
      %v4024 = vsel %vm1896, %v4005, 0
      %v4027 = vsel %vm1896, %v4006, 0
      %v4030 = vsel %vm1896, %v4007, 0
      %v4033 = vsel %vm1896, %v4008, 0
      %v4036 = vsel %vm1896, %v4009, 0
      %v4039 = vsel %vm1896, %v4010, 0
      %v4042 = vsel %vm1896, %v4011, 0
      %v4045 = vsel %vm1896, %v4012, 0
      %v4048 = vsel %vm1896, %v4013, 0
      %v4051 = vsel %vm1896, %v4014, 0
      %v4054 = vsel %vm1896, %v4015, 0
      %v4057 = vsel %vm1896, %v4016, 0
      %v4060 = vsel %vm1896, %v4017, 0
      %v4063 = vsel %vm1896, %v4018, 0
      %v4066 = vsel %vm1896, %v4019, 0
      %4068 = vmatprep.subr.bf16.mxu0 0
      %4069 = vmatpush1.bf16.msra.mxu0 0
      %4070 = vmatprep.subr.bf16.mxu0 0
      %4071 = vmatpush1.bf16.msra.mxu0 0
      %4072 = vmatprep.subr.bf16.mxu0 0
      %4073 = vmatpush1.bf16.msra.mxu0 0
      %4074 = vmatprep.subr.bf16.mxu0 0
      %4075 = vmatpush1.bf16.msra.mxu0 0
      %4076 = vmatprep.subr.bf16.mxu0 0
      %4077 = vmatpush1.bf16.msra.mxu0 %v3562
      %4078 = vmatprep.subr.bf16.mxu0 0
      %4079 = vmatpush1.bf16.msra.mxu0 %v3561
      %4080 = vmatprep.subr.bf16.mxu0 0
      %4081 = vmatpush1.bf16.msra.mxu0 %v3560
      %4082 = vmatprep.subr.bf16.mxu0 0
      %4083 = vmatpush1.bf16.msra.mxu0 %v3559
      %4084 = vmatprep.subr.bf16.mxu0 0
      %4085 = vmatpush2.bf16.msra.mxu0 0
      %4086 = vmatprep.subr.bf16.mxu0 0
      %4087 = vmatpush2.bf16.msra.mxu0 0
      %4088 = vmatprep.subr.bf16.mxu0 0
      %4089 = vmatpush2.bf16.msra.mxu0 0
      %4090 = vmatprep.subr.bf16.mxu0 0
      %4091 = vmatpush2.bf16.msra.mxu0 0
      %4092 = vmatprep.subr.bf16.mxu0 0
      %4093 = vmatpush2.bf16.msra.mxu0 0
      %4094 = vmatprep.subr.bf16.mxu0 0
      %4095 = vmatpush2.bf16.msra.mxu0 0
      %4096 = vmatprep.subr.bf16.mxu0 0
      %4097 = vmatpush2.bf16.msra.mxu0 0
      %4098 = vmatprep.subr.bf16.mxu0 0
      %4099 = vmatpush2.bf16.msra.mxu0 0
      %4100 = vmatprep.mubr.bf16.mxu0 0
      %4101 = vmatmul.mubr.bf16.gmra.mxu0 %v4021
      %v4102 = vpop.f32.mrf.mxu0
      %v4103 = vadd.f32 0.0, %v4102
      %v4104 = vpop.f32.mrf.mxu0
      %v4105 = vpop.f32.mrf.mxu0
      %v4106 = vadd.f32 0.0, %v4105
      %v4107 = vpop.f32.mrf.mxu0
      %4108 = vmatprep.mubr.bf16.mxu0 0
      %4109 = vmatmul.mubr.bf16.gmra.mxu0 %v4024
      %v4110 = vpop.f32.mrf.mxu0
      %v4111 = vadd.f32 0.0, %v4110
      %v4112 = vpop.f32.mrf.mxu0
      %v4113 = vpop.f32.mrf.mxu0
      %v4114 = vadd.f32 0.0, %v4113
      %v4115 = vpop.f32.mrf.mxu0
      %4116 = vmatprep.mubr.bf16.mxu0 0
      %4117 = vmatmul.mubr.bf16.gmra.mxu0 %v4027
      %v4118 = vpop.f32.mrf.mxu0
      %v4119 = vadd.f32 0.0, %v4118
      %v4120 = vpop.f32.mrf.mxu0
      %v4121 = vpop.f32.mrf.mxu0
      %v4122 = vadd.f32 0.0, %v4121
      %v4123 = vpop.f32.mrf.mxu0
      %4124 = vmatprep.mubr.bf16.mxu0 0
      %4125 = vmatmul.mubr.bf16.gmra.mxu0 %v4030
      %v4126 = vpop.f32.mrf.mxu0
      %v4127 = vadd.f32 0.0, %v4126
      %v4128 = vpop.f32.mrf.mxu0
      %v4129 = vpop.f32.mrf.mxu0
      %v4130 = vadd.f32 0.0, %v4129
      %v4131 = vpop.f32.mrf.mxu0
      %4132 = vmatprep.mubr.bf16.mxu0 0
      %4133 = vmatmul.mubr.bf16.gmra.mxu0 %v4033
      %v4134 = vpop.f32.mrf.mxu0
      %v4135 = vadd.f32 0.0, %v4134
      %v4136 = vpop.f32.mrf.mxu0
      %v4137 = vpop.f32.mrf.mxu0
      %v4138 = vadd.f32 0.0, %v4137
      %v4139 = vpop.f32.mrf.mxu0
      %4140 = vmatprep.mubr.bf16.mxu0 0
      %4141 = vmatmul.mubr.bf16.gmra.mxu0 %v4036
      %v4142 = vpop.f32.mrf.mxu0
      %v4143 = vadd.f32 0.0, %v4142
      %v4144 = vpop.f32.mrf.mxu0
      %v4145 = vpop.f32.mrf.mxu0
      %v4146 = vadd.f32 0.0, %v4145
      %v4147 = vpop.f32.mrf.mxu0
      %4148 = vmatprep.mubr.bf16.mxu0 0
      %4149 = vmatmul.mubr.bf16.gmra.mxu0 %v4039
      %v4150 = vpop.f32.mrf.mxu0
      %v4151 = vadd.f32 0.0, %v4150
      %v4152 = vpop.f32.mrf.mxu0
      %v4153 = vpop.f32.mrf.mxu0
      %v4154 = vadd.f32 0.0, %v4153
      %v4155 = vpop.f32.mrf.mxu0
      %4156 = vmatprep.mubr.bf16.mxu0 0
      %4157 = vmatmul.mubr.bf16.gmra.mxu0 %v4042
      %v4158 = vpop.f32.mrf.mxu0
      %v4159 = vadd.f32 0.0, %v4158
      %v4160 = vpop.f32.mrf.mxu0
      %v4161 = vpop.f32.mrf.mxu0
      %v4162 = vadd.f32 0.0, %v4161
      %v4163 = vpop.f32.mrf.mxu0
      %4164 = vmatprep.mubr.bf16.mxu0 0
      %4165 = vmatmul.mubr.bf16.gmra.mxu0 %v4045
      %v4166 = vpop.f32.mrf.mxu0
      %v4167 = vadd.f32 0.0, %v4166
      %v4168 = vpop.f32.mrf.mxu0
      %v4169 = vpop.f32.mrf.mxu0
      %v4170 = vadd.f32 0.0, %v4169
      %v4171 = vpop.f32.mrf.mxu0
      %4172 = vmatprep.mubr.bf16.mxu0 0
      %4173 = vmatmul.mubr.bf16.gmra.mxu0 %v4048
      %v4174 = vpop.f32.mrf.mxu0
      %v4175 = vadd.f32 0.0, %v4174
      %v4176 = vpop.f32.mrf.mxu0
      %v4177 = vpop.f32.mrf.mxu0
      %v4178 = vadd.f32 0.0, %v4177
      %v4179 = vpop.f32.mrf.mxu0
      %4180 = vmatprep.mubr.bf16.mxu0 0
      %4181 = vmatmul.mubr.bf16.gmra.mxu0 %v4051
      %v4182 = vpop.f32.mrf.mxu0
      %v4183 = vadd.f32 0.0, %v4182
      %v4184 = vpop.f32.mrf.mxu0
      %v4185 = vpop.f32.mrf.mxu0
      %v4186 = vadd.f32 0.0, %v4185
      %v4187 = vpop.f32.mrf.mxu0
      %4188 = vmatprep.mubr.bf16.mxu0 0
      %4189 = vmatmul.mubr.bf16.gmra.mxu0 %v4054
      %v4190 = vpop.f32.mrf.mxu0
      %v4191 = vadd.f32 0.0, %v4190
      %v4192 = vpop.f32.mrf.mxu0
      %v4193 = vpop.f32.mrf.mxu0
      %v4194 = vadd.f32 0.0, %v4193
      %v4195 = vpop.f32.mrf.mxu0
      %4196 = vmatprep.mubr.bf16.mxu0 0
      %4197 = vmatmul.mubr.bf16.gmra.mxu0 %v4057
      %v4198 = vpop.f32.mrf.mxu0
      %v4199 = vadd.f32 0.0, %v4198
      %v4200 = vpop.f32.mrf.mxu0
      %v4201 = vpop.f32.mrf.mxu0
      %v4202 = vadd.f32 0.0, %v4201
      %v4203 = vpop.f32.mrf.mxu0
      %4204 = vmatprep.mubr.bf16.mxu0 0
      %4205 = vmatmul.mubr.bf16.gmra.mxu0 %v4060
      %v4206 = vpop.f32.mrf.mxu0
      %v4207 = vadd.f32 0.0, %v4206
      %v4208 = vpop.f32.mrf.mxu0
      %v4209 = vpop.f32.mrf.mxu0
      %v4210 = vadd.f32 0.0, %v4209
      %v4211 = vpop.f32.mrf.mxu0
      %4212 = vmatprep.mubr.bf16.mxu0 0
      %4213 = vmatmul.mubr.bf16.gmra.mxu0 %v4063
      %v4214 = vpop.f32.mrf.mxu0
      %v4215 = vadd.f32 0.0, %v4214
      %v4216 = vpop.f32.mrf.mxu0
      %v4217 = vpop.f32.mrf.mxu0
      %v4218 = vadd.f32 0.0, %v4217
      %v4219 = vpop.f32.mrf.mxu0
      %4220 = vmatprep.mubr.bf16.mxu0 0
      %4221 = vmatmul.mubr.bf16.gmra.mxu0 %v4066
      %v4222 = vpop.f32.mrf.mxu0
      %v4223 = vadd.f32 0.0, %v4222
      %v4224 = vpop.f32.mrf.mxu0
      %v4225 = vpop.f32.mrf.mxu0
      %v4226 = vadd.f32 0.0, %v4225
      %v4227 = vpop.f32.mrf.mxu0
      %4228 = vdwg.mxu0
      %v4229 = vadd.f32 %v3782, %v4103
      %v4230 = vadd.f32 %v3785, %v4106
      %v4231 = vadd.f32 %v3790, %v4111
      %v4232 = vadd.f32 %v3793, %v4114
      %v4233 = vadd.f32 %v3798, %v4119
      %v4234 = vadd.f32 %v3801, %v4122
      %v4235 = vadd.f32 %v3806, %v4127
      %v4236 = vadd.f32 %v3809, %v4130
      %v4237 = vadd.f32 %v3814, %v4135
      %v4238 = vadd.f32 %v3817, %v4138
      %v4239 = vadd.f32 %v3822, %v4143
      %v4240 = vadd.f32 %v3825, %v4146
      %v4241 = vadd.f32 %v3830, %v4151
      %v4242 = vadd.f32 %v3833, %v4154
      %v4243 = vadd.f32 %v3838, %v4159
      %v4244 = vadd.f32 %v3841, %v4162
      %v4245 = vadd.f32 %v3846, %v4167
      %v4246 = vadd.f32 %v3849, %v4170
      %v4247 = vadd.f32 %v3854, %v4175
      %v4248 = vadd.f32 %v3857, %v4178
      %v4249 = vadd.f32 %v3862, %v4183
      %v4250 = vadd.f32 %v3865, %v4186
      %v4251 = vadd.f32 %v3870, %v4191
      %v4252 = vadd.f32 %v3873, %v4194
      %v4253 = vadd.f32 %v3878, %v4199
      %v4254 = vadd.f32 %v3881, %v4202
      %v4255 = vadd.f32 %v3886, %v4207
      %v4256 = vadd.f32 %v3889, %v4210
      %v4257 = vadd.f32 %v3894, %v4215
      %v4258 = vadd.f32 %v3897, %v4218
      %v4259 = vadd.f32 %v3902, %v4223
      %v4260 = vadd.f32 %v3905, %v4226
      %4261 = vst [vmem:[#allocation2] sm:$0xff] 0.0
      %4262 = vst [vmem:[#allocation2 + $0x8] sm:$0xff] 0.0
      %4263 = vst [vmem:[#allocation2 + $0x10] sm:$0xff] 0.0
      %4264 = vst [vmem:[#allocation2 + $0x18] sm:$0xff] 0.0
      %4265 = vst [vmem:[#allocation2 + $0x120] sm:$0xff] 0.0
      %4266 = vst [vmem:[#allocation2 + $0x128] sm:$0xff] 0.0
      %4267 = vst [vmem:[#allocation2 + $0x130] sm:$0xff] 0.0
      %4268 = vst [vmem:[#allocation2 + $0x138] sm:$0xff] 0.0
      %4269 = vst [vmem:[#allocation2 + $0x20] sm:$0xff] %v4229
      %4270 = vst [vmem:[#allocation2 + $0x28] sm:$0xff] %v4230
      %4271 = vst [vmem:[#allocation2 + $0x30] sm:$0xff] %v4231
      %4272 = vst [vmem:[#allocation2 + $0x38] sm:$0xff] %v4232
      %4273 = vst [vmem:[#allocation2 + $0x40] sm:$0xff] %v4233
      %4274 = vst [vmem:[#allocation2 + $0x48] sm:$0xff] %v4234
      %4275 = vst [vmem:[#allocation2 + $0x50] sm:$0xff] %v4235
      %4276 = vst [vmem:[#allocation2 + $0x58] sm:$0xff] %v4236
      %4277 = vst [vmem:[#allocation2 + $0x60] sm:$0xff] %v4237
      %4278 = vst [vmem:[#allocation2 + $0x68] sm:$0xff] %v4238
      %4279 = vst [vmem:[#allocation2 + $0x70] sm:$0xff] %v4239
      %4280 = vst [vmem:[#allocation2 + $0x78] sm:$0xff] %v4240
      %4281 = vst [vmem:[#allocation2 + $0x80] sm:$0xff] %v4241
      %4282 = vst [vmem:[#allocation2 + $0x88] sm:$0xff] %v4242
      %4283 = vst [vmem:[#allocation2 + $0x90] sm:$0xff] %v4243
      %4284 = vst [vmem:[#allocation2 + $0x98] sm:$0xff] %v4244
      %4285 = vst [vmem:[#allocation2 + $0xa0] sm:$0xff] %v4245
      %4286 = vst [vmem:[#allocation2 + $0xa8] sm:$0xff] %v4246
      %4287 = vst [vmem:[#allocation2 + $0xb0] sm:$0xff] %v4247
      %4288 = vst [vmem:[#allocation2 + $0xb8] sm:$0xff] %v4248
      %4289 = vst [vmem:[#allocation2 + $0xc0] sm:$0xff] %v4249
      %4290 = vst [vmem:[#allocation2 + $0xc8] sm:$0xff] %v4250
      %4291 = vst [vmem:[#allocation2 + $0xd0] sm:$0xff] %v4251
      %4292 = vst [vmem:[#allocation2 + $0xd8] sm:$0xff] %v4252
      %4293 = vst [vmem:[#allocation2 + $0xe0] sm:$0xff] %v4253
      %4294 = vst [vmem:[#allocation2 + $0xe8] sm:$0xff] %v4254
      %4295 = vst [vmem:[#allocation2 + $0xf0] sm:$0xff] %v4255
      %4296 = vst [vmem:[#allocation2 + $0xf8] sm:$0xff] %v4256
      %4297 = vst [vmem:[#allocation2 + $0x100] sm:$0xff] %v4257
      %4298 = vst [vmem:[#allocation2 + $0x108] sm:$0xff] %v4258
      %4299 = vst [vmem:[#allocation2 + $0x110] sm:$0xff] %v4259
      %4300 = vst [vmem:[#allocation2 + $0x118] sm:$0xff] %v4260
      %v4301 = vadd.s32 %v796, 64
      %v4302 = vadd.s32 %v796, 72
      %v4303 = vadd.s32 %v796, 80
      %v4304 = vadd.s32 %v796, 88
      %v4305 = vadd.s32 %v796, 96
      %v4306 = vadd.s32 %v796, 104
      %v4307 = vadd.s32 %v796, 112
      %v4308 = vadd.s32 %v796, 120
      %v4309 = vadd.s32 %v796, 128
      %v4310 = vadd.s32 %v796, 136
      %v4311 = vadd.s32 %v796, 144
      %v4312 = vadd.s32 %v796, 152
      %v4313 = vadd.s32 %v796, 160
      %v4314 = vadd.s32 %v796, 168
      %v4315 = vadd.s32 %v796, 176
      %v4316 = vadd.s32 %v796, 184
      %v4317 = vadd.s32 %v796, 192
      %v4318 = vadd.s32 %v796, 200
      %v4319 = vadd.s32 %v796, 208
      %v4320 = vadd.s32 %v796, 216
      %v4321 = vadd.s32 %v796, 224
      %v4322 = vadd.s32 %v796, 232
      %v4323 = vadd.s32 %v796, 240
      %v4324 = vadd.s32 %v796, 248
      %v4325 = vand.u32 %v796, 15
      %v4326 = vand.u32 %v797, 15
      %v4327 = vand.u32 %v2100, 15
      %v4328 = vand.u32 %v2101, 15
      %v4329 = vand.u32 %v2102, 15
      %v4330 = vand.u32 %v2103, 15
      %v4331 = vand.u32 %v2104, 15
      %v4332 = vand.u32 %v2105, 15
      %v4333 = vand.u32 %v4301, 15
      %v4334 = vand.u32 %v4302, 15
      %v4335 = vand.u32 %v4303, 15
      %v4336 = vand.u32 %v4304, 15
      %v4337 = vand.u32 %v4305, 15
      %v4338 = vand.u32 %v4306, 15
      %v4339 = vand.u32 %v4307, 15
      %v4340 = vand.u32 %v4308, 15
      %v4341 = vand.u32 %v4309, 15
      %v4342 = vand.u32 %v4310, 15
      %v4343 = vand.u32 %v4311, 15
      %v4344 = vand.u32 %v4312, 15
      %v4345 = vand.u32 %v4313, 15
      %v4346 = vand.u32 %v4314, 15
      %v4347 = vand.u32 %v4315, 15
      %v4348 = vand.u32 %v4316, 15
      %v4349 = vand.u32 %v4317, 15
      %v4350 = vand.u32 %v4318, 15
      %v4351 = vand.u32 %v4319, 15
      %v4352 = vand.u32 %v4320, 15
      %v4353 = vand.u32 %v4321, 15
      %v4354 = vand.u32 %v4322, 15
      %v4355 = vand.u32 %v4323, 15
      %v4356 = vand.u32 %v4324, 15
      %vm4357 = vcmp.ne.s32.totalorder %v4325, 0
      %vm4358 = vcmp.ne.s32.totalorder %v4326, 0
      %vm4359 = vcmp.ne.s32.totalorder %v4327, 0
      %vm4360 = vcmp.ne.s32.totalorder %v4328, 0
      %vm4361 = vcmp.ne.s32.totalorder %v4329, 0
      %vm4362 = vcmp.ne.s32.totalorder %v4330, 0
      %vm4363 = vcmp.ne.s32.totalorder %v4331, 0
      %vm4364 = vcmp.ne.s32.totalorder %v4332, 0
      %vm4365 = vcmp.ne.s32.totalorder %v4333, 0
      %vm4366 = vcmp.ne.s32.totalorder %v4334, 0
      %vm4367 = vcmp.ne.s32.totalorder %v4335, 0
      %vm4368 = vcmp.ne.s32.totalorder %v4336, 0
      %vm4369 = vcmp.ne.s32.totalorder %v4337, 0
      %vm4370 = vcmp.ne.s32.totalorder %v4338, 0
      %vm4371 = vcmp.ne.s32.totalorder %v4339, 0
      %vm4372 = vcmp.ne.s32.totalorder %v4340, 0
      %vm4373 = vcmp.ne.s32.totalorder %v4341, 0
      %vm4374 = vcmp.ne.s32.totalorder %v4342, 0
      %vm4375 = vcmp.ne.s32.totalorder %v4343, 0
      %vm4376 = vcmp.ne.s32.totalorder %v4344, 0
      %vm4377 = vcmp.ne.s32.totalorder %v4345, 0
      %vm4378 = vcmp.ne.s32.totalorder %v4346, 0
      %vm4379 = vcmp.ne.s32.totalorder %v4347, 0
      %vm4380 = vcmp.ne.s32.totalorder %v4348, 0
      %vm4381 = vcmp.ne.s32.totalorder %v4349, 0
      %vm4382 = vcmp.ne.s32.totalorder %v4350, 0
      %vm4383 = vcmp.ne.s32.totalorder %v4351, 0
      %vm4384 = vcmp.ne.s32.totalorder %v4352, 0
      %vm4385 = vcmp.ne.s32.totalorder %v4353, 0
      %vm4386 = vcmp.ne.s32.totalorder %v4354, 0
      %vm4387 = vcmp.ne.s32.totalorder %v4355, 0
      %vm4388 = vcmp.ne.s32.totalorder %v4356, 0
      %v4389 = vsel %vm4357, 1, 0
      %v4390 = vsel %vm4358, 1, 0
      %v4391 = vsel %vm4359, 1, 0
      %v4392 = vsel %vm4360, 1, 0
      %v4393 = vsel %vm4361, 1, 0
      %v4394 = vsel %vm4362, 1, 0
      %v4395 = vsel %vm4363, 1, 0
      %v4396 = vsel %vm4364, 1, 0
      %v4397 = vsel %vm4365, 1, 0
      %v4398 = vsel %vm4366, 1, 0
      %v4399 = vsel %vm4367, 1, 0
      %v4400 = vsel %vm4368, 1, 0
      %v4401 = vsel %vm4369, 1, 0
      %v4402 = vsel %vm4370, 1, 0
      %v4403 = vsel %vm4371, 1, 0
      %v4404 = vsel %vm4372, 1, 0
      %v4405 = vsel %vm4373, 1, 0
      %v4406 = vsel %vm4374, 1, 0
      %v4407 = vsel %vm4375, 1, 0
      %v4408 = vsel %vm4376, 1, 0
      %v4409 = vsel %vm4377, 1, 0
      %v4410 = vsel %vm4378, 1, 0
      %v4411 = vsel %vm4379, 1, 0
      %v4412 = vsel %vm4380, 1, 0
      %v4413 = vsel %vm4381, 1, 0
      %v4414 = vsel %vm4382, 1, 0
      %v4415 = vsel %vm4383, 1, 0
      %v4416 = vsel %vm4384, 1, 0
      %v4417 = vsel %vm4385, 1, 0
      %v4418 = vsel %vm4386, 1, 0
      %v4419 = vsel %vm4387, 1, 0
      %v4420 = vsel %vm4388, 1, 0
      %v4421 = vcvt.s32.f32 %v4389
      %v4422 = vcvt.s32.f32 %v4390
      %v4423 = vcvt.s32.f32 %v4391
      %v4424 = vcvt.s32.f32 %v4392
      %v4425 = vcvt.s32.f32 %v4393
      %v4426 = vcvt.s32.f32 %v4394
      %v4427 = vcvt.s32.f32 %v4395
      %v4428 = vcvt.s32.f32 %v4396
      %v4429 = vcvt.s32.f32 %v4397
      %v4430 = vcvt.s32.f32 %v4398
      %v4431 = vcvt.s32.f32 %v4399
      %v4432 = vcvt.s32.f32 %v4400
      %v4433 = vcvt.s32.f32 %v4401
      %v4434 = vcvt.s32.f32 %v4402
      %v4435 = vcvt.s32.f32 %v4403
      %v4436 = vcvt.s32.f32 %v4404
      %v4437 = vcvt.s32.f32 %v4405
      %v4438 = vcvt.s32.f32 %v4406
      %v4439 = vcvt.s32.f32 %v4407
      %v4440 = vcvt.s32.f32 %v4408
      %v4441 = vcvt.s32.f32 %v4409
      %v4442 = vcvt.s32.f32 %v4410
      %v4443 = vcvt.s32.f32 %v4411
      %v4444 = vcvt.s32.f32 %v4412
      %v4445 = vcvt.s32.f32 %v4413
      %v4446 = vcvt.s32.f32 %v4414
      %v4447 = vcvt.s32.f32 %v4415
      %v4448 = vcvt.s32.f32 %v4416
      %v4449 = vcvt.s32.f32 %v4417
      %v4450 = vcvt.s32.f32 %v4418
      %v4451 = vcvt.s32.f32 %v4419
      %v4452 = vcvt.s32.f32 %v4420
      %v4453 = vpack.c.bf16 %v4422, %v4421
      %v4454 = vpack.c.bf16 %v4424, %v4423
      %v4455 = vpack.c.bf16 %v4426, %v4425
      %v4456 = vpack.c.bf16 %v4428, %v4427
      %v4457 = vpack.c.bf16 %v4430, %v4429
      %v4458 = vpack.c.bf16 %v4432, %v4431
      %v4459 = vpack.c.bf16 %v4434, %v4433
      %v4460 = vpack.c.bf16 %v4436, %v4435
      %v4461 = vpack.c.bf16 %v4438, %v4437
      %v4462 = vpack.c.bf16 %v4440, %v4439
      %v4463 = vpack.c.bf16 %v4442, %v4441
      %v4464 = vpack.c.bf16 %v4444, %v4443
      %v4465 = vpack.c.bf16 %v4446, %v4445
      %v4466 = vpack.c.bf16 %v4448, %v4447
      %v4467 = vpack.c.bf16 %v4450, %v4449
      %v4468 = vpack.c.bf16 %v4452, %v4451
      %vm4469 = vcmp.ne.s32.totalorder %v4325, 15
      %vm4470 = vcmp.ne.s32.totalorder %v4326, 15
      %vm4471 = vcmp.ne.s32.totalorder %v4327, 15
      %vm4472 = vcmp.ne.s32.totalorder %v4328, 15
      %vm4473 = vcmp.ne.s32.totalorder %v4329, 15
      %vm4474 = vcmp.ne.s32.totalorder %v4330, 15
      %vm4475 = vcmp.ne.s32.totalorder %v4331, 15
      %vm4476 = vcmp.ne.s32.totalorder %v4332, 15
      %vm4477 = vcmp.ne.s32.totalorder %v4333, 15
      %vm4478 = vcmp.ne.s32.totalorder %v4334, 15
      %vm4479 = vcmp.ne.s32.totalorder %v4335, 15
      %vm4480 = vcmp.ne.s32.totalorder %v4336, 15
      %vm4481 = vcmp.ne.s32.totalorder %v4337, 15
      %vm4482 = vcmp.ne.s32.totalorder %v4338, 15
      %vm4483 = vcmp.ne.s32.totalorder %v4339, 15
      %vm4484 = vcmp.ne.s32.totalorder %v4340, 15
      %vm4485 = vcmp.ne.s32.totalorder %v4341, 15
      %vm4486 = vcmp.ne.s32.totalorder %v4342, 15
      %vm4487 = vcmp.ne.s32.totalorder %v4343, 15
      %vm4488 = vcmp.ne.s32.totalorder %v4344, 15
      %vm4489 = vcmp.ne.s32.totalorder %v4345, 15
      %vm4490 = vcmp.ne.s32.totalorder %v4346, 15
      %vm4491 = vcmp.ne.s32.totalorder %v4347, 15
      %vm4492 = vcmp.ne.s32.totalorder %v4348, 15
      %vm4493 = vcmp.ne.s32.totalorder %v4349, 15
      %vm4494 = vcmp.ne.s32.totalorder %v4350, 15
      %vm4495 = vcmp.ne.s32.totalorder %v4351, 15
      %vm4496 = vcmp.ne.s32.totalorder %v4352, 15
      %vm4497 = vcmp.ne.s32.totalorder %v4353, 15
      %vm4498 = vcmp.ne.s32.totalorder %v4354, 15
      %vm4499 = vcmp.ne.s32.totalorder %v4355, 15
      %vm4500 = vcmp.ne.s32.totalorder %v4356, 15
      %v4501 = vsel %vm4469, 1, 0
      %v4502 = vsel %vm4470, 1, 0
      %v4503 = vsel %vm4471, 1, 0
      %v4504 = vsel %vm4472, 1, 0
      %v4505 = vsel %vm4473, 1, 0
      %v4506 = vsel %vm4474, 1, 0
      %v4507 = vsel %vm4475, 1, 0
      %v4508 = vsel %vm4476, 1, 0
      %v4509 = vsel %vm4477, 1, 0
      %v4510 = vsel %vm4478, 1, 0
      %v4511 = vsel %vm4479, 1, 0
      %v4512 = vsel %vm4480, 1, 0
      %v4513 = vsel %vm4481, 1, 0
      %v4514 = vsel %vm4482, 1, 0
      %v4515 = vsel %vm4483, 1, 0
      %v4516 = vsel %vm4484, 1, 0
      %v4517 = vsel %vm4485, 1, 0
      %v4518 = vsel %vm4486, 1, 0
      %v4519 = vsel %vm4487, 1, 0
      %v4520 = vsel %vm4488, 1, 0
      %v4521 = vsel %vm4489, 1, 0
      %v4522 = vsel %vm4490, 1, 0
      %v4523 = vsel %vm4491, 1, 0
      %v4524 = vsel %vm4492, 1, 0
      %v4525 = vsel %vm4493, 1, 0
      %v4526 = vsel %vm4494, 1, 0
      %v4527 = vsel %vm4495, 1, 0
      %v4528 = vsel %vm4496, 1, 0
      %v4529 = vsel %vm4497, 1, 0
      %v4530 = vsel %vm4498, 1, 0
      %v4531 = vsel %vm4499, 1, 0
      %v4532 = vsel %vm4500, 1, 0
      %v4533 = vcvt.s32.f32 %v4501
      %v4534 = vcvt.s32.f32 %v4502
      %v4535 = vcvt.s32.f32 %v4503
      %v4536 = vcvt.s32.f32 %v4504
      %v4537 = vcvt.s32.f32 %v4505
      %v4538 = vcvt.s32.f32 %v4506
      %v4539 = vcvt.s32.f32 %v4507
      %v4540 = vcvt.s32.f32 %v4508
      %v4541 = vcvt.s32.f32 %v4509
      %v4542 = vcvt.s32.f32 %v4510
      %v4543 = vcvt.s32.f32 %v4511
      %v4544 = vcvt.s32.f32 %v4512
      %v4545 = vcvt.s32.f32 %v4513
      %v4546 = vcvt.s32.f32 %v4514
      %v4547 = vcvt.s32.f32 %v4515
      %v4548 = vcvt.s32.f32 %v4516
      %v4549 = vcvt.s32.f32 %v4517
      %v4550 = vcvt.s32.f32 %v4518
      %v4551 = vcvt.s32.f32 %v4519
      %v4552 = vcvt.s32.f32 %v4520
      %v4553 = vcvt.s32.f32 %v4521
      %v4554 = vcvt.s32.f32 %v4522
      %v4555 = vcvt.s32.f32 %v4523
      %v4556 = vcvt.s32.f32 %v4524
      %v4557 = vcvt.s32.f32 %v4525
      %v4558 = vcvt.s32.f32 %v4526
      %v4559 = vcvt.s32.f32 %v4527
      %v4560 = vcvt.s32.f32 %v4528
      %v4561 = vcvt.s32.f32 %v4529
      %v4562 = vcvt.s32.f32 %v4530
      %v4563 = vcvt.s32.f32 %v4531
      %v4564 = vcvt.s32.f32 %v4532
      %v4565 = vpack.c.bf16 %v4534, %v4533
      %v4566 = vpack.c.bf16 %v4536, %v4535
      %v4567 = vpack.c.bf16 %v4538, %v4537
      %v4568 = vpack.c.bf16 %v4540, %v4539
      %v4569 = vpack.c.bf16 %v4542, %v4541
      %v4570 = vpack.c.bf16 %v4544, %v4543
      %v4571 = vpack.c.bf16 %v4546, %v4545
      %v4572 = vpack.c.bf16 %v4548, %v4547
      %v4573 = vpack.c.bf16 %v4550, %v4549
      %v4574 = vpack.c.bf16 %v4552, %v4551
      %v4575 = vpack.c.bf16 %v4554, %v4553
      %v4576 = vpack.c.bf16 %v4556, %v4555
      %v4577 = vpack.c.bf16 %v4558, %v4557
      %v4578 = vpack.c.bf16 %v4560, %v4559
      %v4579 = vpack.c.bf16 %v4562, %v4561
      %v4580 = vpack.c.bf16 %v4564, %v4563
      %v4581 = vld [vmem:[%s6] sm:$0x1]
      %v4583 = vlaneseq
      %v4584 = vshrl.u32 %v4583, 7
      %v4585 = vsub.s32 0, %v4584
      %v4586 = vrot.slane %v4581, %v4585
      %v4588 = vadd.f32 %v4586, 0.0
      %v4589 = vld [vmem:[#allocation2 + $0xf] sm:$0xff]
      %v4590 = vld [vmem:[#allocation2 + $0x17] sm:$0xff]
      %v4591 = vld [vmem:[#allocation2 + $0x1f] sm:$0xff]
      %v4592 = vld [vmem:[#allocation2 + $0x27] sm:$0xff]
      %v4593 = vld [vmem:[#allocation2 + $0x2f] sm:$0xff]
      %v4594 = vld [vmem:[#allocation2 + $0x37] sm:$0xff]
      %v4595 = vld [vmem:[#allocation2 + $0x3f] sm:$0xff]
      %v4596 = vld [vmem:[#allocation2 + $0x47] sm:$0xff]
      %v4597 = vld [vmem:[#allocation2 + $0x4f] sm:$0xff]
      %v4598 = vld [vmem:[#allocation2 + $0x57] sm:$0xff]
      %v4599 = vld [vmem:[#allocation2 + $0x5f] sm:$0xff]
      %v4600 = vld [vmem:[#allocation2 + $0x67] sm:$0xff]
      %v4601 = vld [vmem:[#allocation2 + $0x6f] sm:$0xff]
      %v4602 = vld [vmem:[#allocation2 + $0x77] sm:$0xff]
      %v4603 = vld [vmem:[#allocation2 + $0x7f] sm:$0xff]
      %v4604 = vld [vmem:[#allocation2 + $0x87] sm:$0xff]
      %v4605 = vld [vmem:[#allocation2 + $0x8f] sm:$0xff]
      %v4606 = vld [vmem:[#allocation2 + $0x97] sm:$0xff]
      %v4607 = vld [vmem:[#allocation2 + $0x9f] sm:$0xff]
      %v4608 = vld [vmem:[#allocation2 + $0xa7] sm:$0xff]
      %v4609 = vld [vmem:[#allocation2 + $0xaf] sm:$0xff]
      %v4610 = vld [vmem:[#allocation2 + $0xb7] sm:$0xff]
      %v4611 = vld [vmem:[#allocation2 + $0xbf] sm:$0xff]
      %v4612 = vld [vmem:[#allocation2 + $0xc7] sm:$0xff]
      %v4613 = vld [vmem:[#allocation2 + $0xcf] sm:$0xff]
      %v4614 = vld [vmem:[#allocation2 + $0xd7] sm:$0xff]
      %v4615 = vld [vmem:[#allocation2 + $0xdf] sm:$0xff]
      %v4616 = vld [vmem:[#allocation2 + $0xe7] sm:$0xff]
      %v4617 = vld [vmem:[#allocation2 + $0xef] sm:$0xff]
      %v4618 = vld [vmem:[#allocation2 + $0xf7] sm:$0xff]
      %v4619 = vld [vmem:[#allocation2 + $0xff] sm:$0xff]
      %v4620 = vld [vmem:[#allocation2 + $0x107] sm:$0xff]
      %v4621 = vpack.c.bf16 %v4590, %v4589
      %v4622 = vpack.c.bf16 %v4592, %v4591
      %v4623 = vpack.c.bf16 %v4594, %v4593
      %v4624 = vpack.c.bf16 %v4596, %v4595
      %v4625 = vpack.c.bf16 %v4598, %v4597
      %v4626 = vpack.c.bf16 %v4600, %v4599
      %v4627 = vpack.c.bf16 %v4602, %v4601
      %v4628 = vpack.c.bf16 %v4604, %v4603
      %v4629 = vpack.c.bf16 %v4606, %v4605
      %v4630 = vpack.c.bf16 %v4608, %v4607
      %v4631 = vpack.c.bf16 %v4610, %v4609
      %v4632 = vpack.c.bf16 %v4612, %v4611
      %v4633 = vpack.c.bf16 %v4614, %v4613
      %v4634 = vpack.c.bf16 %v4616, %v4615
      %v4635 = vpack.c.bf16 %v4618, %v4617
      %v4636 = vpack.c.bf16 %v4620, %v4619
      %v4637 = vmul.bf16 %v4621, %v4453
      %v4638 = vmul.bf16 %v4622, %v4454
      %v4639 = vmul.bf16 %v4623, %v4455
      %v4640 = vmul.bf16 %v4624, %v4456
      %v4641 = vmul.bf16 %v4625, %v4457
      %v4642 = vmul.bf16 %v4626, %v4458
      %v4643 = vmul.bf16 %v4627, %v4459
      %v4644 = vmul.bf16 %v4628, %v4460
      %v4645 = vmul.bf16 %v4629, %v4461
      %v4646 = vmul.bf16 %v4630, %v4462
      %v4647 = vmul.bf16 %v4631, %v4463
      %v4648 = vmul.bf16 %v4632, %v4464
      %v4649 = vmul.bf16 %v4633, %v4465
      %v4650 = vmul.bf16 %v4634, %v4466
      %v4651 = vmul.bf16 %v4635, %v4467
      %v4652 = vmul.bf16 %v4636, %v4468
      %v4653 = vld [vmem:[%s5] sm:$0xf]
      %v4654 = vld [vmem:[%s5 + $0x4] sm:$0xf]
      %v4655 = vld [vmem:[%s5 + $0x8] sm:$0xf]
      %v4656 = vld [vmem:[%s5 + $0xc] sm:$0xf]
      %v4657 = vld [vmem:[%s5 + $0x10] sm:$0xf]
      %v4658 = vld [vmem:[%s5 + $0x14] sm:$0xf]
      %v4659 = vld [vmem:[%s5 + $0x18] sm:$0xf]
      %v4660 = vld [vmem:[%s5 + $0x1c] sm:$0xf]
      %v4661 = vld [vmem:[%s5 + $0x20] sm:$0xf]
      %v4662 = vld [vmem:[%s5 + $0x24] sm:$0xf]
      %v4663 = vld [vmem:[%s5 + $0x28] sm:$0xf]
      %v4664 = vld [vmem:[%s5 + $0x2c] sm:$0xf]
      %v4665 = vld [vmem:[%s5 + $0x30] sm:$0xf]
      %v4666 = vld [vmem:[%s5 + $0x34] sm:$0xf]
      %v4667 = vld [vmem:[%s5 + $0x38] sm:$0xf]
      %v4668 = vld [vmem:[%s5 + $0x3c] sm:$0xf]
      %v4685 = vunpack.c.l.b16 %v4653
      %v4686 = vunpack.c.l.b16 %v4654
      %v4687 = vunpack.c.l.b16 %v4655
      %v4688 = vunpack.c.l.b16 %v4656
      %v4689 = vunpack.c.l.b16 %v4657
      %v4690 = vunpack.c.l.b16 %v4658
      %v4691 = vunpack.c.l.b16 %v4659
      %v4692 = vunpack.c.l.b16 %v4660
      %v4693 = vunpack.c.l.b16 %v4661
      %v4694 = vunpack.c.l.b16 %v4662
      %v4695 = vunpack.c.l.b16 %v4663
      %v4696 = vunpack.c.l.b16 %v4664
      %v4697 = vunpack.c.l.b16 %v4665
      %v4698 = vunpack.c.l.b16 %v4666
      %v4699 = vunpack.c.l.b16 %v4667
      %v4700 = vunpack.c.l.b16 %v4668
      %v4701 = vpack.c.b16 %v4686, %v4685
      %v4702 = vpack.c.b16 %v4688, %v4687
      %v4703 = vpack.c.b16 %v4690, %v4689
      %v4704 = vpack.c.b16 %v4692, %v4691
      %v4705 = vpack.c.b16 %v4694, %v4693
      %v4706 = vpack.c.b16 %v4696, %v4695
      %v4707 = vpack.c.b16 %v4698, %v4697
      %v4708 = vpack.c.b16 %v4700, %v4699
      %4717 = vmatprep.subr.bf16.mxu0 0
      %4718 = vmatpush1.bf16.msra.mxu0 %v4708
      %4719 = vmatprep.subr.bf16.mxu0 0
      %4720 = vmatpush1.bf16.msra.mxu0 %v4707
      %4721 = vmatprep.subr.bf16.mxu0 0
      %4722 = vmatpush1.bf16.msra.mxu0 %v4706
      %4723 = vmatprep.subr.bf16.mxu0 0
      %4724 = vmatpush1.bf16.msra.mxu0 %v4705
      %4725 = vmatprep.subr.bf16.mxu0 0
      %4726 = vmatpush1.bf16.msra.mxu0 %v4704
      %4727 = vmatprep.subr.bf16.mxu0 0
      %4728 = vmatpush1.bf16.msra.mxu0 %v4703
      %4729 = vmatprep.subr.bf16.mxu0 0
      %4730 = vmatpush1.bf16.msra.mxu0 %v4702
      %4731 = vmatprep.subr.bf16.mxu0 0
      %4732 = vmatpush1.bf16.msra.mxu0 %v4701
      %4733 = vmatprep.subr.bf16.mxu0 0
      %4734 = vmatpush2.bf16.msra.mxu0 0
      %4735 = vmatprep.subr.bf16.mxu0 0
      %4736 = vmatpush2.bf16.msra.mxu0 0
      %4737 = vmatprep.subr.bf16.mxu0 0
      %4738 = vmatpush2.bf16.msra.mxu0 0
      %4739 = vmatprep.subr.bf16.mxu0 0
      %4740 = vmatpush2.bf16.msra.mxu0 0
      %4741 = vmatprep.subr.bf16.mxu0 0
      %4742 = vmatpush2.bf16.msra.mxu0 0
      %4743 = vmatprep.subr.bf16.mxu0 0
      %4744 = vmatpush2.bf16.msra.mxu0 0
      %4745 = vmatprep.subr.bf16.mxu0 0
      %4746 = vmatpush2.bf16.msra.mxu0 0
      %4747 = vmatprep.subr.bf16.mxu0 0
      %4748 = vmatpush2.bf16.msra.mxu0 0
      %4749 = vmatprep.mubr.bf16.mxu0 0
      %4750 = vmatmul.mubr.bf16.gmra.mxu0 %v4637
      %v4751 = vpop.f32.mrf.mxu0
      %v4752 = vadd.f32 0.0, %v4751
      %v4753 = vpop.f32.mrf.mxu0
      %v4754 = vpop.f32.mrf.mxu0
      %v4755 = vadd.f32 0.0, %v4754
      %v4756 = vpop.f32.mrf.mxu0
      %4757 = vmatprep.mubr.bf16.mxu0 0
      %4758 = vmatmul.mubr.bf16.gmra.mxu0 %v4638
      %v4759 = vpop.f32.mrf.mxu0
      %v4760 = vadd.f32 0.0, %v4759
      %v4761 = vpop.f32.mrf.mxu0
      %v4762 = vpop.f32.mrf.mxu0
      %v4763 = vadd.f32 0.0, %v4762
      %v4764 = vpop.f32.mrf.mxu0
      %4765 = vmatprep.mubr.bf16.mxu0 0
      %4766 = vmatmul.mubr.bf16.gmra.mxu0 %v4639
      %v4767 = vpop.f32.mrf.mxu0
      %v4768 = vadd.f32 0.0, %v4767
      %v4769 = vpop.f32.mrf.mxu0
      %v4770 = vpop.f32.mrf.mxu0
      %v4771 = vadd.f32 0.0, %v4770
      %v4772 = vpop.f32.mrf.mxu0
      %4773 = vmatprep.mubr.bf16.mxu0 0
      %4774 = vmatmul.mubr.bf16.gmra.mxu0 %v4640
      %v4775 = vpop.f32.mrf.mxu0
      %v4776 = vadd.f32 0.0, %v4775
      %v4777 = vpop.f32.mrf.mxu0
      %v4778 = vpop.f32.mrf.mxu0
      %v4779 = vadd.f32 0.0, %v4778
      %v4780 = vpop.f32.mrf.mxu0
      %4781 = vmatprep.mubr.bf16.mxu0 0
      %4782 = vmatmul.mubr.bf16.gmra.mxu0 %v4641
      %v4783 = vpop.f32.mrf.mxu0
      %v4784 = vadd.f32 0.0, %v4783
      %v4785 = vpop.f32.mrf.mxu0
      %v4786 = vpop.f32.mrf.mxu0
      %v4787 = vadd.f32 0.0, %v4786
      %v4788 = vpop.f32.mrf.mxu0
      %4789 = vmatprep.mubr.bf16.mxu0 0
      %4790 = vmatmul.mubr.bf16.gmra.mxu0 %v4642
      %v4791 = vpop.f32.mrf.mxu0
      %v4792 = vadd.f32 0.0, %v4791
      %v4793 = vpop.f32.mrf.mxu0
      %v4794 = vpop.f32.mrf.mxu0
      %v4795 = vadd.f32 0.0, %v4794
      %v4796 = vpop.f32.mrf.mxu0
      %4797 = vmatprep.mubr.bf16.mxu0 0
      %4798 = vmatmul.mubr.bf16.gmra.mxu0 %v4643
      %v4799 = vpop.f32.mrf.mxu0
      %v4800 = vadd.f32 0.0, %v4799
      %v4801 = vpop.f32.mrf.mxu0
      %v4802 = vpop.f32.mrf.mxu0
      %v4803 = vadd.f32 0.0, %v4802
      %v4804 = vpop.f32.mrf.mxu0
      %4805 = vmatprep.mubr.bf16.mxu0 0
      %4806 = vmatmul.mubr.bf16.gmra.mxu0 %v4644
      %v4807 = vpop.f32.mrf.mxu0
      %v4808 = vadd.f32 0.0, %v4807
      %v4809 = vpop.f32.mrf.mxu0
      %v4810 = vpop.f32.mrf.mxu0
      %v4811 = vadd.f32 0.0, %v4810
      %v4812 = vpop.f32.mrf.mxu0
      %4813 = vmatprep.mubr.bf16.mxu0 0
      %4814 = vmatmul.mubr.bf16.gmra.mxu0 %v4645
      %v4815 = vpop.f32.mrf.mxu0
      %v4816 = vadd.f32 0.0, %v4815
      %v4817 = vpop.f32.mrf.mxu0
      %v4818 = vpop.f32.mrf.mxu0
      %v4819 = vadd.f32 0.0, %v4818
      %v4820 = vpop.f32.mrf.mxu0
      %4821 = vmatprep.mubr.bf16.mxu0 0
      %4822 = vmatmul.mubr.bf16.gmra.mxu0 %v4646
      %v4823 = vpop.f32.mrf.mxu0
      %v4824 = vadd.f32 0.0, %v4823
      %v4825 = vpop.f32.mrf.mxu0
      %v4826 = vpop.f32.mrf.mxu0
      %v4827 = vadd.f32 0.0, %v4826
      %v4828 = vpop.f32.mrf.mxu0
      %4829 = vmatprep.mubr.bf16.mxu0 0
      %4830 = vmatmul.mubr.bf16.gmra.mxu0 %v4647
      %v4831 = vpop.f32.mrf.mxu0
      %v4832 = vadd.f32 0.0, %v4831
      %v4833 = vpop.f32.mrf.mxu0
      %v4834 = vpop.f32.mrf.mxu0
      %v4835 = vadd.f32 0.0, %v4834
      %v4836 = vpop.f32.mrf.mxu0
      %4837 = vmatprep.mubr.bf16.mxu0 0
      %4838 = vmatmul.mubr.bf16.gmra.mxu0 %v4648
      %v4839 = vpop.f32.mrf.mxu0
      %v4840 = vadd.f32 0.0, %v4839
      %v4841 = vpop.f32.mrf.mxu0
      %v4842 = vpop.f32.mrf.mxu0
      %v4843 = vadd.f32 0.0, %v4842
      %v4844 = vpop.f32.mrf.mxu0
      %4845 = vmatprep.mubr.bf16.mxu0 0
      %4846 = vmatmul.mubr.bf16.gmra.mxu0 %v4649
      %v4847 = vpop.f32.mrf.mxu0
      %v4848 = vadd.f32 0.0, %v4847
      %v4849 = vpop.f32.mrf.mxu0
      %v4850 = vpop.f32.mrf.mxu0
      %v4851 = vadd.f32 0.0, %v4850
      %v4852 = vpop.f32.mrf.mxu0
      %4853 = vmatprep.mubr.bf16.mxu0 0
      %4854 = vmatmul.mubr.bf16.gmra.mxu0 %v4650
      %v4855 = vpop.f32.mrf.mxu0
      %v4856 = vadd.f32 0.0, %v4855
      %v4857 = vpop.f32.mrf.mxu0
      %v4858 = vpop.f32.mrf.mxu0
      %v4859 = vadd.f32 0.0, %v4858
      %v4860 = vpop.f32.mrf.mxu0
      %4861 = vmatprep.mubr.bf16.mxu0 0
      %4862 = vmatmul.mubr.bf16.gmra.mxu0 %v4651
      %v4863 = vpop.f32.mrf.mxu0
      %v4864 = vadd.f32 0.0, %v4863
      %v4865 = vpop.f32.mrf.mxu0
      %v4866 = vpop.f32.mrf.mxu0
      %v4867 = vadd.f32 0.0, %v4866
      %v4868 = vpop.f32.mrf.mxu0
      %4869 = vmatprep.mubr.bf16.mxu0 0
      %4870 = vmatmul.mubr.bf16.gmra.mxu0 %v4652
      %v4871 = vpop.f32.mrf.mxu0
      %v4872 = vadd.f32 0.0, %v4871
      %v4873 = vpop.f32.mrf.mxu0
      %v4874 = vpop.f32.mrf.mxu0
      %v4875 = vadd.f32 0.0, %v4874
      %v4876 = vpop.f32.mrf.mxu0
      %4877 = vdwg.mxu0
      %v4878 = vadd.f32 %v4588, %v4752
      %v4879 = vadd.f32 %v4588, %v4755
      %v4880 = vadd.f32 %v4588, %v4760
      %v4881 = vadd.f32 %v4588, %v4763
      %v4882 = vadd.f32 %v4588, %v4768
      %v4883 = vadd.f32 %v4588, %v4771
      %v4884 = vadd.f32 %v4588, %v4776
      %v4885 = vadd.f32 %v4588, %v4779
      %v4886 = vadd.f32 %v4588, %v4784
      %v4887 = vadd.f32 %v4588, %v4787
      %v4888 = vadd.f32 %v4588, %v4792
      %v4889 = vadd.f32 %v4588, %v4795
      %v4890 = vadd.f32 %v4588, %v4800
      %v4891 = vadd.f32 %v4588, %v4803
      %v4892 = vadd.f32 %v4588, %v4808
      %v4893 = vadd.f32 %v4588, %v4811
      %v4894 = vadd.f32 %v4588, %v4816
      %v4895 = vadd.f32 %v4588, %v4819
      %v4896 = vadd.f32 %v4588, %v4824
      %v4897 = vadd.f32 %v4588, %v4827
      %v4898 = vadd.f32 %v4588, %v4832
      %v4899 = vadd.f32 %v4588, %v4835
      %v4900 = vadd.f32 %v4588, %v4840
      %v4901 = vadd.f32 %v4588, %v4843
      %v4902 = vadd.f32 %v4588, %v4848
      %v4903 = vadd.f32 %v4588, %v4851
      %v4904 = vadd.f32 %v4588, %v4856
      %v4905 = vadd.f32 %v4588, %v4859
      %v4906 = vadd.f32 %v4588, %v4864
      %v4907 = vadd.f32 %v4588, %v4867
      %v4908 = vadd.f32 %v4588, %v4872
      %v4909 = vadd.f32 %v4588, %v4875
      %v4910 = vld [vmem:[#allocation2 + $0x10] sm:$0xff]
      %v4911 = vld [vmem:[#allocation2 + $0x18] sm:$0xff]
      %v4912 = vld [vmem:[#allocation2 + $0x20] sm:$0xff]
      %v4913 = vld [vmem:[#allocation2 + $0x28] sm:$0xff]
      %v4914 = vld [vmem:[#allocation2 + $0x30] sm:$0xff]
      %v4915 = vld [vmem:[#allocation2 + $0x38] sm:$0xff]
      %v4916 = vld [vmem:[#allocation2 + $0x40] sm:$0xff]
      %v4917 = vld [vmem:[#allocation2 + $0x48] sm:$0xff]
      %v4918 = vld [vmem:[#allocation2 + $0x50] sm:$0xff]
      %v4919 = vld [vmem:[#allocation2 + $0x58] sm:$0xff]
      %v4920 = vld [vmem:[#allocation2 + $0x60] sm:$0xff]
      %v4921 = vld [vmem:[#allocation2 + $0x68] sm:$0xff]
      %v4922 = vld [vmem:[#allocation2 + $0x70] sm:$0xff]
      %v4923 = vld [vmem:[#allocation2 + $0x78] sm:$0xff]
      %v4924 = vld [vmem:[#allocation2 + $0x80] sm:$0xff]
      %v4925 = vld [vmem:[#allocation2 + $0x88] sm:$0xff]
      %v4926 = vld [vmem:[#allocation2 + $0x90] sm:$0xff]
      %v4927 = vld [vmem:[#allocation2 + $0x98] sm:$0xff]
      %v4928 = vld [vmem:[#allocation2 + $0xa0] sm:$0xff]
      %v4929 = vld [vmem:[#allocation2 + $0xa8] sm:$0xff]
      %v4930 = vld [vmem:[#allocation2 + $0xb0] sm:$0xff]
      %v4931 = vld [vmem:[#allocation2 + $0xb8] sm:$0xff]
      %v4932 = vld [vmem:[#allocation2 + $0xc0] sm:$0xff]
      %v4933 = vld [vmem:[#allocation2 + $0xc8] sm:$0xff]
      %v4934 = vld [vmem:[#allocation2 + $0xd0] sm:$0xff]
      %v4935 = vld [vmem:[#allocation2 + $0xd8] sm:$0xff]
      %v4936 = vld [vmem:[#allocation2 + $0xe0] sm:$0xff]
      %v4937 = vld [vmem:[#allocation2 + $0xe8] sm:$0xff]
      %v4938 = vld [vmem:[#allocation2 + $0xf0] sm:$0xff]
      %v4939 = vld [vmem:[#allocation2 + $0xf8] sm:$0xff]
      %v4940 = vld [vmem:[#allocation2 + $0x100] sm:$0xff]
      %v4941 = vld [vmem:[#allocation2 + $0x108] sm:$0xff]
      %v4942 = vpack.c.bf16 %v4911, %v4910
      %v4943 = vpack.c.bf16 %v4913, %v4912
      %v4944 = vpack.c.bf16 %v4915, %v4914
      %v4945 = vpack.c.bf16 %v4917, %v4916
      %v4946 = vpack.c.bf16 %v4919, %v4918
      %v4947 = vpack.c.bf16 %v4921, %v4920
      %v4948 = vpack.c.bf16 %v4923, %v4922
      %v4949 = vpack.c.bf16 %v4925, %v4924
      %v4950 = vpack.c.bf16 %v4927, %v4926
      %v4951 = vpack.c.bf16 %v4929, %v4928
      %v4952 = vpack.c.bf16 %v4931, %v4930
      %v4953 = vpack.c.bf16 %v4933, %v4932
      %v4954 = vpack.c.bf16 %v4935, %v4934
      %v4955 = vpack.c.bf16 %v4937, %v4936
      %v4956 = vpack.c.bf16 %v4939, %v4938
      %v4957 = vpack.c.bf16 %v4941, %v4940
      %s4958 = scalar_lea.vmem %s5, 64
      %v4959 = vld [vmem:[%s4958] sm:$0xf]
      %v4960 = vld [vmem:[%s4958 + $0x4] sm:$0xf]
      %v4961 = vld [vmem:[%s4958 + $0x8] sm:$0xf]
      %v4962 = vld [vmem:[%s4958 + $0xc] sm:$0xf]
      %v4963 = vld [vmem:[%s4958 + $0x10] sm:$0xf]
      %v4964 = vld [vmem:[%s4958 + $0x14] sm:$0xf]
      %v4965 = vld [vmem:[%s4958 + $0x18] sm:$0xf]
      %v4966 = vld [vmem:[%s4958 + $0x1c] sm:$0xf]
      %v4967 = vld [vmem:[%s4958 + $0x20] sm:$0xf]
      %v4968 = vld [vmem:[%s4958 + $0x24] sm:$0xf]
      %v4969 = vld [vmem:[%s4958 + $0x28] sm:$0xf]
      %v4970 = vld [vmem:[%s4958 + $0x2c] sm:$0xf]
      %v4971 = vld [vmem:[%s4958 + $0x30] sm:$0xf]
      %v4972 = vld [vmem:[%s4958 + $0x34] sm:$0xf]
      %v4973 = vld [vmem:[%s4958 + $0x38] sm:$0xf]
      %v4974 = vld [vmem:[%s4958 + $0x3c] sm:$0xf]
      %v4991 = vunpack.c.l.b16 %v4959
      %v4992 = vunpack.c.l.b16 %v4960
      %v4993 = vunpack.c.l.b16 %v4961
      %v4994 = vunpack.c.l.b16 %v4962
      %v4995 = vunpack.c.l.b16 %v4963
      %v4996 = vunpack.c.l.b16 %v4964
      %v4997 = vunpack.c.l.b16 %v4965
      %v4998 = vunpack.c.l.b16 %v4966
      %v4999 = vunpack.c.l.b16 %v4967
      %v5000 = vunpack.c.l.b16 %v4968
      %v5001 = vunpack.c.l.b16 %v4969
      %v5002 = vunpack.c.l.b16 %v4970
      %v5003 = vunpack.c.l.b16 %v4971
      %v5004 = vunpack.c.l.b16 %v4972
      %v5005 = vunpack.c.l.b16 %v4973
      %v5006 = vunpack.c.l.b16 %v4974
      %v5007 = vpack.c.b16 %v4992, %v4991
      %v5008 = vpack.c.b16 %v4994, %v4993
      %v5009 = vpack.c.b16 %v4996, %v4995
      %v5010 = vpack.c.b16 %v4998, %v4997
      %v5011 = vpack.c.b16 %v5000, %v4999
      %v5012 = vpack.c.b16 %v5002, %v5001
      %v5013 = vpack.c.b16 %v5004, %v5003
      %v5014 = vpack.c.b16 %v5006, %v5005
      %5023 = vmatprep.subr.bf16.mxu0 0
      %5024 = vmatpush1.bf16.msra.mxu0 %v5014
      %5025 = vmatprep.subr.bf16.mxu0 0
      %5026 = vmatpush1.bf16.msra.mxu0 %v5013
      %5027 = vmatprep.subr.bf16.mxu0 0
      %5028 = vmatpush1.bf16.msra.mxu0 %v5012
      %5029 = vmatprep.subr.bf16.mxu0 0
      %5030 = vmatpush1.bf16.msra.mxu0 %v5011
      %5031 = vmatprep.subr.bf16.mxu0 0
      %5032 = vmatpush1.bf16.msra.mxu0 %v5010
      %5033 = vmatprep.subr.bf16.mxu0 0
      %5034 = vmatpush1.bf16.msra.mxu0 %v5009
      %5035 = vmatprep.subr.bf16.mxu0 0
      %5036 = vmatpush1.bf16.msra.mxu0 %v5008
      %5037 = vmatprep.subr.bf16.mxu0 0
      %5038 = vmatpush1.bf16.msra.mxu0 %v5007
      %5039 = vmatprep.subr.bf16.mxu0 0
      %5040 = vmatpush2.bf16.msra.mxu0 0
      %5041 = vmatprep.subr.bf16.mxu0 0
      %5042 = vmatpush2.bf16.msra.mxu0 0
      %5043 = vmatprep.subr.bf16.mxu0 0
      %5044 = vmatpush2.bf16.msra.mxu0 0
      %5045 = vmatprep.subr.bf16.mxu0 0
      %5046 = vmatpush2.bf16.msra.mxu0 0
      %5047 = vmatprep.subr.bf16.mxu0 0
      %5048 = vmatpush2.bf16.msra.mxu0 0
      %5049 = vmatprep.subr.bf16.mxu0 0
      %5050 = vmatpush2.bf16.msra.mxu0 0
      %5051 = vmatprep.subr.bf16.mxu0 0
      %5052 = vmatpush2.bf16.msra.mxu0 0
      %5053 = vmatprep.subr.bf16.mxu0 0
      %5054 = vmatpush2.bf16.msra.mxu0 0
      %5055 = vmatprep.mubr.bf16.mxu0 0
      %5056 = vmatmul.mubr.bf16.gmra.mxu0 %v4942
      %v5057 = vpop.f32.mrf.mxu0
      %v5058 = vadd.f32 0.0, %v5057
      %v5059 = vpop.f32.mrf.mxu0
      %v5060 = vpop.f32.mrf.mxu0
      %v5061 = vadd.f32 0.0, %v5060
      %v5062 = vpop.f32.mrf.mxu0
      %5063 = vmatprep.mubr.bf16.mxu0 0
      %5064 = vmatmul.mubr.bf16.gmra.mxu0 %v4943
      %v5065 = vpop.f32.mrf.mxu0
      %v5066 = vadd.f32 0.0, %v5065
      %v5067 = vpop.f32.mrf.mxu0
      %v5068 = vpop.f32.mrf.mxu0
      %v5069 = vadd.f32 0.0, %v5068
      %v5070 = vpop.f32.mrf.mxu0
      %5071 = vmatprep.mubr.bf16.mxu0 0
      %5072 = vmatmul.mubr.bf16.gmra.mxu0 %v4944
      %v5073 = vpop.f32.mrf.mxu0
      %v5074 = vadd.f32 0.0, %v5073
      %v5075 = vpop.f32.mrf.mxu0
      %v5076 = vpop.f32.mrf.mxu0
      %v5077 = vadd.f32 0.0, %v5076
      %v5078 = vpop.f32.mrf.mxu0
      %5079 = vmatprep.mubr.bf16.mxu0 0
      %5080 = vmatmul.mubr.bf16.gmra.mxu0 %v4945
      %v5081 = vpop.f32.mrf.mxu0
      %v5082 = vadd.f32 0.0, %v5081
      %v5083 = vpop.f32.mrf.mxu0
      %v5084 = vpop.f32.mrf.mxu0
      %v5085 = vadd.f32 0.0, %v5084
      %v5086 = vpop.f32.mrf.mxu0
      %5087 = vmatprep.mubr.bf16.mxu0 0
      %5088 = vmatmul.mubr.bf16.gmra.mxu0 %v4946
      %v5089 = vpop.f32.mrf.mxu0
      %v5090 = vadd.f32 0.0, %v5089
      %v5091 = vpop.f32.mrf.mxu0
      %v5092 = vpop.f32.mrf.mxu0
      %v5093 = vadd.f32 0.0, %v5092
      %v5094 = vpop.f32.mrf.mxu0
      %5095 = vmatprep.mubr.bf16.mxu0 0
      %5096 = vmatmul.mubr.bf16.gmra.mxu0 %v4947
      %v5097 = vpop.f32.mrf.mxu0
      %v5098 = vadd.f32 0.0, %v5097
      %v5099 = vpop.f32.mrf.mxu0
      %v5100 = vpop.f32.mrf.mxu0
      %v5101 = vadd.f32 0.0, %v5100
      %v5102 = vpop.f32.mrf.mxu0
      %5103 = vmatprep.mubr.bf16.mxu0 0
      %5104 = vmatmul.mubr.bf16.gmra.mxu0 %v4948
      %v5105 = vpop.f32.mrf.mxu0
      %v5106 = vadd.f32 0.0, %v5105
      %v5107 = vpop.f32.mrf.mxu0
      %v5108 = vpop.f32.mrf.mxu0
      %v5109 = vadd.f32 0.0, %v5108
      %v5110 = vpop.f32.mrf.mxu0
      %5111 = vmatprep.mubr.bf16.mxu0 0
      %5112 = vmatmul.mubr.bf16.gmra.mxu0 %v4949
      %v5113 = vpop.f32.mrf.mxu0
      %v5114 = vadd.f32 0.0, %v5113
      %v5115 = vpop.f32.mrf.mxu0
      %v5116 = vpop.f32.mrf.mxu0
      %v5117 = vadd.f32 0.0, %v5116
      %v5118 = vpop.f32.mrf.mxu0
      %5119 = vmatprep.mubr.bf16.mxu0 0
      %5120 = vmatmul.mubr.bf16.gmra.mxu0 %v4950
      %v5121 = vpop.f32.mrf.mxu0
      %v5122 = vadd.f32 0.0, %v5121
      %v5123 = vpop.f32.mrf.mxu0
      %v5124 = vpop.f32.mrf.mxu0
      %v5125 = vadd.f32 0.0, %v5124
      %v5126 = vpop.f32.mrf.mxu0
      %5127 = vmatprep.mubr.bf16.mxu0 0
      %5128 = vmatmul.mubr.bf16.gmra.mxu0 %v4951
      %v5129 = vpop.f32.mrf.mxu0
      %v5130 = vadd.f32 0.0, %v5129
      %v5131 = vpop.f32.mrf.mxu0
      %v5132 = vpop.f32.mrf.mxu0
      %v5133 = vadd.f32 0.0, %v5132
      %v5134 = vpop.f32.mrf.mxu0
      %5135 = vmatprep.mubr.bf16.mxu0 0
      %5136 = vmatmul.mubr.bf16.gmra.mxu0 %v4952
      %v5137 = vpop.f32.mrf.mxu0
      %v5138 = vadd.f32 0.0, %v5137
      %v5139 = vpop.f32.mrf.mxu0
      %v5140 = vpop.f32.mrf.mxu0
      %v5141 = vadd.f32 0.0, %v5140
      %v5142 = vpop.f32.mrf.mxu0
      %5143 = vmatprep.mubr.bf16.mxu0 0
      %5144 = vmatmul.mubr.bf16.gmra.mxu0 %v4953
      %v5145 = vpop.f32.mrf.mxu0
      %v5146 = vadd.f32 0.0, %v5145
      %v5147 = vpop.f32.mrf.mxu0
      %v5148 = vpop.f32.mrf.mxu0
      %v5149 = vadd.f32 0.0, %v5148
      %v5150 = vpop.f32.mrf.mxu0
      %5151 = vmatprep.mubr.bf16.mxu0 0
      %5152 = vmatmul.mubr.bf16.gmra.mxu0 %v4954
      %v5153 = vpop.f32.mrf.mxu0
      %v5154 = vadd.f32 0.0, %v5153
      %v5155 = vpop.f32.mrf.mxu0
      %v5156 = vpop.f32.mrf.mxu0
      %v5157 = vadd.f32 0.0, %v5156
      %v5158 = vpop.f32.mrf.mxu0
      %5159 = vmatprep.mubr.bf16.mxu0 0
      %5160 = vmatmul.mubr.bf16.gmra.mxu0 %v4955
      %v5161 = vpop.f32.mrf.mxu0
      %v5162 = vadd.f32 0.0, %v5161
      %v5163 = vpop.f32.mrf.mxu0
      %v5164 = vpop.f32.mrf.mxu0
      %v5165 = vadd.f32 0.0, %v5164
      %v5166 = vpop.f32.mrf.mxu0
      %5167 = vmatprep.mubr.bf16.mxu0 0
      %5168 = vmatmul.mubr.bf16.gmra.mxu0 %v4956
      %v5169 = vpop.f32.mrf.mxu0
      %v5170 = vadd.f32 0.0, %v5169
      %v5171 = vpop.f32.mrf.mxu0
      %v5172 = vpop.f32.mrf.mxu0
      %v5173 = vadd.f32 0.0, %v5172
      %v5174 = vpop.f32.mrf.mxu0
      %5175 = vmatprep.mubr.bf16.mxu0 0
      %5176 = vmatmul.mubr.bf16.gmra.mxu0 %v4957
      %v5177 = vpop.f32.mrf.mxu0
      %v5178 = vadd.f32 0.0, %v5177
      %v5179 = vpop.f32.mrf.mxu0
      %v5180 = vpop.f32.mrf.mxu0
      %v5181 = vadd.f32 0.0, %v5180
      %v5182 = vpop.f32.mrf.mxu0
      %5183 = vdwg.mxu0
      %v5184 = vadd.f32 %v4878, %v5058
      %v5185 = vadd.f32 %v4879, %v5061
      %v5186 = vadd.f32 %v4880, %v5066
      %v5187 = vadd.f32 %v4881, %v5069
      %v5188 = vadd.f32 %v4882, %v5074
      %v5189 = vadd.f32 %v4883, %v5077
      %v5190 = vadd.f32 %v4884, %v5082
      %v5191 = vadd.f32 %v4885, %v5085
      %v5192 = vadd.f32 %v4886, %v5090
      %v5193 = vadd.f32 %v4887, %v5093
      %v5194 = vadd.f32 %v4888, %v5098
      %v5195 = vadd.f32 %v4889, %v5101
      %v5196 = vadd.f32 %v4890, %v5106
      %v5197 = vadd.f32 %v4891, %v5109
      %v5198 = vadd.f32 %v4892, %v5114
      %v5199 = vadd.f32 %v4893, %v5117
      %v5200 = vadd.f32 %v4894, %v5122
      %v5201 = vadd.f32 %v4895, %v5125
      %v5202 = vadd.f32 %v4896, %v5130
      %v5203 = vadd.f32 %v4897, %v5133
      %v5204 = vadd.f32 %v4898, %v5138
      %v5205 = vadd.f32 %v4899, %v5141
      %v5206 = vadd.f32 %v4900, %v5146
      %v5207 = vadd.f32 %v4901, %v5149
      %v5208 = vadd.f32 %v4902, %v5154
      %v5209 = vadd.f32 %v4903, %v5157
      %v5210 = vadd.f32 %v4904, %v5162
      %v5211 = vadd.f32 %v4905, %v5165
      %v5212 = vadd.f32 %v4906, %v5170
      %v5213 = vadd.f32 %v4907, %v5173
      %v5214 = vadd.f32 %v4908, %v5178
      %v5215 = vadd.f32 %v4909, %v5181
      %v5216 = vld [vmem:[#allocation2 + $0x11] sm:$0xff]
      %v5217 = vld [vmem:[#allocation2 + $0x19] sm:$0xff]
      %v5218 = vld [vmem:[#allocation2 + $0x21] sm:$0xff]
      %v5219 = vld [vmem:[#allocation2 + $0x29] sm:$0xff]
      %v5220 = vld [vmem:[#allocation2 + $0x31] sm:$0xff]
      %v5221 = vld [vmem:[#allocation2 + $0x39] sm:$0xff]
      %v5222 = vld [vmem:[#allocation2 + $0x41] sm:$0xff]
      %v5223 = vld [vmem:[#allocation2 + $0x49] sm:$0xff]
      %v5224 = vld [vmem:[#allocation2 + $0x51] sm:$0xff]
      %v5225 = vld [vmem:[#allocation2 + $0x59] sm:$0xff]
      %v5226 = vld [vmem:[#allocation2 + $0x61] sm:$0xff]
      %v5227 = vld [vmem:[#allocation2 + $0x69] sm:$0xff]
      %v5228 = vld [vmem:[#allocation2 + $0x71] sm:$0xff]
      %v5229 = vld [vmem:[#allocation2 + $0x79] sm:$0xff]
      %v5230 = vld [vmem:[#allocation2 + $0x81] sm:$0xff]
      %v5231 = vld [vmem:[#allocation2 + $0x89] sm:$0xff]
      %v5232 = vld [vmem:[#allocation2 + $0x91] sm:$0xff]
      %v5233 = vld [vmem:[#allocation2 + $0x99] sm:$0xff]
      %v5234 = vld [vmem:[#allocation2 + $0xa1] sm:$0xff]
      %v5235 = vld [vmem:[#allocation2 + $0xa9] sm:$0xff]
      %v5236 = vld [vmem:[#allocation2 + $0xb1] sm:$0xff]
      %v5237 = vld [vmem:[#allocation2 + $0xb9] sm:$0xff]
      %v5238 = vld [vmem:[#allocation2 + $0xc1] sm:$0xff]
      %v5239 = vld [vmem:[#allocation2 + $0xc9] sm:$0xff]
      %v5240 = vld [vmem:[#allocation2 + $0xd1] sm:$0xff]
      %v5241 = vld [vmem:[#allocation2 + $0xd9] sm:$0xff]
      %v5242 = vld [vmem:[#allocation2 + $0xe1] sm:$0xff]
      %v5243 = vld [vmem:[#allocation2 + $0xe9] sm:$0xff]
      %v5244 = vld [vmem:[#allocation2 + $0xf1] sm:$0xff]
      %v5245 = vld [vmem:[#allocation2 + $0xf9] sm:$0xff]
      %v5246 = vld [vmem:[#allocation2 + $0x101] sm:$0xff]
      %v5247 = vld [vmem:[#allocation2 + $0x109] sm:$0xff]
      %v5248 = vpack.c.bf16 %v5217, %v5216
      %v5249 = vpack.c.bf16 %v5219, %v5218
      %v5250 = vpack.c.bf16 %v5221, %v5220
      %v5251 = vpack.c.bf16 %v5223, %v5222
      %v5252 = vpack.c.bf16 %v5225, %v5224
      %v5253 = vpack.c.bf16 %v5227, %v5226
      %v5254 = vpack.c.bf16 %v5229, %v5228
      %v5255 = vpack.c.bf16 %v5231, %v5230
      %v5256 = vpack.c.bf16 %v5233, %v5232
      %v5257 = vpack.c.bf16 %v5235, %v5234
      %v5258 = vpack.c.bf16 %v5237, %v5236
      %v5259 = vpack.c.bf16 %v5239, %v5238
      %v5260 = vpack.c.bf16 %v5241, %v5240
      %v5261 = vpack.c.bf16 %v5243, %v5242
      %v5262 = vpack.c.bf16 %v5245, %v5244
      %v5263 = vpack.c.bf16 %v5247, %v5246
      %v5264 = vmul.bf16 %v5248, %v4565
      %v5265 = vmul.bf16 %v5249, %v4566
      %v5266 = vmul.bf16 %v5250, %v4567
      %v5267 = vmul.bf16 %v5251, %v4568
      %v5268 = vmul.bf16 %v5252, %v4569
      %v5269 = vmul.bf16 %v5253, %v4570
      %v5270 = vmul.bf16 %v5254, %v4571
      %v5271 = vmul.bf16 %v5255, %v4572
      %v5272 = vmul.bf16 %v5256, %v4573
      %v5273 = vmul.bf16 %v5257, %v4574
      %v5274 = vmul.bf16 %v5258, %v4575
      %v5275 = vmul.bf16 %v5259, %v4576
      %v5276 = vmul.bf16 %v5260, %v4577
      %v5277 = vmul.bf16 %v5261, %v4578
      %v5278 = vmul.bf16 %v5262, %v4579
      %v5279 = vmul.bf16 %v5263, %v4580
      %s5280 = scalar_lea.vmem %s5, 128
      %v5281 = vld [vmem:[%s5280] sm:$0xf]
      %v5282 = vld [vmem:[%s5280 + $0x4] sm:$0xf]
      %v5283 = vld [vmem:[%s5280 + $0x8] sm:$0xf]
      %v5284 = vld [vmem:[%s5280 + $0xc] sm:$0xf]
      %v5285 = vld [vmem:[%s5280 + $0x10] sm:$0xf]
      %v5286 = vld [vmem:[%s5280 + $0x14] sm:$0xf]
      %v5287 = vld [vmem:[%s5280 + $0x18] sm:$0xf]
      %v5288 = vld [vmem:[%s5280 + $0x1c] sm:$0xf]
      %v5289 = vld [vmem:[%s5280 + $0x20] sm:$0xf]
      %v5290 = vld [vmem:[%s5280 + $0x24] sm:$0xf]
      %v5291 = vld [vmem:[%s5280 + $0x28] sm:$0xf]
      %v5292 = vld [vmem:[%s5280 + $0x2c] sm:$0xf]
      %v5293 = vld [vmem:[%s5280 + $0x30] sm:$0xf]
      %v5294 = vld [vmem:[%s5280 + $0x34] sm:$0xf]
      %v5295 = vld [vmem:[%s5280 + $0x38] sm:$0xf]
      %v5296 = vld [vmem:[%s5280 + $0x3c] sm:$0xf]
      %v5313 = vunpack.c.l.b16 %v5281
      %v5314 = vunpack.c.l.b16 %v5282
      %v5315 = vunpack.c.l.b16 %v5283
      %v5316 = vunpack.c.l.b16 %v5284
      %v5317 = vunpack.c.l.b16 %v5285
      %v5318 = vunpack.c.l.b16 %v5286
      %v5319 = vunpack.c.l.b16 %v5287
      %v5320 = vunpack.c.l.b16 %v5288
      %v5321 = vunpack.c.l.b16 %v5289
      %v5322 = vunpack.c.l.b16 %v5290
      %v5323 = vunpack.c.l.b16 %v5291
      %v5324 = vunpack.c.l.b16 %v5292
      %v5325 = vunpack.c.l.b16 %v5293
      %v5326 = vunpack.c.l.b16 %v5294
      %v5327 = vunpack.c.l.b16 %v5295
      %v5328 = vunpack.c.l.b16 %v5296
      %v5329 = vpack.c.b16 %v5314, %v5313
      %v5330 = vpack.c.b16 %v5316, %v5315
      %v5331 = vpack.c.b16 %v5318, %v5317
      %v5332 = vpack.c.b16 %v5320, %v5319
      %v5333 = vpack.c.b16 %v5322, %v5321
      %v5334 = vpack.c.b16 %v5324, %v5323
      %v5335 = vpack.c.b16 %v5326, %v5325
      %v5336 = vpack.c.b16 %v5328, %v5327
      %5345 = vmatprep.subr.bf16.mxu0 0
      %5346 = vmatpush1.bf16.msra.mxu0 %v5336
      %5347 = vmatprep.subr.bf16.mxu0 0
      %5348 = vmatpush1.bf16.msra.mxu0 %v5335
      %5349 = vmatprep.subr.bf16.mxu0 0
      %5350 = vmatpush1.bf16.msra.mxu0 %v5334
      %5351 = vmatprep.subr.bf16.mxu0 0
      %5352 = vmatpush1.bf16.msra.mxu0 %v5333
      %5353 = vmatprep.subr.bf16.mxu0 0
      %5354 = vmatpush1.bf16.msra.mxu0 %v5332
      %5355 = vmatprep.subr.bf16.mxu0 0
      %5356 = vmatpush1.bf16.msra.mxu0 %v5331
      %5357 = vmatprep.subr.bf16.mxu0 0
      %5358 = vmatpush1.bf16.msra.mxu0 %v5330
      %5359 = vmatprep.subr.bf16.mxu0 0
      %5360 = vmatpush1.bf16.msra.mxu0 %v5329
      %5361 = vmatprep.subr.bf16.mxu0 0
      %5362 = vmatpush2.bf16.msra.mxu0 0
      %5363 = vmatprep.subr.bf16.mxu0 0
      %5364 = vmatpush2.bf16.msra.mxu0 0
      %5365 = vmatprep.subr.bf16.mxu0 0
      %5366 = vmatpush2.bf16.msra.mxu0 0
      %5367 = vmatprep.subr.bf16.mxu0 0
      %5368 = vmatpush2.bf16.msra.mxu0 0
      %5369 = vmatprep.subr.bf16.mxu0 0
      %5370 = vmatpush2.bf16.msra.mxu0 0
      %5371 = vmatprep.subr.bf16.mxu0 0
      %5372 = vmatpush2.bf16.msra.mxu0 0
      %5373 = vmatprep.subr.bf16.mxu0 0
      %5374 = vmatpush2.bf16.msra.mxu0 0
      %5375 = vmatprep.subr.bf16.mxu0 0
      %5376 = vmatpush2.bf16.msra.mxu0 0
      %5377 = vmatprep.mubr.bf16.mxu0 0
      %5378 = vmatmul.mubr.bf16.gmra.mxu0 %v5264
      %v5379 = vpop.f32.mrf.mxu0
      %v5380 = vadd.f32 0.0, %v5379
      %v5381 = vpop.f32.mrf.mxu0
      %v5382 = vpop.f32.mrf.mxu0
      %v5383 = vadd.f32 0.0, %v5382
      %v5384 = vpop.f32.mrf.mxu0
      %5385 = vmatprep.mubr.bf16.mxu0 0
      %5386 = vmatmul.mubr.bf16.gmra.mxu0 %v5265
      %v5387 = vpop.f32.mrf.mxu0
      %v5388 = vadd.f32 0.0, %v5387
      %v5389 = vpop.f32.mrf.mxu0
      %v5390 = vpop.f32.mrf.mxu0
      %v5391 = vadd.f32 0.0, %v5390
      %v5392 = vpop.f32.mrf.mxu0
      %5393 = vmatprep.mubr.bf16.mxu0 0
      %5394 = vmatmul.mubr.bf16.gmra.mxu0 %v5266
      %v5395 = vpop.f32.mrf.mxu0
      %v5396 = vadd.f32 0.0, %v5395
      %v5397 = vpop.f32.mrf.mxu0
      %v5398 = vpop.f32.mrf.mxu0
      %v5399 = vadd.f32 0.0, %v5398
      %v5400 = vpop.f32.mrf.mxu0
      %5401 = vmatprep.mubr.bf16.mxu0 0
      %5402 = vmatmul.mubr.bf16.gmra.mxu0 %v5267
      %v5403 = vpop.f32.mrf.mxu0
      %v5404 = vadd.f32 0.0, %v5403
      %v5405 = vpop.f32.mrf.mxu0
      %v5406 = vpop.f32.mrf.mxu0
      %v5407 = vadd.f32 0.0, %v5406
      %v5408 = vpop.f32.mrf.mxu0
      %5409 = vmatprep.mubr.bf16.mxu0 0
      %5410 = vmatmul.mubr.bf16.gmra.mxu0 %v5268
      %v5411 = vpop.f32.mrf.mxu0
      %v5412 = vadd.f32 0.0, %v5411
      %v5413 = vpop.f32.mrf.mxu0
      %v5414 = vpop.f32.mrf.mxu0
      %v5415 = vadd.f32 0.0, %v5414
      %v5416 = vpop.f32.mrf.mxu0
      %5417 = vmatprep.mubr.bf16.mxu0 0
      %5418 = vmatmul.mubr.bf16.gmra.mxu0 %v5269
      %v5419 = vpop.f32.mrf.mxu0
      %v5420 = vadd.f32 0.0, %v5419
      %v5421 = vpop.f32.mrf.mxu0
      %v5422 = vpop.f32.mrf.mxu0
      %v5423 = vadd.f32 0.0, %v5422
      %v5424 = vpop.f32.mrf.mxu0
      %5425 = vmatprep.mubr.bf16.mxu0 0
      %5426 = vmatmul.mubr.bf16.gmra.mxu0 %v5270
      %v5427 = vpop.f32.mrf.mxu0
      %v5428 = vadd.f32 0.0, %v5427
      %v5429 = vpop.f32.mrf.mxu0
      %v5430 = vpop.f32.mrf.mxu0
      %v5431 = vadd.f32 0.0, %v5430
      %v5432 = vpop.f32.mrf.mxu0
      %5433 = vmatprep.mubr.bf16.mxu0 0
      %5434 = vmatmul.mubr.bf16.gmra.mxu0 %v5271
      %v5435 = vpop.f32.mrf.mxu0
      %v5436 = vadd.f32 0.0, %v5435
      %v5437 = vpop.f32.mrf.mxu0
      %v5438 = vpop.f32.mrf.mxu0
      %v5439 = vadd.f32 0.0, %v5438
      %v5440 = vpop.f32.mrf.mxu0
      %5441 = vmatprep.mubr.bf16.mxu0 0
      %5442 = vmatmul.mubr.bf16.gmra.mxu0 %v5272
      %v5443 = vpop.f32.mrf.mxu0
      %v5444 = vadd.f32 0.0, %v5443
      %v5445 = vpop.f32.mrf.mxu0
      %v5446 = vpop.f32.mrf.mxu0
      %v5447 = vadd.f32 0.0, %v5446
      %v5448 = vpop.f32.mrf.mxu0
      %5449 = vmatprep.mubr.bf16.mxu0 0
      %5450 = vmatmul.mubr.bf16.gmra.mxu0 %v5273
      %v5451 = vpop.f32.mrf.mxu0
      %v5452 = vadd.f32 0.0, %v5451
      %v5453 = vpop.f32.mrf.mxu0
      %v5454 = vpop.f32.mrf.mxu0
      %v5455 = vadd.f32 0.0, %v5454
      %v5456 = vpop.f32.mrf.mxu0
      %5457 = vmatprep.mubr.bf16.mxu0 0
      %5458 = vmatmul.mubr.bf16.gmra.mxu0 %v5274
      %v5459 = vpop.f32.mrf.mxu0
      %v5460 = vadd.f32 0.0, %v5459
      %v5461 = vpop.f32.mrf.mxu0
      %v5462 = vpop.f32.mrf.mxu0
      %v5463 = vadd.f32 0.0, %v5462
      %v5464 = vpop.f32.mrf.mxu0
      %5465 = vmatprep.mubr.bf16.mxu0 0
      %5466 = vmatmul.mubr.bf16.gmra.mxu0 %v5275
      %v5467 = vpop.f32.mrf.mxu0
      %v5468 = vadd.f32 0.0, %v5467
      %v5469 = vpop.f32.mrf.mxu0
      %v5470 = vpop.f32.mrf.mxu0
      %v5471 = vadd.f32 0.0, %v5470
      %v5472 = vpop.f32.mrf.mxu0
      %5473 = vmatprep.mubr.bf16.mxu0 0
      %5474 = vmatmul.mubr.bf16.gmra.mxu0 %v5276
      %v5475 = vpop.f32.mrf.mxu0
      %v5476 = vadd.f32 0.0, %v5475
      %v5477 = vpop.f32.mrf.mxu0
      %v5478 = vpop.f32.mrf.mxu0
      %v5479 = vadd.f32 0.0, %v5478
      %v5480 = vpop.f32.mrf.mxu0
      %5481 = vmatprep.mubr.bf16.mxu0 0
      %5482 = vmatmul.mubr.bf16.gmra.mxu0 %v5277
      %v5483 = vpop.f32.mrf.mxu0
      %v5484 = vadd.f32 0.0, %v5483
      %v5485 = vpop.f32.mrf.mxu0
      %v5486 = vpop.f32.mrf.mxu0
      %v5487 = vadd.f32 0.0, %v5486
      %v5488 = vpop.f32.mrf.mxu0
      %5489 = vmatprep.mubr.bf16.mxu0 0
      %5490 = vmatmul.mubr.bf16.gmra.mxu0 %v5278
      %v5491 = vpop.f32.mrf.mxu0
      %v5492 = vadd.f32 0.0, %v5491
      %v5493 = vpop.f32.mrf.mxu0
      %v5494 = vpop.f32.mrf.mxu0
      %v5495 = vadd.f32 0.0, %v5494
      %v5496 = vpop.f32.mrf.mxu0
      %5497 = vmatprep.mubr.bf16.mxu0 0
      %5498 = vmatmul.mubr.bf16.gmra.mxu0 %v5279
      %v5499 = vpop.f32.mrf.mxu0
      %v5500 = vadd.f32 0.0, %v5499
      %v5501 = vpop.f32.mrf.mxu0
      %v5502 = vpop.f32.mrf.mxu0
      %v5503 = vadd.f32 0.0, %v5502
      %v5504 = vpop.f32.mrf.mxu0
      %5505 = vdwg.mxu0
      %v5506 = vadd.f32 %v5184, %v5380
      %v5507 = vadd.f32 %v5185, %v5383
      %v5508 = vadd.f32 %v5186, %v5388
      %v5509 = vadd.f32 %v5187, %v5391
      %v5510 = vadd.f32 %v5188, %v5396
      %v5511 = vadd.f32 %v5189, %v5399
      %v5512 = vadd.f32 %v5190, %v5404
      %v5513 = vadd.f32 %v5191, %v5407
      %v5514 = vadd.f32 %v5192, %v5412
      %v5515 = vadd.f32 %v5193, %v5415
      %v5516 = vadd.f32 %v5194, %v5420
      %v5517 = vadd.f32 %v5195, %v5423
      %v5518 = vadd.f32 %v5196, %v5428
      %v5519 = vadd.f32 %v5197, %v5431
      %v5520 = vadd.f32 %v5198, %v5436
      %v5521 = vadd.f32 %v5199, %v5439
      %v5522 = vadd.f32 %v5200, %v5444
      %v5523 = vadd.f32 %v5201, %v5447
      %v5524 = vadd.f32 %v5202, %v5452
      %v5525 = vadd.f32 %v5203, %v5455
      %v5526 = vadd.f32 %v5204, %v5460
      %v5527 = vadd.f32 %v5205, %v5463
      %v5528 = vadd.f32 %v5206, %v5468
      %v5529 = vadd.f32 %v5207, %v5471
      %v5530 = vadd.f32 %v5208, %v5476
      %v5531 = vadd.f32 %v5209, %v5479
      %v5532 = vadd.f32 %v5210, %v5484
      %v5533 = vadd.f32 %v5211, %v5487
      %v5534 = vadd.f32 %v5212, %v5492
      %v5535 = vadd.f32 %v5213, %v5495
      %v5536 = vadd.f32 %v5214, %v5500
      %v5537 = vadd.f32 %v5215, %v5503
      %v5538 = vld [vmem:[#allocation2 + $0x1f] sm:$0xff]
      %v5539 = vld [vmem:[#allocation2 + $0x27] sm:$0xff]
      %v5540 = vld [vmem:[#allocation2 + $0x2f] sm:$0xff]
      %v5541 = vld [vmem:[#allocation2 + $0x37] sm:$0xff]
      %v5542 = vld [vmem:[#allocation2 + $0x3f] sm:$0xff]
      %v5543 = vld [vmem:[#allocation2 + $0x47] sm:$0xff]
      %v5544 = vld [vmem:[#allocation2 + $0x4f] sm:$0xff]
      %v5545 = vld [vmem:[#allocation2 + $0x57] sm:$0xff]
      %v5546 = vld [vmem:[#allocation2 + $0x5f] sm:$0xff]
      %v5547 = vld [vmem:[#allocation2 + $0x67] sm:$0xff]
      %v5548 = vld [vmem:[#allocation2 + $0x6f] sm:$0xff]
      %v5549 = vld [vmem:[#allocation2 + $0x77] sm:$0xff]
      %v5550 = vld [vmem:[#allocation2 + $0x7f] sm:$0xff]
      %v5551 = vld [vmem:[#allocation2 + $0x87] sm:$0xff]
      %v5552 = vld [vmem:[#allocation2 + $0x8f] sm:$0xff]
      %v5553 = vld [vmem:[#allocation2 + $0x97] sm:$0xff]
      %v5554 = vld [vmem:[#allocation2 + $0x9f] sm:$0xff]
      %v5555 = vld [vmem:[#allocation2 + $0xa7] sm:$0xff]
      %v5556 = vld [vmem:[#allocation2 + $0xaf] sm:$0xff]
      %v5557 = vld [vmem:[#allocation2 + $0xb7] sm:$0xff]
      %v5558 = vld [vmem:[#allocation2 + $0xbf] sm:$0xff]
      %v5559 = vld [vmem:[#allocation2 + $0xc7] sm:$0xff]
      %v5560 = vld [vmem:[#allocation2 + $0xcf] sm:$0xff]
      %v5561 = vld [vmem:[#allocation2 + $0xd7] sm:$0xff]
      %v5562 = vld [vmem:[#allocation2 + $0xdf] sm:$0xff]
      %v5563 = vld [vmem:[#allocation2 + $0xe7] sm:$0xff]
      %v5564 = vld [vmem:[#allocation2 + $0xef] sm:$0xff]
      %v5565 = vld [vmem:[#allocation2 + $0xf7] sm:$0xff]
      %v5566 = vld [vmem:[#allocation2 + $0xff] sm:$0xff]
      %v5567 = vld [vmem:[#allocation2 + $0x107] sm:$0xff]
      %v5568 = vld [vmem:[#allocation2 + $0x10f] sm:$0xff]
      %v5569 = vld [vmem:[#allocation2 + $0x117] sm:$0xff]
      %v5570 = vpack.c.bf16 %v5539, %v5538
      %v5571 = vpack.c.bf16 %v5541, %v5540
      %v5572 = vpack.c.bf16 %v5543, %v5542
      %v5573 = vpack.c.bf16 %v5545, %v5544
      %v5574 = vpack.c.bf16 %v5547, %v5546
      %v5575 = vpack.c.bf16 %v5549, %v5548
      %v5576 = vpack.c.bf16 %v5551, %v5550
      %v5577 = vpack.c.bf16 %v5553, %v5552
      %v5578 = vpack.c.bf16 %v5555, %v5554
      %v5579 = vpack.c.bf16 %v5557, %v5556
      %v5580 = vpack.c.bf16 %v5559, %v5558
      %v5581 = vpack.c.bf16 %v5561, %v5560
      %v5582 = vpack.c.bf16 %v5563, %v5562
      %v5583 = vpack.c.bf16 %v5565, %v5564
      %v5584 = vpack.c.bf16 %v5567, %v5566
      %v5585 = vpack.c.bf16 %v5569, %v5568
      %v5586 = vmul.bf16 %v5570, %v4453
      %v5587 = vmul.bf16 %v5571, %v4454
      %v5588 = vmul.bf16 %v5572, %v4455
      %v5589 = vmul.bf16 %v5573, %v4456
      %v5590 = vmul.bf16 %v5574, %v4457
      %v5591 = vmul.bf16 %v5575, %v4458
      %v5592 = vmul.bf16 %v5576, %v4459
      %v5593 = vmul.bf16 %v5577, %v4460
      %v5594 = vmul.bf16 %v5578, %v4461
      %v5595 = vmul.bf16 %v5579, %v4462
      %v5596 = vmul.bf16 %v5580, %v4463
      %v5597 = vmul.bf16 %v5581, %v4464
      %v5598 = vmul.bf16 %v5582, %v4465
      %v5599 = vmul.bf16 %v5583, %v4466
      %v5600 = vmul.bf16 %v5584, %v4467
      %v5601 = vmul.bf16 %v5585, %v4468
      %s5602 = scalar_lea.vmem %s5, 192
      %v5603 = vld [vmem:[%s5602] sm:$0xf]
      %v5604 = vld [vmem:[%s5602 + $0x4] sm:$0xf]
      %v5605 = vld [vmem:[%s5602 + $0x8] sm:$0xf]
      %v5606 = vld [vmem:[%s5602 + $0xc] sm:$0xf]
      %v5607 = vld [vmem:[%s5602 + $0x10] sm:$0xf]
      %v5608 = vld [vmem:[%s5602 + $0x14] sm:$0xf]
      %v5609 = vld [vmem:[%s5602 + $0x18] sm:$0xf]
      %v5610 = vld [vmem:[%s5602 + $0x1c] sm:$0xf]
      %v5611 = vld [vmem:[%s5602 + $0x20] sm:$0xf]
      %v5612 = vld [vmem:[%s5602 + $0x24] sm:$0xf]
      %v5613 = vld [vmem:[%s5602 + $0x28] sm:$0xf]
      %v5614 = vld [vmem:[%s5602 + $0x2c] sm:$0xf]
      %v5615 = vld [vmem:[%s5602 + $0x30] sm:$0xf]
      %v5616 = vld [vmem:[%s5602 + $0x34] sm:$0xf]
      %v5617 = vld [vmem:[%s5602 + $0x38] sm:$0xf]
      %v5618 = vld [vmem:[%s5602 + $0x3c] sm:$0xf]
      %v5635 = vunpack.c.l.b16 %v5603
      %v5636 = vunpack.c.l.b16 %v5604
      %v5637 = vunpack.c.l.b16 %v5605
      %v5638 = vunpack.c.l.b16 %v5606
      %v5639 = vunpack.c.l.b16 %v5607
      %v5640 = vunpack.c.l.b16 %v5608
      %v5641 = vunpack.c.l.b16 %v5609
      %v5642 = vunpack.c.l.b16 %v5610
      %v5643 = vunpack.c.l.b16 %v5611
      %v5644 = vunpack.c.l.b16 %v5612
      %v5645 = vunpack.c.l.b16 %v5613
      %v5646 = vunpack.c.l.b16 %v5614
      %v5647 = vunpack.c.l.b16 %v5615
      %v5648 = vunpack.c.l.b16 %v5616
      %v5649 = vunpack.c.l.b16 %v5617
      %v5650 = vunpack.c.l.b16 %v5618
      %v5651 = vpack.c.b16 %v5636, %v5635
      %v5652 = vpack.c.b16 %v5638, %v5637
      %v5653 = vpack.c.b16 %v5640, %v5639
      %v5654 = vpack.c.b16 %v5642, %v5641
      %v5655 = vpack.c.b16 %v5644, %v5643
      %v5656 = vpack.c.b16 %v5646, %v5645
      %v5657 = vpack.c.b16 %v5648, %v5647
      %v5658 = vpack.c.b16 %v5650, %v5649
      %5667 = vmatprep.subr.bf16.mxu0 0
      %5668 = vmatpush1.bf16.msra.mxu0 %v5658
      %5669 = vmatprep.subr.bf16.mxu0 0
      %5670 = vmatpush1.bf16.msra.mxu0 %v5657
      %5671 = vmatprep.subr.bf16.mxu0 0
      %5672 = vmatpush1.bf16.msra.mxu0 %v5656
      %5673 = vmatprep.subr.bf16.mxu0 0
      %5674 = vmatpush1.bf16.msra.mxu0 %v5655
      %5675 = vmatprep.subr.bf16.mxu0 0
      %5676 = vmatpush1.bf16.msra.mxu0 %v5654
      %5677 = vmatprep.subr.bf16.mxu0 0
      %5678 = vmatpush1.bf16.msra.mxu0 %v5653
      %5679 = vmatprep.subr.bf16.mxu0 0
      %5680 = vmatpush1.bf16.msra.mxu0 %v5652
      %5681 = vmatprep.subr.bf16.mxu0 0
      %5682 = vmatpush1.bf16.msra.mxu0 %v5651
      %5683 = vmatprep.subr.bf16.mxu0 0
      %5684 = vmatpush2.bf16.msra.mxu0 0
      %5685 = vmatprep.subr.bf16.mxu0 0
      %5686 = vmatpush2.bf16.msra.mxu0 0
      %5687 = vmatprep.subr.bf16.mxu0 0
      %5688 = vmatpush2.bf16.msra.mxu0 0
      %5689 = vmatprep.subr.bf16.mxu0 0
      %5690 = vmatpush2.bf16.msra.mxu0 0
      %5691 = vmatprep.subr.bf16.mxu0 0
      %5692 = vmatpush2.bf16.msra.mxu0 0
      %5693 = vmatprep.subr.bf16.mxu0 0
      %5694 = vmatpush2.bf16.msra.mxu0 0
      %5695 = vmatprep.subr.bf16.mxu0 0
      %5696 = vmatpush2.bf16.msra.mxu0 0
      %5697 = vmatprep.subr.bf16.mxu0 0
      %5698 = vmatpush2.bf16.msra.mxu0 0
      %5699 = vmatprep.mubr.bf16.mxu0 0
      %5700 = vmatmul.mubr.bf16.gmra.mxu0 %v5586
      %v5701 = vpop.f32.mrf.mxu0
      %v5702 = vadd.f32 0.0, %v5701
      %v5703 = vpop.f32.mrf.mxu0
      %v5704 = vpop.f32.mrf.mxu0
      %v5705 = vadd.f32 0.0, %v5704
      %v5706 = vpop.f32.mrf.mxu0
      %5707 = vmatprep.mubr.bf16.mxu0 0
      %5708 = vmatmul.mubr.bf16.gmra.mxu0 %v5587
      %v5709 = vpop.f32.mrf.mxu0
      %v5710 = vadd.f32 0.0, %v5709
      %v5711 = vpop.f32.mrf.mxu0
      %v5712 = vpop.f32.mrf.mxu0
      %v5713 = vadd.f32 0.0, %v5712
      %v5714 = vpop.f32.mrf.mxu0
      %5715 = vmatprep.mubr.bf16.mxu0 0
      %5716 = vmatmul.mubr.bf16.gmra.mxu0 %v5588
      %v5717 = vpop.f32.mrf.mxu0
      %v5718 = vadd.f32 0.0, %v5717
      %v5719 = vpop.f32.mrf.mxu0
      %v5720 = vpop.f32.mrf.mxu0
      %v5721 = vadd.f32 0.0, %v5720
      %v5722 = vpop.f32.mrf.mxu0
      %5723 = vmatprep.mubr.bf16.mxu0 0
      %5724 = vmatmul.mubr.bf16.gmra.mxu0 %v5589
      %v5725 = vpop.f32.mrf.mxu0
      %v5726 = vadd.f32 0.0, %v5725
      %v5727 = vpop.f32.mrf.mxu0
      %v5728 = vpop.f32.mrf.mxu0
      %v5729 = vadd.f32 0.0, %v5728
      %v5730 = vpop.f32.mrf.mxu0
      %5731 = vmatprep.mubr.bf16.mxu0 0
      %5732 = vmatmul.mubr.bf16.gmra.mxu0 %v5590
      %v5733 = vpop.f32.mrf.mxu0
      %v5734 = vadd.f32 0.0, %v5733
      %v5735 = vpop.f32.mrf.mxu0
      %v5736 = vpop.f32.mrf.mxu0
      %v5737 = vadd.f32 0.0, %v5736
      %v5738 = vpop.f32.mrf.mxu0
      %5739 = vmatprep.mubr.bf16.mxu0 0
      %5740 = vmatmul.mubr.bf16.gmra.mxu0 %v5591
      %v5741 = vpop.f32.mrf.mxu0
      %v5742 = vadd.f32 0.0, %v5741
      %v5743 = vpop.f32.mrf.mxu0
      %v5744 = vpop.f32.mrf.mxu0
      %v5745 = vadd.f32 0.0, %v5744
      %v5746 = vpop.f32.mrf.mxu0
      %5747 = vmatprep.mubr.bf16.mxu0 0
      %5748 = vmatmul.mubr.bf16.gmra.mxu0 %v5592
      %v5749 = vpop.f32.mrf.mxu0
      %v5750 = vadd.f32 0.0, %v5749
      %v5751 = vpop.f32.mrf.mxu0
      %v5752 = vpop.f32.mrf.mxu0
      %v5753 = vadd.f32 0.0, %v5752
      %v5754 = vpop.f32.mrf.mxu0
      %5755 = vmatprep.mubr.bf16.mxu0 0
      %5756 = vmatmul.mubr.bf16.gmra.mxu0 %v5593
      %v5757 = vpop.f32.mrf.mxu0
      %v5758 = vadd.f32 0.0, %v5757
      %v5759 = vpop.f32.mrf.mxu0
      %v5760 = vpop.f32.mrf.mxu0
      %v5761 = vadd.f32 0.0, %v5760
      %v5762 = vpop.f32.mrf.mxu0
      %5763 = vmatprep.mubr.bf16.mxu0 0
      %5764 = vmatmul.mubr.bf16.gmra.mxu0 %v5594
      %v5765 = vpop.f32.mrf.mxu0
      %v5766 = vadd.f32 0.0, %v5765
      %v5767 = vpop.f32.mrf.mxu0
      %v5768 = vpop.f32.mrf.mxu0
      %v5769 = vadd.f32 0.0, %v5768
      %v5770 = vpop.f32.mrf.mxu0
      %5771 = vmatprep.mubr.bf16.mxu0 0
      %5772 = vmatmul.mubr.bf16.gmra.mxu0 %v5595
      %v5773 = vpop.f32.mrf.mxu0
      %v5774 = vadd.f32 0.0, %v5773
      %v5775 = vpop.f32.mrf.mxu0
      %v5776 = vpop.f32.mrf.mxu0
      %v5777 = vadd.f32 0.0, %v5776
      %v5778 = vpop.f32.mrf.mxu0
      %5779 = vmatprep.mubr.bf16.mxu0 0
      %5780 = vmatmul.mubr.bf16.gmra.mxu0 %v5596
      %v5781 = vpop.f32.mrf.mxu0
      %v5782 = vadd.f32 0.0, %v5781
      %v5783 = vpop.f32.mrf.mxu0
      %v5784 = vpop.f32.mrf.mxu0
      %v5785 = vadd.f32 0.0, %v5784
      %v5786 = vpop.f32.mrf.mxu0
      %5787 = vmatprep.mubr.bf16.mxu0 0
      %5788 = vmatmul.mubr.bf16.gmra.mxu0 %v5597
      %v5789 = vpop.f32.mrf.mxu0
      %v5790 = vadd.f32 0.0, %v5789
      %v5791 = vpop.f32.mrf.mxu0
      %v5792 = vpop.f32.mrf.mxu0
      %v5793 = vadd.f32 0.0, %v5792
      %v5794 = vpop.f32.mrf.mxu0
      %5795 = vmatprep.mubr.bf16.mxu0 0
      %5796 = vmatmul.mubr.bf16.gmra.mxu0 %v5598
      %v5797 = vpop.f32.mrf.mxu0
      %v5798 = vadd.f32 0.0, %v5797
      %v5799 = vpop.f32.mrf.mxu0
      %v5800 = vpop.f32.mrf.mxu0
      %v5801 = vadd.f32 0.0, %v5800
      %v5802 = vpop.f32.mrf.mxu0
      %5803 = vmatprep.mubr.bf16.mxu0 0
      %5804 = vmatmul.mubr.bf16.gmra.mxu0 %v5599
      %v5805 = vpop.f32.mrf.mxu0
      %v5806 = vadd.f32 0.0, %v5805
      %v5807 = vpop.f32.mrf.mxu0
      %v5808 = vpop.f32.mrf.mxu0
      %v5809 = vadd.f32 0.0, %v5808
      %v5810 = vpop.f32.mrf.mxu0
      %5811 = vmatprep.mubr.bf16.mxu0 0
      %5812 = vmatmul.mubr.bf16.gmra.mxu0 %v5600
      %v5813 = vpop.f32.mrf.mxu0
      %v5814 = vadd.f32 0.0, %v5813
      %v5815 = vpop.f32.mrf.mxu0
      %v5816 = vpop.f32.mrf.mxu0
      %v5817 = vadd.f32 0.0, %v5816
      %v5818 = vpop.f32.mrf.mxu0
      %5819 = vmatprep.mubr.bf16.mxu0 0
      %5820 = vmatmul.mubr.bf16.gmra.mxu0 %v5601
      %v5821 = vpop.f32.mrf.mxu0
      %v5822 = vadd.f32 0.0, %v5821
      %v5823 = vpop.f32.mrf.mxu0
      %v5824 = vpop.f32.mrf.mxu0
      %v5825 = vadd.f32 0.0, %v5824
      %v5826 = vpop.f32.mrf.mxu0
      %5827 = vdwg.mxu0
      %v5828 = vadd.f32 %v5506, %v5702
      %v5829 = vadd.f32 %v5507, %v5705
      %v5830 = vadd.f32 %v5508, %v5710
      %v5831 = vadd.f32 %v5509, %v5713
      %v5832 = vadd.f32 %v5510, %v5718
      %v5833 = vadd.f32 %v5511, %v5721
      %v5834 = vadd.f32 %v5512, %v5726
      %v5835 = vadd.f32 %v5513, %v5729
      %v5836 = vadd.f32 %v5514, %v5734
      %v5837 = vadd.f32 %v5515, %v5737
      %v5838 = vadd.f32 %v5516, %v5742
      %v5839 = vadd.f32 %v5517, %v5745
      %v5840 = vadd.f32 %v5518, %v5750
      %v5841 = vadd.f32 %v5519, %v5753
      %v5842 = vadd.f32 %v5520, %v5758
      %v5843 = vadd.f32 %v5521, %v5761
      %v5844 = vadd.f32 %v5522, %v5766
      %v5845 = vadd.f32 %v5523, %v5769
      %v5846 = vadd.f32 %v5524, %v5774
      %v5847 = vadd.f32 %v5525, %v5777
      %v5848 = vadd.f32 %v5526, %v5782
      %v5849 = vadd.f32 %v5527, %v5785
      %v5850 = vadd.f32 %v5528, %v5790
      %v5851 = vadd.f32 %v5529, %v5793
      %v5852 = vadd.f32 %v5530, %v5798
      %v5853 = vadd.f32 %v5531, %v5801
      %v5854 = vadd.f32 %v5532, %v5806
      %v5855 = vadd.f32 %v5533, %v5809
      %v5856 = vadd.f32 %v5534, %v5814
      %v5857 = vadd.f32 %v5535, %v5817
      %v5858 = vadd.f32 %v5536, %v5822
      %v5859 = vadd.f32 %v5537, %v5825
      %v5860 = vld [vmem:[#allocation2 + $0x20] sm:$0xff]
      %v5861 = vld [vmem:[#allocation2 + $0x28] sm:$0xff]
      %v5862 = vld [vmem:[#allocation2 + $0x30] sm:$0xff]
      %v5863 = vld [vmem:[#allocation2 + $0x38] sm:$0xff]
      %v5864 = vld [vmem:[#allocation2 + $0x40] sm:$0xff]
      %v5865 = vld [vmem:[#allocation2 + $0x48] sm:$0xff]
      %v5866 = vld [vmem:[#allocation2 + $0x50] sm:$0xff]
      %v5867 = vld [vmem:[#allocation2 + $0x58] sm:$0xff]
      %v5868 = vld [vmem:[#allocation2 + $0x60] sm:$0xff]
      %v5869 = vld [vmem:[#allocation2 + $0x68] sm:$0xff]
      %v5870 = vld [vmem:[#allocation2 + $0x70] sm:$0xff]
      %v5871 = vld [vmem:[#allocation2 + $0x78] sm:$0xff]
      %v5872 = vld [vmem:[#allocation2 + $0x80] sm:$0xff]
      %v5873 = vld [vmem:[#allocation2 + $0x88] sm:$0xff]
      %v5874 = vld [vmem:[#allocation2 + $0x90] sm:$0xff]
      %v5875 = vld [vmem:[#allocation2 + $0x98] sm:$0xff]
      %v5876 = vld [vmem:[#allocation2 + $0xa0] sm:$0xff]
      %v5877 = vld [vmem:[#allocation2 + $0xa8] sm:$0xff]
      %v5878 = vld [vmem:[#allocation2 + $0xb0] sm:$0xff]
      %v5879 = vld [vmem:[#allocation2 + $0xb8] sm:$0xff]
      %v5880 = vld [vmem:[#allocation2 + $0xc0] sm:$0xff]
      %v5881 = vld [vmem:[#allocation2 + $0xc8] sm:$0xff]
      %v5882 = vld [vmem:[#allocation2 + $0xd0] sm:$0xff]
      %v5883 = vld [vmem:[#allocation2 + $0xd8] sm:$0xff]
      %v5884 = vld [vmem:[#allocation2 + $0xe0] sm:$0xff]
      %v5885 = vld [vmem:[#allocation2 + $0xe8] sm:$0xff]
      %v5886 = vld [vmem:[#allocation2 + $0xf0] sm:$0xff]
      %v5887 = vld [vmem:[#allocation2 + $0xf8] sm:$0xff]
      %v5888 = vld [vmem:[#allocation2 + $0x100] sm:$0xff]
      %v5889 = vld [vmem:[#allocation2 + $0x108] sm:$0xff]
      %v5890 = vld [vmem:[#allocation2 + $0x110] sm:$0xff]
      %v5891 = vld [vmem:[#allocation2 + $0x118] sm:$0xff]
      %v5892 = vpack.c.bf16 %v5861, %v5860
      %v5893 = vpack.c.bf16 %v5863, %v5862
      %v5894 = vpack.c.bf16 %v5865, %v5864
      %v5895 = vpack.c.bf16 %v5867, %v5866
      %v5896 = vpack.c.bf16 %v5869, %v5868
      %v5897 = vpack.c.bf16 %v5871, %v5870
      %v5898 = vpack.c.bf16 %v5873, %v5872
      %v5899 = vpack.c.bf16 %v5875, %v5874
      %v5900 = vpack.c.bf16 %v5877, %v5876
      %v5901 = vpack.c.bf16 %v5879, %v5878
      %v5902 = vpack.c.bf16 %v5881, %v5880
      %v5903 = vpack.c.bf16 %v5883, %v5882
      %v5904 = vpack.c.bf16 %v5885, %v5884
      %v5905 = vpack.c.bf16 %v5887, %v5886
      %v5906 = vpack.c.bf16 %v5889, %v5888
      %v5907 = vpack.c.bf16 %v5891, %v5890
      %s5908 = scalar_lea.vmem %s5, 256
      %v5909 = vld [vmem:[%s5908] sm:$0xf]
      %v5910 = vld [vmem:[%s5908 + $0x4] sm:$0xf]
      %v5911 = vld [vmem:[%s5908 + $0x8] sm:$0xf]
      %v5912 = vld [vmem:[%s5908 + $0xc] sm:$0xf]
      %v5913 = vld [vmem:[%s5908 + $0x10] sm:$0xf]
      %v5914 = vld [vmem:[%s5908 + $0x14] sm:$0xf]
      %v5915 = vld [vmem:[%s5908 + $0x18] sm:$0xf]
      %v5916 = vld [vmem:[%s5908 + $0x1c] sm:$0xf]
      %v5917 = vld [vmem:[%s5908 + $0x20] sm:$0xf]
      %v5918 = vld [vmem:[%s5908 + $0x24] sm:$0xf]
      %v5919 = vld [vmem:[%s5908 + $0x28] sm:$0xf]
      %v5920 = vld [vmem:[%s5908 + $0x2c] sm:$0xf]
      %v5921 = vld [vmem:[%s5908 + $0x30] sm:$0xf]
      %v5922 = vld [vmem:[%s5908 + $0x34] sm:$0xf]
      %v5923 = vld [vmem:[%s5908 + $0x38] sm:$0xf]
      %v5924 = vld [vmem:[%s5908 + $0x3c] sm:$0xf]
      %v5941 = vunpack.c.l.b16 %v5909
      %v5942 = vunpack.c.l.b16 %v5910
      %v5943 = vunpack.c.l.b16 %v5911
      %v5944 = vunpack.c.l.b16 %v5912
      %v5945 = vunpack.c.l.b16 %v5913
      %v5946 = vunpack.c.l.b16 %v5914
      %v5947 = vunpack.c.l.b16 %v5915
      %v5948 = vunpack.c.l.b16 %v5916
      %v5949 = vunpack.c.l.b16 %v5917
      %v5950 = vunpack.c.l.b16 %v5918
      %v5951 = vunpack.c.l.b16 %v5919
      %v5952 = vunpack.c.l.b16 %v5920
      %v5953 = vunpack.c.l.b16 %v5921
      %v5954 = vunpack.c.l.b16 %v5922
      %v5955 = vunpack.c.l.b16 %v5923
      %v5956 = vunpack.c.l.b16 %v5924
      %v5957 = vpack.c.b16 %v5942, %v5941
      %v5958 = vpack.c.b16 %v5944, %v5943
      %v5959 = vpack.c.b16 %v5946, %v5945
      %v5960 = vpack.c.b16 %v5948, %v5947
      %v5961 = vpack.c.b16 %v5950, %v5949
      %v5962 = vpack.c.b16 %v5952, %v5951
      %v5963 = vpack.c.b16 %v5954, %v5953
      %v5964 = vpack.c.b16 %v5956, %v5955
      %5973 = vmatprep.subr.bf16.mxu0 0
      %5974 = vmatpush1.bf16.msra.mxu0 %v5964
      %5975 = vmatprep.subr.bf16.mxu0 0
      %5976 = vmatpush1.bf16.msra.mxu0 %v5963
      %5977 = vmatprep.subr.bf16.mxu0 0
      %5978 = vmatpush1.bf16.msra.mxu0 %v5962
      %5979 = vmatprep.subr.bf16.mxu0 0
      %5980 = vmatpush1.bf16.msra.mxu0 %v5961
      %5981 = vmatprep.subr.bf16.mxu0 0
      %5982 = vmatpush1.bf16.msra.mxu0 %v5960
      %5983 = vmatprep.subr.bf16.mxu0 0
      %5984 = vmatpush1.bf16.msra.mxu0 %v5959
      %5985 = vmatprep.subr.bf16.mxu0 0
      %5986 = vmatpush1.bf16.msra.mxu0 %v5958
      %5987 = vmatprep.subr.bf16.mxu0 0
      %5988 = vmatpush1.bf16.msra.mxu0 %v5957
      %5989 = vmatprep.subr.bf16.mxu0 0
      %5990 = vmatpush2.bf16.msra.mxu0 0
      %5991 = vmatprep.subr.bf16.mxu0 0
      %5992 = vmatpush2.bf16.msra.mxu0 0
      %5993 = vmatprep.subr.bf16.mxu0 0
      %5994 = vmatpush2.bf16.msra.mxu0 0
      %5995 = vmatprep.subr.bf16.mxu0 0
      %5996 = vmatpush2.bf16.msra.mxu0 0
      %5997 = vmatprep.subr.bf16.mxu0 0
      %5998 = vmatpush2.bf16.msra.mxu0 0
      %5999 = vmatprep.subr.bf16.mxu0 0
      %6000 = vmatpush2.bf16.msra.mxu0 0
      %6001 = vmatprep.subr.bf16.mxu0 0
      %6002 = vmatpush2.bf16.msra.mxu0 0
      %6003 = vmatprep.subr.bf16.mxu0 0
      %6004 = vmatpush2.bf16.msra.mxu0 0
      %6005 = vmatprep.mubr.bf16.mxu0 0
      %6006 = vmatmul.mubr.bf16.gmra.mxu0 %v5892
      %v6007 = vpop.f32.mrf.mxu0
      %v6008 = vadd.f32 0.0, %v6007
      %v6009 = vpop.f32.mrf.mxu0
      %v6010 = vpop.f32.mrf.mxu0
      %v6011 = vadd.f32 0.0, %v6010
      %v6012 = vpop.f32.mrf.mxu0
      %6013 = vmatprep.mubr.bf16.mxu0 0
      %6014 = vmatmul.mubr.bf16.gmra.mxu0 %v5893
      %v6015 = vpop.f32.mrf.mxu0
      %v6016 = vadd.f32 0.0, %v6015
      %v6017 = vpop.f32.mrf.mxu0
      %v6018 = vpop.f32.mrf.mxu0
      %v6019 = vadd.f32 0.0, %v6018
      %v6020 = vpop.f32.mrf.mxu0
      %6021 = vmatprep.mubr.bf16.mxu0 0
      %6022 = vmatmul.mubr.bf16.gmra.mxu0 %v5894
      %v6023 = vpop.f32.mrf.mxu0
      %v6024 = vadd.f32 0.0, %v6023
      %v6025 = vpop.f32.mrf.mxu0
      %v6026 = vpop.f32.mrf.mxu0
      %v6027 = vadd.f32 0.0, %v6026
      %v6028 = vpop.f32.mrf.mxu0
      %6029 = vmatprep.mubr.bf16.mxu0 0
      %6030 = vmatmul.mubr.bf16.gmra.mxu0 %v5895
      %v6031 = vpop.f32.mrf.mxu0
      %v6032 = vadd.f32 0.0, %v6031
      %v6033 = vpop.f32.mrf.mxu0
      %v6034 = vpop.f32.mrf.mxu0
      %v6035 = vadd.f32 0.0, %v6034
      %v6036 = vpop.f32.mrf.mxu0
      %6037 = vmatprep.mubr.bf16.mxu0 0
      %6038 = vmatmul.mubr.bf16.gmra.mxu0 %v5896
      %v6039 = vpop.f32.mrf.mxu0
      %v6040 = vadd.f32 0.0, %v6039
      %v6041 = vpop.f32.mrf.mxu0
      %v6042 = vpop.f32.mrf.mxu0
      %v6043 = vadd.f32 0.0, %v6042
      %v6044 = vpop.f32.mrf.mxu0
      %6045 = vmatprep.mubr.bf16.mxu0 0
      %6046 = vmatmul.mubr.bf16.gmra.mxu0 %v5897
      %v6047 = vpop.f32.mrf.mxu0
      %v6048 = vadd.f32 0.0, %v6047
      %v6049 = vpop.f32.mrf.mxu0
      %v6050 = vpop.f32.mrf.mxu0
      %v6051 = vadd.f32 0.0, %v6050
      %v6052 = vpop.f32.mrf.mxu0
      %6053 = vmatprep.mubr.bf16.mxu0 0
      %6054 = vmatmul.mubr.bf16.gmra.mxu0 %v5898
      %v6055 = vpop.f32.mrf.mxu0
      %v6056 = vadd.f32 0.0, %v6055
      %v6057 = vpop.f32.mrf.mxu0
      %v6058 = vpop.f32.mrf.mxu0
      %v6059 = vadd.f32 0.0, %v6058
      %v6060 = vpop.f32.mrf.mxu0
      %6061 = vmatprep.mubr.bf16.mxu0 0
      %6062 = vmatmul.mubr.bf16.gmra.mxu0 %v5899
      %v6063 = vpop.f32.mrf.mxu0
      %v6064 = vadd.f32 0.0, %v6063
      %v6065 = vpop.f32.mrf.mxu0
      %v6066 = vpop.f32.mrf.mxu0
      %v6067 = vadd.f32 0.0, %v6066
      %v6068 = vpop.f32.mrf.mxu0
      %6069 = vmatprep.mubr.bf16.mxu0 0
      %6070 = vmatmul.mubr.bf16.gmra.mxu0 %v5900
      %v6071 = vpop.f32.mrf.mxu0
      %v6072 = vadd.f32 0.0, %v6071
      %v6073 = vpop.f32.mrf.mxu0
      %v6074 = vpop.f32.mrf.mxu0
      %v6075 = vadd.f32 0.0, %v6074
      %v6076 = vpop.f32.mrf.mxu0
      %6077 = vmatprep.mubr.bf16.mxu0 0
      %6078 = vmatmul.mubr.bf16.gmra.mxu0 %v5901
      %v6079 = vpop.f32.mrf.mxu0
      %v6080 = vadd.f32 0.0, %v6079
      %v6081 = vpop.f32.mrf.mxu0
      %v6082 = vpop.f32.mrf.mxu0
      %v6083 = vadd.f32 0.0, %v6082
      %v6084 = vpop.f32.mrf.mxu0
      %6085 = vmatprep.mubr.bf16.mxu0 0
      %6086 = vmatmul.mubr.bf16.gmra.mxu0 %v5902
      %v6087 = vpop.f32.mrf.mxu0
      %v6088 = vadd.f32 0.0, %v6087
      %v6089 = vpop.f32.mrf.mxu0
      %v6090 = vpop.f32.mrf.mxu0
      %v6091 = vadd.f32 0.0, %v6090
      %v6092 = vpop.f32.mrf.mxu0
      %6093 = vmatprep.mubr.bf16.mxu0 0
      %6094 = vmatmul.mubr.bf16.gmra.mxu0 %v5903
      %v6095 = vpop.f32.mrf.mxu0
      %v6096 = vadd.f32 0.0, %v6095
      %v6097 = vpop.f32.mrf.mxu0
      %v6098 = vpop.f32.mrf.mxu0
      %v6099 = vadd.f32 0.0, %v6098
      %v6100 = vpop.f32.mrf.mxu0
      %6101 = vmatprep.mubr.bf16.mxu0 0
      %6102 = vmatmul.mubr.bf16.gmra.mxu0 %v5904
      %v6103 = vpop.f32.mrf.mxu0
      %v6104 = vadd.f32 0.0, %v6103
      %v6105 = vpop.f32.mrf.mxu0
      %v6106 = vpop.f32.mrf.mxu0
      %v6107 = vadd.f32 0.0, %v6106
      %v6108 = vpop.f32.mrf.mxu0
      %6109 = vmatprep.mubr.bf16.mxu0 0
      %6110 = vmatmul.mubr.bf16.gmra.mxu0 %v5905
      %v6111 = vpop.f32.mrf.mxu0
      %v6112 = vadd.f32 0.0, %v6111
      %v6113 = vpop.f32.mrf.mxu0
      %v6114 = vpop.f32.mrf.mxu0
      %v6115 = vadd.f32 0.0, %v6114
      %v6116 = vpop.f32.mrf.mxu0
      %6117 = vmatprep.mubr.bf16.mxu0 0
      %6118 = vmatmul.mubr.bf16.gmra.mxu0 %v5906
      %v6119 = vpop.f32.mrf.mxu0
      %v6120 = vadd.f32 0.0, %v6119
      %v6121 = vpop.f32.mrf.mxu0
      %v6122 = vpop.f32.mrf.mxu0
      %v6123 = vadd.f32 0.0, %v6122
      %v6124 = vpop.f32.mrf.mxu0
      %6125 = vmatprep.mubr.bf16.mxu0 0
      %6126 = vmatmul.mubr.bf16.gmra.mxu0 %v5907
      %v6127 = vpop.f32.mrf.mxu0
      %v6128 = vadd.f32 0.0, %v6127
      %v6129 = vpop.f32.mrf.mxu0
      %v6130 = vpop.f32.mrf.mxu0
      %v6131 = vadd.f32 0.0, %v6130
      %v6132 = vpop.f32.mrf.mxu0
      %6133 = vdwg.mxu0
      %v6134 = vadd.f32 %v5828, %v6008
      %v6135 = vadd.f32 %v5829, %v6011
      %v6136 = vadd.f32 %v5830, %v6016
      %v6137 = vadd.f32 %v5831, %v6019
      %v6138 = vadd.f32 %v5832, %v6024
      %v6139 = vadd.f32 %v5833, %v6027
      %v6140 = vadd.f32 %v5834, %v6032
      %v6141 = vadd.f32 %v5835, %v6035
      %v6142 = vadd.f32 %v5836, %v6040
      %v6143 = vadd.f32 %v5837, %v6043
      %v6144 = vadd.f32 %v5838, %v6048
      %v6145 = vadd.f32 %v5839, %v6051
      %v6146 = vadd.f32 %v5840, %v6056
      %v6147 = vadd.f32 %v5841, %v6059
      %v6148 = vadd.f32 %v5842, %v6064
      %v6149 = vadd.f32 %v5843, %v6067
      %v6150 = vadd.f32 %v5844, %v6072
      %v6151 = vadd.f32 %v5845, %v6075
      %v6152 = vadd.f32 %v5846, %v6080
      %v6153 = vadd.f32 %v5847, %v6083
      %v6154 = vadd.f32 %v5848, %v6088
      %v6155 = vadd.f32 %v5849, %v6091
      %v6156 = vadd.f32 %v5850, %v6096
      %v6157 = vadd.f32 %v5851, %v6099
      %v6158 = vadd.f32 %v5852, %v6104
      %v6159 = vadd.f32 %v5853, %v6107
      %v6160 = vadd.f32 %v5854, %v6112
      %v6161 = vadd.f32 %v5855, %v6115
      %v6162 = vadd.f32 %v5856, %v6120
      %v6163 = vadd.f32 %v5857, %v6123
      %v6164 = vadd.f32 %v5858, %v6128
      %v6165 = vadd.f32 %v5859, %v6131
      %v6166 = vld [vmem:[#allocation2 + $0x21] sm:$0xff]
      %v6167 = vld [vmem:[#allocation2 + $0x29] sm:$0xff]
      %v6168 = vld [vmem:[#allocation2 + $0x31] sm:$0xff]
      %v6169 = vld [vmem:[#allocation2 + $0x39] sm:$0xff]
      %v6170 = vld [vmem:[#allocation2 + $0x41] sm:$0xff]
      %v6171 = vld [vmem:[#allocation2 + $0x49] sm:$0xff]
      %v6172 = vld [vmem:[#allocation2 + $0x51] sm:$0xff]
      %v6173 = vld [vmem:[#allocation2 + $0x59] sm:$0xff]
      %v6174 = vld [vmem:[#allocation2 + $0x61] sm:$0xff]
      %v6175 = vld [vmem:[#allocation2 + $0x69] sm:$0xff]
      %v6176 = vld [vmem:[#allocation2 + $0x71] sm:$0xff]
      %v6177 = vld [vmem:[#allocation2 + $0x79] sm:$0xff]
      %v6178 = vld [vmem:[#allocation2 + $0x81] sm:$0xff]
      %v6179 = vld [vmem:[#allocation2 + $0x89] sm:$0xff]
      %v6180 = vld [vmem:[#allocation2 + $0x91] sm:$0xff]
      %v6181 = vld [vmem:[#allocation2 + $0x99] sm:$0xff]
      %v6182 = vld [vmem:[#allocation2 + $0xa1] sm:$0xff]
      %v6183 = vld [vmem:[#allocation2 + $0xa9] sm:$0xff]
      %v6184 = vld [vmem:[#allocation2 + $0xb1] sm:$0xff]
      %v6185 = vld [vmem:[#allocation2 + $0xb9] sm:$0xff]
      %v6186 = vld [vmem:[#allocation2 + $0xc1] sm:$0xff]
      %v6187 = vld [vmem:[#allocation2 + $0xc9] sm:$0xff]
      %v6188 = vld [vmem:[#allocation2 + $0xd1] sm:$0xff]
      %v6189 = vld [vmem:[#allocation2 + $0xd9] sm:$0xff]
      %v6190 = vld [vmem:[#allocation2 + $0xe1] sm:$0xff]
      %v6191 = vld [vmem:[#allocation2 + $0xe9] sm:$0xff]
      %v6192 = vld [vmem:[#allocation2 + $0xf1] sm:$0xff]
      %v6193 = vld [vmem:[#allocation2 + $0xf9] sm:$0xff]
      %v6194 = vld [vmem:[#allocation2 + $0x101] sm:$0xff]
      %v6195 = vld [vmem:[#allocation2 + $0x109] sm:$0xff]
      %v6196 = vld [vmem:[#allocation2 + $0x111] sm:$0xff]
      %v6197 = vld [vmem:[#allocation2 + $0x119] sm:$0xff]
      %v6198 = vpack.c.bf16 %v6167, %v6166
      %v6199 = vpack.c.bf16 %v6169, %v6168
      %v6200 = vpack.c.bf16 %v6171, %v6170
      %v6201 = vpack.c.bf16 %v6173, %v6172
      %v6202 = vpack.c.bf16 %v6175, %v6174
      %v6203 = vpack.c.bf16 %v6177, %v6176
      %v6204 = vpack.c.bf16 %v6179, %v6178
      %v6205 = vpack.c.bf16 %v6181, %v6180
      %v6206 = vpack.c.bf16 %v6183, %v6182
      %v6207 = vpack.c.bf16 %v6185, %v6184
      %v6208 = vpack.c.bf16 %v6187, %v6186
      %v6209 = vpack.c.bf16 %v6189, %v6188
      %v6210 = vpack.c.bf16 %v6191, %v6190
      %v6211 = vpack.c.bf16 %v6193, %v6192
      %v6212 = vpack.c.bf16 %v6195, %v6194
      %v6213 = vpack.c.bf16 %v6197, %v6196
      %v6214 = vmul.bf16 %v6198, %v4565
      %v6215 = vmul.bf16 %v6199, %v4566
      %v6216 = vmul.bf16 %v6200, %v4567
      %v6217 = vmul.bf16 %v6201, %v4568
      %v6218 = vmul.bf16 %v6202, %v4569
      %v6219 = vmul.bf16 %v6203, %v4570
      %v6220 = vmul.bf16 %v6204, %v4571
      %v6221 = vmul.bf16 %v6205, %v4572
      %v6222 = vmul.bf16 %v6206, %v4573
      %v6223 = vmul.bf16 %v6207, %v4574
      %v6224 = vmul.bf16 %v6208, %v4575
      %v6225 = vmul.bf16 %v6209, %v4576
      %v6226 = vmul.bf16 %v6210, %v4577
      %v6227 = vmul.bf16 %v6211, %v4578
      %v6228 = vmul.bf16 %v6212, %v4579
      %v6229 = vmul.bf16 %v6213, %v4580
      %s6230 = scalar_lea.vmem %s5, 320
      %v6231 = vld [vmem:[%s6230] sm:$0xf]
      %v6232 = vld [vmem:[%s6230 + $0x4] sm:$0xf]
      %v6233 = vld [vmem:[%s6230 + $0x8] sm:$0xf]
      %v6234 = vld [vmem:[%s6230 + $0xc] sm:$0xf]
      %v6235 = vld [vmem:[%s6230 + $0x10] sm:$0xf]
      %v6236 = vld [vmem:[%s6230 + $0x14] sm:$0xf]
      %v6237 = vld [vmem:[%s6230 + $0x18] sm:$0xf]
      %v6238 = vld [vmem:[%s6230 + $0x1c] sm:$0xf]
      %v6239 = vld [vmem:[%s6230 + $0x20] sm:$0xf]
      %v6240 = vld [vmem:[%s6230 + $0x24] sm:$0xf]
      %v6241 = vld [vmem:[%s6230 + $0x28] sm:$0xf]
      %v6242 = vld [vmem:[%s6230 + $0x2c] sm:$0xf]
      %v6243 = vld [vmem:[%s6230 + $0x30] sm:$0xf]
      %v6244 = vld [vmem:[%s6230 + $0x34] sm:$0xf]
      %v6245 = vld [vmem:[%s6230 + $0x38] sm:$0xf]
      %v6246 = vld [vmem:[%s6230 + $0x3c] sm:$0xf]
      %v6263 = vunpack.c.l.b16 %v6231
      %v6264 = vunpack.c.l.b16 %v6232
      %v6265 = vunpack.c.l.b16 %v6233
      %v6266 = vunpack.c.l.b16 %v6234
      %v6267 = vunpack.c.l.b16 %v6235
      %v6268 = vunpack.c.l.b16 %v6236
      %v6269 = vunpack.c.l.b16 %v6237
      %v6270 = vunpack.c.l.b16 %v6238
      %v6271 = vunpack.c.l.b16 %v6239
      %v6272 = vunpack.c.l.b16 %v6240
      %v6273 = vunpack.c.l.b16 %v6241
      %v6274 = vunpack.c.l.b16 %v6242
      %v6275 = vunpack.c.l.b16 %v6243
      %v6276 = vunpack.c.l.b16 %v6244
      %v6277 = vunpack.c.l.b16 %v6245
      %v6278 = vunpack.c.l.b16 %v6246
      %v6279 = vpack.c.b16 %v6264, %v6263
      %v6280 = vpack.c.b16 %v6266, %v6265
      %v6281 = vpack.c.b16 %v6268, %v6267
      %v6282 = vpack.c.b16 %v6270, %v6269
      %v6283 = vpack.c.b16 %v6272, %v6271
      %v6284 = vpack.c.b16 %v6274, %v6273
      %v6285 = vpack.c.b16 %v6276, %v6275
      %v6286 = vpack.c.b16 %v6278, %v6277
      %6295 = vmatprep.subr.bf16.mxu0 0
      %6296 = vmatpush1.bf16.msra.mxu0 %v6286
      %6297 = vmatprep.subr.bf16.mxu0 0
      %6298 = vmatpush1.bf16.msra.mxu0 %v6285
      %6299 = vmatprep.subr.bf16.mxu0 0
      %6300 = vmatpush1.bf16.msra.mxu0 %v6284
      %6301 = vmatprep.subr.bf16.mxu0 0
      %6302 = vmatpush1.bf16.msra.mxu0 %v6283
      %6303 = vmatprep.subr.bf16.mxu0 0
      %6304 = vmatpush1.bf16.msra.mxu0 %v6282
      %6305 = vmatprep.subr.bf16.mxu0 0
      %6306 = vmatpush1.bf16.msra.mxu0 %v6281
      %6307 = vmatprep.subr.bf16.mxu0 0
      %6308 = vmatpush1.bf16.msra.mxu0 %v6280
      %6309 = vmatprep.subr.bf16.mxu0 0
      %6310 = vmatpush1.bf16.msra.mxu0 %v6279
      %6311 = vmatprep.subr.bf16.mxu0 0
      %6312 = vmatpush2.bf16.msra.mxu0 0
      %6313 = vmatprep.subr.bf16.mxu0 0
      %6314 = vmatpush2.bf16.msra.mxu0 0
      %6315 = vmatprep.subr.bf16.mxu0 0
      %6316 = vmatpush2.bf16.msra.mxu0 0
      %6317 = vmatprep.subr.bf16.mxu0 0
      %6318 = vmatpush2.bf16.msra.mxu0 0
      %6319 = vmatprep.subr.bf16.mxu0 0
      %6320 = vmatpush2.bf16.msra.mxu0 0
      %6321 = vmatprep.subr.bf16.mxu0 0
      %6322 = vmatpush2.bf16.msra.mxu0 0
      %6323 = vmatprep.subr.bf16.mxu0 0
      %6324 = vmatpush2.bf16.msra.mxu0 0
      %6325 = vmatprep.subr.bf16.mxu0 0
      %6326 = vmatpush2.bf16.msra.mxu0 0
      %6327 = vmatprep.mubr.bf16.mxu0 0
      %6328 = vmatmul.mubr.bf16.gmra.mxu0 %v6214
      %v6329 = vpop.f32.mrf.mxu0
      %v6330 = vadd.f32 0.0, %v6329
      %v6331 = vpop.f32.mrf.mxu0
      %v6332 = vpop.f32.mrf.mxu0
      %v6333 = vadd.f32 0.0, %v6332
      %v6334 = vpop.f32.mrf.mxu0
      %6335 = vmatprep.mubr.bf16.mxu0 0
      %6336 = vmatmul.mubr.bf16.gmra.mxu0 %v6215
      %v6337 = vpop.f32.mrf.mxu0
      %v6338 = vadd.f32 0.0, %v6337
      %v6339 = vpop.f32.mrf.mxu0
      %v6340 = vpop.f32.mrf.mxu0
      %v6341 = vadd.f32 0.0, %v6340
      %v6342 = vpop.f32.mrf.mxu0
      %6343 = vmatprep.mubr.bf16.mxu0 0
      %6344 = vmatmul.mubr.bf16.gmra.mxu0 %v6216
      %v6345 = vpop.f32.mrf.mxu0
      %v6346 = vadd.f32 0.0, %v6345
      %v6347 = vpop.f32.mrf.mxu0
      %v6348 = vpop.f32.mrf.mxu0
      %v6349 = vadd.f32 0.0, %v6348
      %v6350 = vpop.f32.mrf.mxu0
      %6351 = vmatprep.mubr.bf16.mxu0 0
      %6352 = vmatmul.mubr.bf16.gmra.mxu0 %v6217
      %v6353 = vpop.f32.mrf.mxu0
      %v6354 = vadd.f32 0.0, %v6353
      %v6355 = vpop.f32.mrf.mxu0
      %v6356 = vpop.f32.mrf.mxu0
      %v6357 = vadd.f32 0.0, %v6356
      %v6358 = vpop.f32.mrf.mxu0
      %6359 = vmatprep.mubr.bf16.mxu0 0
      %6360 = vmatmul.mubr.bf16.gmra.mxu0 %v6218
      %v6361 = vpop.f32.mrf.mxu0
      %v6362 = vadd.f32 0.0, %v6361
      %v6363 = vpop.f32.mrf.mxu0
      %v6364 = vpop.f32.mrf.mxu0
      %v6365 = vadd.f32 0.0, %v6364
      %v6366 = vpop.f32.mrf.mxu0
      %6367 = vmatprep.mubr.bf16.mxu0 0
      %6368 = vmatmul.mubr.bf16.gmra.mxu0 %v6219
      %v6369 = vpop.f32.mrf.mxu0
      %v6370 = vadd.f32 0.0, %v6369
      %v6371 = vpop.f32.mrf.mxu0
      %v6372 = vpop.f32.mrf.mxu0
      %v6373 = vadd.f32 0.0, %v6372
      %v6374 = vpop.f32.mrf.mxu0
      %6375 = vmatprep.mubr.bf16.mxu0 0
      %6376 = vmatmul.mubr.bf16.gmra.mxu0 %v6220
      %v6377 = vpop.f32.mrf.mxu0
      %v6378 = vadd.f32 0.0, %v6377
      %v6379 = vpop.f32.mrf.mxu0
      %v6380 = vpop.f32.mrf.mxu0
      %v6381 = vadd.f32 0.0, %v6380
      %v6382 = vpop.f32.mrf.mxu0
      %6383 = vmatprep.mubr.bf16.mxu0 0
      %6384 = vmatmul.mubr.bf16.gmra.mxu0 %v6221
      %v6385 = vpop.f32.mrf.mxu0
      %v6386 = vadd.f32 0.0, %v6385
      %v6387 = vpop.f32.mrf.mxu0
      %v6388 = vpop.f32.mrf.mxu0
      %v6389 = vadd.f32 0.0, %v6388
      %v6390 = vpop.f32.mrf.mxu0
      %6391 = vmatprep.mubr.bf16.mxu0 0
      %6392 = vmatmul.mubr.bf16.gmra.mxu0 %v6222
      %v6393 = vpop.f32.mrf.mxu0
      %v6394 = vadd.f32 0.0, %v6393
      %v6395 = vpop.f32.mrf.mxu0
      %v6396 = vpop.f32.mrf.mxu0
      %v6397 = vadd.f32 0.0, %v6396
      %v6398 = vpop.f32.mrf.mxu0
      %6399 = vmatprep.mubr.bf16.mxu0 0
      %6400 = vmatmul.mubr.bf16.gmra.mxu0 %v6223
      %v6401 = vpop.f32.mrf.mxu0
      %v6402 = vadd.f32 0.0, %v6401
      %v6403 = vpop.f32.mrf.mxu0
      %v6404 = vpop.f32.mrf.mxu0
      %v6405 = vadd.f32 0.0, %v6404
      %v6406 = vpop.f32.mrf.mxu0
      %6407 = vmatprep.mubr.bf16.mxu0 0
      %6408 = vmatmul.mubr.bf16.gmra.mxu0 %v6224
      %v6409 = vpop.f32.mrf.mxu0
      %v6410 = vadd.f32 0.0, %v6409
      %v6411 = vpop.f32.mrf.mxu0
      %v6412 = vpop.f32.mrf.mxu0
      %v6413 = vadd.f32 0.0, %v6412
      %v6414 = vpop.f32.mrf.mxu0
      %6415 = vmatprep.mubr.bf16.mxu0 0
      %6416 = vmatmul.mubr.bf16.gmra.mxu0 %v6225
      %v6417 = vpop.f32.mrf.mxu0
      %v6418 = vadd.f32 0.0, %v6417
      %v6419 = vpop.f32.mrf.mxu0
      %v6420 = vpop.f32.mrf.mxu0
      %v6421 = vadd.f32 0.0, %v6420
      %v6422 = vpop.f32.mrf.mxu0
      %6423 = vmatprep.mubr.bf16.mxu0 0
      %6424 = vmatmul.mubr.bf16.gmra.mxu0 %v6226
      %v6425 = vpop.f32.mrf.mxu0
      %v6426 = vadd.f32 0.0, %v6425
      %v6427 = vpop.f32.mrf.mxu0
      %v6428 = vpop.f32.mrf.mxu0
      %v6429 = vadd.f32 0.0, %v6428
      %v6430 = vpop.f32.mrf.mxu0
      %6431 = vmatprep.mubr.bf16.mxu0 0
      %6432 = vmatmul.mubr.bf16.gmra.mxu0 %v6227
      %v6433 = vpop.f32.mrf.mxu0
      %v6434 = vadd.f32 0.0, %v6433
      %v6435 = vpop.f32.mrf.mxu0
      %v6436 = vpop.f32.mrf.mxu0
      %v6437 = vadd.f32 0.0, %v6436
      %v6438 = vpop.f32.mrf.mxu0
      %6439 = vmatprep.mubr.bf16.mxu0 0
      %6440 = vmatmul.mubr.bf16.gmra.mxu0 %v6228
      %v6441 = vpop.f32.mrf.mxu0
      %v6442 = vadd.f32 0.0, %v6441
      %v6443 = vpop.f32.mrf.mxu0
      %v6444 = vpop.f32.mrf.mxu0
      %v6445 = vadd.f32 0.0, %v6444
      %v6446 = vpop.f32.mrf.mxu0
      %6447 = vmatprep.mubr.bf16.mxu0 0
      %6448 = vmatmul.mubr.bf16.gmra.mxu0 %v6229
      %v6449 = vpop.f32.mrf.mxu0
      %v6450 = vadd.f32 0.0, %v6449
      %v6451 = vpop.f32.mrf.mxu0
      %v6452 = vpop.f32.mrf.mxu0
      %v6453 = vadd.f32 0.0, %v6452
      %v6454 = vpop.f32.mrf.mxu0
      %6455 = vdwg.mxu0
      %v6456 = vadd.f32 %v6134, %v6330
      %v6457 = vadd.f32 %v6135, %v6333
      %v6458 = vadd.f32 %v6136, %v6338
      %v6459 = vadd.f32 %v6137, %v6341
      %v6460 = vadd.f32 %v6138, %v6346
      %v6461 = vadd.f32 %v6139, %v6349
      %v6462 = vadd.f32 %v6140, %v6354
      %v6463 = vadd.f32 %v6141, %v6357
      %v6464 = vadd.f32 %v6142, %v6362
      %v6465 = vadd.f32 %v6143, %v6365
      %v6466 = vadd.f32 %v6144, %v6370
      %v6467 = vadd.f32 %v6145, %v6373
      %v6468 = vadd.f32 %v6146, %v6378
      %v6469 = vadd.f32 %v6147, %v6381
      %v6470 = vadd.f32 %v6148, %v6386
      %v6471 = vadd.f32 %v6149, %v6389
      %v6472 = vadd.f32 %v6150, %v6394
      %v6473 = vadd.f32 %v6151, %v6397
      %v6474 = vadd.f32 %v6152, %v6402
      %v6475 = vadd.f32 %v6153, %v6405
      %v6476 = vadd.f32 %v6154, %v6410
      %v6477 = vadd.f32 %v6155, %v6413
      %v6478 = vadd.f32 %v6156, %v6418
      %v6479 = vadd.f32 %v6157, %v6421
      %v6480 = vadd.f32 %v6158, %v6426
      %v6481 = vadd.f32 %v6159, %v6429
      %v6482 = vadd.f32 %v6160, %v6434
      %v6483 = vadd.f32 %v6161, %v6437
      %v6484 = vadd.f32 %v6162, %v6442
      %v6485 = vadd.f32 %v6163, %v6445
      %v6486 = vadd.f32 %v6164, %v6450
      %v6487 = vadd.f32 %v6165, %v6453
      %v6488 = vld [vmem:[#allocation2 + $0x2f] sm:$0xff]
      %v6489 = vld [vmem:[#allocation2 + $0x37] sm:$0xff]
      %v6490 = vld [vmem:[#allocation2 + $0x3f] sm:$0xff]
      %v6491 = vld [vmem:[#allocation2 + $0x47] sm:$0xff]
      %v6492 = vld [vmem:[#allocation2 + $0x4f] sm:$0xff]
      %v6493 = vld [vmem:[#allocation2 + $0x57] sm:$0xff]
      %v6494 = vld [vmem:[#allocation2 + $0x5f] sm:$0xff]
      %v6495 = vld [vmem:[#allocation2 + $0x67] sm:$0xff]
      %v6496 = vld [vmem:[#allocation2 + $0x6f] sm:$0xff]
      %v6497 = vld [vmem:[#allocation2 + $0x77] sm:$0xff]
      %v6498 = vld [vmem:[#allocation2 + $0x7f] sm:$0xff]
      %v6499 = vld [vmem:[#allocation2 + $0x87] sm:$0xff]
      %v6500 = vld [vmem:[#allocation2 + $0x8f] sm:$0xff]
      %v6501 = vld [vmem:[#allocation2 + $0x97] sm:$0xff]
      %v6502 = vld [vmem:[#allocation2 + $0x9f] sm:$0xff]
      %v6503 = vld [vmem:[#allocation2 + $0xa7] sm:$0xff]
      %v6504 = vld [vmem:[#allocation2 + $0xaf] sm:$0xff]
      %v6505 = vld [vmem:[#allocation2 + $0xb7] sm:$0xff]
      %v6506 = vld [vmem:[#allocation2 + $0xbf] sm:$0xff]
      %v6507 = vld [vmem:[#allocation2 + $0xc7] sm:$0xff]
      %v6508 = vld [vmem:[#allocation2 + $0xcf] sm:$0xff]
      %v6509 = vld [vmem:[#allocation2 + $0xd7] sm:$0xff]
      %v6510 = vld [vmem:[#allocation2 + $0xdf] sm:$0xff]
      %v6511 = vld [vmem:[#allocation2 + $0xe7] sm:$0xff]
      %v6512 = vld [vmem:[#allocation2 + $0xef] sm:$0xff]
      %v6513 = vld [vmem:[#allocation2 + $0xf7] sm:$0xff]
      %v6514 = vld [vmem:[#allocation2 + $0xff] sm:$0xff]
      %v6515 = vld [vmem:[#allocation2 + $0x107] sm:$0xff]
      %v6516 = vld [vmem:[#allocation2 + $0x10f] sm:$0xff]
      %v6517 = vld [vmem:[#allocation2 + $0x117] sm:$0xff]
      %v6518 = vld [vmem:[#allocation2 + $0x11f] sm:$0xff]
      %v6519 = vld [vmem:[#allocation2 + $0x127] sm:$0xff]
      %v6520 = vpack.c.bf16 %v6489, %v6488
      %v6521 = vpack.c.bf16 %v6491, %v6490
      %v6522 = vpack.c.bf16 %v6493, %v6492
      %v6523 = vpack.c.bf16 %v6495, %v6494
      %v6524 = vpack.c.bf16 %v6497, %v6496
      %v6525 = vpack.c.bf16 %v6499, %v6498
      %v6526 = vpack.c.bf16 %v6501, %v6500
      %v6527 = vpack.c.bf16 %v6503, %v6502
      %v6528 = vpack.c.bf16 %v6505, %v6504
      %v6529 = vpack.c.bf16 %v6507, %v6506
      %v6530 = vpack.c.bf16 %v6509, %v6508
      %v6531 = vpack.c.bf16 %v6511, %v6510
      %v6532 = vpack.c.bf16 %v6513, %v6512
      %v6533 = vpack.c.bf16 %v6515, %v6514
      %v6534 = vpack.c.bf16 %v6517, %v6516
      %v6535 = vpack.c.bf16 %v6519, %v6518
      %v6536 = vmul.bf16 %v6520, %v4453
      %v6537 = vmul.bf16 %v6521, %v4454
      %v6538 = vmul.bf16 %v6522, %v4455
      %v6539 = vmul.bf16 %v6523, %v4456
      %v6540 = vmul.bf16 %v6524, %v4457
      %v6541 = vmul.bf16 %v6525, %v4458
      %v6542 = vmul.bf16 %v6526, %v4459
      %v6543 = vmul.bf16 %v6527, %v4460
      %v6544 = vmul.bf16 %v6528, %v4461
      %v6545 = vmul.bf16 %v6529, %v4462
      %v6546 = vmul.bf16 %v6530, %v4463
      %v6547 = vmul.bf16 %v6531, %v4464
      %v6548 = vmul.bf16 %v6532, %v4465
      %v6549 = vmul.bf16 %v6533, %v4466
      %v6550 = vmul.bf16 %v6534, %v4467
      %v6551 = vmul.bf16 %v6535, %v4468
      %s6552 = scalar_lea.vmem %s5, 384
      %v6553 = vld [vmem:[%s6552] sm:$0xf]
      %v6554 = vld [vmem:[%s6552 + $0x4] sm:$0xf]
      %v6555 = vld [vmem:[%s6552 + $0x8] sm:$0xf]
      %v6556 = vld [vmem:[%s6552 + $0xc] sm:$0xf]
      %v6557 = vld [vmem:[%s6552 + $0x10] sm:$0xf]
      %v6558 = vld [vmem:[%s6552 + $0x14] sm:$0xf]
      %v6559 = vld [vmem:[%s6552 + $0x18] sm:$0xf]
      %v6560 = vld [vmem:[%s6552 + $0x1c] sm:$0xf]
      %v6561 = vld [vmem:[%s6552 + $0x20] sm:$0xf]
      %v6562 = vld [vmem:[%s6552 + $0x24] sm:$0xf]
      %v6563 = vld [vmem:[%s6552 + $0x28] sm:$0xf]
      %v6564 = vld [vmem:[%s6552 + $0x2c] sm:$0xf]
      %v6565 = vld [vmem:[%s6552 + $0x30] sm:$0xf]
      %v6566 = vld [vmem:[%s6552 + $0x34] sm:$0xf]
      %v6567 = vld [vmem:[%s6552 + $0x38] sm:$0xf]
      %v6568 = vld [vmem:[%s6552 + $0x3c] sm:$0xf]
      %v6585 = vunpack.c.l.b16 %v6553
      %v6586 = vunpack.c.l.b16 %v6554
      %v6587 = vunpack.c.l.b16 %v6555
      %v6588 = vunpack.c.l.b16 %v6556
      %v6589 = vunpack.c.l.b16 %v6557
      %v6590 = vunpack.c.l.b16 %v6558
      %v6591 = vunpack.c.l.b16 %v6559
      %v6592 = vunpack.c.l.b16 %v6560
      %v6593 = vunpack.c.l.b16 %v6561
      %v6594 = vunpack.c.l.b16 %v6562
      %v6595 = vunpack.c.l.b16 %v6563
      %v6596 = vunpack.c.l.b16 %v6564
      %v6597 = vunpack.c.l.b16 %v6565
      %v6598 = vunpack.c.l.b16 %v6566
      %v6599 = vunpack.c.l.b16 %v6567
      %v6600 = vunpack.c.l.b16 %v6568
      %v6601 = vpack.c.b16 %v6586, %v6585
      %v6602 = vpack.c.b16 %v6588, %v6587
      %v6603 = vpack.c.b16 %v6590, %v6589
      %v6604 = vpack.c.b16 %v6592, %v6591
      %v6605 = vpack.c.b16 %v6594, %v6593
      %v6606 = vpack.c.b16 %v6596, %v6595
      %v6607 = vpack.c.b16 %v6598, %v6597
      %v6608 = vpack.c.b16 %v6600, %v6599
      %6617 = vmatprep.subr.bf16.mxu0 0
      %6618 = vmatpush1.bf16.msra.mxu0 %v6608
      %6619 = vmatprep.subr.bf16.mxu0 0
      %6620 = vmatpush1.bf16.msra.mxu0 %v6607
      %6621 = vmatprep.subr.bf16.mxu0 0
      %6622 = vmatpush1.bf16.msra.mxu0 %v6606
      %6623 = vmatprep.subr.bf16.mxu0 0
      %6624 = vmatpush1.bf16.msra.mxu0 %v6605
      %6625 = vmatprep.subr.bf16.mxu0 0
      %6626 = vmatpush1.bf16.msra.mxu0 %v6604
      %6627 = vmatprep.subr.bf16.mxu0 0
      %6628 = vmatpush1.bf16.msra.mxu0 %v6603
      %6629 = vmatprep.subr.bf16.mxu0 0
      %6630 = vmatpush1.bf16.msra.mxu0 %v6602
      %6631 = vmatprep.subr.bf16.mxu0 0
      %6632 = vmatpush1.bf16.msra.mxu0 %v6601
      %6633 = vmatprep.subr.bf16.mxu0 0
      %6634 = vmatpush2.bf16.msra.mxu0 0
      %6635 = vmatprep.subr.bf16.mxu0 0
      %6636 = vmatpush2.bf16.msra.mxu0 0
      %6637 = vmatprep.subr.bf16.mxu0 0
      %6638 = vmatpush2.bf16.msra.mxu0 0
      %6639 = vmatprep.subr.bf16.mxu0 0
      %6640 = vmatpush2.bf16.msra.mxu0 0
      %6641 = vmatprep.subr.bf16.mxu0 0
      %6642 = vmatpush2.bf16.msra.mxu0 0
      %6643 = vmatprep.subr.bf16.mxu0 0
      %6644 = vmatpush2.bf16.msra.mxu0 0
      %6645 = vmatprep.subr.bf16.mxu0 0
      %6646 = vmatpush2.bf16.msra.mxu0 0
      %6647 = vmatprep.subr.bf16.mxu0 0
      %6648 = vmatpush2.bf16.msra.mxu0 0
      %6649 = vmatprep.mubr.bf16.mxu0 0
      %6650 = vmatmul.mubr.bf16.gmra.mxu0 %v6536
      %v6651 = vpop.f32.mrf.mxu0
      %v6652 = vadd.f32 0.0, %v6651
      %v6653 = vpop.f32.mrf.mxu0
      %v6654 = vpop.f32.mrf.mxu0
      %v6655 = vadd.f32 0.0, %v6654
      %v6656 = vpop.f32.mrf.mxu0
      %6657 = vmatprep.mubr.bf16.mxu0 0
      %6658 = vmatmul.mubr.bf16.gmra.mxu0 %v6537
      %v6659 = vpop.f32.mrf.mxu0
      %v6660 = vadd.f32 0.0, %v6659
      %v6661 = vpop.f32.mrf.mxu0
      %v6662 = vpop.f32.mrf.mxu0
      %v6663 = vadd.f32 0.0, %v6662
      %v6664 = vpop.f32.mrf.mxu0
      %6665 = vmatprep.mubr.bf16.mxu0 0
      %6666 = vmatmul.mubr.bf16.gmra.mxu0 %v6538
      %v6667 = vpop.f32.mrf.mxu0
      %v6668 = vadd.f32 0.0, %v6667
      %v6669 = vpop.f32.mrf.mxu0
      %v6670 = vpop.f32.mrf.mxu0
      %v6671 = vadd.f32 0.0, %v6670
      %v6672 = vpop.f32.mrf.mxu0
      %6673 = vmatprep.mubr.bf16.mxu0 0
      %6674 = vmatmul.mubr.bf16.gmra.mxu0 %v6539
      %v6675 = vpop.f32.mrf.mxu0
      %v6676 = vadd.f32 0.0, %v6675
      %v6677 = vpop.f32.mrf.mxu0
      %v6678 = vpop.f32.mrf.mxu0
      %v6679 = vadd.f32 0.0, %v6678
      %v6680 = vpop.f32.mrf.mxu0
      %6681 = vmatprep.mubr.bf16.mxu0 0
      %6682 = vmatmul.mubr.bf16.gmra.mxu0 %v6540
      %v6683 = vpop.f32.mrf.mxu0
      %v6684 = vadd.f32 0.0, %v6683
      %v6685 = vpop.f32.mrf.mxu0
      %v6686 = vpop.f32.mrf.mxu0
      %v6687 = vadd.f32 0.0, %v6686
      %v6688 = vpop.f32.mrf.mxu0
      %6689 = vmatprep.mubr.bf16.mxu0 0
      %6690 = vmatmul.mubr.bf16.gmra.mxu0 %v6541
      %v6691 = vpop.f32.mrf.mxu0
      %v6692 = vadd.f32 0.0, %v6691
      %v6693 = vpop.f32.mrf.mxu0
      %v6694 = vpop.f32.mrf.mxu0
      %v6695 = vadd.f32 0.0, %v6694
      %v6696 = vpop.f32.mrf.mxu0
      %6697 = vmatprep.mubr.bf16.mxu0 0
      %6698 = vmatmul.mubr.bf16.gmra.mxu0 %v6542
      %v6699 = vpop.f32.mrf.mxu0
      %v6700 = vadd.f32 0.0, %v6699
      %v6701 = vpop.f32.mrf.mxu0
      %v6702 = vpop.f32.mrf.mxu0
      %v6703 = vadd.f32 0.0, %v6702
      %v6704 = vpop.f32.mrf.mxu0
      %6705 = vmatprep.mubr.bf16.mxu0 0
      %6706 = vmatmul.mubr.bf16.gmra.mxu0 %v6543
      %v6707 = vpop.f32.mrf.mxu0
      %v6708 = vadd.f32 0.0, %v6707
      %v6709 = vpop.f32.mrf.mxu0
      %v6710 = vpop.f32.mrf.mxu0
      %v6711 = vadd.f32 0.0, %v6710
      %v6712 = vpop.f32.mrf.mxu0
      %6713 = vmatprep.mubr.bf16.mxu0 0
      %6714 = vmatmul.mubr.bf16.gmra.mxu0 %v6544
      %v6715 = vpop.f32.mrf.mxu0
      %v6716 = vadd.f32 0.0, %v6715
      %v6717 = vpop.f32.mrf.mxu0
      %v6718 = vpop.f32.mrf.mxu0
      %v6719 = vadd.f32 0.0, %v6718
      %v6720 = vpop.f32.mrf.mxu0
      %6721 = vmatprep.mubr.bf16.mxu0 0
      %6722 = vmatmul.mubr.bf16.gmra.mxu0 %v6545
      %v6723 = vpop.f32.mrf.mxu0
      %v6724 = vadd.f32 0.0, %v6723
      %v6725 = vpop.f32.mrf.mxu0
      %v6726 = vpop.f32.mrf.mxu0
      %v6727 = vadd.f32 0.0, %v6726
      %v6728 = vpop.f32.mrf.mxu0
      %6729 = vmatprep.mubr.bf16.mxu0 0
      %6730 = vmatmul.mubr.bf16.gmra.mxu0 %v6546
      %v6731 = vpop.f32.mrf.mxu0
      %v6732 = vadd.f32 0.0, %v6731
      %v6733 = vpop.f32.mrf.mxu0
      %v6734 = vpop.f32.mrf.mxu0
      %v6735 = vadd.f32 0.0, %v6734
      %v6736 = vpop.f32.mrf.mxu0
      %6737 = vmatprep.mubr.bf16.mxu0 0
      %6738 = vmatmul.mubr.bf16.gmra.mxu0 %v6547
      %v6739 = vpop.f32.mrf.mxu0
      %v6740 = vadd.f32 0.0, %v6739
      %v6741 = vpop.f32.mrf.mxu0
      %v6742 = vpop.f32.mrf.mxu0
      %v6743 = vadd.f32 0.0, %v6742
      %v6744 = vpop.f32.mrf.mxu0
      %6745 = vmatprep.mubr.bf16.mxu0 0
      %6746 = vmatmul.mubr.bf16.gmra.mxu0 %v6548
      %v6747 = vpop.f32.mrf.mxu0
      %v6748 = vadd.f32 0.0, %v6747
      %v6749 = vpop.f32.mrf.mxu0
      %v6750 = vpop.f32.mrf.mxu0
      %v6751 = vadd.f32 0.0, %v6750
      %v6752 = vpop.f32.mrf.mxu0
      %6753 = vmatprep.mubr.bf16.mxu0 0
      %6754 = vmatmul.mubr.bf16.gmra.mxu0 %v6549
      %v6755 = vpop.f32.mrf.mxu0
      %v6756 = vadd.f32 0.0, %v6755
      %v6757 = vpop.f32.mrf.mxu0
      %v6758 = vpop.f32.mrf.mxu0
      %v6759 = vadd.f32 0.0, %v6758
      %v6760 = vpop.f32.mrf.mxu0
      %6761 = vmatprep.mubr.bf16.mxu0 0
      %6762 = vmatmul.mubr.bf16.gmra.mxu0 %v6550
      %v6763 = vpop.f32.mrf.mxu0
      %v6764 = vadd.f32 0.0, %v6763
      %v6765 = vpop.f32.mrf.mxu0
      %v6766 = vpop.f32.mrf.mxu0
      %v6767 = vadd.f32 0.0, %v6766
      %v6768 = vpop.f32.mrf.mxu0
      %6769 = vmatprep.mubr.bf16.mxu0 0
      %6770 = vmatmul.mubr.bf16.gmra.mxu0 %v6551
      %v6771 = vpop.f32.mrf.mxu0
      %v6772 = vadd.f32 0.0, %v6771
      %v6773 = vpop.f32.mrf.mxu0
      %v6774 = vpop.f32.mrf.mxu0
      %v6775 = vadd.f32 0.0, %v6774
      %v6776 = vpop.f32.mrf.mxu0
      %6777 = vdwg.mxu0
      %v6778 = vadd.f32 %v6456, %v6652
      %v6779 = vadd.f32 %v6457, %v6655
      %v6780 = vadd.f32 %v6458, %v6660
      %v6781 = vadd.f32 %v6459, %v6663
      %v6782 = vadd.f32 %v6460, %v6668
      %v6783 = vadd.f32 %v6461, %v6671
      %v6784 = vadd.f32 %v6462, %v6676
      %v6785 = vadd.f32 %v6463, %v6679
      %v6786 = vadd.f32 %v6464, %v6684
      %v6787 = vadd.f32 %v6465, %v6687
      %v6788 = vadd.f32 %v6466, %v6692
      %v6789 = vadd.f32 %v6467, %v6695
      %v6790 = vadd.f32 %v6468, %v6700
      %v6791 = vadd.f32 %v6469, %v6703
      %v6792 = vadd.f32 %v6470, %v6708
      %v6793 = vadd.f32 %v6471, %v6711
      %v6794 = vadd.f32 %v6472, %v6716
      %v6795 = vadd.f32 %v6473, %v6719
      %v6796 = vadd.f32 %v6474, %v6724
      %v6797 = vadd.f32 %v6475, %v6727
      %v6798 = vadd.f32 %v6476, %v6732
      %v6799 = vadd.f32 %v6477, %v6735
      %v6800 = vadd.f32 %v6478, %v6740
      %v6801 = vadd.f32 %v6479, %v6743
      %v6802 = vadd.f32 %v6480, %v6748
      %v6803 = vadd.f32 %v6481, %v6751
      %v6804 = vadd.f32 %v6482, %v6756
      %v6805 = vadd.f32 %v6483, %v6759
      %v6806 = vadd.f32 %v6484, %v6764
      %v6807 = vadd.f32 %v6485, %v6767
      %v6808 = vadd.f32 %v6486, %v6772
      %v6809 = vadd.f32 %v6487, %v6775
      %v6810 = vld [vmem:[#allocation2 + $0x30] sm:$0xff]
      %v6811 = vld [vmem:[#allocation2 + $0x38] sm:$0xff]
      %v6812 = vld [vmem:[#allocation2 + $0x40] sm:$0xff]
      %v6813 = vld [vmem:[#allocation2 + $0x48] sm:$0xff]
      %v6814 = vld [vmem:[#allocation2 + $0x50] sm:$0xff]
      %v6815 = vld [vmem:[#allocation2 + $0x58] sm:$0xff]
      %v6816 = vld [vmem:[#allocation2 + $0x60] sm:$0xff]
      %v6817 = vld [vmem:[#allocation2 + $0x68] sm:$0xff]
      %v6818 = vld [vmem:[#allocation2 + $0x70] sm:$0xff]
      %v6819 = vld [vmem:[#allocation2 + $0x78] sm:$0xff]
      %v6820 = vld [vmem:[#allocation2 + $0x80] sm:$0xff]
      %v6821 = vld [vmem:[#allocation2 + $0x88] sm:$0xff]
      %v6822 = vld [vmem:[#allocation2 + $0x90] sm:$0xff]
      %v6823 = vld [vmem:[#allocation2 + $0x98] sm:$0xff]
      %v6824 = vld [vmem:[#allocation2 + $0xa0] sm:$0xff]
      %v6825 = vld [vmem:[#allocation2 + $0xa8] sm:$0xff]
      %v6826 = vld [vmem:[#allocation2 + $0xb0] sm:$0xff]
      %v6827 = vld [vmem:[#allocation2 + $0xb8] sm:$0xff]
      %v6828 = vld [vmem:[#allocation2 + $0xc0] sm:$0xff]
      %v6829 = vld [vmem:[#allocation2 + $0xc8] sm:$0xff]
      %v6830 = vld [vmem:[#allocation2 + $0xd0] sm:$0xff]
      %v6831 = vld [vmem:[#allocation2 + $0xd8] sm:$0xff]
      %v6832 = vld [vmem:[#allocation2 + $0xe0] sm:$0xff]
      %v6833 = vld [vmem:[#allocation2 + $0xe8] sm:$0xff]
      %v6834 = vld [vmem:[#allocation2 + $0xf0] sm:$0xff]
      %v6835 = vld [vmem:[#allocation2 + $0xf8] sm:$0xff]
      %v6836 = vld [vmem:[#allocation2 + $0x100] sm:$0xff]
      %v6837 = vld [vmem:[#allocation2 + $0x108] sm:$0xff]
      %v6838 = vld [vmem:[#allocation2 + $0x110] sm:$0xff]
      %v6839 = vld [vmem:[#allocation2 + $0x118] sm:$0xff]
      %v6840 = vld [vmem:[#allocation2 + $0x120] sm:$0xff]
      %v6841 = vld [vmem:[#allocation2 + $0x128] sm:$0xff]
      %v6842 = vpack.c.bf16 %v6811, %v6810
      %v6843 = vpack.c.bf16 %v6813, %v6812
      %v6844 = vpack.c.bf16 %v6815, %v6814
      %v6845 = vpack.c.bf16 %v6817, %v6816
      %v6846 = vpack.c.bf16 %v6819, %v6818
      %v6847 = vpack.c.bf16 %v6821, %v6820
      %v6848 = vpack.c.bf16 %v6823, %v6822
      %v6849 = vpack.c.bf16 %v6825, %v6824
      %v6850 = vpack.c.bf16 %v6827, %v6826
      %v6851 = vpack.c.bf16 %v6829, %v6828
      %v6852 = vpack.c.bf16 %v6831, %v6830
      %v6853 = vpack.c.bf16 %v6833, %v6832
      %v6854 = vpack.c.bf16 %v6835, %v6834
      %v6855 = vpack.c.bf16 %v6837, %v6836
      %v6856 = vpack.c.bf16 %v6839, %v6838
      %v6857 = vpack.c.bf16 %v6841, %v6840
      %s6858 = scalar_lea.vmem %s5, 448
      %v6859 = vld [vmem:[%s6858] sm:$0xf]
      %v6860 = vld [vmem:[%s6858 + $0x4] sm:$0xf]
      %v6861 = vld [vmem:[%s6858 + $0x8] sm:$0xf]
      %v6862 = vld [vmem:[%s6858 + $0xc] sm:$0xf]
      %v6863 = vld [vmem:[%s6858 + $0x10] sm:$0xf]
      %v6864 = vld [vmem:[%s6858 + $0x14] sm:$0xf]
      %v6865 = vld [vmem:[%s6858 + $0x18] sm:$0xf]
      %v6866 = vld [vmem:[%s6858 + $0x1c] sm:$0xf]
      %v6867 = vld [vmem:[%s6858 + $0x20] sm:$0xf]
      %v6868 = vld [vmem:[%s6858 + $0x24] sm:$0xf]
      %v6869 = vld [vmem:[%s6858 + $0x28] sm:$0xf]
      %v6870 = vld [vmem:[%s6858 + $0x2c] sm:$0xf]
      %v6871 = vld [vmem:[%s6858 + $0x30] sm:$0xf]
      %v6872 = vld [vmem:[%s6858 + $0x34] sm:$0xf]
      %v6873 = vld [vmem:[%s6858 + $0x38] sm:$0xf]
      %v6874 = vld [vmem:[%s6858 + $0x3c] sm:$0xf]
      %v6891 = vunpack.c.l.b16 %v6859
      %v6892 = vunpack.c.l.b16 %v6860
      %v6893 = vunpack.c.l.b16 %v6861
      %v6894 = vunpack.c.l.b16 %v6862
      %v6895 = vunpack.c.l.b16 %v6863
      %v6896 = vunpack.c.l.b16 %v6864
      %v6897 = vunpack.c.l.b16 %v6865
      %v6898 = vunpack.c.l.b16 %v6866
      %v6899 = vunpack.c.l.b16 %v6867
      %v6900 = vunpack.c.l.b16 %v6868
      %v6901 = vunpack.c.l.b16 %v6869
      %v6902 = vunpack.c.l.b16 %v6870
      %v6903 = vunpack.c.l.b16 %v6871
      %v6904 = vunpack.c.l.b16 %v6872
      %v6905 = vunpack.c.l.b16 %v6873
      %v6906 = vunpack.c.l.b16 %v6874
      %v6907 = vpack.c.b16 %v6892, %v6891
      %v6908 = vpack.c.b16 %v6894, %v6893
      %v6909 = vpack.c.b16 %v6896, %v6895
      %v6910 = vpack.c.b16 %v6898, %v6897
      %v6911 = vpack.c.b16 %v6900, %v6899
      %v6912 = vpack.c.b16 %v6902, %v6901
      %v6913 = vpack.c.b16 %v6904, %v6903
      %v6914 = vpack.c.b16 %v6906, %v6905
      %6923 = vmatprep.subr.bf16.mxu0 0
      %6924 = vmatpush1.bf16.msra.mxu0 %v6914
      %6925 = vmatprep.subr.bf16.mxu0 0
      %6926 = vmatpush1.bf16.msra.mxu0 %v6913
      %6927 = vmatprep.subr.bf16.mxu0 0
      %6928 = vmatpush1.bf16.msra.mxu0 %v6912
      %6929 = vmatprep.subr.bf16.mxu0 0
      %6930 = vmatpush1.bf16.msra.mxu0 %v6911
      %6931 = vmatprep.subr.bf16.mxu0 0
      %6932 = vmatpush1.bf16.msra.mxu0 %v6910
      %6933 = vmatprep.subr.bf16.mxu0 0
      %6934 = vmatpush1.bf16.msra.mxu0 %v6909
      %6935 = vmatprep.subr.bf16.mxu0 0
      %6936 = vmatpush1.bf16.msra.mxu0 %v6908
      %6937 = vmatprep.subr.bf16.mxu0 0
      %6938 = vmatpush1.bf16.msra.mxu0 %v6907
      %6939 = vmatprep.subr.bf16.mxu0 0
      %6940 = vmatpush2.bf16.msra.mxu0 0
      %6941 = vmatprep.subr.bf16.mxu0 0
      %6942 = vmatpush2.bf16.msra.mxu0 0
      %6943 = vmatprep.subr.bf16.mxu0 0
      %6944 = vmatpush2.bf16.msra.mxu0 0
      %6945 = vmatprep.subr.bf16.mxu0 0
      %6946 = vmatpush2.bf16.msra.mxu0 0
      %6947 = vmatprep.subr.bf16.mxu0 0
      %6948 = vmatpush2.bf16.msra.mxu0 0
      %6949 = vmatprep.subr.bf16.mxu0 0
      %6950 = vmatpush2.bf16.msra.mxu0 0
      %6951 = vmatprep.subr.bf16.mxu0 0
      %6952 = vmatpush2.bf16.msra.mxu0 0
      %6953 = vmatprep.subr.bf16.mxu0 0
      %6954 = vmatpush2.bf16.msra.mxu0 0
      %6955 = vmatprep.mubr.bf16.mxu0 0
      %6956 = vmatmul.mubr.bf16.gmra.mxu0 %v6842
      %v6957 = vpop.f32.mrf.mxu0
      %v6958 = vadd.f32 0.0, %v6957
      %v6959 = vpop.f32.mrf.mxu0
      %v6960 = vpop.f32.mrf.mxu0
      %v6961 = vadd.f32 0.0, %v6960
      %v6962 = vpop.f32.mrf.mxu0
      %6963 = vmatprep.mubr.bf16.mxu0 0
      %6964 = vmatmul.mubr.bf16.gmra.mxu0 %v6843
      %v6965 = vpop.f32.mrf.mxu0
      %v6966 = vadd.f32 0.0, %v6965
      %v6967 = vpop.f32.mrf.mxu0
      %v6968 = vpop.f32.mrf.mxu0
      %v6969 = vadd.f32 0.0, %v6968
      %v6970 = vpop.f32.mrf.mxu0
      %6971 = vmatprep.mubr.bf16.mxu0 0
      %6972 = vmatmul.mubr.bf16.gmra.mxu0 %v6844
      %v6973 = vpop.f32.mrf.mxu0
      %v6974 = vadd.f32 0.0, %v6973
      %v6975 = vpop.f32.mrf.mxu0
      %v6976 = vpop.f32.mrf.mxu0
      %v6977 = vadd.f32 0.0, %v6976
      %v6978 = vpop.f32.mrf.mxu0
      %6979 = vmatprep.mubr.bf16.mxu0 0
      %6980 = vmatmul.mubr.bf16.gmra.mxu0 %v6845
      %v6981 = vpop.f32.mrf.mxu0
      %v6982 = vadd.f32 0.0, %v6981
      %v6983 = vpop.f32.mrf.mxu0
      %v6984 = vpop.f32.mrf.mxu0
      %v6985 = vadd.f32 0.0, %v6984
      %v6986 = vpop.f32.mrf.mxu0
      %6987 = vmatprep.mubr.bf16.mxu0 0
      %6988 = vmatmul.mubr.bf16.gmra.mxu0 %v6846
      %v6989 = vpop.f32.mrf.mxu0
      %v6990 = vadd.f32 0.0, %v6989
      %v6991 = vpop.f32.mrf.mxu0
      %v6992 = vpop.f32.mrf.mxu0
      %v6993 = vadd.f32 0.0, %v6992
      %v6994 = vpop.f32.mrf.mxu0
      %6995 = vmatprep.mubr.bf16.mxu0 0
      %6996 = vmatmul.mubr.bf16.gmra.mxu0 %v6847
      %v6997 = vpop.f32.mrf.mxu0
      %v6998 = vadd.f32 0.0, %v6997
      %v6999 = vpop.f32.mrf.mxu0
      %v7000 = vpop.f32.mrf.mxu0
      %v7001 = vadd.f32 0.0, %v7000
      %v7002 = vpop.f32.mrf.mxu0
      %7003 = vmatprep.mubr.bf16.mxu0 0
      %7004 = vmatmul.mubr.bf16.gmra.mxu0 %v6848
      %v7005 = vpop.f32.mrf.mxu0
      %v7006 = vadd.f32 0.0, %v7005
      %v7007 = vpop.f32.mrf.mxu0
      %v7008 = vpop.f32.mrf.mxu0
      %v7009 = vadd.f32 0.0, %v7008
      %v7010 = vpop.f32.mrf.mxu0
      %7011 = vmatprep.mubr.bf16.mxu0 0
      %7012 = vmatmul.mubr.bf16.gmra.mxu0 %v6849
      %v7013 = vpop.f32.mrf.mxu0
      %v7014 = vadd.f32 0.0, %v7013
      %v7015 = vpop.f32.mrf.mxu0
      %v7016 = vpop.f32.mrf.mxu0
      %v7017 = vadd.f32 0.0, %v7016
      %v7018 = vpop.f32.mrf.mxu0
      %7019 = vmatprep.mubr.bf16.mxu0 0
      %7020 = vmatmul.mubr.bf16.gmra.mxu0 %v6850
      %v7021 = vpop.f32.mrf.mxu0
      %v7022 = vadd.f32 0.0, %v7021
      %v7023 = vpop.f32.mrf.mxu0
      %v7024 = vpop.f32.mrf.mxu0
      %v7025 = vadd.f32 0.0, %v7024
      %v7026 = vpop.f32.mrf.mxu0
      %7027 = vmatprep.mubr.bf16.mxu0 0
      %7028 = vmatmul.mubr.bf16.gmra.mxu0 %v6851
      %v7029 = vpop.f32.mrf.mxu0
      %v7030 = vadd.f32 0.0, %v7029
      %v7031 = vpop.f32.mrf.mxu0
      %v7032 = vpop.f32.mrf.mxu0
      %v7033 = vadd.f32 0.0, %v7032
      %v7034 = vpop.f32.mrf.mxu0
      %7035 = vmatprep.mubr.bf16.mxu0 0
      %7036 = vmatmul.mubr.bf16.gmra.mxu0 %v6852
      %v7037 = vpop.f32.mrf.mxu0
      %v7038 = vadd.f32 0.0, %v7037
      %v7039 = vpop.f32.mrf.mxu0
      %v7040 = vpop.f32.mrf.mxu0
      %v7041 = vadd.f32 0.0, %v7040
      %v7042 = vpop.f32.mrf.mxu0
      %7043 = vmatprep.mubr.bf16.mxu0 0
      %7044 = vmatmul.mubr.bf16.gmra.mxu0 %v6853
      %v7045 = vpop.f32.mrf.mxu0
      %v7046 = vadd.f32 0.0, %v7045
      %v7047 = vpop.f32.mrf.mxu0
      %v7048 = vpop.f32.mrf.mxu0
      %v7049 = vadd.f32 0.0, %v7048
      %v7050 = vpop.f32.mrf.mxu0
      %7051 = vmatprep.mubr.bf16.mxu0 0
      %7052 = vmatmul.mubr.bf16.gmra.mxu0 %v6854
      %v7053 = vpop.f32.mrf.mxu0
      %v7054 = vadd.f32 0.0, %v7053
      %v7055 = vpop.f32.mrf.mxu0
      %v7056 = vpop.f32.mrf.mxu0
      %v7057 = vadd.f32 0.0, %v7056
      %v7058 = vpop.f32.mrf.mxu0
      %7059 = vmatprep.mubr.bf16.mxu0 0
      %7060 = vmatmul.mubr.bf16.gmra.mxu0 %v6855
      %v7061 = vpop.f32.mrf.mxu0
      %v7062 = vadd.f32 0.0, %v7061
      %v7063 = vpop.f32.mrf.mxu0
      %v7064 = vpop.f32.mrf.mxu0
      %v7065 = vadd.f32 0.0, %v7064
      %v7066 = vpop.f32.mrf.mxu0
      %7067 = vmatprep.mubr.bf16.mxu0 0
      %7068 = vmatmul.mubr.bf16.gmra.mxu0 %v6856
      %v7069 = vpop.f32.mrf.mxu0
      %v7070 = vadd.f32 0.0, %v7069
      %v7071 = vpop.f32.mrf.mxu0
      %v7072 = vpop.f32.mrf.mxu0
      %v7073 = vadd.f32 0.0, %v7072
      %v7074 = vpop.f32.mrf.mxu0
      %7075 = vmatprep.mubr.bf16.mxu0 0
      %7076 = vmatmul.mubr.bf16.gmra.mxu0 %v6857
      %v7077 = vpop.f32.mrf.mxu0
      %v7078 = vadd.f32 0.0, %v7077
      %v7079 = vpop.f32.mrf.mxu0
      %v7080 = vpop.f32.mrf.mxu0
      %v7081 = vadd.f32 0.0, %v7080
      %v7082 = vpop.f32.mrf.mxu0
      %7083 = vdwg.mxu0
      %v7084 = vadd.f32 %v6778, %v6958
      %v7085 = vadd.f32 %v6779, %v6961
      %v7086 = vadd.f32 %v6780, %v6966
      %v7087 = vadd.f32 %v6781, %v6969
      %v7088 = vadd.f32 %v6782, %v6974
      %v7089 = vadd.f32 %v6783, %v6977
      %v7090 = vadd.f32 %v6784, %v6982
      %v7091 = vadd.f32 %v6785, %v6985
      %v7092 = vadd.f32 %v6786, %v6990
      %v7093 = vadd.f32 %v6787, %v6993
      %v7094 = vadd.f32 %v6788, %v6998
      %v7095 = vadd.f32 %v6789, %v7001
      %v7096 = vadd.f32 %v6790, %v7006
      %v7097 = vadd.f32 %v6791, %v7009
      %v7098 = vadd.f32 %v6792, %v7014
      %v7099 = vadd.f32 %v6793, %v7017
      %v7100 = vadd.f32 %v6794, %v7022
      %v7101 = vadd.f32 %v6795, %v7025
      %v7102 = vadd.f32 %v6796, %v7030
      %v7103 = vadd.f32 %v6797, %v7033
      %v7104 = vadd.f32 %v6798, %v7038
      %v7105 = vadd.f32 %v6799, %v7041
      %v7106 = vadd.f32 %v6800, %v7046
      %v7107 = vadd.f32 %v6801, %v7049
      %v7108 = vadd.f32 %v6802, %v7054
      %v7109 = vadd.f32 %v6803, %v7057
      %v7110 = vadd.f32 %v6804, %v7062
      %v7111 = vadd.f32 %v6805, %v7065
      %v7112 = vadd.f32 %v6806, %v7070
      %v7113 = vadd.f32 %v6807, %v7073
      %v7114 = vadd.f32 %v6808, %v7078
      %v7115 = vadd.f32 %v6809, %v7081
      %v7116 = vld [vmem:[#allocation2 + $0x31] sm:$0xff]
      %v7117 = vld [vmem:[#allocation2 + $0x39] sm:$0xff]
      %v7118 = vld [vmem:[#allocation2 + $0x41] sm:$0xff]
      %v7119 = vld [vmem:[#allocation2 + $0x49] sm:$0xff]
      %v7120 = vld [vmem:[#allocation2 + $0x51] sm:$0xff]
      %v7121 = vld [vmem:[#allocation2 + $0x59] sm:$0xff]
      %v7122 = vld [vmem:[#allocation2 + $0x61] sm:$0xff]
      %v7123 = vld [vmem:[#allocation2 + $0x69] sm:$0xff]
      %v7124 = vld [vmem:[#allocation2 + $0x71] sm:$0xff]
      %v7125 = vld [vmem:[#allocation2 + $0x79] sm:$0xff]
      %v7126 = vld [vmem:[#allocation2 + $0x81] sm:$0xff]
      %v7127 = vld [vmem:[#allocation2 + $0x89] sm:$0xff]
      %v7128 = vld [vmem:[#allocation2 + $0x91] sm:$0xff]
      %v7129 = vld [vmem:[#allocation2 + $0x99] sm:$0xff]
      %v7130 = vld [vmem:[#allocation2 + $0xa1] sm:$0xff]
      %v7131 = vld [vmem:[#allocation2 + $0xa9] sm:$0xff]
      %v7132 = vld [vmem:[#allocation2 + $0xb1] sm:$0xff]
      %v7133 = vld [vmem:[#allocation2 + $0xb9] sm:$0xff]
      %v7134 = vld [vmem:[#allocation2 + $0xc1] sm:$0xff]
      %v7135 = vld [vmem:[#allocation2 + $0xc9] sm:$0xff]
      %v7136 = vld [vmem:[#allocation2 + $0xd1] sm:$0xff]
      %v7137 = vld [vmem:[#allocation2 + $0xd9] sm:$0xff]
      %v7138 = vld [vmem:[#allocation2 + $0xe1] sm:$0xff]
      %v7139 = vld [vmem:[#allocation2 + $0xe9] sm:$0xff]
      %v7140 = vld [vmem:[#allocation2 + $0xf1] sm:$0xff]
      %v7141 = vld [vmem:[#allocation2 + $0xf9] sm:$0xff]
      %v7142 = vld [vmem:[#allocation2 + $0x101] sm:$0xff]
      %v7143 = vld [vmem:[#allocation2 + $0x109] sm:$0xff]
      %v7144 = vld [vmem:[#allocation2 + $0x111] sm:$0xff]
      %v7145 = vld [vmem:[#allocation2 + $0x119] sm:$0xff]
      %v7146 = vld [vmem:[#allocation2 + $0x121] sm:$0xff]
      %v7147 = vld [vmem:[#allocation2 + $0x129] sm:$0xff]
      %v7148 = vpack.c.bf16 %v7117, %v7116
      %v7149 = vpack.c.bf16 %v7119, %v7118
      %v7150 = vpack.c.bf16 %v7121, %v7120
      %v7151 = vpack.c.bf16 %v7123, %v7122
      %v7152 = vpack.c.bf16 %v7125, %v7124
      %v7153 = vpack.c.bf16 %v7127, %v7126
      %v7154 = vpack.c.bf16 %v7129, %v7128
      %v7155 = vpack.c.bf16 %v7131, %v7130
      %v7156 = vpack.c.bf16 %v7133, %v7132
      %v7157 = vpack.c.bf16 %v7135, %v7134
      %v7158 = vpack.c.bf16 %v7137, %v7136
      %v7159 = vpack.c.bf16 %v7139, %v7138
      %v7160 = vpack.c.bf16 %v7141, %v7140
      %v7161 = vpack.c.bf16 %v7143, %v7142
      %v7162 = vpack.c.bf16 %v7145, %v7144
      %v7163 = vpack.c.bf16 %v7147, %v7146
      %v7164 = vmul.bf16 %v7148, %v4565
      %v7165 = vmul.bf16 %v7149, %v4566
      %v7166 = vmul.bf16 %v7150, %v4567
      %v7167 = vmul.bf16 %v7151, %v4568
      %v7168 = vmul.bf16 %v7152, %v4569
      %v7169 = vmul.bf16 %v7153, %v4570
      %v7170 = vmul.bf16 %v7154, %v4571
      %v7171 = vmul.bf16 %v7155, %v4572
      %v7172 = vmul.bf16 %v7156, %v4573
      %v7173 = vmul.bf16 %v7157, %v4574
      %v7174 = vmul.bf16 %v7158, %v4575
      %v7175 = vmul.bf16 %v7159, %v4576
      %v7176 = vmul.bf16 %v7160, %v4577
      %v7177 = vmul.bf16 %v7161, %v4578
      %v7178 = vmul.bf16 %v7162, %v4579
      %v7179 = vmul.bf16 %v7163, %v4580
      %s7180 = scalar_lea.vmem %s5, 512
      %v7181 = vld [vmem:[%s7180] sm:$0xf]
      %v7182 = vld [vmem:[%s7180 + $0x4] sm:$0xf]
      %v7183 = vld [vmem:[%s7180 + $0x8] sm:$0xf]
      %v7184 = vld [vmem:[%s7180 + $0xc] sm:$0xf]
      %v7185 = vld [vmem:[%s7180 + $0x10] sm:$0xf]
      %v7186 = vld [vmem:[%s7180 + $0x14] sm:$0xf]
      %v7187 = vld [vmem:[%s7180 + $0x18] sm:$0xf]
      %v7188 = vld [vmem:[%s7180 + $0x1c] sm:$0xf]
      %v7189 = vld [vmem:[%s7180 + $0x20] sm:$0xf]
      %v7190 = vld [vmem:[%s7180 + $0x24] sm:$0xf]
      %v7191 = vld [vmem:[%s7180 + $0x28] sm:$0xf]
      %v7192 = vld [vmem:[%s7180 + $0x2c] sm:$0xf]
      %v7193 = vld [vmem:[%s7180 + $0x30] sm:$0xf]
      %v7194 = vld [vmem:[%s7180 + $0x34] sm:$0xf]
      %v7195 = vld [vmem:[%s7180 + $0x38] sm:$0xf]
      %v7196 = vld [vmem:[%s7180 + $0x3c] sm:$0xf]
      %v7213 = vunpack.c.l.b16 %v7181
      %v7214 = vunpack.c.l.b16 %v7182
      %v7215 = vunpack.c.l.b16 %v7183
      %v7216 = vunpack.c.l.b16 %v7184
      %v7217 = vunpack.c.l.b16 %v7185
      %v7218 = vunpack.c.l.b16 %v7186
      %v7219 = vunpack.c.l.b16 %v7187
      %v7220 = vunpack.c.l.b16 %v7188
      %v7221 = vunpack.c.l.b16 %v7189
      %v7222 = vunpack.c.l.b16 %v7190
      %v7223 = vunpack.c.l.b16 %v7191
      %v7224 = vunpack.c.l.b16 %v7192
      %v7225 = vunpack.c.l.b16 %v7193
      %v7226 = vunpack.c.l.b16 %v7194
      %v7227 = vunpack.c.l.b16 %v7195
      %v7228 = vunpack.c.l.b16 %v7196
      %v7229 = vpack.c.b16 %v7214, %v7213
      %v7230 = vpack.c.b16 %v7216, %v7215
      %v7231 = vpack.c.b16 %v7218, %v7217
      %v7232 = vpack.c.b16 %v7220, %v7219
      %v7233 = vpack.c.b16 %v7222, %v7221
      %v7234 = vpack.c.b16 %v7224, %v7223
      %v7235 = vpack.c.b16 %v7226, %v7225
      %v7236 = vpack.c.b16 %v7228, %v7227
      %7245 = vmatprep.subr.bf16.mxu0 0
      %7246 = vmatpush1.bf16.msra.mxu0 %v7236
      %7247 = vmatprep.subr.bf16.mxu0 0
      %7248 = vmatpush1.bf16.msra.mxu0 %v7235
      %7249 = vmatprep.subr.bf16.mxu0 0
      %7250 = vmatpush1.bf16.msra.mxu0 %v7234
      %7251 = vmatprep.subr.bf16.mxu0 0
      %7252 = vmatpush1.bf16.msra.mxu0 %v7233
      %7253 = vmatprep.subr.bf16.mxu0 0
      %7254 = vmatpush1.bf16.msra.mxu0 %v7232
      %7255 = vmatprep.subr.bf16.mxu0 0
      %7256 = vmatpush1.bf16.msra.mxu0 %v7231
      %7257 = vmatprep.subr.bf16.mxu0 0
      %7258 = vmatpush1.bf16.msra.mxu0 %v7230
      %7259 = vmatprep.subr.bf16.mxu0 0
      %7260 = vmatpush1.bf16.msra.mxu0 %v7229
      %7261 = vmatprep.subr.bf16.mxu0 0
      %7262 = vmatpush2.bf16.msra.mxu0 0
      %7263 = vmatprep.subr.bf16.mxu0 0
      %7264 = vmatpush2.bf16.msra.mxu0 0
      %7265 = vmatprep.subr.bf16.mxu0 0
      %7266 = vmatpush2.bf16.msra.mxu0 0
      %7267 = vmatprep.subr.bf16.mxu0 0
      %7268 = vmatpush2.bf16.msra.mxu0 0
      %7269 = vmatprep.subr.bf16.mxu0 0
      %7270 = vmatpush2.bf16.msra.mxu0 0
      %7271 = vmatprep.subr.bf16.mxu0 0
      %7272 = vmatpush2.bf16.msra.mxu0 0
      %7273 = vmatprep.subr.bf16.mxu0 0
      %7274 = vmatpush2.bf16.msra.mxu0 0
      %7275 = vmatprep.subr.bf16.mxu0 0
      %7276 = vmatpush2.bf16.msra.mxu0 0
      %7277 = vmatprep.mubr.bf16.mxu0 0
      %7278 = vmatmul.mubr.bf16.gmra.mxu0 %v7164
      %v7279 = vpop.f32.mrf.mxu0
      %v7280 = vadd.f32 0.0, %v7279
      %v7281 = vpop.f32.mrf.mxu0
      %v7282 = vpop.f32.mrf.mxu0
      %v7283 = vadd.f32 0.0, %v7282
      %v7284 = vpop.f32.mrf.mxu0
      %7285 = vmatprep.mubr.bf16.mxu0 0
      %7286 = vmatmul.mubr.bf16.gmra.mxu0 %v7165
      %v7287 = vpop.f32.mrf.mxu0
      %v7288 = vadd.f32 0.0, %v7287
      %v7289 = vpop.f32.mrf.mxu0
      %v7290 = vpop.f32.mrf.mxu0
      %v7291 = vadd.f32 0.0, %v7290
      %v7292 = vpop.f32.mrf.mxu0
      %7293 = vmatprep.mubr.bf16.mxu0 0
      %7294 = vmatmul.mubr.bf16.gmra.mxu0 %v7166
      %v7295 = vpop.f32.mrf.mxu0
      %v7296 = vadd.f32 0.0, %v7295
      %v7297 = vpop.f32.mrf.mxu0
      %v7298 = vpop.f32.mrf.mxu0
      %v7299 = vadd.f32 0.0, %v7298
      %v7300 = vpop.f32.mrf.mxu0
      %7301 = vmatprep.mubr.bf16.mxu0 0
      %7302 = vmatmul.mubr.bf16.gmra.mxu0 %v7167
      %v7303 = vpop.f32.mrf.mxu0
      %v7304 = vadd.f32 0.0, %v7303
      %v7305 = vpop.f32.mrf.mxu0
      %v7306 = vpop.f32.mrf.mxu0
      %v7307 = vadd.f32 0.0, %v7306
      %v7308 = vpop.f32.mrf.mxu0
      %7309 = vmatprep.mubr.bf16.mxu0 0
      %7310 = vmatmul.mubr.bf16.gmra.mxu0 %v7168
      %v7311 = vpop.f32.mrf.mxu0
      %v7312 = vadd.f32 0.0, %v7311
      %v7313 = vpop.f32.mrf.mxu0
      %v7314 = vpop.f32.mrf.mxu0
      %v7315 = vadd.f32 0.0, %v7314
      %v7316 = vpop.f32.mrf.mxu0
      %7317 = vmatprep.mubr.bf16.mxu0 0
      %7318 = vmatmul.mubr.bf16.gmra.mxu0 %v7169
      %v7319 = vpop.f32.mrf.mxu0
      %v7320 = vadd.f32 0.0, %v7319
      %v7321 = vpop.f32.mrf.mxu0
      %v7322 = vpop.f32.mrf.mxu0
      %v7323 = vadd.f32 0.0, %v7322
      %v7324 = vpop.f32.mrf.mxu0
      %7325 = vmatprep.mubr.bf16.mxu0 0
      %7326 = vmatmul.mubr.bf16.gmra.mxu0 %v7170
      %v7327 = vpop.f32.mrf.mxu0
      %v7328 = vadd.f32 0.0, %v7327
      %v7329 = vpop.f32.mrf.mxu0
      %v7330 = vpop.f32.mrf.mxu0
      %v7331 = vadd.f32 0.0, %v7330
      %v7332 = vpop.f32.mrf.mxu0
      %7333 = vmatprep.mubr.bf16.mxu0 0
      %7334 = vmatmul.mubr.bf16.gmra.mxu0 %v7171
      %v7335 = vpop.f32.mrf.mxu0
      %v7336 = vadd.f32 0.0, %v7335
      %v7337 = vpop.f32.mrf.mxu0
      %v7338 = vpop.f32.mrf.mxu0
      %v7339 = vadd.f32 0.0, %v7338
      %v7340 = vpop.f32.mrf.mxu0
      %7341 = vmatprep.mubr.bf16.mxu0 0
      %7342 = vmatmul.mubr.bf16.gmra.mxu0 %v7172
      %v7343 = vpop.f32.mrf.mxu0
      %v7344 = vadd.f32 0.0, %v7343
      %v7345 = vpop.f32.mrf.mxu0
      %v7346 = vpop.f32.mrf.mxu0
      %v7347 = vadd.f32 0.0, %v7346
      %v7348 = vpop.f32.mrf.mxu0
      %7349 = vmatprep.mubr.bf16.mxu0 0
      %7350 = vmatmul.mubr.bf16.gmra.mxu0 %v7173
      %v7351 = vpop.f32.mrf.mxu0
      %v7352 = vadd.f32 0.0, %v7351
      %v7353 = vpop.f32.mrf.mxu0
      %v7354 = vpop.f32.mrf.mxu0
      %v7355 = vadd.f32 0.0, %v7354
      %v7356 = vpop.f32.mrf.mxu0
      %7357 = vmatprep.mubr.bf16.mxu0 0
      %7358 = vmatmul.mubr.bf16.gmra.mxu0 %v7174
      %v7359 = vpop.f32.mrf.mxu0
      %v7360 = vadd.f32 0.0, %v7359
      %v7361 = vpop.f32.mrf.mxu0
      %v7362 = vpop.f32.mrf.mxu0
      %v7363 = vadd.f32 0.0, %v7362
      %v7364 = vpop.f32.mrf.mxu0
      %7365 = vmatprep.mubr.bf16.mxu0 0
      %7366 = vmatmul.mubr.bf16.gmra.mxu0 %v7175
      %v7367 = vpop.f32.mrf.mxu0
      %v7368 = vadd.f32 0.0, %v7367
      %v7369 = vpop.f32.mrf.mxu0
      %v7370 = vpop.f32.mrf.mxu0
      %v7371 = vadd.f32 0.0, %v7370
      %v7372 = vpop.f32.mrf.mxu0
      %7373 = vmatprep.mubr.bf16.mxu0 0
      %7374 = vmatmul.mubr.bf16.gmra.mxu0 %v7176
      %v7375 = vpop.f32.mrf.mxu0
      %v7376 = vadd.f32 0.0, %v7375
      %v7377 = vpop.f32.mrf.mxu0
      %v7378 = vpop.f32.mrf.mxu0
      %v7379 = vadd.f32 0.0, %v7378
      %v7380 = vpop.f32.mrf.mxu0
      %7381 = vmatprep.mubr.bf16.mxu0 0
      %7382 = vmatmul.mubr.bf16.gmra.mxu0 %v7177
      %v7383 = vpop.f32.mrf.mxu0
      %v7384 = vadd.f32 0.0, %v7383
      %v7385 = vpop.f32.mrf.mxu0
      %v7386 = vpop.f32.mrf.mxu0
      %v7387 = vadd.f32 0.0, %v7386
      %v7388 = vpop.f32.mrf.mxu0
      %7389 = vmatprep.mubr.bf16.mxu0 0
      %7390 = vmatmul.mubr.bf16.gmra.mxu0 %v7178
      %v7391 = vpop.f32.mrf.mxu0
      %v7392 = vadd.f32 0.0, %v7391
      %v7393 = vpop.f32.mrf.mxu0
      %v7394 = vpop.f32.mrf.mxu0
      %v7395 = vadd.f32 0.0, %v7394
      %v7396 = vpop.f32.mrf.mxu0
      %7397 = vmatprep.mubr.bf16.mxu0 0
      %7398 = vmatmul.mubr.bf16.gmra.mxu0 %v7179
      %v7399 = vpop.f32.mrf.mxu0
      %v7400 = vadd.f32 0.0, %v7399
      %v7401 = vpop.f32.mrf.mxu0
      %v7402 = vpop.f32.mrf.mxu0
      %v7403 = vadd.f32 0.0, %v7402
      %v7404 = vpop.f32.mrf.mxu0
      %7405 = vdwg.mxu0
      %v7406 = vadd.f32 %v7084, %v7280
      %v7407 = vadd.f32 %v7085, %v7283
      %v7408 = vadd.f32 %v7086, %v7288
      %v7409 = vadd.f32 %v7087, %v7291
      %v7410 = vadd.f32 %v7088, %v7296
      %v7411 = vadd.f32 %v7089, %v7299
      %v7412 = vadd.f32 %v7090, %v7304
      %v7413 = vadd.f32 %v7091, %v7307
      %v7414 = vadd.f32 %v7092, %v7312
      %v7415 = vadd.f32 %v7093, %v7315
      %v7416 = vadd.f32 %v7094, %v7320
      %v7417 = vadd.f32 %v7095, %v7323
      %v7418 = vadd.f32 %v7096, %v7328
      %v7419 = vadd.f32 %v7097, %v7331
      %v7420 = vadd.f32 %v7098, %v7336
      %v7421 = vadd.f32 %v7099, %v7339
      %v7422 = vadd.f32 %v7100, %v7344
      %v7423 = vadd.f32 %v7101, %v7347
      %v7424 = vadd.f32 %v7102, %v7352
      %v7425 = vadd.f32 %v7103, %v7355
      %v7426 = vadd.f32 %v7104, %v7360
      %v7427 = vadd.f32 %v7105, %v7363
      %v7428 = vadd.f32 %v7106, %v7368
      %v7429 = vadd.f32 %v7107, %v7371
      %v7430 = vadd.f32 %v7108, %v7376
      %v7431 = vadd.f32 %v7109, %v7379
      %v7432 = vadd.f32 %v7110, %v7384
      %v7433 = vadd.f32 %v7111, %v7387
      %v7434 = vadd.f32 %v7112, %v7392
      %v7435 = vadd.f32 %v7113, %v7395
      %v7436 = vadd.f32 %v7114, %v7400
      %v7437 = vadd.f32 %v7115, %v7403
      %7438 = vst [vmem:[%s657] sm:$0xff] %v7406
      %7439 = vst [vmem:[%s657 + $0x8] sm:$0xff] %v7407
      %7440 = vst [vmem:[%s657 + $0x10] sm:$0xff] %v7408
      %7441 = vst [vmem:[%s657 + $0x18] sm:$0xff] %v7409
      %7442 = vst [vmem:[%s657 + $0x20] sm:$0xff] %v7410
      %7443 = vst [vmem:[%s657 + $0x28] sm:$0xff] %v7411
      %7444 = vst [vmem:[%s657 + $0x30] sm:$0xff] %v7412
      %7445 = vst [vmem:[%s657 + $0x38] sm:$0xff] %v7413
      %7446 = vst [vmem:[%s657 + $0x40] sm:$0xff] %v7414
      %7447 = vst [vmem:[%s657 + $0x48] sm:$0xff] %v7415
      %7448 = vst [vmem:[%s657 + $0x50] sm:$0xff] %v7416
      %7449 = vst [vmem:[%s657 + $0x58] sm:$0xff] %v7417
      %7450 = vst [vmem:[%s657 + $0x60] sm:$0xff] %v7418
      %7451 = vst [vmem:[%s657 + $0x68] sm:$0xff] %v7419
      %7452 = vst [vmem:[%s657 + $0x70] sm:$0xff] %v7420
      %7453 = vst [vmem:[%s657 + $0x78] sm:$0xff] %v7421
      %7454 = vst [vmem:[%s657 + $0x80] sm:$0xff] %v7422
      %7455 = vst [vmem:[%s657 + $0x88] sm:$0xff] %v7423
      %7456 = vst [vmem:[%s657 + $0x90] sm:$0xff] %v7424
      %7457 = vst [vmem:[%s657 + $0x98] sm:$0xff] %v7425
      %7458 = vst [vmem:[%s657 + $0xa0] sm:$0xff] %v7426
      %7459 = vst [vmem:[%s657 + $0xa8] sm:$0xff] %v7427
      %7460 = vst [vmem:[%s657 + $0xb0] sm:$0xff] %v7428
      %7461 = vst [vmem:[%s657 + $0xb8] sm:$0xff] %v7429
      %7462 = vst [vmem:[%s657 + $0xc0] sm:$0xff] %v7430
      %7463 = vst [vmem:[%s657 + $0xc8] sm:$0xff] %v7431
      %7464 = vst [vmem:[%s657 + $0xd0] sm:$0xff] %v7432
      %7465 = vst [vmem:[%s657 + $0xd8] sm:$0xff] %v7433
      %7466 = vst [vmem:[%s657 + $0xe0] sm:$0xff] %v7434
      %7467 = vst [vmem:[%s657 + $0xe8] sm:$0xff] %v7435
      %7468 = vst [vmem:[%s657 + $0xf0] sm:$0xff] %v7436
      %7469 = vst [vmem:[%s657 + $0xf8] sm:$0xff] %v7437
      %p7470 = scmp.lt.s32.totalorder %s31, 1
      %s7471 = scalar_select %p7470, %s31, 1
      %s7472 = smul.addr %s7471, 32
      %s7473 = smul.addr %s7472, 8
      %s7474 = scalar_lea.vmem %s17, %s7473
      %p7475 = scmp.lt.s32.totalorder %s31, 1
      %s7476 = scalar_select %p7475, %s31, 1
      %s7477 = smul.addr %s7476, 8
      %s7478 = smul.addr %s7477, 8
      %s7479 = scalar_lea.vmem %s18, %s7478
      %p7480 = scmp.lt.s32.totalorder %s31, 1
      %s7481 = scalar_select %p7480, %s31, 1
      %s7482 = smul.addr %s7481, 2
      %s7483 = smul.addr %s7482, 8
      %s7484 = scalar_lea.vmem %s19, %s7483
      // Predicated region
      $region89: #{custom_swin_fpn_forward.1} parent=87 // pred_check
        %p7485 = pneg %p421
      $region90: #{custom_swin_fpn_forward.1} parent=87 // pred_check_branch
        %7487 = sbr.rel (%p7485) target = $region92
      $region91: #{custom_swin_fpn_forward.1} parent=87 // pred_region
        _
      $region92: #{custom_swin_fpn_forward.1} parent=87 // pred_fallthru
        _
      // Predicated region
      $region93: #{custom_swin_fpn_forward.1} parent=87 // pred_check
        %p7488 = pneg %p447
      $region94: #{custom_swin_fpn_forward.1} parent=87 // pred_check_branch
        %7490 = sbr.rel (%p7488) target = $region96
      $region95: #{custom_swin_fpn_forward.1} parent=87 // pred_region
        _
      $region96: #{custom_swin_fpn_forward.1} parent=87 // pred_fallthru
        _
      // Predicated region
      $region97: #{custom_swin_fpn_forward.1} parent=87 // pred_check
        %p7491 = pneg %p473
      $region98: #{custom_swin_fpn_forward.1} parent=87 // pred_check_branch
        %7493 = sbr.rel (%p7491) target = $region100
      $region99: #{custom_swin_fpn_forward.1} parent=87 // pred_region
        _
      $region100: #{custom_swin_fpn_forward.1} parent=87 // pred_fallthru
        _
    $region88: #{custom_swin_fpn_forward.1} parent=5 // pred_fallthru
      _
    %p7494 = scmp.le.s32.totalorder 2, %s26
    // Predicated region
    $region101: #{custom_swin_fpn_forward.1} parent=5 // pred_check
      %p7495 = pneg %p7494
    $region102: #{custom_swin_fpn_forward.1} parent=5 // pred_check_branch
      %7497 = sbr.rel (%p7495) target = $region104
    $region103: #{custom_swin_fpn_forward.1} parent=5 // pred_region
      %s7498 = ssub.s32 %s26, 2
      // Predicated region
      $region105: #{custom_swin_fpn_forward.1} parent=103 // pred_check
        %p7499 = pneg %p427
      $region106: #{custom_swin_fpn_forward.1} parent=103 // pred_check_branch
        %7501 = sbr.rel (%p7499) target = $region108
      $region107: #{custom_swin_fpn_forward.1} parent=103 // pred_region
        %p7502 = scmp.lt.s32.totalorder %s32, 1
        %s7503 = scalar_select %p7502, %s32, 1
        %s7504 = smul.addr %s7503, 32
        %s7505 = smul.addr %s7504, 8
        %s7506 = scalar_lea.vmem %s17, %s7505
      $region108: #{custom_swin_fpn_forward.1} parent=103 // pred_fallthru
        _
      // Predicated region
      $region109: #{custom_swin_fpn_forward.1} parent=103 // pred_check
        %p7507 = pneg %p453
      $region110: #{custom_swin_fpn_forward.1} parent=103 // pred_check_branch
        %7509 = sbr.rel (%p7507) target = $region112
      $region111: #{custom_swin_fpn_forward.1} parent=103 // pred_region
        %p7510 = scmp.lt.s32.totalorder %s32, 1
        %s7511 = scalar_select %p7510, %s32, 1
        %s7512 = smul.addr %s7511, 8
        %s7513 = smul.addr %s7512, 8
        %s7514 = scalar_lea.vmem %s18, %s7513
      $region112: #{custom_swin_fpn_forward.1} parent=103 // pred_fallthru
        _
      // Predicated region
      $region113: #{custom_swin_fpn_forward.1} parent=103 // pred_check
        %p7515 = pneg %p479
      $region114: #{custom_swin_fpn_forward.1} parent=103 // pred_check_branch
        %7517 = sbr.rel (%p7515) target = $region116
      $region115: #{custom_swin_fpn_forward.1} parent=103 // pred_region
        %p7518 = scmp.lt.s32.totalorder %s32, 1
        %s7519 = scalar_select %p7518, %s32, 1
        %s7520 = smul.addr %s7519, 2
        %s7521 = smul.addr %s7520, 8
        %s7522 = scalar_lea.vmem %s19, %s7521
      $region116: #{custom_swin_fpn_forward.1} parent=103 // pred_fallthru
        _
    $region104: #{custom_swin_fpn_forward.1} parent=5 // pred_fallthru
      _
  $region6: #{custom_swin_fpn_forward.1} parent=0 // loop_footer
    %s30 = sadd.s32 1, %s26
  $region7: #{custom_swin_fpn_forward.1} parent=0 // loop_footer_branch
    %25 = sbr.rel target = $region3
  $region8: #{custom_swin_fpn_forward.1} parent=0 // loop_exit
    _

</llo_original>
